<compile_context>
chip_gen: v7x
topology: tpu7x:2x2x1
jax: 0.10.0
libtpu: 0.0.40
codegen_flags: <defaults>
</compile_context>

<pallas_src>
import functools

import jax
import jax.numpy as jnp
from jax.experimental import pallas as pl
from jax.experimental.pallas import tpu as pltpu

LANE = 128                       # channel padding target (lane-dense blocks)
VMEM_LIMIT = 32 * 1024 * 1024    # explicit scoped-VMEM cap (safe on v5e/v6e/v7x)


def _round_up(x, m):
    return (x + m - 1) // m * m


def _act(y, slope):
    return jnp.where(y > 0, y, slope * y)


def _zero_pad_hw1(a):
    """Zero-pad a (H, W, C) in-kernel value by 1 on each spatial side."""
    H, W, C = a.shape
    zc = jnp.zeros((H, 1, C), a.dtype)
    a = jnp.concatenate([zc, a, zc], axis=1)          # (H, W+2, C)
    zr = jnp.zeros((1, W + 2, C), a.dtype)
    return jnp.concatenate([zr, a, zr], axis=0)       # (H+2, W+2, C)


def _conv_params():
    return pltpu.CompilerParams(
        dimension_semantics=("parallel",),
        vmem_limit_bytes=VMEM_LIMIT)


# --------------------------------------------------------------------------
# Pallas kernels (one image per grid step; 3x3 taps accumulated in-kernel)
# --------------------------------------------------------------------------
def _conv1_bn_kernel(H, W, Cin, slope,
                     x_ref, s1_ref, b1_ref, w_ref, s2_ref, b2_ref,
                     o_ref, acc_ref):
    # prologue: bn1 + act fused (zero padding applied AFTER the activation)
    a = _act(x_ref[...].astype(jnp.float32) * s1_ref[...] + b1_ref[...], slope)
    a = _zero_pad_hw1(a.astype(jnp.bfloat16))                   # (H+2, W+2, Cin)

    acc_ref[...] = jnp.zeros_like(acc_ref)
    for t in range(9):                                          # 3x3 taps
        dh, dw = t // 3, t % 3
        win = a[dh:dh + H, dw:dw + W, :].reshape(H * W, Cin)
        acc_ref[...] += jnp.dot(win, w_ref[t * Cin:(t + 1) * Cin, :],
                                preferred_element_type=jnp.float32)

    # epilogue: bn2 + act fused
    y = acc_ref[...] * s2_ref[...] + b2_ref[...]
    o_ref[...] = _act(y, slope).astype(o_ref.dtype)


def _conv2_identity_kernel(H, W, C, h_ref, r_ref, w_ref, o_ref, acc_ref):
    # conv2 (3x3, stride 1) fused with the identity-shortcut add.
    a = _zero_pad_hw1(h_ref[...])                               # (H+2, W+2, C)
    acc_ref[...] = r_ref[...].astype(jnp.float32)               # residual init
    for t in range(9):
        dh, dw = t // 3, t % 3
        win = a[dh:dh + H, dw:dw + W, :].reshape(H * W, C)
        acc_ref[...] += jnp.dot(win, w_ref[t * C:(t + 1) * C, :],
                                preferred_element_type=jnp.float32)
    o_ref[...] = acc_ref[...].astype(o_ref.dtype)


def _conv2_shortcut_kernel(Ho, Wo, C, hp, taps,
                           a_ref, xs_ref, wsc_ref, w_ref, o_ref, acc_ref):
    # conv2 (3x3, any stride via parity planes) fused with the 1x1-conv
    # shortcut: the accumulator is initialized with xs @ wsc (added once).
    acc_ref[...] = jnp.dot(xs_ref[...], wsc_ref[...],
                           preferred_element_type=jnp.float32)
    for t, (p, r, c) in enumerate(taps):
        row0 = p * hp + r
        win = a_ref[row0:row0 + Ho, c:c + Wo, :].reshape(Ho * Wo, C)
        acc_ref[...] += jnp.dot(win, w_ref[t * C:(t + 1) * C, :],
                                preferred_element_type=jnp.float32)
    o_ref[...] = acc_ref[...].astype(o_ref.dtype)


# --------------------------------------------------------------------------
# pallas_call wrappers
# --------------------------------------------------------------------------
def conv1_bn_act(x_p, s1, b1, w1m, s2, b2, slope):
    """conv1 (3x3, s=1, p=1) with bn1+act prologue and bn2+act epilogue."""
    N, H, W, Cin = x_p.shape
    K9, Cout = w1m.shape
    kern = functools.partial(_conv1_bn_kernel, H, W, Cin, slope)
    return pl.pallas_call(
        kern,
        out_shape=jax.ShapeDtypeStruct((N, H * W, Cout), jnp.bfloat16),
        grid=(N,),
        in_specs=[
            pl.BlockSpec((None, H, W, Cin), lambda n: (n, 0, 0, 0)),
            pl.BlockSpec((1, Cin), lambda n: (0, 0)),
            pl.BlockSpec((1, Cin), lambda n: (0, 0)),
            pl.BlockSpec((K9, Cout), lambda n: (0, 0)),   # weight: resident
            pl.BlockSpec((1, Cout), lambda n: (0, 0)),
            pl.BlockSpec((1, Cout), lambda n: (0, 0)),
        ],
        out_specs=pl.BlockSpec((None, H * W, Cout), lambda n: (n, 0, 0)),
        scratch_shapes=[pltpu.VMEM((H * W, Cout), jnp.float32)],
        compiler_params=_conv_params(),
    )(x_p, s1, b1, w1m, s2, b2)


def conv2_identity(h2, resid, w2m):
    """conv2 (3x3, s=1, p=1) fused with the identity-shortcut add."""
    N, H, W, C = h2.shape
    K9, Cout = w2m.shape
    kern = functools.partial(_conv2_identity_kernel, H, W, C)
    return pl.pallas_call(
        kern,
        out_shape=jax.ShapeDtypeStruct((N, H * W, Cout), jnp.float32),
        grid=(N,),
        in_specs=[
            pl.BlockSpec((None, H, W, C), lambda n: (n, 0, 0, 0)),
            pl.BlockSpec((None, H * W, Cout), lambda n: (n, 0, 0)),
            pl.BlockSpec((K9, Cout), lambda n: (0, 0)),
        ],
        out_specs=pl.BlockSpec((None, H * W, Cout), lambda n: (n, 0, 0)),
        scratch_shapes=[pltpu.VMEM((H * W, Cout), jnp.float32)],
        compiler_params=_conv_params(),
    )(h2, resid, w2m)


def conv2_shortcut(planes_in, taps, hp, Ho, Wo, xs, wsc, w2m):
    """conv2 (3x3, stride s via parity planes) fused with the 1x1 shortcut."""
    N, PH, wp, C = planes_in.shape
    K9, Cout = w2m.shape
    Csc = wsc.shape[0]
    kern = functools.partial(_conv2_shortcut_kernel, Ho, Wo, C, hp, taps)
    return pl.pallas_call(
        kern,
        out_shape=jax.ShapeDtypeStruct((N, Ho * Wo, Cout), jnp.float32),
        grid=(N,),
        in_specs=[
            pl.BlockSpec((None, PH, wp, C), lambda n: (n, 0, 0, 0)),
            pl.BlockSpec((None, Ho * Wo, Csc), lambda n: (n, 0, 0)),
            pl.BlockSpec((Csc, Cout), lambda n: (0, 0)),
            pl.BlockSpec((K9, Cout), lambda n: (0, 0)),
        ],
        out_specs=pl.BlockSpec((None, Ho * Wo, Cout), lambda n: (n, 0, 0)),
        scratch_shapes=[pltpu.VMEM((Ho * Wo, Cout), jnp.float32)],
        compiler_params=_conv_params(),
    )(planes_in, xs, wsc, w2m)


# --------------------------------------------------------------------------
# Plain-JAX glue: parameter folding/padding + parity-plane prep for stride>1
# --------------------------------------------------------------------------
def conv_weight_to_mat(w_oihw, cin_p, cout_p, dtype=jnp.bfloat16):
    """(O,I,kh,kw) -> zero-padded (kh*kw*cin_p, cout_p) in (kh,kw,cin) K order."""
    O, I, kh, kw = w_oihw.shape
    w = jnp.transpose(w_oihw, (2, 3, 1, 0))               # (kh,kw,I,O)
    w = jnp.pad(w, ((0, 0), (0, 0), (0, cin_p - I), (0, cout_p - O)))
    return w.reshape(kh * kw * cin_p, cout_p).astype(dtype)


def fold_bn(gamma, beta, mean, var, eps=1e-5):
    scale = gamma / jnp.sqrt(var + eps)
    bias = beta - mean * scale
    return scale, bias


def _pad_vec(v, n):
    return jnp.pad(v, (0, n - v.shape[0])).reshape(1, n).astype(jnp.float32)


def make_tap_planes(x_nhwc, stride):
    """Split the zero-padded (pad=1) tensor into stride-parity planes so each
    3x3 tap becomes a stride-1 window.  Planes are concatenated along rows:
    result (N, s*s*hp, wp, C); tap (dh,dw) -> plane (dh%s)*s+(dw%s) at offset
    (dh//s, dw//s)."""
    N, H, W, C = x_nhwc.shape
    s = stride
    Ho = (H + 2 - 3) // s + 1
    Wo = (W + 2 - 3) // s + 1
    hp = 2 // s + Ho                                      # rows per parity plane
    wp = 2 // s + Wo
    xp = jnp.pad(x_nhwc, ((0, 0), (1, s * hp - H - 1), (1, s * wp - W - 1),
                          (0, 0)))
    planes = jnp.concatenate(
        [xp[:, a::s, b::s, :] for a in range(s) for b in range(s)], axis=1)
    taps = tuple(((dh % s) * s + (dw % s), dh // s, dw // s)
                 for dh in range(3) for dw in range(3))
    return planes, taps, hp, Ho, Wo


# --------------------------------------------------------------------------
# wide_basic forward
# --------------------------------------------------------------------------
def wide_basic_forward(x_nchw, params, stride=1, leaky=False):
    slope = 0.1 if leaky else 0.0
    N, Cin, H, W = x_nchw.shape
    planes_out = params["w1"].shape[0]
    cin_p = _round_up(Cin, LANE)
    cout_p = _round_up(planes_out, LANE)

    # NHWC, lane-dense channel padding, bf16 activations end-to-end
    x = jnp.transpose(x_nchw, (0, 2, 3, 1))
    x_p = jnp.pad(x, ((0, 0), (0, 0), (0, 0),
                      (0, cin_p - Cin))).astype(jnp.bfloat16)

    s1, b1 = fold_bn(params["g1"], params["b1"], params["m1"], params["v1"])
    s2, b2 = fold_bn(params["g2"], params["b2"], params["m2"], params["v2"])

    # --- conv1: bn1+act prologue, 3x3 s=1 p=1, bn2+act epilogue (one kernel) ---
    w1m = conv_weight_to_mat(params["w1"], cin_p, cout_p)
    h2 = conv1_bn_act(x_p, _pad_vec(s1, cin_p), _pad_vec(b1, cin_p),
                      w1m, _pad_vec(s2, cout_p), _pad_vec(b2, cout_p), slope)
    h2 = h2.reshape(N, H, W, cout_p)                      # bf16

    # --- dropout: eval-mode identity ---
    # TODO(synk): training-mode dropout RNG masking not implemented.

    # --- conv2: 3x3 stride s, p=1, fused with shortcut ---
    w2m = conv_weight_to_mat(params["w2"], cout_p, cout_p)

    if stride != 1 or Cin != planes_out:
        planes_in, taps, hp, Ho, Wo = make_tap_planes(h2, stride)
        xs = x_p[:, ::stride, ::stride, :].reshape(N, Ho * Wo, cin_p)
        wsc = params["wsc"][:, :, 0, 0].T                 # (Cin, planes)
        wsc = jnp.pad(wsc, ((0, cin_p - Cin),
                            (0, cout_p - planes_out))).astype(jnp.bfloat16)
        out = conv2_shortcut(planes_in, taps, hp, Ho, Wo, xs, wsc, w2m)
    else:
        Ho, Wo = H, W
        resid = x_p.reshape(N, H * W, cin_p)              # cin_p == cout_p here
        out = conv2_identity(h2, resid, w2m)

    out = out.reshape(N, Ho, Wo, cout_p)[:, :, :, :planes_out]
    return jnp.transpose(out, (0, 3, 1, 2))               # back to NCHW (f32)


# --------------------------------------------------------------------------
# Pure-JAX reference (NCHW, mirrors the PyTorch module in eval mode, f32)
# --------------------------------------------------------------------------
def reference_forward(x, p, stride=1, leaky=False, eps=1e-5):
    act = (lambda t: jnp.where(t > 0, t, 0.1 * t)) if leaky else \
          (lambda t: jnp.maximum(t, 0.0))

    def bn(t, g, b, m, v):
        sh = (1, -1, 1, 1)
        return (t - m.reshape(sh)) / jnp.sqrt(v.reshape(sh) + eps) \
            * g.reshape(sh) + b.reshape(sh)

    def conv(t, w, s, pad):
        return jax.lax.conv_general_dilated(
            t, w, (s, s), [(pad, pad), (pad, pad)],
            dimension_numbers=("NCHW", "OIHW", "NCHW"))

    out = conv(act(bn(x, p["g1"], p["b1"], p["m1"], p["v1"])), p["w1"], 1, 1)
    out = conv(act(bn(out, p["g2"], p["b2"], p["m2"], p["v2"])), p["w2"], stride, 1)
    if stride != 1 or p["w1"].shape[1] != p["w1"].shape[0]:
        sc = conv(x, p["wsc"], stride, 0)
    else:
        sc = x
    return out + sc


# --------------------------------------------------------------------------
# Deterministic parameter init + driver
# --------------------------------------------------------------------------
def make_params(key, in_planes, planes, stride):
    ks = jax.random.split(key, 12)
    p = {
        "g1": 0.5 + jax.random.uniform(ks[0], (in_planes,)),
        "b1": 0.1 * jax.random.normal(ks[1], (in_planes,)),
        "m1": 0.1 * jax.random.normal(ks[2], (in_planes,)),
        "v1": 0.5 + jax.random.uniform(ks[3], (in_planes,)),
        "w1": 0.1 * jax.random.normal(ks[4], (planes, in_planes, 3, 3)),
        "g2": 0.5 + jax.random.uniform(ks[5], (planes,)),
        "b2": 0.1 * jax.random.normal(ks[6], (planes,)),
        "m2": 0.1 * jax.random.normal(ks[7], (planes,)),
        "v2": 0.5 + jax.random.uniform(ks[8], (planes,)),
        "w2": 0.1 * jax.random.normal(ks[9], (planes, planes, 3, 3)),
    }
    if stride != 1 or in_planes != planes:
        p["wsc"] = 0.1 * jax.random.normal(ks[10], (planes, in_planes, 1, 1))
    return {k: v.astype(jnp.float32) for k, v in p.items()}


def _run_case(key, N, in_planes, planes, H, W, stride, leaky):
    k_x, k_p = jax.random.split(key)
    x = jax.random.normal(k_x, (N, in_planes, H, W), dtype=jnp.float32)
    params = make_params(k_p, in_planes, planes, stride)

    fwd = jax.jit(wide_basic_forward, static_argnames=("stride", "leaky"))
    out = jax.block_until_ready(fwd(x, params, stride=stride, leaky=leaky))
    ref = jax.block_until_ready(
        reference_forward(x, params, stride=stride, leaky=leaky))

    Ho = (H + 2 - 3) // stride + 1
    Wo = (W + 2 - 3) // stride + 1
    assert out.shape == (N, planes, Ho, Wo), out.shape
    max_err = float(jnp.max(jnp.abs(out - ref)))
    # bf16 MXU operands / bf16 activation streams with f32 accumulation.
    assert max_err < 5e-2, f"mismatch vs reference: {max_err}"


if __name__ == "__main__":
    key = jax.random.PRNGKey(0)
    k1, k2, k3 = jax.random.split(key, 3)

    # strided block with channel change (parity-plane conv2 + fused 1x1 shortcut)
    _run_case(k1, N=2, in_planes=4, planes=8, H=16, W=16, stride=2, leaky=False)
    # identity-shortcut block with leaky ReLU (residual add fused into conv2)
    _run_case(k2, N=2, in_planes=8, planes=8, H=16, W=16, stride=1, leaky=True)
    # stride-1 block with channel change (1x1 shortcut, single-plane conv2)
    _run_case(k3, N=2, in_planes=4, planes=8, H=16, W=16, stride=1, leaky=False)

    print("KERNEL_OK")
</pallas_src>

<mosaic_0001>
module attributes {stable_mosaic.version = 11 : i64} {
  func.func @_conv1_bn_kernel(%arg0: i32, %arg1: memref<1x16x16x128xbf16, #tpu.memory_space<vmem>>, %arg2: memref<1x128xf32, #tpu.memory_space<vmem>>, %arg3: memref<1x128xf32, #tpu.memory_space<vmem>>, %arg4: memref<1152x128xbf16, #tpu.memory_space<vmem>>, %arg5: memref<1x128xf32, #tpu.memory_space<vmem>>, %arg6: memref<1x128xf32, #tpu.memory_space<vmem>>, %arg7: memref<1x256x128xbf16, #tpu.memory_space<vmem>>, %arg8: memref<256x128xf32, #tpu.memory_space<vmem>>) attributes {dimension_semantics = [#tpu.dimension_semantics<parallel>], iteration_bounds = array<i64: 2>, scalar_prefetch = 0 : i64, scratch_operands = 1 : i64, tpu.core_type = #tpu.core_type<tc>, window_params = [{transform_indices = @transform_0, window_bounds = array<i64: 1, 16, 16, 128>}, {pipeline_mode = #tpu.pipeline_mode<synchronous>, transform_indices = @transform_1, window_bounds = array<i64: 1, 128>}, {pipeline_mode = #tpu.pipeline_mode<synchronous>, transform_indices = @transform_2, window_bounds = array<i64: 1, 128>}, {pipeline_mode = #tpu.pipeline_mode<synchronous>, transform_indices = @transform_3, window_bounds = array<i64: 1152, 128>}, {pipeline_mode = #tpu.pipeline_mode<synchronous>, transform_indices = @transform_4, window_bounds = array<i64: 1, 128>}, {pipeline_mode = #tpu.pipeline_mode<synchronous>, transform_indices = @transform_5, window_bounds = array<i64: 1, 128>}, {transform_indices = @transform_6, window_bounds = array<i64: 1, 256, 128>}]} {
    %c0 = arith.constant 0 : index
    %c0_0 = arith.constant 0 : index
    %c0_1 = arith.constant 0 : index
    %c0_2 = arith.constant 0 : index
    %0 = vector.load %arg1[%c0, %c0_0, %c0_1, %c0_2] : memref<1x16x16x128xbf16, #tpu.memory_space<vmem>>, vector<1x16x16x128xbf16>
    %1 = vector.shape_cast %0 : vector<1x16x16x128xbf16> to vector<16x16x128xbf16>
    %2 = arith.extf %1 : vector<16x16x128xbf16> to vector<16x16x128xf32>
    %c0_3 = arith.constant 0 : index
    %c0_4 = arith.constant 0 : index
    %3 = vector.load %arg2[%c0_3, %c0_4] : memref<1x128xf32, #tpu.memory_space<vmem>>, vector<1x128xf32>
    %4 = vector.shape_cast %3 : vector<1x128xf32> to vector<1x1x128xf32>
    %5 = vector.broadcast %4 : vector<1x1x128xf32> to vector<16x16x128xf32>
    %6 = arith.mulf %2, %5 : vector<16x16x128xf32>
    %c0_5 = arith.constant 0 : index
    %c0_6 = arith.constant 0 : index
    %7 = vector.load %arg3[%c0_5, %c0_6] : memref<1x128xf32, #tpu.memory_space<vmem>>, vector<1x128xf32>
    %8 = vector.shape_cast %7 : vector<1x128xf32> to vector<1x1x128xf32>
    %9 = vector.broadcast %8 : vector<1x1x128xf32> to vector<16x16x128xf32>
    %10 = arith.addf %6, %9 : vector<16x16x128xf32>
    %cst = arith.constant 0.000000e+00 : f32
    %11 = vector.broadcast %cst : f32 to vector<16x16x128xf32>
    %12 = arith.cmpf ogt, %10, %11 : vector<16x16x128xf32>
    %cst_7 = arith.constant 0.000000e+00 : f32
    %13 = vector.broadcast %cst_7 : f32 to vector<16x16x128xf32>
    %14 = arith.mulf %13, %10 : vector<16x16x128xf32>
    %15 = arith.select %12, %10, %14 : vector<16x16x128xi1>, vector<16x16x128xf32>
    %16 = arith.truncf %15 : vector<16x16x128xf32> to vector<16x16x128xbf16>
    %cst_8 = arith.constant 0.000000e+00 : bf16
    %17 = vector.broadcast %cst_8 : bf16 to vector<16x1x128xbf16>
    %18 = tpu.concatenate %17, %16, %17 in 1 : vector<16x1x128xbf16>, vector<16x16x128xbf16>, vector<16x1x128xbf16> -> vector<16x18x128xbf16>
    %cst_9 = arith.constant 0.000000e+00 : bf16
    %19 = vector.broadcast %cst_9 : bf16 to vector<1x18x128xbf16>
    %20 = tpu.concatenate %19, %18, %19 in 0 : vector<1x18x128xbf16>, vector<16x18x128xbf16>, vector<1x18x128xbf16> -> vector<18x18x128xbf16>
    %cst_10 = arith.constant 0.000000e+00 : f32
    %21 = vector.broadcast %cst_10 : f32 to vector<256x128xf32>
    %c0_11 = arith.constant 0 : index
    %c0_12 = arith.constant 0 : index
    %22 = vector.load %arg8[%c0_11, %c0_12] : memref<256x128xf32, #tpu.memory_space<vmem>>, vector<256x128xf32>
    tpu.vector_store %arg8[%c0_11, %c0_12], %21 {strides = array<i32>} : memref<256x128xf32, #tpu.memory_space<vmem>>, vector<256x128xf32>,
    %23 = vector.extract_strided_slice %20 {offsets = [0, 0, 0], sizes = [16, 16, 128], strides = [1, 1, 1]} : vector<18x18x128xbf16> to vector<16x16x128xbf16>
    %24 = vector.shape_cast %23 : vector<16x16x128xbf16> to vector<256x128xbf16>
    %c0_13 = arith.constant 0 : index
    %c0_14 = arith.constant 0 : index
    %25 = vector.load %arg8[%c0_13, %c0_14] : memref<256x128xf32, #tpu.memory_space<vmem>>, vector<256x128xf32>
    %c0_15 = arith.constant 0 : index
    %c0_16 = arith.constant 0 : index
    %26 = vector.load %arg4[%c0_15, %c0_16] : memref<1152x128xbf16, #tpu.memory_space<vmem>>, vector<128x128xbf16>
    %cst_17 = arith.constant dense<0.000000e+00> : vector<256x128xf32>
    %27 = tpu.matmul %24, %26, %cst_17 {dimension_numbers = #tpu.dot_dimension_numbers<[1], [0], [0], [1], [0, 0, 1, 1], [], []>} : vector<256x128xbf16>, vector<128x128xbf16>, vector<256x128xf32> -> vector<256x128xf32>
    %28 = arith.addf %25, %27 : vector<256x128xf32>
    %c0_18 = arith.constant 0 : index
    %c0_19 = arith.constant 0 : index
    %29 = vector.load %arg8[%c0_18, %c0_19] : memref<256x128xf32, #tpu.memory_space<vmem>>, vector<256x128xf32>
    tpu.vector_store %arg8[%c0_18, %c0_19], %28 {strides = array<i32>} : memref<256x128xf32, #tpu.memory_space<vmem>>, vector<256x128xf32>,
    %30 = vector.extract_strided_slice %20 {offsets = [0, 1, 0], sizes = [16, 16, 128], strides = [1, 1, 1]} : vector<18x18x128xbf16> to vector<16x16x128xbf16>
    %31 = vector.shape_cast %30 : vector<16x16x128xbf16> to vector<256x128xbf16>
    %c0_20 = arith.constant 0 : index
    %c0_21 = arith.constant 0 : index
    %32 = vector.load %arg8[%c0_20, %c0_21] : memref<256x128xf32, #tpu.memory_space<vmem>>, vector<256x128xf32>
    %c128 = arith.constant 128 : index
    %c0_22 = arith.constant 0 : index
    %33 = vector.load %arg4[%c128, %c0_22] : memref<1152x128xbf16, #tpu.memory_space<vmem>>, vector<128x128xbf16>
    %cst_23 = arith.constant dense<0.000000e+00> : vector<256x128xf32>
    %34 = tpu.matmul %31, %33, %cst_23 {dimension_numbers = #tpu.dot_dimension_numbers<[1], [0], [0], [1], [0, 0, 1, 1], [], []>} : vector<256x128xbf16>, vector<128x128xbf16>, vector<256x128xf32> -> vector<256x128xf32>
    %35 = arith.addf %32, %34 : vector<256x128xf32>
    %c0_24 = arith.constant 0 : index
    %c0_25 = arith.constant 0 : index
    %36 = vector.load %arg8[%c0_24, %c0_25] : memref<256x128xf32, #tpu.memory_space<vmem>>, vector<256x128xf32>
    tpu.vector_store %arg8[%c0_24, %c0_25], %35 {strides = array<i32>} : memref<256x128xf32, #tpu.memory_space<vmem>>, vector<256x128xf32>,
    %37 = vector.extract_strided_slice %20 {offsets = [0, 2, 0], sizes = [16, 16, 128], strides = [1, 1, 1]} : vector<18x18x128xbf16> to vector<16x16x128xbf16>
    %38 = vector.shape_cast %37 : vector<16x16x128xbf16> to vector<256x128xbf16>
    %c0_26 = arith.constant 0 : index
    %c0_27 = arith.constant 0 : index
    %39 = vector.load %arg8[%c0_26, %c0_27] : memref<256x128xf32, #tpu.memory_space<vmem>>, vector<256x128xf32>
    %c256 = arith.constant 256 : index
    %c0_28 = arith.constant 0 : index
    %40 = vector.load %arg4[%c256, %c0_28] : memref<1152x128xbf16, #tpu.memory_space<vmem>>, vector<128x128xbf16>
    %cst_29 = arith.constant dense<0.000000e+00> : vector<256x128xf32>
    %41 = tpu.matmul %38, %40, %cst_29 {dimension_numbers = #tpu.dot_dimension_numbers<[1], [0], [0], [1], [0, 0, 1, 1], [], []>} : vector<256x128xbf16>, vector<128x128xbf16>, vector<256x128xf32> -> vector<256x128xf32>
    %42 = arith.addf %39, %41 : vector<256x128xf32>
    %c0_30 = arith.constant 0 : index
    %c0_31 = arith.constant 0 : index
    %43 = vector.load %arg8[%c0_30, %c0_31] : memref<256x128xf32, #tpu.memory_space<vmem>>, vector<256x128xf32>
    tpu.vector_store %arg8[%c0_30, %c0_31], %42 {strides = array<i32>} : memref<256x128xf32, #tpu.memory_space<vmem>>, vector<256x128xf32>,
    %44 = vector.extract_strided_slice %20 {offsets = [1, 0, 0], sizes = [16, 16, 128], strides = [1, 1, 1]} : vector<18x18x128xbf16> to vector<16x16x128xbf16>
    %45 = vector.shape_cast %44 : vector<16x16x128xbf16> to vector<256x128xbf16>
    %c0_32 = arith.constant 0 : index
    %c0_33 = arith.constant 0 : index
    %46 = vector.load %arg8[%c0_32, %c0_33] : memref<256x128xf32, #tpu.memory_space<vmem>>, vector<256x128xf32>
    %c384 = arith.constant 384 : index
    %c0_34 = arith.constant 0 : index
    %47 = vector.load %arg4[%c384, %c0_34] : memref<1152x128xbf16, #tpu.memory_space<vmem>>, vector<128x128xbf16>
    %cst_35 = arith.constant dense<0.000000e+00> : vector<256x128xf32>
    %48 = tpu.matmul %45, %47, %cst_35 {dimension_numbers = #tpu.dot_dimension_numbers<[1], [0], [0], [1], [0, 0, 1, 1], [], []>} : vector<256x128xbf16>, vector<128x128xbf16>, vector<256x128xf32> -> vector<256x128xf32>
    %49 = arith.addf %46, %48 : vector<256x128xf32>
    %c0_36 = arith.constant 0 : index
    %c0_37 = arith.constant 0 : index
    %50 = vector.load %arg8[%c0_36, %c0_37] : memref<256x128xf32, #tpu.memory_space<vmem>>, vector<256x128xf32>
    tpu.vector_store %arg8[%c0_36, %c0_37], %49 {strides = array<i32>} : memref<256x128xf32, #tpu.memory_space<vmem>>, vector<256x128xf32>,
    %51 = vector.extract_strided_slice %20 {offsets = [1, 1, 0], sizes = [16, 16, 128], strides = [1, 1, 1]} : vector<18x18x128xbf16> to vector<16x16x128xbf16>
    %52 = vector.shape_cast %51 : vector<16x16x128xbf16> to vector<256x128xbf16>
    %c0_38 = arith.constant 0 : index
    %c0_39 = arith.constant 0 : index
    %53 = vector.load %arg8[%c0_38, %c0_39] : memref<256x128xf32, #tpu.memory_space<vmem>>, vector<256x128xf32>
    %c512 = arith.constant 512 : index
    %c0_40 = arith.constant 0 : index
    %54 = vector.load %arg4[%c512, %c0_40] : memref<1152x128xbf16, #tpu.memory_space<vmem>>, vector<128x128xbf16>
    %cst_41 = arith.constant dense<0.000000e+00> : vector<256x128xf32>
    %55 = tpu.matmul %52, %54, %cst_41 {dimension_numbers = #tpu.dot_dimension_numbers<[1], [0], [0], [1], [0, 0, 1, 1], [], []>} : vector<256x128xbf16>, vector<128x128xbf16>, vector<256x128xf32> -> vector<256x128xf32>
    %56 = arith.addf %53, %55 : vector<256x128xf32>
    %c0_42 = arith.constant 0 : index
    %c0_43 = arith.constant 0 : index
    %57 = vector.load %arg8[%c0_42, %c0_43] : memref<256x128xf32, #tpu.memory_space<vmem>>, vector<256x128xf32>
    tpu.vector_store %arg8[%c0_42, %c0_43], %56 {strides = array<i32>} : memref<256x128xf32, #tpu.memory_space<vmem>>, vector<256x128xf32>,
    %58 = vector.extract_strided_slice %20 {offsets = [1, 2, 0], sizes = [16, 16, 128], strides = [1, 1, 1]} : vector<18x18x128xbf16> to vector<16x16x128xbf16>
    %59 = vector.shape_cast %58 : vector<16x16x128xbf16> to vector<256x128xbf16>
    %c0_44 = arith.constant 0 : index
    %c0_45 = arith.constant 0 : index
    %60 = vector.load %arg8[%c0_44, %c0_45] : memref<256x128xf32, #tpu.memory_space<vmem>>, vector<256x128xf32>
    %c640 = arith.constant 640 : index
    %c0_46 = arith.constant 0 : index
    %61 = vector.load %arg4[%c640, %c0_46] : memref<1152x128xbf16, #tpu.memory_space<vmem>>, vector<128x128xbf16>
    %cst_47 = arith.constant dense<0.000000e+00> : vector<256x128xf32>
    %62 = tpu.matmul %59, %61, %cst_47 {dimension_numbers = #tpu.dot_dimension_numbers<[1], [0], [0], [1], [0, 0, 1, 1], [], []>} : vector<256x128xbf16>, vector<128x128xbf16>, vector<256x128xf32> -> vector<256x128xf32>
    %63 = arith.addf %60, %62 : vector<256x128xf32>
    %c0_48 = arith.constant 0 : index
    %c0_49 = arith.constant 0 : index
    %64 = vector.load %arg8[%c0_48, %c0_49] : memref<256x128xf32, #tpu.memory_space<vmem>>, vector<256x128xf32>
    tpu.vector_store %arg8[%c0_48, %c0_49], %63 {strides = array<i32>} : memref<256x128xf32, #tpu.memory_space<vmem>>, vector<256x128xf32>,
    %65 = vector.extract_strided_slice %20 {offsets = [2, 0, 0], sizes = [16, 16, 128], strides = [1, 1, 1]} : vector<18x18x128xbf16> to vector<16x16x128xbf16>
    %66 = vector.shape_cast %65 : vector<16x16x128xbf16> to vector<256x128xbf16>
    %c0_50 = arith.constant 0 : index
    %c0_51 = arith.constant 0 : index
    %67 = vector.load %arg8[%c0_50, %c0_51] : memref<256x128xf32, #tpu.memory_space<vmem>>, vector<256x128xf32>
    %c768 = arith.constant 768 : index
    %c0_52 = arith.constant 0 : index
    %68 = vector.load %arg4[%c768, %c0_52] : memref<1152x128xbf16, #tpu.memory_space<vmem>>, vector<128x128xbf16>
    %cst_53 = arith.constant dense<0.000000e+00> : vector<256x128xf32>
    %69 = tpu.matmul %66, %68, %cst_53 {dimension_numbers = #tpu.dot_dimension_numbers<[1], [0], [0], [1], [0, 0, 1, 1], [], []>} : vector<256x128xbf16>, vector<128x128xbf16>, vector<256x128xf32> -> vector<256x128xf32>
    %70 = arith.addf %67, %69 : vector<256x128xf32>
    %c0_54 = arith.constant 0 : index
    %c0_55 = arith.constant 0 : index
    %71 = vector.load %arg8[%c0_54, %c0_55] : memref<256x128xf32, #tpu.memory_space<vmem>>, vector<256x128xf32>
    tpu.vector_store %arg8[%c0_54, %c0_55], %70 {strides = array<i32>} : memref<256x128xf32, #tpu.memory_space<vmem>>, vector<256x128xf32>,
    %72 = vector.extract_strided_slice %20 {offsets = [2, 1, 0], sizes = [16, 16, 128], strides = [1, 1, 1]} : vector<18x18x128xbf16> to vector<16x16x128xbf16>
    %73 = vector.shape_cast %72 : vector<16x16x128xbf16> to vector<256x128xbf16>
    %c0_56 = arith.constant 0 : index
    %c0_57 = arith.constant 0 : index
    %74 = vector.load %arg8[%c0_56, %c0_57] : memref<256x128xf32, #tpu.memory_space<vmem>>, vector<256x128xf32>
    %c896 = arith.constant 896 : index
    %c0_58 = arith.constant 0 : index
    %75 = vector.load %arg4[%c896, %c0_58] : memref<1152x128xbf16, #tpu.memory_space<vmem>>, vector<128x128xbf16>
    %cst_59 = arith.constant dense<0.000000e+00> : vector<256x128xf32>
    %76 = tpu.matmul %73, %75, %cst_59 {dimension_numbers = #tpu.dot_dimension_numbers<[1], [0], [0], [1], [0, 0, 1, 1], [], []>} : vector<256x128xbf16>, vector<128x128xbf16>, vector<256x128xf32> -> vector<256x128xf32>
    %77 = arith.addf %74, %76 : vector<256x128xf32>
    %c0_60 = arith.constant 0 : index
    %c0_61 = arith.constant 0 : index
    %78 = vector.load %arg8[%c0_60, %c0_61] : memref<256x128xf32, #tpu.memory_space<vmem>>, vector<256x128xf32>
    tpu.vector_store %arg8[%c0_60, %c0_61], %77 {strides = array<i32>} : memref<256x128xf32, #tpu.memory_space<vmem>>, vector<256x128xf32>,
    %79 = vector.extract_strided_slice %20 {offsets = [2, 2, 0], sizes = [16, 16, 128], strides = [1, 1, 1]} : vector<18x18x128xbf16> to vector<16x16x128xbf16>
    %80 = vector.shape_cast %79 : vector<16x16x128xbf16> to vector<256x128xbf16>
    %c0_62 = arith.constant 0 : index
    %c0_63 = arith.constant 0 : index
    %81 = vector.load %arg8[%c0_62, %c0_63] : memref<256x128xf32, #tpu.memory_space<vmem>>, vector<256x128xf32>
    %c1024 = arith.constant 1024 : index
    %c0_64 = arith.constant 0 : index
    %82 = vector.load %arg4[%c1024, %c0_64] : memref<1152x128xbf16, #tpu.memory_space<vmem>>, vector<128x128xbf16>
    %cst_65 = arith.constant dense<0.000000e+00> : vector<256x128xf32>
    %83 = tpu.matmul %80, %82, %cst_65 {dimension_numbers = #tpu.dot_dimension_numbers<[1], [0], [0], [1], [0, 0, 1, 1], [], []>} : vector<256x128xbf16>, vector<128x128xbf16>, vector<256x128xf32> -> vector<256x128xf32>
    %84 = arith.addf %81, %83 : vector<256x128xf32>
    %c0_66 = arith.constant 0 : index
    %c0_67 = arith.constant 0 : index
    %85 = vector.load %arg8[%c0_66, %c0_67] : memref<256x128xf32, #tpu.memory_space<vmem>>, vector<256x128xf32>
    tpu.vector_store %arg8[%c0_66, %c0_67], %84 {strides = array<i32>} : memref<256x128xf32, #tpu.memory_space<vmem>>, vector<256x128xf32>,
    %c0_68 = arith.constant 0 : index
    %c0_69 = arith.constant 0 : index
    %86 = vector.load %arg8[%c0_68, %c0_69] : memref<256x128xf32, #tpu.memory_space<vmem>>, vector<256x128xf32>
    %c0_70 = arith.constant 0 : index
    %c0_71 = arith.constant 0 : index
    %87 = vector.load %arg5[%c0_70, %c0_71] : memref<1x128xf32, #tpu.memory_space<vmem>>, vector<1x128xf32>
    %88 = vector.broadcast %87 : vector<1x128xf32> to vector<256x128xf32>
    %89 = arith.mulf %86, %88 : vector<256x128xf32>
    %c0_72 = arith.constant 0 : index
    %c0_73 = arith.constant 0 : index
    %90 = vector.load %arg6[%c0_72, %c0_73] : memref<1x128xf32, #tpu.memory_space<vmem>>, vector<1x128xf32>
    %91 = vector.broadcast %90 : vector<1x128xf32> to vector<256x128xf32>
    %92 = arith.addf %89, %91 : vector<256x128xf32>
    %cst_74 = arith.constant 0.000000e+00 : f32
    %93 = vector.broadcast %cst_74 : f32 to vector<256x128xf32>
    %94 = arith.cmpf ogt, %92, %93 : vector<256x128xf32>
    %cst_75 = arith.constant 0.000000e+00 : f32
    %95 = vector.broadcast %cst_75 : f32 to vector<256x128xf32>
    %96 = arith.mulf %95, %92 : vector<256x128xf32>
    %97 = arith.select %94, %92, %96 : vector<256x128xi1>, vector<256x128xf32>
    %98 = arith.truncf %97 : vector<256x128xf32> to vector<256x128xbf16>
    %c0_76 = arith.constant 0 : index
    %c0_77 = arith.constant 0 : index
    %c0_78 = arith.constant 0 : index
    %99 = vector.load %arg7[%c0_76, %c0_77, %c0_78] : memref<1x256x128xbf16, #tpu.memory_space<vmem>>, vector<1x256x128xbf16>
    %100 = vector.shape_cast %99 : vector<1x256x128xbf16> to vector<256x128xbf16>
    %101 = vector.shape_cast %98 : vector<256x128xbf16> to vector<1x256x128xbf16>
    tpu.vector_store %arg7[%c0_76, %c0_77, %c0_78], %101 {strides = array<i32>} : memref<1x256x128xbf16, #tpu.memory_space<vmem>>, vector<1x256x128xbf16>,
    return
  }
  func.func @transform_0(%arg0: i32) -> (i32, i32, i32, i32) {
    %c0_i32 = arith.constant 0 : i32
    %c0_i32_0 = arith.constant 0 : i32
    %c0_i32_1 = arith.constant 0 : i32
    %c0_i32_2 = arith.constant 0 : i32
    return %arg0, %c0_i32, %c0_i32_0, %c0_i32_1 : i32, i32, i32, i32
  }
  func.func @transform_1(%arg0: i32) -> (i32, i32) {
    %c0_i32 = arith.constant 0 : i32
    %c0_i32_0 = arith.constant 0 : i32
    %c0_i32_1 = arith.constant 0 : i32
    return %c0_i32, %c0_i32_0 : i32, i32
  }
  func.func @transform_2(%arg0: i32) -> (i32, i32) {
    %c0_i32 = arith.constant 0 : i32
    %c0_i32_0 = arith.constant 0 : i32
    %c0_i32_1 = arith.constant 0 : i32
    return %c0_i32, %c0_i32_0 : i32, i32
  }
  func.func @transform_3(%arg0: i32) -> (i32, i32) {
    %c0_i32 = arith.constant 0 : i32
    %c0_i32_0 = arith.constant 0 : i32
    %c0_i32_1 = arith.constant 0 : i32
    return %c0_i32, %c0_i32_0 : i32, i32
  }
  func.func @transform_4(%arg0: i32) -> (i32, i32) {
    %c0_i32 = arith.constant 0 : i32
    %c0_i32_0 = arith.constant 0 : i32
    %c0_i32_1 = arith.constant 0 : i32
    return %c0_i32, %c0_i32_0 : i32, i32
  }
  func.func @transform_5(%arg0: i32) -> (i32, i32) {
    %c0_i32 = arith.constant 0 : i32
    %c0_i32_0 = arith.constant 0 : i32
    %c0_i32_1 = arith.constant 0 : i32
    return %c0_i32, %c0_i32_0 : i32, i32
  }
  func.func @transform_6(%arg0: i32) -> (i32, i32, i32) {
    %c0_i32 = arith.constant 0 : i32
    %c0_i32_0 = arith.constant 0 : i32
    %c0_i32_1 = arith.constant 0 : i32
    return %arg0, %c0_i32, %c0_i32_0 : i32, i32, i32
  }
}

module attributes {stable_mosaic.version = 11 : i64} {
  func.func @_conv2_shortcut_kernel(%arg0: i32, %arg1: memref<1x36x9x128xbf16, #tpu.memory_space<vmem>>, %arg2: memref<1x64x128xbf16, #tpu.memory_space<vmem>>, %arg3: memref<128x128xbf16, #tpu.memory_space<vmem>>, %arg4: memref<1152x128xbf16, #tpu.memory_space<vmem>>, %arg5: memref<1x64x128xf32, #tpu.memory_space<vmem>>, %arg6: memref<64x128xf32, #tpu.memory_space<vmem>>) attributes {dimension_semantics = [#tpu.dimension_semantics<parallel>], iteration_bounds = array<i64: 2>, scalar_prefetch = 0 : i64, scratch_operands = 1 : i64, tpu.core_type = #tpu.core_type<tc>, window_params = [{transform_indices = @transform_0, window_bounds = array<i64: 1, 36, 9, 128>}, {transform_indices = @transform_1, window_bounds = array<i64: 1, 64, 128>}, {pipeline_mode = #tpu.pipeline_mode<synchronous>, transform_indices = @transform_2, window_bounds = array<i64: 128, 128>}, {pipeline_mode = #tpu.pipeline_mode<synchronous>, transform_indices = @transform_3, window_bounds = array<i64: 1152, 128>}, {transform_indices = @transform_4, window_bounds = array<i64: 1, 64, 128>}]} {
    %c0 = arith.constant 0 : index
    %c0_0 = arith.constant 0 : index
    %c0_1 = arith.constant 0 : index
    %0 = vector.load %arg2[%c0, %c0_0, %c0_1] : memref<1x64x128xbf16, #tpu.memory_space<vmem>>, vector<1x64x128xbf16>
    %1 = vector.shape_cast %0 : vector<1x64x128xbf16> to vector<64x128xbf16>
    %c0_2 = arith.constant 0 : index
    %c0_3 = arith.constant 0 : index
    %2 = vector.load %arg3[%c0_2, %c0_3] : memref<128x128xbf16, #tpu.memory_space<vmem>>, vector<128x128xbf16>
    %cst = arith.constant dense<0.000000e+00> : vector<64x128xf32>
    %3 = tpu.matmul %1, %2, %cst {dimension_numbers = #tpu.dot_dimension_numbers<[1], [0], [0], [1], [0, 0, 1, 1], [], []>} : vector<64x128xbf16>, vector<128x128xbf16>, vector<64x128xf32> -> vector<64x128xf32>
    %c0_4 = arith.constant 0 : index
    %c0_5 = arith.constant 0 : index
    %4 = vector.load %arg6[%c0_4, %c0_5] : memref<64x128xf32, #tpu.memory_space<vmem>>, vector<64x128xf32>
    tpu.vector_store %arg6[%c0_4, %c0_5], %3 {strides = array<i32>} : memref<64x128xf32, #tpu.memory_space<vmem>>, vector<64x128xf32>,
    %c0_6 = arith.constant 0 : index
    %c0_7 = arith.constant 0 : index
    %c0_8 = arith.constant 0 : index
    %c0_9 = arith.constant 0 : index
    %5 = vector.load %arg1[%c0_6, %c0_7, %c0_8, %c0_9] : memref<1x36x9x128xbf16, #tpu.memory_space<vmem>>, vector<1x8x8x128xbf16>
    %6 = vector.shape_cast %5 : vector<1x8x8x128xbf16> to vector<8x8x128xbf16>
    %7 = vector.shape_cast %6 : vector<8x8x128xbf16> to vector<64x128xbf16>
    %c0_10 = arith.constant 0 : index
    %c0_11 = arith.constant 0 : index
    %8 = vector.load %arg6[%c0_10, %c0_11] : memref<64x128xf32, #tpu.memory_space<vmem>>, vector<64x128xf32>
    %c0_12 = arith.constant 0 : index
    %c0_13 = arith.constant 0 : index
    %9 = vector.load %arg4[%c0_12, %c0_13] : memref<1152x128xbf16, #tpu.memory_space<vmem>>, vector<128x128xbf16>
    %cst_14 = arith.constant dense<0.000000e+00> : vector<64x128xf32>
    %10 = tpu.matmul %7, %9, %cst_14 {dimension_numbers = #tpu.dot_dimension_numbers<[1], [0], [0], [1], [0, 0, 1, 1], [], []>} : vector<64x128xbf16>, vector<128x128xbf16>, vector<64x128xf32> -> vector<64x128xf32>
    %11 = arith.addf %8, %10 : vector<64x128xf32>
    %c0_15 = arith.constant 0 : index
    %c0_16 = arith.constant 0 : index
    %12 = vector.load %arg6[%c0_15, %c0_16] : memref<64x128xf32, #tpu.memory_space<vmem>>, vector<64x128xf32>
    tpu.vector_store %arg6[%c0_15, %c0_16], %11 {strides = array<i32>} : memref<64x128xf32, #tpu.memory_space<vmem>>, vector<64x128xf32>,
    %c0_17 = arith.constant 0 : index
    %c9 = arith.constant 9 : index
    %c0_18 = arith.constant 0 : index
    %c0_19 = arith.constant 0 : index
    %13 = vector.load %arg1[%c0_17, %c9, %c0_18, %c0_19] : memref<1x36x9x128xbf16, #tpu.memory_space<vmem>>, vector<1x8x8x128xbf16>
    %14 = vector.shape_cast %13 : vector<1x8x8x128xbf16> to vector<8x8x128xbf16>
    %15 = vector.shape_cast %14 : vector<8x8x128xbf16> to vector<64x128xbf16>
    %c0_20 = arith.constant 0 : index
    %c0_21 = arith.constant 0 : index
    %16 = vector.load %arg6[%c0_20, %c0_21] : memref<64x128xf32, #tpu.memory_space<vmem>>, vector<64x128xf32>
    %c128 = arith.constant 128 : index
    %c0_22 = arith.constant 0 : index
    %17 = vector.load %arg4[%c128, %c0_22] : memref<1152x128xbf16, #tpu.memory_space<vmem>>, vector<128x128xbf16>
    %cst_23 = arith.constant dense<0.000000e+00> : vector<64x128xf32>
    %18 = tpu.matmul %15, %17, %cst_23 {dimension_numbers = #tpu.dot_dimension_numbers<[1], [0], [0], [1], [0, 0, 1, 1], [], []>} : vector<64x128xbf16>, vector<128x128xbf16>, vector<64x128xf32> -> vector<64x128xf32>
    %19 = arith.addf %16, %18 : vector<64x128xf32>
    %c0_24 = arith.constant 0 : index
    %c0_25 = arith.constant 0 : index
    %20 = vector.load %arg6[%c0_24, %c0_25] : memref<64x128xf32, #tpu.memory_space<vmem>>, vector<64x128xf32>
    tpu.vector_store %arg6[%c0_24, %c0_25], %19 {strides = array<i32>} : memref<64x128xf32, #tpu.memory_space<vmem>>, vector<64x128xf32>,
    %c0_26 = arith.constant 0 : index
    %c0_27 = arith.constant 0 : index
    %c1 = arith.constant 1 : index
    %c0_28 = arith.constant 0 : index
    %21 = vector.load %arg1[%c0_26, %c0_27, %c1, %c0_28] : memref<1x36x9x128xbf16, #tpu.memory_space<vmem>>, vector<1x8x8x128xbf16>
    %22 = vector.shape_cast %21 : vector<1x8x8x128xbf16> to vector<8x8x128xbf16>
    %23 = vector.shape_cast %22 : vector<8x8x128xbf16> to vector<64x128xbf16>
    %c0_29 = arith.constant 0 : index
    %c0_30 = arith.constant 0 : index
    %24 = vector.load %arg6[%c0_29, %c0_30] : memref<64x128xf32, #tpu.memory_space<vmem>>, vector<64x128xf32>
    %c256 = arith.constant 256 : index
    %c0_31 = arith.constant 0 : index
    %25 = vector.load %arg4[%c256, %c0_31] : memref<1152x128xbf16, #tpu.memory_space<vmem>>, vector<128x128xbf16>
    %cst_32 = arith.constant dense<0.000000e+00> : vector<64x128xf32>
    %26 = tpu.matmul %23, %25, %cst_32 {dimension_numbers = #tpu.dot_dimension_numbers<[1], [0], [0], [1], [0, 0, 1, 1], [], []>} : vector<64x128xbf16>, vector<128x128xbf16>, vector<64x128xf32> -> vector<64x128xf32>
    %27 = arith.addf %24, %26 : vector<64x128xf32>
    %c0_33 = arith.constant 0 : index
    %c0_34 = arith.constant 0 : index
    %28 = vector.load %arg6[%c0_33, %c0_34] : memref<64x128xf32, #tpu.memory_space<vmem>>, vector<64x128xf32>
    tpu.vector_store %arg6[%c0_33, %c0_34], %27 {strides = array<i32>} : memref<64x128xf32, #tpu.memory_space<vmem>>, vector<64x128xf32>,
    %c0_35 = arith.constant 0 : index
    %c18 = arith.constant 18 : index
    %c0_36 = arith.constant 0 : index
    %c0_37 = arith.constant 0 : index
    %29 = vector.load %arg1[%c0_35, %c18, %c0_36, %c0_37] : memref<1x36x9x128xbf16, #tpu.memory_space<vmem>>, vector<1x8x8x128xbf16>
    %30 = vector.shape_cast %29 : vector<1x8x8x128xbf16> to vector<8x8x128xbf16>
    %31 = vector.shape_cast %30 : vector<8x8x128xbf16> to vector<64x128xbf16>
    %c0_38 = arith.constant 0 : index
    %c0_39 = arith.constant 0 : index
    %32 = vector.load %arg6[%c0_38, %c0_39] : memref<64x128xf32, #tpu.memory_space<vmem>>, vector<64x128xf32>
    %c384 = arith.constant 384 : index
    %c0_40 = arith.constant 0 : index
    %33 = vector.load %arg4[%c384, %c0_40] : memref<1152x128xbf16, #tpu.memory_space<vmem>>, vector<128x128xbf16>
    %cst_41 = arith.constant dense<0.000000e+00> : vector<64x128xf32>
    %34 = tpu.matmul %31, %33, %cst_41 {dimension_numbers = #tpu.dot_dimension_numbers<[1], [0], [0], [1], [0, 0, 1, 1], [], []>} : vector<64x128xbf16>, vector<128x128xbf16>, vector<64x128xf32> -> vector<64x128xf32>
    %35 = arith.addf %32, %34 : vector<64x128xf32>
    %c0_42 = arith.constant 0 : index
    %c0_43 = arith.constant 0 : index
    %36 = vector.load %arg6[%c0_42, %c0_43] : memref<64x128xf32, #tpu.memory_space<vmem>>, vector<64x128xf32>
    tpu.vector_store %arg6[%c0_42, %c0_43], %35 {strides = array<i32>} : memref<64x128xf32, #tpu.memory_space<vmem>>, vector<64x128xf32>,
    %c0_44 = arith.constant 0 : index
    %c27 = arith.constant 27 : index
    %c0_45 = arith.constant 0 : index
    %c0_46 = arith.constant 0 : index
    %37 = vector.load %arg1[%c0_44, %c27, %c0_45, %c0_46] : memref<1x36x9x128xbf16, #tpu.memory_space<vmem>>, vector<1x8x8x128xbf16>
    %38 = vector.shape_cast %37 : vector<1x8x8x128xbf16> to vector<8x8x128xbf16>
    %39 = vector.shape_cast %38 : vector<8x8x128xbf16> to vector<64x128xbf16>
    %c0_47 = arith.constant 0 : index
    %c0_48 = arith.constant 0 : index
    %40 = vector.load %arg6[%c0_47, %c0_48] : memref<64x128xf32, #tpu.memory_space<vmem>>, vector<64x128xf32>
    %c512 = arith.constant 512 : index
    %c0_49 = arith.constant 0 : index
    %41 = vector.load %arg4[%c512, %c0_49] : memref<1152x128xbf16, #tpu.memory_space<vmem>>, vector<128x128xbf16>
    %cst_50 = arith.constant dense<0.000000e+00> : vector<64x128xf32>
    %42 = tpu.matmul %39, %41, %cst_50 {dimension_numbers = #tpu.dot_dimension_numbers<[1], [0], [0], [1], [0, 0, 1, 1], [], []>} : vector<64x128xbf16>, vector<128x128xbf16>, vector<64x128xf32> -> vector<64x128xf32>
    %43 = arith.addf %40, %42 : vector<64x128xf32>
    %c0_51 = arith.constant 0 : index
    %c0_52 = arith.constant 0 : index
    %44 = vector.load %arg6[%c0_51, %c0_52] : memref<64x128xf32, #tpu.memory_space<vmem>>, vector<64x128xf32>
    tpu.vector_store %arg6[%c0_51, %c0_52], %43 {strides = array<i32>} : memref<64x128xf32, #tpu.memory_space<vmem>>, vector<64x128xf32>,
    %c0_53 = arith.constant 0 : index
    %c18_54 = arith.constant 18 : index
    %c1_55 = arith.constant 1 : index
    %c0_56 = arith.constant 0 : index
    %45 = vector.load %arg1[%c0_53, %c18_54, %c1_55, %c0_56] : memref<1x36x9x128xbf16, #tpu.memory_space<vmem>>, vector<1x8x8x128xbf16>
    %46 = vector.shape_cast %45 : vector<1x8x8x128xbf16> to vector<8x8x128xbf16>
    %47 = vector.shape_cast %46 : vector<8x8x128xbf16> to vector<64x128xbf16>
    %c0_57 = arith.constant 0 : index
    %c0_58 = arith.constant 0 : index
    %48 = vector.load %arg6[%c0_57, %c0_58] : memref<64x128xf32, #tpu.memory_space<vmem>>, vector<64x128xf32>
    %c640 = arith.constant 640 : index
    %c0_59 = arith.constant 0 : index
    %49 = vector.load %arg4[%c640, %c0_59] : memref<1152x128xbf16, #tpu.memory_space<vmem>>, vector<128x128xbf16>
    %cst_60 = arith.constant dense<0.000000e+00> : vector<64x128xf32>
    %50 = tpu.matmul %47, %49, %cst_60 {dimension_numbers = #tpu.dot_dimension_numbers<[1], [0], [0], [1], [0, 0, 1, 1], [], []>} : vector<64x128xbf16>, vector<128x128xbf16>, vector<64x128xf32> -> vector<64x128xf32>
    %51 = arith.addf %48, %50 : vector<64x128xf32>
    %c0_61 = arith.constant 0 : index
    %c0_62 = arith.constant 0 : index
    %52 = vector.load %arg6[%c0_61, %c0_62] : memref<64x128xf32, #tpu.memory_space<vmem>>, vector<64x128xf32>
    tpu.vector_store %arg6[%c0_61, %c0_62], %51 {strides = array<i32>} : memref<64x128xf32, #tpu.memory_space<vmem>>, vector<64x128xf32>,
    %c0_63 = arith.constant 0 : index
    %c1_64 = arith.constant 1 : index
    %c0_65 = arith.constant 0 : index
    %c0_66 = arith.constant 0 : index
    %53 = vector.load %arg1[%c0_63, %c1_64, %c0_65, %c0_66] : memref<1x36x9x128xbf16, #tpu.memory_space<vmem>>, vector<1x8x8x128xbf16>
    %54 = vector.shape_cast %53 : vector<1x8x8x128xbf16> to vector<8x8x128xbf16>
    %55 = vector.shape_cast %54 : vector<8x8x128xbf16> to vector<64x128xbf16>
    %c0_67 = arith.constant 0 : index
    %c0_68 = arith.constant 0 : index
    %56 = vector.load %arg6[%c0_67, %c0_68] : memref<64x128xf32, #tpu.memory_space<vmem>>, vector<64x128xf32>
    %c768 = arith.constant 768 : index
    %c0_69 = arith.constant 0 : index
    %57 = vector.load %arg4[%c768, %c0_69] : memref<1152x128xbf16, #tpu.memory_space<vmem>>, vector<128x128xbf16>
    %cst_70 = arith.constant dense<0.000000e+00> : vector<64x128xf32>
    %58 = tpu.matmul %55, %57, %cst_70 {dimension_numbers = #tpu.dot_dimension_numbers<[1], [0], [0], [1], [0, 0, 1, 1], [], []>} : vector<64x128xbf16>, vector<128x128xbf16>, vector<64x128xf32> -> vector<64x128xf32>
    %59 = arith.addf %56, %58 : vector<64x128xf32>
    %c0_71 = arith.constant 0 : index
    %c0_72 = arith.constant 0 : index
    %60 = vector.load %arg6[%c0_71, %c0_72] : memref<64x128xf32, #tpu.memory_space<vmem>>, vector<64x128xf32>
    tpu.vector_store %arg6[%c0_71, %c0_72], %59 {strides = array<i32>} : memref<64x128xf32, #tpu.memory_space<vmem>>, vector<64x128xf32>,
    %c0_73 = arith.constant 0 : index
    %c10 = arith.constant 10 : index
    %c0_74 = arith.constant 0 : index
    %c0_75 = arith.constant 0 : index
    %61 = vector.load %arg1[%c0_73, %c10, %c0_74, %c0_75] : memref<1x36x9x128xbf16, #tpu.memory_space<vmem>>, vector<1x8x8x128xbf16>
    %62 = vector.shape_cast %61 : vector<1x8x8x128xbf16> to vector<8x8x128xbf16>
    %63 = vector.shape_cast %62 : vector<8x8x128xbf16> to vector<64x128xbf16>
    %c0_76 = arith.constant 0 : index
    %c0_77 = arith.constant 0 : index
    %64 = vector.load %arg6[%c0_76, %c0_77] : memref<64x128xf32, #tpu.memory_space<vmem>>, vector<64x128xf32>
    %c896 = arith.constant 896 : index
    %c0_78 = arith.constant 0 : index
    %65 = vector.load %arg4[%c896, %c0_78] : memref<1152x128xbf16, #tpu.memory_space<vmem>>, vector<128x128xbf16>
    %cst_79 = arith.constant dense<0.000000e+00> : vector<64x128xf32>
    %66 = tpu.matmul %63, %65, %cst_79 {dimension_numbers = #tpu.dot_dimension_numbers<[1], [0], [0], [1], [0, 0, 1, 1], [], []>} : vector<64x128xbf16>, vector<128x128xbf16>, vector<64x128xf32> -> vector<64x128xf32>
    %67 = arith.addf %64, %66 : vector<64x128xf32>
    %c0_80 = arith.constant 0 : index
    %c0_81 = arith.constant 0 : index
    %68 = vector.load %arg6[%c0_80, %c0_81] : memref<64x128xf32, #tpu.memory_space<vmem>>, vector<64x128xf32>
    tpu.vector_store %arg6[%c0_80, %c0_81], %67 {strides = array<i32>} : memref<64x128xf32, #tpu.memory_space<vmem>>, vector<64x128xf32>,
    %c0_82 = arith.constant 0 : index
    %c1_83 = arith.constant 1 : index
    %c1_84 = arith.constant 1 : index
    %c0_85 = arith.constant 0 : index
    %69 = vector.load %arg1[%c0_82, %c1_83, %c1_84, %c0_85] : memref<1x36x9x128xbf16, #tpu.memory_space<vmem>>, vector<1x8x8x128xbf16>
    %70 = vector.shape_cast %69 : vector<1x8x8x128xbf16> to vector<8x8x128xbf16>
    %71 = vector.shape_cast %70 : vector<8x8x128xbf16> to vector<64x128xbf16>
    %c0_86 = arith.constant 0 : index
    %c0_87 = arith.constant 0 : index
    %72 = vector.load %arg6[%c0_86, %c0_87] : memref<64x128xf32, #tpu.memory_space<vmem>>, vector<64x128xf32>
    %c1024 = arith.constant 1024 : index
    %c0_88 = arith.constant 0 : index
    %73 = vector.load %arg4[%c1024, %c0_88] : memref<1152x128xbf16, #tpu.memory_space<vmem>>, vector<128x128xbf16>
    %cst_89 = arith.constant dense<0.000000e+00> : vector<64x128xf32>
    %74 = tpu.matmul %71, %73, %cst_89 {dimension_numbers = #tpu.dot_dimension_numbers<[1], [0], [0], [1], [0, 0, 1, 1], [], []>} : vector<64x128xbf16>, vector<128x128xbf16>, vector<64x128xf32> -> vector<64x128xf32>
    %75 = arith.addf %72, %74 : vector<64x128xf32>
    %c0_90 = arith.constant 0 : index
    %c0_91 = arith.constant 0 : index
    %76 = vector.load %arg6[%c0_90, %c0_91] : memref<64x128xf32, #tpu.memory_space<vmem>>, vector<64x128xf32>
    tpu.vector_store %arg6[%c0_90, %c0_91], %75 {strides = array<i32>} : memref<64x128xf32, #tpu.memory_space<vmem>>, vector<64x128xf32>,
    %c0_92 = arith.constant 0 : index
    %c0_93 = arith.constant 0 : index
    %77 = vector.load %arg6[%c0_92, %c0_93] : memref<64x128xf32, #tpu.memory_space<vmem>>, vector<64x128xf32>
    %c0_94 = arith.constant 0 : index
    %c0_95 = arith.constant 0 : index
    %c0_96 = arith.constant 0 : index
    %78 = vector.load %arg5[%c0_94, %c0_95, %c0_96] : memref<1x64x128xf32, #tpu.memory_space<vmem>>, vector<1x64x128xf32>
    %79 = vector.shape_cast %78 : vector<1x64x128xf32> to vector<64x128xf32>
    %80 = vector.shape_cast %77 : vector<64x128xf32> to vector<1x64x128xf32>
    tpu.vector_store %arg5[%c0_94, %c0_95, %c0_96], %80 {strides = array<i32>} : memref<1x64x128xf32, #tpu.memory_space<vmem>>, vector<1x64x128xf32>,
    return
  }
  func.func @transform_0(%arg0: i32) -> (i32, i32, i32, i32) {
    %c0_i32 = arith.constant 0 : i32
    %c0_i32_0 = arith.constant 0 : i32
    %c0_i32_1 = arith.constant 0 : i32
    %c0_i32_2 = arith.constant 0 : i32
    return %arg0, %c0_i32, %c0_i32_0, %c0_i32_1 : i32, i32, i32, i32
  }
  func.func @transform_1(%arg0: i32) -> (i32, i32, i32) {
    %c0_i32 = arith.constant 0 : i32
    %c0_i32_0 = arith.constant 0 : i32
    %c0_i32_1 = arith.constant 0 : i32
    return %arg0, %c0_i32, %c0_i32_0 : i32, i32, i32
  }
  func.func @transform_2(%arg0: i32) -> (i32, i32) {
    %c0_i32 = arith.constant 0 : i32
    %c0_i32_0 = arith.constant 0 : i32
    %c0_i32_1 = arith.constant 0 : i32
    return %c0_i32, %c0_i32_0 : i32, i32
  }
  func.func @transform_3(%arg0: i32) -> (i32, i32) {
    %c0_i32 = arith.constant 0 : i32
    %c0_i32_0 = arith.constant 0 : i32
    %c0_i32_1 = arith.constant 0 : i32
    return %c0_i32, %c0_i32_0 : i32, i32
  }
  func.func @transform_4(%arg0: i32) -> (i32, i32, i32) {
    %c0_i32 = arith.constant 0 : i32
    %c0_i32_0 = arith.constant 0 : i32
    %c0_i32_1 = arith.constant 0 : i32
    return %arg0, %c0_i32, %c0_i32_0 : i32, i32, i32
  }
}

</mosaic_0001>

<llo_original>
// kernel: wide_basic_forward.3
$region0: #{wide_basic_forward.3}
  #allocation0 [shape = 'u32[]', space=smem, size = 0x4, offset = 0x4, fixed_abs, tag = 'smem constant byte address 0x4 - core index']
  #allocation1 [shape = 'u32[144,128]{1,0:T(1,128)}', space=vmem, size = 0x12000, scoped, tag = 'internal scratch']
  #allocation2 [shape = 'f32[64,128]{1,0:T(8,128)}', space=vmem, size = 0x8000, scoped, tag = 'scratch operand']
  %s0 = inlined_call_operand.vmem [shape: bf16[2,36,9,128], index: 0, kind: input, shape index: {}]
  %s1 = inlined_call_operand.vmem [shape: bf16[2,64,128], index: 1, kind: input, shape index: {}]
  %s2 = inlined_call_operand.vmem [shape: bf16[128,128], index: 2, kind: input, shape index: {}]
  %s3 = inlined_call_operand.vmem [shape: bf16[1152,128], index: 3, kind: input, shape index: {}]
  %s4 = inlined_call_operand.vmem [shape: f32[2,64,128], index: 4, kind: output, shape index: {}]
  %s5 = sld [smem:[#allocation0]]
  $region49: #{wide_basic_forward.3} parent=0
    _
  %s7 = ssub.s32 1, %s5
  %s8 = scalar_select 0, %s7, %s5
  loop: start=0, step=1, limit=4
  $region2: #{wide_basic_forward.3} parent=0 // loop_pre_header
    _
  $region3: #{wide_basic_forward.3} parent=0 // loop_header
    %s10 = sphi 0, %s14
    %p11 = scmp.ge.s32.totalorder %s10, 4
    %s20 = sphi 0, %s22
    %s23 = sphi 0, %s20
    %s24 = sphi 0, %s23
    %s40 = sphi 0, %s24
    %s46 = sphi 0, %s48
    %s49 = sphi 0, %s46
    %s50 = sphi 0, %s49
    %s66 = sphi 0, %s50
    %s70 = sphi 0, %s70
    %s72 = sphi 0, %s70
    %s73 = sphi 0, %s72
    %s87 = sphi 0, %s73
    %s91 = sphi 0, %s91
    %s93 = sphi 0, %s91
    %s94 = sphi 0, %s93
    %s108 = sphi 0, %s94
    %s114 = sphi 0, %s116
    %s117 = sphi 0, %s114
    %s118 = sphi 0, %s117
    %s134 = sphi 0, %s118
  $region4: #{wide_basic_forward.3} parent=0 // loop_header_branch
    %13 = sbr.rel (%p11) target = $region8
  $region5: #{wide_basic_forward.3} parent=0 // loop_body
    %s15 = ssub.s32 %s10, 1
    %s16 = ssub.s32 %s10, 2
    %s17 = sadd.s32 %s10, 1
    %s18 = ssub.s32 %s10, %s17
    %p19 = scmp.eq.s32.totalorder %s18, 0
    %s21 = sadd.s32 %s20, 1
    %s22 = scalar_select %p19, %s20, %s21
    %p25 = pneg %p19
    %p26 = scmp.eq.s32.totalorder %s10, 1
    %p27 = por %p25, %p26
    %p28 = scmp.ne.s32.totalorder %s20, %s23
    %p29 = scmp.eq.s32.totalorder %s10, 0
    %p30 = por %p28, %p29
    %p31 = scmp.ne.s32.totalorder %s20, %s23
    %p32 = scmp.eq.s32.totalorder %s15, 1
    %p33 = por %p31, %p32
    %p34 = scmp.ne.s32.totalorder %s23, %s24
    %p35 = scmp.eq.s32.totalorder %s15, 0
    %p36 = por %p34, %p35
    %p37 = scmp.ne.s32.totalorder %s23, %s24
    %p38 = scmp.eq.s32.totalorder %s16, 1
    %p39 = por %p37, %p38
    %p41 = scmp.ne.s32.totalorder %s24, %s40
    %p42 = scmp.eq.s32.totalorder %s16, 0
    %p43 = por %p41, %p42
    %s44 = ssub.s32 %s10, %s17
    %p45 = scmp.eq.s32.totalorder %s44, 0
    %s47 = sadd.s32 %s46, 1
    %s48 = scalar_select %p45, %s46, %s47
    %p51 = pneg %p45
    %p52 = scmp.eq.s32.totalorder %s10, 1
    %p53 = por %p51, %p52
    %p54 = scmp.ne.s32.totalorder %s46, %s49
    %p55 = scmp.eq.s32.totalorder %s10, 0
    %p56 = por %p54, %p55
    %p57 = scmp.ne.s32.totalorder %s46, %s49
    %p58 = scmp.eq.s32.totalorder %s15, 1
    %p59 = por %p57, %p58
    %p60 = scmp.ne.s32.totalorder %s49, %s50
    %p61 = scmp.eq.s32.totalorder %s15, 0
    %p62 = por %p60, %p61
    %p63 = scmp.ne.s32.totalorder %s49, %s50
    %p64 = scmp.eq.s32.totalorder %s16, 1
    %p65 = por %p63, %p64
    %p67 = scmp.ne.s32.totalorder %s50, %s66
    %p68 = scmp.eq.s32.totalorder %s16, 0
    %p69 = por %p67, %p68
    %s71 = sadd.s32 %s70, 1
    %p74 = scmp.eq.s32.totalorder %s10, 1
    %p75 = scmp.ne.s32.totalorder %s70, %s72
    %p76 = scmp.eq.s32.totalorder %s10, 0
    %p77 = por %p75, %p76
    %p78 = scmp.ne.s32.totalorder %s70, %s72
    %p79 = scmp.eq.s32.totalorder %s15, 1
    %p80 = por %p78, %p79
    %p81 = scmp.ne.s32.totalorder %s72, %s73
    %p82 = scmp.eq.s32.totalorder %s15, 0
    %p83 = por %p81, %p82
    %p84 = scmp.ne.s32.totalorder %s72, %s73
    %p85 = scmp.eq.s32.totalorder %s16, 1
    %p86 = por %p84, %p85
    %p88 = scmp.ne.s32.totalorder %s73, %s87
    %p89 = scmp.eq.s32.totalorder %s16, 0
    %p90 = por %p88, %p89
    %s92 = sadd.s32 %s91, 1
    %p95 = scmp.eq.s32.totalorder %s10, 1
    %p96 = scmp.ne.s32.totalorder %s91, %s93
    %p97 = scmp.eq.s32.totalorder %s10, 0
    %p98 = por %p96, %p97
    %p99 = scmp.ne.s32.totalorder %s91, %s93
    %p100 = scmp.eq.s32.totalorder %s15, 1
    %p101 = por %p99, %p100
    %p102 = scmp.ne.s32.totalorder %s93, %s94
    %p103 = scmp.eq.s32.totalorder %s15, 0
    %p104 = por %p102, %p103
    %p105 = scmp.ne.s32.totalorder %s93, %s94
    %p106 = scmp.eq.s32.totalorder %s16, 1
    %p107 = por %p105, %p106
    %p109 = scmp.ne.s32.totalorder %s94, %s108
    %p110 = scmp.eq.s32.totalorder %s16, 0
    %p111 = por %p109, %p110
    %s112 = ssub.s32 %s10, %s17
    %p113 = scmp.eq.s32.totalorder %s112, 0
    %s115 = sadd.s32 %s114, 1
    %s116 = scalar_select %p113, %s114, %s115
    %p119 = pneg %p113
    %p120 = scmp.eq.s32.totalorder %s10, 1
    %p121 = por %p119, %p120
    %p122 = scmp.ne.s32.totalorder %s114, %s117
    %p123 = scmp.eq.s32.totalorder %s10, 0
    %p124 = por %p122, %p123
    %p125 = scmp.ne.s32.totalorder %s114, %s117
    %p126 = scmp.eq.s32.totalorder %s15, 1
    %p127 = por %p125, %p126
    %p128 = scmp.ne.s32.totalorder %s117, %s118
    %p129 = scmp.eq.s32.totalorder %s15, 0
    %p130 = por %p128, %p129
    %p131 = scmp.ne.s32.totalorder %s117, %s118
    %p132 = scmp.eq.s32.totalorder %s16, 1
    %p133 = por %p131, %p132
    %p135 = scmp.ne.s32.totalorder %s118, %s134
    %p136 = scmp.eq.s32.totalorder %s16, 0
    %p137 = por %p135, %p136
    %p138 = scmp.le.s32.totalorder 1, %s10
    %p139 = scmp.lt.s32.totalorder %s10, 3
    %p140 = pnand %p138, %p139
    %p141 = pneg %p140
    // Predicated region
    $region9: #{wide_basic_forward.3} parent=5 // pred_check
      _
    $region10: #{wide_basic_forward.3} parent=5 // pred_check_branch
      %143 = sbr.rel (%p140) target = $region12
    $region11: #{wide_basic_forward.3} parent=5 // pred_region
      %s144 = ssub.s32 %s10, 1
      // Predicated region
      $region13: #{wide_basic_forward.3} parent=11 // pred_check
        %p145 = pneg %p83
      $region14: #{wide_basic_forward.3} parent=11 // pred_check_branch
        %147 = sbr.rel (%p145) target = $region16
      $region15: #{wide_basic_forward.3} parent=11 // pred_region
        _
      $region16: #{wide_basic_forward.3} parent=11 // pred_fallthru
        _
      // Predicated region
      $region17: #{wide_basic_forward.3} parent=11 // pred_check
        %p148 = pneg %p104
      $region18: #{wide_basic_forward.3} parent=11 // pred_check_branch
        %150 = sbr.rel (%p148) target = $region20
      $region19: #{wide_basic_forward.3} parent=11 // pred_region
        _
      $region20: #{wide_basic_forward.3} parent=11 // pred_fallthru
        _
    $region12: #{wide_basic_forward.3} parent=5 // pred_fallthru
      _
    %p151 = scmp.lt.s32.totalorder %s10, 2
    // Predicated region
    $region21: #{wide_basic_forward.3} parent=5 // pred_check
      %p152 = pneg %p151
    $region22: #{wide_basic_forward.3} parent=5 // pred_check_branch
      %154 = sbr.rel (%p152) target = $region24
    $region23: #{wide_basic_forward.3} parent=5 // pred_region
      // Predicated region
      $region25: #{wide_basic_forward.3} parent=23 // pred_check
        %p155 = pneg %p30
      $region26: #{wide_basic_forward.3} parent=23 // pred_check_branch
        %157 = sbr.rel (%p155) target = $region28
      $region27: #{wide_basic_forward.3} parent=23 // pred_region
        %p158 = scmp.lt.s32.totalorder %s10, 1
        %s159 = scalar_select %p158, %s10, 1
        %s160 = smul.addr %s159, 72
        %s161 = smul.addr %s160, 4
        %s162 = scalar_lea.vmem %s0, %s161
      $region28: #{wide_basic_forward.3} parent=23 // pred_fallthru
        _
      // Predicated region
      $region29: #{wide_basic_forward.3} parent=23 // pred_check
        %p163 = pneg %p56
      $region30: #{wide_basic_forward.3} parent=23 // pred_check_branch
        %165 = sbr.rel (%p163) target = $region32
      $region31: #{wide_basic_forward.3} parent=23 // pred_region
        %p166 = scmp.lt.s32.totalorder %s10, 1
        %s167 = scalar_select %p166, %s10, 1
        %s168 = smul.addr %s167, 8
        %s169 = smul.addr %s168, 4
        %s170 = scalar_lea.vmem %s1, %s169
      $region32: #{wide_basic_forward.3} parent=23 // pred_fallthru
        _
    $region24: #{wide_basic_forward.3} parent=5 // pred_fallthru
      _
    %p171 = scmp.le.s32.totalorder 1, %s10
    %p172 = scmp.lt.s32.totalorder %s10, 3
    %p173 = pnand %p171, %p172
    %p174 = pneg %p173
    // Predicated region
    $region33: #{wide_basic_forward.3} parent=5 // pred_check
      _
    $region34: #{wide_basic_forward.3} parent=5 // pred_check_branch
      %176 = sbr.rel (%p173) target = $region36
    $region35: #{wide_basic_forward.3} parent=5 // pred_region
      %s177 = ssub.s32 %s10, 1
      %p178 = scmp.lt.s32.totalorder %s15, 1
      %s179 = scalar_select %p178, %s15, 1
      %s180 = smul.addr %s179, 72
      %s181 = smul.addr %s180, 4
      %s182 = scalar_lea.vmem %s0, %s181
      %p183 = pneg %p36
      %p184 = pneg %p33
      %p185 = scmp.lt.s32.totalorder %s15, 1
      %s186 = scalar_select %p185, %s15, 1
      %s187 = smul.addr %s186, 8
      %s188 = smul.addr %s187, 4
      %s189 = scalar_lea.vmem %s1, %s188
      %p190 = pneg %p62
      %p191 = pneg %p59
      %p192 = pneg %p83
      %p193 = pneg %p80
      %p194 = pneg %p104
      %p195 = pneg %p101
      %p196 = pneg %p130
      %p197 = pneg %p127
      %p198 = scmp.lt.s32.totalorder %s15, 1
      %s199 = scalar_select %p198, %s15, 1
      %s200 = smul.addr %s199, 8
      %s201 = smul.addr %s200, 8
      %s202 = scalar_lea.vmem %s4, %s201
      %p203 = scmp.lt.s32.totalorder %s15, 1
      %s204 = scalar_select %p203, %s15, 1
      %s205 = smul.addr %s204, 72
      %s206 = smul.addr %s205, 4
      %s207 = scalar_lea.vmem %s0, %s206
      %p208 = scmp.lt.s32.totalorder %s15, 1
      %s209 = scalar_select %p208, %s15, 1
      %s210 = smul.addr %s209, 8
      %s211 = smul.addr %s210, 4
      %s212 = scalar_lea.vmem %s1, %s211
      %p213 = scmp.lt.s32.totalorder %s15, 1
      %s214 = scalar_select %p213, %s15, 1
      %s215 = smul.addr %s214, 8
      %s216 = smul.addr %s215, 8
      %s217 = scalar_lea.vmem %s4, %s216
      %v219 = vld [vmem:[%s212] sm:$0xf]
      %v220 = vld [vmem:[%s212 + $0x4] sm:$0xf]
      %v221 = vld [vmem:[%s212 + $0x8] sm:$0xf]
      %v222 = vld [vmem:[%s212 + $0xc] sm:$0xf]
      %v223 = vld [vmem:[%s212 + $0x10] sm:$0xf]
      %v224 = vld [vmem:[%s212 + $0x14] sm:$0xf]
      %v225 = vld [vmem:[%s212 + $0x18] sm:$0xf]
      %v226 = vld [vmem:[%s212 + $0x1c] sm:$0xf]
      %v227 = vld [vmem:[%s2] sm:$0xf]
      %v228 = vld [vmem:[%s2 + $0x4] sm:$0xf]
      %v229 = vld [vmem:[%s2 + $0x8] sm:$0xf]
      %v230 = vld [vmem:[%s2 + $0xc] sm:$0xf]
      %v231 = vld [vmem:[%s2 + $0x10] sm:$0xf]
      %v232 = vld [vmem:[%s2 + $0x14] sm:$0xf]
      %v233 = vld [vmem:[%s2 + $0x18] sm:$0xf]
      %v234 = vld [vmem:[%s2 + $0x1c] sm:$0xf]
      %v235 = vld [vmem:[%s2 + $0x20] sm:$0xf]
      %v236 = vld [vmem:[%s2 + $0x24] sm:$0xf]
      %v237 = vld [vmem:[%s2 + $0x28] sm:$0xf]
      %v238 = vld [vmem:[%s2 + $0x2c] sm:$0xf]
      %v239 = vld [vmem:[%s2 + $0x30] sm:$0xf]
      %v240 = vld [vmem:[%s2 + $0x34] sm:$0xf]
      %v241 = vld [vmem:[%s2 + $0x38] sm:$0xf]
      %v242 = vld [vmem:[%s2 + $0x3c] sm:$0xf]
      %v251 = vunpack.c.l.b16 %v219
      %v252 = vunpack.c.l.b16 %v220
      %v253 = vunpack.c.l.b16 %v221
      %v254 = vunpack.c.l.b16 %v222
      %v255 = vunpack.c.l.b16 %v223
      %v256 = vunpack.c.l.b16 %v224
      %v257 = vunpack.c.l.b16 %v225
      %v258 = vunpack.c.l.b16 %v226
      %v259 = vpack.c.b16 %v252, %v251
      %v260 = vpack.c.b16 %v254, %v253
      %v261 = vpack.c.b16 %v256, %v255
      %v262 = vpack.c.b16 %v258, %v257
      %v283 = vunpack.c.l.b16 %v227
      %v284 = vunpack.c.l.b16 %v228
      %v285 = vunpack.c.l.b16 %v229
      %v286 = vunpack.c.l.b16 %v230
      %v287 = vunpack.c.l.b16 %v231
      %v288 = vunpack.c.l.b16 %v232
      %v289 = vunpack.c.l.b16 %v233
      %v290 = vunpack.c.l.b16 %v234
      %v291 = vunpack.c.l.b16 %v235
      %v292 = vunpack.c.l.b16 %v236
      %v293 = vunpack.c.l.b16 %v237
      %v294 = vunpack.c.l.b16 %v238
      %v295 = vunpack.c.l.b16 %v239
      %v296 = vunpack.c.l.b16 %v240
      %v297 = vunpack.c.l.b16 %v241
      %v298 = vunpack.c.l.b16 %v242
      %v299 = vpack.c.b16 %v284, %v283
      %v300 = vpack.c.b16 %v286, %v285
      %v301 = vpack.c.b16 %v288, %v287
      %v302 = vpack.c.b16 %v290, %v289
      %v303 = vpack.c.b16 %v292, %v291
      %v304 = vpack.c.b16 %v294, %v293
      %v305 = vpack.c.b16 %v296, %v295
      %v306 = vpack.c.b16 %v298, %v297
      %315 = vmatprep.subr.bf16.mxu0 0
      %316 = vmatpush1.bf16.msra.mxu0 %v299
      %317 = vmatprep.subr.bf16.mxu0 0
      %318 = vmatpush1.bf16.msra.mxu0 %v300
      %319 = vmatprep.subr.bf16.mxu0 0
      %320 = vmatpush1.bf16.msra.mxu0 %v301
      %321 = vmatprep.subr.bf16.mxu0 0
      %322 = vmatpush1.bf16.msra.mxu0 %v302
      %323 = vmatprep.subr.bf16.mxu0 0
      %324 = vmatpush1.bf16.msra.mxu0 %v303
      %325 = vmatprep.subr.bf16.mxu0 0
      %326 = vmatpush1.bf16.msra.mxu0 %v304
      %327 = vmatprep.subr.bf16.mxu0 0
      %328 = vmatpush1.bf16.msra.mxu0 %v305
      %329 = vmatprep.subr.bf16.mxu0 0
      %330 = vmatpush1.bf16.msra.mxu0 %v306
      %331 = vmatprep.subr.bf16.mxu0 0
      %332 = vmatpush1.bf16.msra.mxu0 0
      %333 = vmatprep.subr.bf16.mxu0 0
      %334 = vmatpush1.bf16.msra.mxu0 0
      %335 = vmatprep.subr.bf16.mxu0 0
      %336 = vmatpush1.bf16.msra.mxu0 0
      %337 = vmatprep.subr.bf16.mxu0 0
      %338 = vmatpush1.bf16.msra.mxu0 0
      %339 = vmatprep.subr.bf16.mxu0 0
      %340 = vmatpush1.bf16.msra.mxu0 0
      %341 = vmatprep.subr.bf16.mxu0 0
      %342 = vmatpush1.bf16.msra.mxu0 0
      %343 = vmatprep.subr.bf16.mxu0 0
      %344 = vmatpush1.bf16.msra.mxu0 0
      %345 = vmatprep.subr.bf16.mxu0 0
      %346 = vmatpush1.bf16.msra.mxu0 0
      %347 = vmatprep.mubr.bf16.mxu0 0
      %348 = vmatmul.mubr.bf16.gmra.mrb[0].mxu0 %v259
      %v349 = vpop.f32.mrb[0].mxu0
      %v350 = vadd.f32 0.0, %v349
      %v351 = vpop.f32.mrb[0].mxu0
      %v352 = vpop.f32.mrb[0].mxu0
      %v353 = vadd.f32 0.0, %v352
      %v354 = vpop.f32.mrb[0].mxu0
      %355 = vmatprep.mubr.bf16.mxu0 0
      %356 = vmatmul.mubr.bf16.gmra.mrb[0].mxu0 %v260
      %v357 = vpop.f32.mrb[0].mxu0
      %v358 = vadd.f32 0.0, %v357
      %v359 = vpop.f32.mrb[0].mxu0
      %v360 = vpop.f32.mrb[0].mxu0
      %v361 = vadd.f32 0.0, %v360
      %v362 = vpop.f32.mrb[0].mxu0
      %363 = vmatprep.mubr.bf16.mxu0 0
      %364 = vmatmul.mubr.bf16.gmra.mrb[0].mxu0 %v261
      %v365 = vpop.f32.mrb[0].mxu0
      %v366 = vadd.f32 0.0, %v365
      %v367 = vpop.f32.mrb[0].mxu0
      %v368 = vpop.f32.mrb[0].mxu0
      %v369 = vadd.f32 0.0, %v368
      %v370 = vpop.f32.mrb[0].mxu0
      %371 = vmatprep.mubr.bf16.mxu0 0
      %372 = vmatmul.mubr.bf16.gmra.mrb[0].mxu0 %v262
      %v373 = vpop.f32.mrb[0].mxu0
      %v374 = vadd.f32 0.0, %v373
      %v375 = vpop.f32.mrb[0].mxu0
      %v376 = vpop.f32.mrb[0].mxu0
      %v377 = vadd.f32 0.0, %v376
      %v378 = vpop.f32.mrb[0].mxu0
      %379 = vdwg.mxu0
      %380 = vst [vmem:[#allocation2] sm:$0xff] %v350
      %381 = vst [vmem:[#allocation2 + $0x8] sm:$0xff] %v353
      %382 = vst [vmem:[#allocation2 + $0x10] sm:$0xff] %v358
      %383 = vst [vmem:[#allocation2 + $0x18] sm:$0xff] %v361
      %384 = vst [vmem:[#allocation2 + $0x20] sm:$0xff] %v366
      %385 = vst [vmem:[#allocation2 + $0x28] sm:$0xff] %v369
      %386 = vst [vmem:[#allocation2 + $0x30] sm:$0xff] %v374
      %387 = vst [vmem:[#allocation2 + $0x38] sm:$0xff] %v377
      %v388 = vld [vmem:[%s207] sm:$0xf]
      %v389 = vld [vmem:[%s207 + $0x8] sm:$0xf]
      %v390 = vld [vmem:[%s207 + $0x10] sm:$0xf]
      %v391 = vld [vmem:[%s207 + $0x18] sm:$0xf]
      %v392 = vld [vmem:[%s207 + $0x20] sm:$0xf]
      %v393 = vld [vmem:[%s207 + $0x28] sm:$0xf]
      %v394 = vld [vmem:[%s207 + $0x30] sm:$0xf]
      %v395 = vld [vmem:[%s207 + $0x38] sm:$0xf]
      %v396 = vld [vmem:[#allocation2] sm:$0xff]
      %v397 = vld [vmem:[#allocation2 + $0x8] sm:$0xff]
      %v398 = vld [vmem:[#allocation2 + $0x10] sm:$0xff]
      %v399 = vld [vmem:[#allocation2 + $0x18] sm:$0xff]
      %v400 = vld [vmem:[#allocation2 + $0x20] sm:$0xff]
      %v401 = vld [vmem:[#allocation2 + $0x28] sm:$0xff]
      %v402 = vld [vmem:[#allocation2 + $0x30] sm:$0xff]
      %v403 = vld [vmem:[#allocation2 + $0x38] sm:$0xff]
      %v404 = vld [vmem:[%s3] sm:$0xf]
      %v405 = vld [vmem:[%s3 + $0x4] sm:$0xf]
      %v406 = vld [vmem:[%s3 + $0x8] sm:$0xf]
      %v407 = vld [vmem:[%s3 + $0xc] sm:$0xf]
      %v408 = vld [vmem:[%s3 + $0x10] sm:$0xf]
      %v409 = vld [vmem:[%s3 + $0x14] sm:$0xf]
      %v410 = vld [vmem:[%s3 + $0x18] sm:$0xf]
      %v411 = vld [vmem:[%s3 + $0x1c] sm:$0xf]
      %v412 = vld [vmem:[%s3 + $0x20] sm:$0xf]
      %v413 = vld [vmem:[%s3 + $0x24] sm:$0xf]
      %v414 = vld [vmem:[%s3 + $0x28] sm:$0xf]
      %v415 = vld [vmem:[%s3 + $0x2c] sm:$0xf]
      %v416 = vld [vmem:[%s3 + $0x30] sm:$0xf]
      %v417 = vld [vmem:[%s3 + $0x34] sm:$0xf]
      %v418 = vld [vmem:[%s3 + $0x38] sm:$0xf]
      %v419 = vld [vmem:[%s3 + $0x3c] sm:$0xf]
      %v428 = vunpack.c.l.b16 %v388
      %v429 = vunpack.c.l.b16 %v389
      %v430 = vunpack.c.l.b16 %v390
      %v431 = vunpack.c.l.b16 %v391
      %v432 = vunpack.c.l.b16 %v392
      %v433 = vunpack.c.l.b16 %v393
      %v434 = vunpack.c.l.b16 %v394
      %v435 = vunpack.c.l.b16 %v395
      %v436 = vpack.c.b16 %v429, %v428
      %v437 = vpack.c.b16 %v431, %v430
      %v438 = vpack.c.b16 %v433, %v432
      %v439 = vpack.c.b16 %v435, %v434
      %v460 = vunpack.c.l.b16 %v404
      %v461 = vunpack.c.l.b16 %v405
      %v462 = vunpack.c.l.b16 %v406
      %v463 = vunpack.c.l.b16 %v407
      %v464 = vunpack.c.l.b16 %v408
      %v465 = vunpack.c.l.b16 %v409
      %v466 = vunpack.c.l.b16 %v410
      %v467 = vunpack.c.l.b16 %v411
      %v468 = vunpack.c.l.b16 %v412
      %v469 = vunpack.c.l.b16 %v413
      %v470 = vunpack.c.l.b16 %v414
      %v471 = vunpack.c.l.b16 %v415
      %v472 = vunpack.c.l.b16 %v416
      %v473 = vunpack.c.l.b16 %v417
      %v474 = vunpack.c.l.b16 %v418
      %v475 = vunpack.c.l.b16 %v419
      %v476 = vpack.c.b16 %v461, %v460
      %v477 = vpack.c.b16 %v463, %v462
      %v478 = vpack.c.b16 %v465, %v464
      %v479 = vpack.c.b16 %v467, %v466
      %v480 = vpack.c.b16 %v469, %v468
      %v481 = vpack.c.b16 %v471, %v470
      %v482 = vpack.c.b16 %v473, %v472
      %v483 = vpack.c.b16 %v475, %v474
      %492 = vmatprep.subr.bf16.mxu0 0
      %493 = vmatpush1.bf16.msra.mxu0 %v476
      %494 = vmatprep.subr.bf16.mxu0 0
      %495 = vmatpush1.bf16.msra.mxu0 %v477
      %496 = vmatprep.subr.bf16.mxu0 0
      %497 = vmatpush1.bf16.msra.mxu0 %v478
      %498 = vmatprep.subr.bf16.mxu0 0
      %499 = vmatpush1.bf16.msra.mxu0 %v479
      %500 = vmatprep.subr.bf16.mxu0 0
      %501 = vmatpush1.bf16.msra.mxu0 %v480
      %502 = vmatprep.subr.bf16.mxu0 0
      %503 = vmatpush1.bf16.msra.mxu0 %v481
      %504 = vmatprep.subr.bf16.mxu0 0
      %505 = vmatpush1.bf16.msra.mxu0 %v482
      %506 = vmatprep.subr.bf16.mxu0 0
      %507 = vmatpush1.bf16.msra.mxu0 %v483
      %508 = vmatprep.subr.bf16.mxu0 0
      %509 = vmatpush1.bf16.msra.mxu0 0
      %510 = vmatprep.subr.bf16.mxu0 0
      %511 = vmatpush1.bf16.msra.mxu0 0
      %512 = vmatprep.subr.bf16.mxu0 0
      %513 = vmatpush1.bf16.msra.mxu0 0
      %514 = vmatprep.subr.bf16.mxu0 0
      %515 = vmatpush1.bf16.msra.mxu0 0
      %516 = vmatprep.subr.bf16.mxu0 0
      %517 = vmatpush1.bf16.msra.mxu0 0
      %518 = vmatprep.subr.bf16.mxu0 0
      %519 = vmatpush1.bf16.msra.mxu0 0
      %520 = vmatprep.subr.bf16.mxu0 0
      %521 = vmatpush1.bf16.msra.mxu0 0
      %522 = vmatprep.subr.bf16.mxu0 0
      %523 = vmatpush1.bf16.msra.mxu0 0
      %524 = vmatprep.mubr.bf16.mxu0 0
      %525 = vmatmul.mubr.bf16.gmra.mrb[0].mxu0 %v436
      %v526 = vpop.f32.mrb[0].mxu0
      %v527 = vadd.f32 0.0, %v526
      %v528 = vpop.f32.mrb[0].mxu0
      %v529 = vpop.f32.mrb[0].mxu0
      %v530 = vadd.f32 0.0, %v529
      %v531 = vpop.f32.mrb[0].mxu0
      %532 = vmatprep.mubr.bf16.mxu0 0
      %533 = vmatmul.mubr.bf16.gmra.mrb[0].mxu0 %v437
      %v534 = vpop.f32.mrb[0].mxu0
      %v535 = vadd.f32 0.0, %v534
      %v536 = vpop.f32.mrb[0].mxu0
      %v537 = vpop.f32.mrb[0].mxu0
      %v538 = vadd.f32 0.0, %v537
      %v539 = vpop.f32.mrb[0].mxu0
      %540 = vmatprep.mubr.bf16.mxu0 0
      %541 = vmatmul.mubr.bf16.gmra.mrb[0].mxu0 %v438
      %v542 = vpop.f32.mrb[0].mxu0
      %v543 = vadd.f32 0.0, %v542
      %v544 = vpop.f32.mrb[0].mxu0
      %v545 = vpop.f32.mrb[0].mxu0
      %v546 = vadd.f32 0.0, %v545
      %v547 = vpop.f32.mrb[0].mxu0
      %548 = vmatprep.mubr.bf16.mxu0 0
      %549 = vmatmul.mubr.bf16.gmra.mrb[0].mxu0 %v439
      %v550 = vpop.f32.mrb[0].mxu0
      %v551 = vadd.f32 0.0, %v550
      %v552 = vpop.f32.mrb[0].mxu0
      %v553 = vpop.f32.mrb[0].mxu0
      %v554 = vadd.f32 0.0, %v553
      %v555 = vpop.f32.mrb[0].mxu0
      %556 = vdwg.mxu0
      %v557 = vadd.f32 %v396, %v527
      %v558 = vadd.f32 %v397, %v530
      %v559 = vadd.f32 %v398, %v535
      %v560 = vadd.f32 %v399, %v538
      %v561 = vadd.f32 %v400, %v543
      %v562 = vadd.f32 %v401, %v546
      %v563 = vadd.f32 %v402, %v551
      %v564 = vadd.f32 %v403, %v554
      %565 = vst [vmem:[#allocation2] sm:$0xff] %v557
      %566 = vst [vmem:[#allocation2 + $0x8] sm:$0xff] %v558
      %567 = vst [vmem:[#allocation2 + $0x10] sm:$0xff] %v559
      %568 = vst [vmem:[#allocation2 + $0x18] sm:$0xff] %v560
      %569 = vst [vmem:[#allocation2 + $0x20] sm:$0xff] %v561
      %570 = vst [vmem:[#allocation2 + $0x28] sm:$0xff] %v562
      %571 = vst [vmem:[#allocation2 + $0x30] sm:$0xff] %v563
      %572 = vst [vmem:[#allocation2 + $0x38] sm:$0xff] %v564
      %s573 = scalar_lea.vmem %s207, 72
      %v574 = vld [vmem:[%s573] sm:$0xf]
      %v575 = vld [vmem:[%s573 + $0x8] sm:$0xf]
      %v576 = vld [vmem:[%s573 + $0x10] sm:$0xf]
      %v577 = vld [vmem:[%s573 + $0x18] sm:$0xf]
      %v578 = vld [vmem:[%s573 + $0x20] sm:$0xf]
      %v579 = vld [vmem:[%s573 + $0x28] sm:$0xf]
      %v580 = vld [vmem:[%s573 + $0x30] sm:$0xf]
      %v581 = vld [vmem:[%s573 + $0x38] sm:$0xf]
      %v582 = vld [vmem:[#allocation2] sm:$0xff]
      %v583 = vld [vmem:[#allocation2 + $0x8] sm:$0xff]
      %v584 = vld [vmem:[#allocation2 + $0x10] sm:$0xff]
      %v585 = vld [vmem:[#allocation2 + $0x18] sm:$0xff]
      %v586 = vld [vmem:[#allocation2 + $0x20] sm:$0xff]
      %v587 = vld [vmem:[#allocation2 + $0x28] sm:$0xff]
      %v588 = vld [vmem:[#allocation2 + $0x30] sm:$0xff]
      %v589 = vld [vmem:[#allocation2 + $0x38] sm:$0xff]
      %v590 = vld [vmem:[%s3 + $0x40] sm:$0xf]
      %v591 = vld [vmem:[%s3 + $0x44] sm:$0xf]
      %v592 = vld [vmem:[%s3 + $0x48] sm:$0xf]
      %v593 = vld [vmem:[%s3 + $0x4c] sm:$0xf]
      %v594 = vld [vmem:[%s3 + $0x50] sm:$0xf]
      %v595 = vld [vmem:[%s3 + $0x54] sm:$0xf]
      %v596 = vld [vmem:[%s3 + $0x58] sm:$0xf]
      %v597 = vld [vmem:[%s3 + $0x5c] sm:$0xf]
      %v598 = vld [vmem:[%s3 + $0x60] sm:$0xf]
      %v599 = vld [vmem:[%s3 + $0x64] sm:$0xf]
      %v600 = vld [vmem:[%s3 + $0x68] sm:$0xf]
      %v601 = vld [vmem:[%s3 + $0x6c] sm:$0xf]
      %v602 = vld [vmem:[%s3 + $0x70] sm:$0xf]
      %v603 = vld [vmem:[%s3 + $0x74] sm:$0xf]
      %v604 = vld [vmem:[%s3 + $0x78] sm:$0xf]
      %v605 = vld [vmem:[%s3 + $0x7c] sm:$0xf]
      %v614 = vunpack.c.l.b16 %v574
      %v615 = vunpack.c.l.b16 %v575
      %v616 = vunpack.c.l.b16 %v576
      %v617 = vunpack.c.l.b16 %v577
      %v618 = vunpack.c.l.b16 %v578
      %v619 = vunpack.c.l.b16 %v579
      %v620 = vunpack.c.l.b16 %v580
      %v621 = vunpack.c.l.b16 %v581
      %v622 = vpack.c.b16 %v615, %v614
      %v623 = vpack.c.b16 %v617, %v616
      %v624 = vpack.c.b16 %v619, %v618
      %v625 = vpack.c.b16 %v621, %v620
      %v646 = vunpack.c.l.b16 %v590
      %v647 = vunpack.c.l.b16 %v591
      %v648 = vunpack.c.l.b16 %v592
      %v649 = vunpack.c.l.b16 %v593
      %v650 = vunpack.c.l.b16 %v594
      %v651 = vunpack.c.l.b16 %v595
      %v652 = vunpack.c.l.b16 %v596
      %v653 = vunpack.c.l.b16 %v597
      %v654 = vunpack.c.l.b16 %v598
      %v655 = vunpack.c.l.b16 %v599
      %v656 = vunpack.c.l.b16 %v600
      %v657 = vunpack.c.l.b16 %v601
      %v658 = vunpack.c.l.b16 %v602
      %v659 = vunpack.c.l.b16 %v603
      %v660 = vunpack.c.l.b16 %v604
      %v661 = vunpack.c.l.b16 %v605
      %v662 = vpack.c.b16 %v647, %v646
      %v663 = vpack.c.b16 %v649, %v648
      %v664 = vpack.c.b16 %v651, %v650
      %v665 = vpack.c.b16 %v653, %v652
      %v666 = vpack.c.b16 %v655, %v654
      %v667 = vpack.c.b16 %v657, %v656
      %v668 = vpack.c.b16 %v659, %v658
      %v669 = vpack.c.b16 %v661, %v660
      %678 = vmatprep.subr.bf16.mxu0 0
      %679 = vmatpush1.bf16.msra.mxu0 %v662
      %680 = vmatprep.subr.bf16.mxu0 0
      %681 = vmatpush1.bf16.msra.mxu0 %v663
      %682 = vmatprep.subr.bf16.mxu0 0
      %683 = vmatpush1.bf16.msra.mxu0 %v664
      %684 = vmatprep.subr.bf16.mxu0 0
      %685 = vmatpush1.bf16.msra.mxu0 %v665
      %686 = vmatprep.subr.bf16.mxu0 0
      %687 = vmatpush1.bf16.msra.mxu0 %v666
      %688 = vmatprep.subr.bf16.mxu0 0
      %689 = vmatpush1.bf16.msra.mxu0 %v667
      %690 = vmatprep.subr.bf16.mxu0 0
      %691 = vmatpush1.bf16.msra.mxu0 %v668
      %692 = vmatprep.subr.bf16.mxu0 0
      %693 = vmatpush1.bf16.msra.mxu0 %v669
      %694 = vmatprep.subr.bf16.mxu0 0
      %695 = vmatpush1.bf16.msra.mxu0 0
      %696 = vmatprep.subr.bf16.mxu0 0
      %697 = vmatpush1.bf16.msra.mxu0 0
      %698 = vmatprep.subr.bf16.mxu0 0
      %699 = vmatpush1.bf16.msra.mxu0 0
      %700 = vmatprep.subr.bf16.mxu0 0
      %701 = vmatpush1.bf16.msra.mxu0 0
      %702 = vmatprep.subr.bf16.mxu0 0
      %703 = vmatpush1.bf16.msra.mxu0 0
      %704 = vmatprep.subr.bf16.mxu0 0
      %705 = vmatpush1.bf16.msra.mxu0 0
      %706 = vmatprep.subr.bf16.mxu0 0
      %707 = vmatpush1.bf16.msra.mxu0 0
      %708 = vmatprep.subr.bf16.mxu0 0
      %709 = vmatpush1.bf16.msra.mxu0 0
      %710 = vmatprep.mubr.bf16.mxu0 0
      %711 = vmatmul.mubr.bf16.gmra.mrb[0].mxu0 %v622
      %v712 = vpop.f32.mrb[0].mxu0
      %v713 = vadd.f32 0.0, %v712
      %v714 = vpop.f32.mrb[0].mxu0
      %v715 = vpop.f32.mrb[0].mxu0
      %v716 = vadd.f32 0.0, %v715
      %v717 = vpop.f32.mrb[0].mxu0
      %718 = vmatprep.mubr.bf16.mxu0 0
      %719 = vmatmul.mubr.bf16.gmra.mrb[0].mxu0 %v623
      %v720 = vpop.f32.mrb[0].mxu0
      %v721 = vadd.f32 0.0, %v720
      %v722 = vpop.f32.mrb[0].mxu0
      %v723 = vpop.f32.mrb[0].mxu0
      %v724 = vadd.f32 0.0, %v723
      %v725 = vpop.f32.mrb[0].mxu0
      %726 = vmatprep.mubr.bf16.mxu0 0
      %727 = vmatmul.mubr.bf16.gmra.mrb[0].mxu0 %v624
      %v728 = vpop.f32.mrb[0].mxu0
      %v729 = vadd.f32 0.0, %v728
      %v730 = vpop.f32.mrb[0].mxu0
      %v731 = vpop.f32.mrb[0].mxu0
      %v732 = vadd.f32 0.0, %v731
      %v733 = vpop.f32.mrb[0].mxu0
      %734 = vmatprep.mubr.bf16.mxu0 0
      %735 = vmatmul.mubr.bf16.gmra.mrb[0].mxu0 %v625
      %v736 = vpop.f32.mrb[0].mxu0
      %v737 = vadd.f32 0.0, %v736
      %v738 = vpop.f32.mrb[0].mxu0
      %v739 = vpop.f32.mrb[0].mxu0
      %v740 = vadd.f32 0.0, %v739
      %v741 = vpop.f32.mrb[0].mxu0
      %742 = vdwg.mxu0
      %v743 = vadd.f32 %v582, %v713
      %v744 = vadd.f32 %v583, %v716
      %v745 = vadd.f32 %v584, %v721
      %v746 = vadd.f32 %v585, %v724
      %v747 = vadd.f32 %v586, %v729
      %v748 = vadd.f32 %v587, %v732
      %v749 = vadd.f32 %v588, %v737
      %v750 = vadd.f32 %v589, %v740
      %751 = vst [vmem:[#allocation2] sm:$0xff] %v743
      %752 = vst [vmem:[#allocation2 + $0x8] sm:$0xff] %v744
      %753 = vst [vmem:[#allocation2 + $0x10] sm:$0xff] %v745
      %754 = vst [vmem:[#allocation2 + $0x18] sm:$0xff] %v746
      %755 = vst [vmem:[#allocation2 + $0x20] sm:$0xff] %v747
      %756 = vst [vmem:[#allocation2 + $0x28] sm:$0xff] %v748
      %757 = vst [vmem:[#allocation2 + $0x30] sm:$0xff] %v749
      %758 = vst [vmem:[#allocation2 + $0x38] sm:$0xff] %v750
      %v759 = vld [vmem:[%s207] sm:$0xf]
      %v760 = vld [vmem:[%s207 + $0x4] sm:$0x1]
      %v761 = vld [vmem:[%s207 + $0x8] sm:$0xf]
      %v762 = vld [vmem:[%s207 + $0xc] sm:$0x1]
      %v763 = vld [vmem:[%s207 + $0x10] sm:$0xf]
      %v764 = vld [vmem:[%s207 + $0x14] sm:$0x1]
      %v765 = vld [vmem:[%s207 + $0x18] sm:$0xf]
      %v766 = vld [vmem:[%s207 + $0x1c] sm:$0x1]
      %v767 = vld [vmem:[%s207 + $0x20] sm:$0xf]
      %v768 = vld [vmem:[%s207 + $0x24] sm:$0x1]
      %v769 = vld [vmem:[%s207 + $0x28] sm:$0xf]
      %v770 = vld [vmem:[%s207 + $0x2c] sm:$0x1]
      %v771 = vld [vmem:[%s207 + $0x30] sm:$0xf]
      %v772 = vld [vmem:[%s207 + $0x34] sm:$0x1]
      %v773 = vld [vmem:[%s207 + $0x38] sm:$0xf]
      %v774 = vld [vmem:[%s207 + $0x3c] sm:$0x1]
      %vm775 = vsmask.f32 3328
      %vm776 = vsmask.f32 7440
      %vm777 = vmor %vm775, %vm776
      %v779 = vshrl.u32 %v759, 16
      %v781 = vrot.slane %v779, 4
      %v782 = vshll.u32 %v759, 16
      %v784 = vrot.slane %v782, 5
      %v785 = vor.u32 %v781, %v784
      %v786 = vrot.slane %v785, 4
      %v788 = vshll.u32 %v760, 16
      %v790 = vrot.slane %v788, 5
      %v791 = vsel %vm777, %v786, %v790
      %v793 = vshrl.u32 %v761, 16
      %v795 = vrot.slane %v793, 4
      %v796 = vshll.u32 %v761, 16
      %v798 = vrot.slane %v796, 5
      %v799 = vor.u32 %v795, %v798
      %v800 = vrot.slane %v799, 4
      %v802 = vshll.u32 %v762, 16
      %v804 = vrot.slane %v802, 5
      %v805 = vsel %vm777, %v800, %v804
      %v807 = vshrl.u32 %v763, 16
      %v809 = vrot.slane %v807, 4
      %v810 = vshll.u32 %v763, 16
      %v812 = vrot.slane %v810, 5
      %v813 = vor.u32 %v809, %v812
      %v814 = vrot.slane %v813, 4
      %v816 = vshll.u32 %v764, 16
      %v818 = vrot.slane %v816, 5
      %v819 = vsel %vm777, %v814, %v818
      %v821 = vshrl.u32 %v765, 16
      %v823 = vrot.slane %v821, 4
      %v824 = vshll.u32 %v765, 16
      %v826 = vrot.slane %v824, 5
      %v827 = vor.u32 %v823, %v826
      %v828 = vrot.slane %v827, 4
      %v830 = vshll.u32 %v766, 16
      %v832 = vrot.slane %v830, 5
      %v833 = vsel %vm777, %v828, %v832
      %v835 = vshrl.u32 %v767, 16
      %v837 = vrot.slane %v835, 4
      %v838 = vshll.u32 %v767, 16
      %v840 = vrot.slane %v838, 5
      %v841 = vor.u32 %v837, %v840
      %v842 = vrot.slane %v841, 4
      %v844 = vshll.u32 %v768, 16
      %v846 = vrot.slane %v844, 5
      %v847 = vsel %vm777, %v842, %v846
      %v849 = vshrl.u32 %v769, 16
      %v851 = vrot.slane %v849, 4
      %v852 = vshll.u32 %v769, 16
      %v854 = vrot.slane %v852, 5
      %v855 = vor.u32 %v851, %v854
      %v856 = vrot.slane %v855, 4
      %v858 = vshll.u32 %v770, 16
      %v860 = vrot.slane %v858, 5
      %v861 = vsel %vm777, %v856, %v860
      %v863 = vshrl.u32 %v771, 16
      %v865 = vrot.slane %v863, 4
      %v866 = vshll.u32 %v771, 16
      %v868 = vrot.slane %v866, 5
      %v869 = vor.u32 %v865, %v868
      %v870 = vrot.slane %v869, 4
      %v872 = vshll.u32 %v772, 16
      %v874 = vrot.slane %v872, 5
      %v875 = vsel %vm777, %v870, %v874
      %v877 = vshrl.u32 %v773, 16
      %v879 = vrot.slane %v877, 4
      %v880 = vshll.u32 %v773, 16
      %v882 = vrot.slane %v880, 5
      %v883 = vor.u32 %v879, %v882
      %v884 = vrot.slane %v883, 4
      %v886 = vshll.u32 %v774, 16
      %v888 = vrot.slane %v886, 5
      %v889 = vsel %vm777, %v884, %v888
      %v890 = vld [vmem:[#allocation2] sm:$0xff]
      %v891 = vld [vmem:[#allocation2 + $0x8] sm:$0xff]
      %v892 = vld [vmem:[#allocation2 + $0x10] sm:$0xff]
      %v893 = vld [vmem:[#allocation2 + $0x18] sm:$0xff]
      %v894 = vld [vmem:[#allocation2 + $0x20] sm:$0xff]
      %v895 = vld [vmem:[#allocation2 + $0x28] sm:$0xff]
      %v896 = vld [vmem:[#allocation2 + $0x30] sm:$0xff]
      %v897 = vld [vmem:[#allocation2 + $0x38] sm:$0xff]
      %v898 = vld [vmem:[%s3 + $0x80] sm:$0xf]
      %v899 = vld [vmem:[%s3 + $0x84] sm:$0xf]
      %v900 = vld [vmem:[%s3 + $0x88] sm:$0xf]
      %v901 = vld [vmem:[%s3 + $0x8c] sm:$0xf]
      %v902 = vld [vmem:[%s3 + $0x90] sm:$0xf]
      %v903 = vld [vmem:[%s3 + $0x94] sm:$0xf]
      %v904 = vld [vmem:[%s3 + $0x98] sm:$0xf]
      %v905 = vld [vmem:[%s3 + $0x9c] sm:$0xf]
      %v906 = vld [vmem:[%s3 + $0xa0] sm:$0xf]
      %v907 = vld [vmem:[%s3 + $0xa4] sm:$0xf]
      %v908 = vld [vmem:[%s3 + $0xa8] sm:$0xf]
      %v909 = vld [vmem:[%s3 + $0xac] sm:$0xf]
      %v910 = vld [vmem:[%s3 + $0xb0] sm:$0xf]
      %v911 = vld [vmem:[%s3 + $0xb4] sm:$0xf]
      %v912 = vld [vmem:[%s3 + $0xb8] sm:$0xf]
      %v913 = vld [vmem:[%s3 + $0xbc] sm:$0xf]
      %v914 = vunpack.c.l.b16 %v791
      %v915 = vunpack.c.l.b16 %v805
      %v916 = vunpack.c.l.b16 %v819
      %v917 = vunpack.c.l.b16 %v833
      %v918 = vunpack.c.l.b16 %v847
      %v919 = vunpack.c.l.b16 %v861
      %v920 = vunpack.c.l.b16 %v875
      %v921 = vunpack.c.l.b16 %v889
      %v922 = vpack.c.b16 %v915, %v914
      %v923 = vpack.c.b16 %v917, %v916
      %v924 = vpack.c.b16 %v919, %v918
      %v925 = vpack.c.b16 %v921, %v920
      %v946 = vunpack.c.l.b16 %v898
      %v947 = vunpack.c.l.b16 %v899
      %v948 = vunpack.c.l.b16 %v900
      %v949 = vunpack.c.l.b16 %v901
      %v950 = vunpack.c.l.b16 %v902
      %v951 = vunpack.c.l.b16 %v903
      %v952 = vunpack.c.l.b16 %v904
      %v953 = vunpack.c.l.b16 %v905
      %v954 = vunpack.c.l.b16 %v906
      %v955 = vunpack.c.l.b16 %v907
      %v956 = vunpack.c.l.b16 %v908
      %v957 = vunpack.c.l.b16 %v909
      %v958 = vunpack.c.l.b16 %v910
      %v959 = vunpack.c.l.b16 %v911
      %v960 = vunpack.c.l.b16 %v912
      %v961 = vunpack.c.l.b16 %v913
      %v962 = vpack.c.b16 %v947, %v946
      %v963 = vpack.c.b16 %v949, %v948
      %v964 = vpack.c.b16 %v951, %v950
      %v965 = vpack.c.b16 %v953, %v952
      %v966 = vpack.c.b16 %v955, %v954
      %v967 = vpack.c.b16 %v957, %v956
      %v968 = vpack.c.b16 %v959, %v958
      %v969 = vpack.c.b16 %v961, %v960
      %978 = vmatprep.subr.bf16.mxu0 0
      %979 = vmatpush1.bf16.msra.mxu0 %v962
      %980 = vmatprep.subr.bf16.mxu0 0
      %981 = vmatpush1.bf16.msra.mxu0 %v963
      %982 = vmatprep.subr.bf16.mxu0 0
      %983 = vmatpush1.bf16.msra.mxu0 %v964
      %984 = vmatprep.subr.bf16.mxu0 0
      %985 = vmatpush1.bf16.msra.mxu0 %v965
      %986 = vmatprep.subr.bf16.mxu0 0
      %987 = vmatpush1.bf16.msra.mxu0 %v966
      %988 = vmatprep.subr.bf16.mxu0 0
      %989 = vmatpush1.bf16.msra.mxu0 %v967
      %990 = vmatprep.subr.bf16.mxu0 0
      %991 = vmatpush1.bf16.msra.mxu0 %v968
      %992 = vmatprep.subr.bf16.mxu0 0
      %993 = vmatpush1.bf16.msra.mxu0 %v969
      %994 = vmatprep.subr.bf16.mxu0 0
      %995 = vmatpush1.bf16.msra.mxu0 0
      %996 = vmatprep.subr.bf16.mxu0 0
      %997 = vmatpush1.bf16.msra.mxu0 0
      %998 = vmatprep.subr.bf16.mxu0 0
      %999 = vmatpush1.bf16.msra.mxu0 0
      %1000 = vmatprep.subr.bf16.mxu0 0
      %1001 = vmatpush1.bf16.msra.mxu0 0
      %1002 = vmatprep.subr.bf16.mxu0 0
      %1003 = vmatpush1.bf16.msra.mxu0 0
      %1004 = vmatprep.subr.bf16.mxu0 0
      %1005 = vmatpush1.bf16.msra.mxu0 0
      %1006 = vmatprep.subr.bf16.mxu0 0
      %1007 = vmatpush1.bf16.msra.mxu0 0
      %1008 = vmatprep.subr.bf16.mxu0 0
      %1009 = vmatpush1.bf16.msra.mxu0 0
      %1010 = vmatprep.mubr.bf16.mxu0 0
      %1011 = vmatmul.mubr.bf16.gmra.mrb[0].mxu0 %v922
      %v1012 = vpop.f32.mrb[0].mxu0
      %v1013 = vadd.f32 0.0, %v1012
      %v1014 = vpop.f32.mrb[0].mxu0
      %v1015 = vpop.f32.mrb[0].mxu0
      %v1016 = vadd.f32 0.0, %v1015
      %v1017 = vpop.f32.mrb[0].mxu0
      %1018 = vmatprep.mubr.bf16.mxu0 0
      %1019 = vmatmul.mubr.bf16.gmra.mrb[0].mxu0 %v923
      %v1020 = vpop.f32.mrb[0].mxu0
      %v1021 = vadd.f32 0.0, %v1020
      %v1022 = vpop.f32.mrb[0].mxu0
      %v1023 = vpop.f32.mrb[0].mxu0
      %v1024 = vadd.f32 0.0, %v1023
      %v1025 = vpop.f32.mrb[0].mxu0
      %1026 = vmatprep.mubr.bf16.mxu0 0
      %1027 = vmatmul.mubr.bf16.gmra.mrb[0].mxu0 %v924
      %v1028 = vpop.f32.mrb[0].mxu0
      %v1029 = vadd.f32 0.0, %v1028
      %v1030 = vpop.f32.mrb[0].mxu0
      %v1031 = vpop.f32.mrb[0].mxu0
      %v1032 = vadd.f32 0.0, %v1031
      %v1033 = vpop.f32.mrb[0].mxu0
      %1034 = vmatprep.mubr.bf16.mxu0 0
      %1035 = vmatmul.mubr.bf16.gmra.mrb[0].mxu0 %v925
      %v1036 = vpop.f32.mrb[0].mxu0
      %v1037 = vadd.f32 0.0, %v1036
      %v1038 = vpop.f32.mrb[0].mxu0
      %v1039 = vpop.f32.mrb[0].mxu0
      %v1040 = vadd.f32 0.0, %v1039
      %v1041 = vpop.f32.mrb[0].mxu0
      %1042 = vdwg.mxu0
      %v1043 = vadd.f32 %v890, %v1013
      %v1044 = vadd.f32 %v891, %v1016
      %v1045 = vadd.f32 %v892, %v1021
      %v1046 = vadd.f32 %v893, %v1024
      %v1047 = vadd.f32 %v894, %v1029
      %v1048 = vadd.f32 %v895, %v1032
      %v1049 = vadd.f32 %v896, %v1037
      %v1050 = vadd.f32 %v897, %v1040
      %1051 = vst [vmem:[#allocation2] sm:$0xff] %v1043
      %1052 = vst [vmem:[#allocation2 + $0x8] sm:$0xff] %v1044
      %1053 = vst [vmem:[#allocation2 + $0x10] sm:$0xff] %v1045
      %1054 = vst [vmem:[#allocation2 + $0x18] sm:$0xff] %v1046
      %1055 = vst [vmem:[#allocation2 + $0x20] sm:$0xff] %v1047
      %1056 = vst [vmem:[#allocation2 + $0x28] sm:$0xff] %v1048
      %1057 = vst [vmem:[#allocation2 + $0x30] sm:$0xff] %v1049
      %1058 = vst [vmem:[#allocation2 + $0x38] sm:$0xff] %v1050
      %s1059 = scalar_lea.vmem %s207, 144
      %v1060 = vld [vmem:[%s1059] sm:$0xf]
      %v1061 = vld [vmem:[%s1059 + $0x8] sm:$0xf]
      %v1062 = vld [vmem:[%s1059 + $0x10] sm:$0xf]
      %v1063 = vld [vmem:[%s1059 + $0x18] sm:$0xf]
      %v1064 = vld [vmem:[%s1059 + $0x20] sm:$0xf]
      %v1065 = vld [vmem:[%s1059 + $0x28] sm:$0xf]
      %v1066 = vld [vmem:[%s1059 + $0x30] sm:$0xf]
      %v1067 = vld [vmem:[%s1059 + $0x38] sm:$0xf]
      %v1068 = vld [vmem:[#allocation2] sm:$0xff]
      %v1069 = vld [vmem:[#allocation2 + $0x8] sm:$0xff]
      %v1070 = vld [vmem:[#allocation2 + $0x10] sm:$0xff]
      %v1071 = vld [vmem:[#allocation2 + $0x18] sm:$0xff]
      %v1072 = vld [vmem:[#allocation2 + $0x20] sm:$0xff]
      %v1073 = vld [vmem:[#allocation2 + $0x28] sm:$0xff]
      %v1074 = vld [vmem:[#allocation2 + $0x30] sm:$0xff]
      %v1075 = vld [vmem:[#allocation2 + $0x38] sm:$0xff]
      %v1076 = vld [vmem:[%s3 + $0xc0] sm:$0xf]
      %v1077 = vld [vmem:[%s3 + $0xc4] sm:$0xf]
      %v1078 = vld [vmem:[%s3 + $0xc8] sm:$0xf]
      %v1079 = vld [vmem:[%s3 + $0xcc] sm:$0xf]
      %v1080 = vld [vmem:[%s3 + $0xd0] sm:$0xf]
      %v1081 = vld [vmem:[%s3 + $0xd4] sm:$0xf]
      %v1082 = vld [vmem:[%s3 + $0xd8] sm:$0xf]
      %v1083 = vld [vmem:[%s3 + $0xdc] sm:$0xf]
      %v1084 = vld [vmem:[%s3 + $0xe0] sm:$0xf]
      %v1085 = vld [vmem:[%s3 + $0xe4] sm:$0xf]
      %v1086 = vld [vmem:[%s3 + $0xe8] sm:$0xf]
      %v1087 = vld [vmem:[%s3 + $0xec] sm:$0xf]
      %v1088 = vld [vmem:[%s3 + $0xf0] sm:$0xf]
      %v1089 = vld [vmem:[%s3 + $0xf4] sm:$0xf]
      %v1090 = vld [vmem:[%s3 + $0xf8] sm:$0xf]
      %v1091 = vld [vmem:[%s3 + $0xfc] sm:$0xf]
      %v1100 = vunpack.c.l.b16 %v1060
      %v1101 = vunpack.c.l.b16 %v1061
      %v1102 = vunpack.c.l.b16 %v1062
      %v1103 = vunpack.c.l.b16 %v1063
      %v1104 = vunpack.c.l.b16 %v1064
      %v1105 = vunpack.c.l.b16 %v1065
      %v1106 = vunpack.c.l.b16 %v1066
      %v1107 = vunpack.c.l.b16 %v1067
      %v1108 = vpack.c.b16 %v1101, %v1100
      %v1109 = vpack.c.b16 %v1103, %v1102
      %v1110 = vpack.c.b16 %v1105, %v1104
      %v1111 = vpack.c.b16 %v1107, %v1106
      %v1132 = vunpack.c.l.b16 %v1076
      %v1133 = vunpack.c.l.b16 %v1077
      %v1134 = vunpack.c.l.b16 %v1078
      %v1135 = vunpack.c.l.b16 %v1079
      %v1136 = vunpack.c.l.b16 %v1080
      %v1137 = vunpack.c.l.b16 %v1081
      %v1138 = vunpack.c.l.b16 %v1082
      %v1139 = vunpack.c.l.b16 %v1083
      %v1140 = vunpack.c.l.b16 %v1084
      %v1141 = vunpack.c.l.b16 %v1085
      %v1142 = vunpack.c.l.b16 %v1086
      %v1143 = vunpack.c.l.b16 %v1087
      %v1144 = vunpack.c.l.b16 %v1088
      %v1145 = vunpack.c.l.b16 %v1089
      %v1146 = vunpack.c.l.b16 %v1090
      %v1147 = vunpack.c.l.b16 %v1091
      %v1148 = vpack.c.b16 %v1133, %v1132
      %v1149 = vpack.c.b16 %v1135, %v1134
      %v1150 = vpack.c.b16 %v1137, %v1136
      %v1151 = vpack.c.b16 %v1139, %v1138
      %v1152 = vpack.c.b16 %v1141, %v1140
      %v1153 = vpack.c.b16 %v1143, %v1142
      %v1154 = vpack.c.b16 %v1145, %v1144
      %v1155 = vpack.c.b16 %v1147, %v1146
      %1164 = vmatprep.subr.bf16.mxu0 0
      %1165 = vmatpush1.bf16.msra.mxu0 %v1148
      %1166 = vmatprep.subr.bf16.mxu0 0
      %1167 = vmatpush1.bf16.msra.mxu0 %v1149
      %1168 = vmatprep.subr.bf16.mxu0 0
      %1169 = vmatpush1.bf16.msra.mxu0 %v1150
      %1170 = vmatprep.subr.bf16.mxu0 0
      %1171 = vmatpush1.bf16.msra.mxu0 %v1151
      %1172 = vmatprep.subr.bf16.mxu0 0
      %1173 = vmatpush1.bf16.msra.mxu0 %v1152
      %1174 = vmatprep.subr.bf16.mxu0 0
      %1175 = vmatpush1.bf16.msra.mxu0 %v1153
      %1176 = vmatprep.subr.bf16.mxu0 0
      %1177 = vmatpush1.bf16.msra.mxu0 %v1154
      %1178 = vmatprep.subr.bf16.mxu0 0
      %1179 = vmatpush1.bf16.msra.mxu0 %v1155
      %1180 = vmatprep.subr.bf16.mxu0 0
      %1181 = vmatpush1.bf16.msra.mxu0 0
      %1182 = vmatprep.subr.bf16.mxu0 0
      %1183 = vmatpush1.bf16.msra.mxu0 0
      %1184 = vmatprep.subr.bf16.mxu0 0
      %1185 = vmatpush1.bf16.msra.mxu0 0
      %1186 = vmatprep.subr.bf16.mxu0 0
      %1187 = vmatpush1.bf16.msra.mxu0 0
      %1188 = vmatprep.subr.bf16.mxu0 0
      %1189 = vmatpush1.bf16.msra.mxu0 0
      %1190 = vmatprep.subr.bf16.mxu0 0
      %1191 = vmatpush1.bf16.msra.mxu0 0
      %1192 = vmatprep.subr.bf16.mxu0 0
      %1193 = vmatpush1.bf16.msra.mxu0 0
      %1194 = vmatprep.subr.bf16.mxu0 0
      %1195 = vmatpush1.bf16.msra.mxu0 0
      %1196 = vmatprep.mubr.bf16.mxu0 0
      %1197 = vmatmul.mubr.bf16.gmra.mrb[0].mxu0 %v1108
      %v1198 = vpop.f32.mrb[0].mxu0
      %v1199 = vadd.f32 0.0, %v1198
      %v1200 = vpop.f32.mrb[0].mxu0
      %v1201 = vpop.f32.mrb[0].mxu0
      %v1202 = vadd.f32 0.0, %v1201
      %v1203 = vpop.f32.mrb[0].mxu0
      %1204 = vmatprep.mubr.bf16.mxu0 0
      %1205 = vmatmul.mubr.bf16.gmra.mrb[0].mxu0 %v1109
      %v1206 = vpop.f32.mrb[0].mxu0
      %v1207 = vadd.f32 0.0, %v1206
      %v1208 = vpop.f32.mrb[0].mxu0
      %v1209 = vpop.f32.mrb[0].mxu0
      %v1210 = vadd.f32 0.0, %v1209
      %v1211 = vpop.f32.mrb[0].mxu0
      %1212 = vmatprep.mubr.bf16.mxu0 0
      %1213 = vmatmul.mubr.bf16.gmra.mrb[0].mxu0 %v1110
      %v1214 = vpop.f32.mrb[0].mxu0
      %v1215 = vadd.f32 0.0, %v1214
      %v1216 = vpop.f32.mrb[0].mxu0
      %v1217 = vpop.f32.mrb[0].mxu0
      %v1218 = vadd.f32 0.0, %v1217
      %v1219 = vpop.f32.mrb[0].mxu0
      %1220 = vmatprep.mubr.bf16.mxu0 0
      %1221 = vmatmul.mubr.bf16.gmra.mrb[0].mxu0 %v1111
      %v1222 = vpop.f32.mrb[0].mxu0
      %v1223 = vadd.f32 0.0, %v1222
      %v1224 = vpop.f32.mrb[0].mxu0
      %v1225 = vpop.f32.mrb[0].mxu0
      %v1226 = vadd.f32 0.0, %v1225
      %v1227 = vpop.f32.mrb[0].mxu0
      %1228 = vdwg.mxu0
      %v1229 = vadd.f32 %v1068, %v1199
      %v1230 = vadd.f32 %v1069, %v1202
      %v1231 = vadd.f32 %v1070, %v1207
      %v1232 = vadd.f32 %v1071, %v1210
      %v1233 = vadd.f32 %v1072, %v1215
      %v1234 = vadd.f32 %v1073, %v1218
      %v1235 = vadd.f32 %v1074, %v1223
      %v1236 = vadd.f32 %v1075, %v1226
      %1237 = vst [vmem:[#allocation2] sm:$0xff] %v1229
      %1238 = vst [vmem:[#allocation2 + $0x8] sm:$0xff] %v1230
      %1239 = vst [vmem:[#allocation2 + $0x10] sm:$0xff] %v1231
      %1240 = vst [vmem:[#allocation2 + $0x18] sm:$0xff] %v1232
      %1241 = vst [vmem:[#allocation2 + $0x20] sm:$0xff] %v1233
      %1242 = vst [vmem:[#allocation2 + $0x28] sm:$0xff] %v1234
      %1243 = vst [vmem:[#allocation2 + $0x30] sm:$0xff] %v1235
      %1244 = vst [vmem:[#allocation2 + $0x38] sm:$0xff] %v1236
      %s1245 = scalar_lea.vmem %s207, 216
      %v1246 = vld [vmem:[%s1245] sm:$0xf]
      %v1247 = vld [vmem:[%s1245 + $0x8] sm:$0xf]
      %v1248 = vld [vmem:[%s1245 + $0x10] sm:$0xf]
      %v1249 = vld [vmem:[%s1245 + $0x18] sm:$0xf]
      %v1250 = vld [vmem:[%s1245 + $0x20] sm:$0xf]
      %v1251 = vld [vmem:[%s1245 + $0x28] sm:$0xf]
      %v1252 = vld [vmem:[%s1245 + $0x30] sm:$0xf]
      %v1253 = vld [vmem:[%s1245 + $0x38] sm:$0xf]
      %v1254 = vld [vmem:[#allocation2] sm:$0xff]
      %v1255 = vld [vmem:[#allocation2 + $0x8] sm:$0xff]
      %v1256 = vld [vmem:[#allocation2 + $0x10] sm:$0xff]
      %v1257 = vld [vmem:[#allocation2 + $0x18] sm:$0xff]
      %v1258 = vld [vmem:[#allocation2 + $0x20] sm:$0xff]
      %v1259 = vld [vmem:[#allocation2 + $0x28] sm:$0xff]
      %v1260 = vld [vmem:[#allocation2 + $0x30] sm:$0xff]
      %v1261 = vld [vmem:[#allocation2 + $0x38] sm:$0xff]
      %v1262 = vld [vmem:[%s3 + $0x100] sm:$0xf]
      %v1263 = vld [vmem:[%s3 + $0x104] sm:$0xf]
      %v1264 = vld [vmem:[%s3 + $0x108] sm:$0xf]
      %v1265 = vld [vmem:[%s3 + $0x10c] sm:$0xf]
      %v1266 = vld [vmem:[%s3 + $0x110] sm:$0xf]
      %v1267 = vld [vmem:[%s3 + $0x114] sm:$0xf]
      %v1268 = vld [vmem:[%s3 + $0x118] sm:$0xf]
      %v1269 = vld [vmem:[%s3 + $0x11c] sm:$0xf]
      %v1270 = vld [vmem:[%s3 + $0x120] sm:$0xf]
      %v1271 = vld [vmem:[%s3 + $0x124] sm:$0xf]
      %v1272 = vld [vmem:[%s3 + $0x128] sm:$0xf]
      %v1273 = vld [vmem:[%s3 + $0x12c] sm:$0xf]
      %v1274 = vld [vmem:[%s3 + $0x130] sm:$0xf]
      %v1275 = vld [vmem:[%s3 + $0x134] sm:$0xf]
      %v1276 = vld [vmem:[%s3 + $0x138] sm:$0xf]
      %v1277 = vld [vmem:[%s3 + $0x13c] sm:$0xf]
      %v1286 = vunpack.c.l.b16 %v1246
      %v1287 = vunpack.c.l.b16 %v1247
      %v1288 = vunpack.c.l.b16 %v1248
      %v1289 = vunpack.c.l.b16 %v1249
      %v1290 = vunpack.c.l.b16 %v1250
      %v1291 = vunpack.c.l.b16 %v1251
      %v1292 = vunpack.c.l.b16 %v1252
      %v1293 = vunpack.c.l.b16 %v1253
      %v1294 = vpack.c.b16 %v1287, %v1286
      %v1295 = vpack.c.b16 %v1289, %v1288
      %v1296 = vpack.c.b16 %v1291, %v1290
      %v1297 = vpack.c.b16 %v1293, %v1292
      %v1318 = vunpack.c.l.b16 %v1262
      %v1319 = vunpack.c.l.b16 %v1263
      %v1320 = vunpack.c.l.b16 %v1264
      %v1321 = vunpack.c.l.b16 %v1265
      %v1322 = vunpack.c.l.b16 %v1266
      %v1323 = vunpack.c.l.b16 %v1267
      %v1324 = vunpack.c.l.b16 %v1268
      %v1325 = vunpack.c.l.b16 %v1269
      %v1326 = vunpack.c.l.b16 %v1270
      %v1327 = vunpack.c.l.b16 %v1271
      %v1328 = vunpack.c.l.b16 %v1272
      %v1329 = vunpack.c.l.b16 %v1273
      %v1330 = vunpack.c.l.b16 %v1274
      %v1331 = vunpack.c.l.b16 %v1275
      %v1332 = vunpack.c.l.b16 %v1276
      %v1333 = vunpack.c.l.b16 %v1277
      %v1334 = vpack.c.b16 %v1319, %v1318
      %v1335 = vpack.c.b16 %v1321, %v1320
      %v1336 = vpack.c.b16 %v1323, %v1322
      %v1337 = vpack.c.b16 %v1325, %v1324
      %v1338 = vpack.c.b16 %v1327, %v1326
      %v1339 = vpack.c.b16 %v1329, %v1328
      %v1340 = vpack.c.b16 %v1331, %v1330
      %v1341 = vpack.c.b16 %v1333, %v1332
      %1350 = vmatprep.subr.bf16.mxu0 0
      %1351 = vmatpush1.bf16.msra.mxu0 %v1334
      %1352 = vmatprep.subr.bf16.mxu0 0
      %1353 = vmatpush1.bf16.msra.mxu0 %v1335
      %1354 = vmatprep.subr.bf16.mxu0 0
      %1355 = vmatpush1.bf16.msra.mxu0 %v1336
      %1356 = vmatprep.subr.bf16.mxu0 0
      %1357 = vmatpush1.bf16.msra.mxu0 %v1337
      %1358 = vmatprep.subr.bf16.mxu0 0
      %1359 = vmatpush1.bf16.msra.mxu0 %v1338
      %1360 = vmatprep.subr.bf16.mxu0 0
      %1361 = vmatpush1.bf16.msra.mxu0 %v1339
      %1362 = vmatprep.subr.bf16.mxu0 0
      %1363 = vmatpush1.bf16.msra.mxu0 %v1340
      %1364 = vmatprep.subr.bf16.mxu0 0
      %1365 = vmatpush1.bf16.msra.mxu0 %v1341
      %1366 = vmatprep.subr.bf16.mxu0 0
      %1367 = vmatpush1.bf16.msra.mxu0 0
      %1368 = vmatprep.subr.bf16.mxu0 0
      %1369 = vmatpush1.bf16.msra.mxu0 0
      %1370 = vmatprep.subr.bf16.mxu0 0
      %1371 = vmatpush1.bf16.msra.mxu0 0
      %1372 = vmatprep.subr.bf16.mxu0 0
      %1373 = vmatpush1.bf16.msra.mxu0 0
      %1374 = vmatprep.subr.bf16.mxu0 0
      %1375 = vmatpush1.bf16.msra.mxu0 0
      %1376 = vmatprep.subr.bf16.mxu0 0
      %1377 = vmatpush1.bf16.msra.mxu0 0
      %1378 = vmatprep.subr.bf16.mxu0 0
      %1379 = vmatpush1.bf16.msra.mxu0 0
      %1380 = vmatprep.subr.bf16.mxu0 0
      %1381 = vmatpush1.bf16.msra.mxu0 0
      %1382 = vmatprep.mubr.bf16.mxu0 0
      %1383 = vmatmul.mubr.bf16.gmra.mrb[0].mxu0 %v1294
      %v1384 = vpop.f32.mrb[0].mxu0
      %v1385 = vadd.f32 0.0, %v1384
      %v1386 = vpop.f32.mrb[0].mxu0
      %v1387 = vpop.f32.mrb[0].mxu0
      %v1388 = vadd.f32 0.0, %v1387
      %v1389 = vpop.f32.mrb[0].mxu0
      %1390 = vmatprep.mubr.bf16.mxu0 0
      %1391 = vmatmul.mubr.bf16.gmra.mrb[0].mxu0 %v1295
      %v1392 = vpop.f32.mrb[0].mxu0
      %v1393 = vadd.f32 0.0, %v1392
      %v1394 = vpop.f32.mrb[0].mxu0
      %v1395 = vpop.f32.mrb[0].mxu0
      %v1396 = vadd.f32 0.0, %v1395
      %v1397 = vpop.f32.mrb[0].mxu0
      %1398 = vmatprep.mubr.bf16.mxu0 0
      %1399 = vmatmul.mubr.bf16.gmra.mrb[0].mxu0 %v1296
      %v1400 = vpop.f32.mrb[0].mxu0
      %v1401 = vadd.f32 0.0, %v1400
      %v1402 = vpop.f32.mrb[0].mxu0
      %v1403 = vpop.f32.mrb[0].mxu0
      %v1404 = vadd.f32 0.0, %v1403
      %v1405 = vpop.f32.mrb[0].mxu0
      %1406 = vmatprep.mubr.bf16.mxu0 0
      %1407 = vmatmul.mubr.bf16.gmra.mrb[0].mxu0 %v1297
      %v1408 = vpop.f32.mrb[0].mxu0
      %v1409 = vadd.f32 0.0, %v1408
      %v1410 = vpop.f32.mrb[0].mxu0
      %v1411 = vpop.f32.mrb[0].mxu0
      %v1412 = vadd.f32 0.0, %v1411
      %v1413 = vpop.f32.mrb[0].mxu0
      %1414 = vdwg.mxu0
      %v1415 = vadd.f32 %v1254, %v1385
      %v1416 = vadd.f32 %v1255, %v1388
      %v1417 = vadd.f32 %v1256, %v1393
      %v1418 = vadd.f32 %v1257, %v1396
      %v1419 = vadd.f32 %v1258, %v1401
      %v1420 = vadd.f32 %v1259, %v1404
      %v1421 = vadd.f32 %v1260, %v1409
      %v1422 = vadd.f32 %v1261, %v1412
      %1423 = vst [vmem:[#allocation2] sm:$0xff] %v1415
      %1424 = vst [vmem:[#allocation2 + $0x8] sm:$0xff] %v1416
      %1425 = vst [vmem:[#allocation2 + $0x10] sm:$0xff] %v1417
      %1426 = vst [vmem:[#allocation2 + $0x18] sm:$0xff] %v1418
      %1427 = vst [vmem:[#allocation2 + $0x20] sm:$0xff] %v1419
      %1428 = vst [vmem:[#allocation2 + $0x28] sm:$0xff] %v1420
      %1429 = vst [vmem:[#allocation2 + $0x30] sm:$0xff] %v1421
      %1430 = vst [vmem:[#allocation2 + $0x38] sm:$0xff] %v1422
      %v1431 = vld [vmem:[%s1059] sm:$0xf]
      %v1432 = vld [vmem:[%s1059 + $0x4] sm:$0x1]
      %v1433 = vld [vmem:[%s1059 + $0x8] sm:$0xf]
      %v1434 = vld [vmem:[%s1059 + $0xc] sm:$0x1]
      %v1435 = vld [vmem:[%s1059 + $0x10] sm:$0xf]
      %v1436 = vld [vmem:[%s1059 + $0x14] sm:$0x1]
      %v1437 = vld [vmem:[%s1059 + $0x18] sm:$0xf]
      %v1438 = vld [vmem:[%s1059 + $0x1c] sm:$0x1]
      %v1439 = vld [vmem:[%s1059 + $0x20] sm:$0xf]
      %v1440 = vld [vmem:[%s1059 + $0x24] sm:$0x1]
      %v1441 = vld [vmem:[%s1059 + $0x28] sm:$0xf]
      %v1442 = vld [vmem:[%s1059 + $0x2c] sm:$0x1]
      %v1443 = vld [vmem:[%s1059 + $0x30] sm:$0xf]
      %v1444 = vld [vmem:[%s1059 + $0x34] sm:$0x1]
      %v1445 = vld [vmem:[%s1059 + $0x38] sm:$0xf]
      %v1446 = vld [vmem:[%s1059 + $0x3c] sm:$0x1]
      %v1448 = vshrl.u32 %v1431, 16
      %v1450 = vrot.slane %v1448, 4
      %v1451 = vshll.u32 %v1431, 16
      %v1453 = vrot.slane %v1451, 5
      %v1454 = vor.u32 %v1450, %v1453
      %v1455 = vrot.slane %v1454, 4
      %v1457 = vshll.u32 %v1432, 16
      %v1459 = vrot.slane %v1457, 5
      %v1460 = vsel %vm777, %v1455, %v1459
      %v1462 = vshrl.u32 %v1433, 16
      %v1464 = vrot.slane %v1462, 4
      %v1465 = vshll.u32 %v1433, 16
      %v1467 = vrot.slane %v1465, 5
      %v1468 = vor.u32 %v1464, %v1467
      %v1469 = vrot.slane %v1468, 4
      %v1471 = vshll.u32 %v1434, 16
      %v1473 = vrot.slane %v1471, 5
      %v1474 = vsel %vm777, %v1469, %v1473
      %v1476 = vshrl.u32 %v1435, 16
      %v1478 = vrot.slane %v1476, 4
      %v1479 = vshll.u32 %v1435, 16
      %v1481 = vrot.slane %v1479, 5
      %v1482 = vor.u32 %v1478, %v1481
      %v1483 = vrot.slane %v1482, 4
      %v1485 = vshll.u32 %v1436, 16
      %v1487 = vrot.slane %v1485, 5
      %v1488 = vsel %vm777, %v1483, %v1487
      %v1490 = vshrl.u32 %v1437, 16
      %v1492 = vrot.slane %v1490, 4
      %v1493 = vshll.u32 %v1437, 16
      %v1495 = vrot.slane %v1493, 5
      %v1496 = vor.u32 %v1492, %v1495
      %v1497 = vrot.slane %v1496, 4
      %v1499 = vshll.u32 %v1438, 16
      %v1501 = vrot.slane %v1499, 5
      %v1502 = vsel %vm777, %v1497, %v1501
      %v1504 = vshrl.u32 %v1439, 16
      %v1506 = vrot.slane %v1504, 4
      %v1507 = vshll.u32 %v1439, 16
      %v1509 = vrot.slane %v1507, 5
      %v1510 = vor.u32 %v1506, %v1509
      %v1511 = vrot.slane %v1510, 4
      %v1513 = vshll.u32 %v1440, 16
      %v1515 = vrot.slane %v1513, 5
      %v1516 = vsel %vm777, %v1511, %v1515
      %v1518 = vshrl.u32 %v1441, 16
      %v1520 = vrot.slane %v1518, 4
      %v1521 = vshll.u32 %v1441, 16
      %v1523 = vrot.slane %v1521, 5
      %v1524 = vor.u32 %v1520, %v1523
      %v1525 = vrot.slane %v1524, 4
      %v1527 = vshll.u32 %v1442, 16
      %v1529 = vrot.slane %v1527, 5
      %v1530 = vsel %vm777, %v1525, %v1529
      %v1532 = vshrl.u32 %v1443, 16
      %v1534 = vrot.slane %v1532, 4
      %v1535 = vshll.u32 %v1443, 16
      %v1537 = vrot.slane %v1535, 5
      %v1538 = vor.u32 %v1534, %v1537
      %v1539 = vrot.slane %v1538, 4
      %v1541 = vshll.u32 %v1444, 16
      %v1543 = vrot.slane %v1541, 5
      %v1544 = vsel %vm777, %v1539, %v1543
      %v1546 = vshrl.u32 %v1445, 16
      %v1548 = vrot.slane %v1546, 4
      %v1549 = vshll.u32 %v1445, 16
      %v1551 = vrot.slane %v1549, 5
      %v1552 = vor.u32 %v1548, %v1551
      %v1553 = vrot.slane %v1552, 4
      %v1555 = vshll.u32 %v1446, 16
      %v1557 = vrot.slane %v1555, 5
      %v1558 = vsel %vm777, %v1553, %v1557
      %v1559 = vld [vmem:[#allocation2] sm:$0xff]
      %v1560 = vld [vmem:[#allocation2 + $0x8] sm:$0xff]
      %v1561 = vld [vmem:[#allocation2 + $0x10] sm:$0xff]
      %v1562 = vld [vmem:[#allocation2 + $0x18] sm:$0xff]
      %v1563 = vld [vmem:[#allocation2 + $0x20] sm:$0xff]
      %v1564 = vld [vmem:[#allocation2 + $0x28] sm:$0xff]
      %v1565 = vld [vmem:[#allocation2 + $0x30] sm:$0xff]
      %v1566 = vld [vmem:[#allocation2 + $0x38] sm:$0xff]
      %v1567 = vld [vmem:[%s3 + $0x140] sm:$0xf]
      %v1568 = vld [vmem:[%s3 + $0x144] sm:$0xf]
      %v1569 = vld [vmem:[%s3 + $0x148] sm:$0xf]
      %v1570 = vld [vmem:[%s3 + $0x14c] sm:$0xf]
      %v1571 = vld [vmem:[%s3 + $0x150] sm:$0xf]
      %v1572 = vld [vmem:[%s3 + $0x154] sm:$0xf]
      %v1573 = vld [vmem:[%s3 + $0x158] sm:$0xf]
      %v1574 = vld [vmem:[%s3 + $0x15c] sm:$0xf]
      %v1575 = vld [vmem:[%s3 + $0x160] sm:$0xf]
      %v1576 = vld [vmem:[%s3 + $0x164] sm:$0xf]
      %v1577 = vld [vmem:[%s3 + $0x168] sm:$0xf]
      %v1578 = vld [vmem:[%s3 + $0x16c] sm:$0xf]
      %v1579 = vld [vmem:[%s3 + $0x170] sm:$0xf]
      %v1580 = vld [vmem:[%s3 + $0x174] sm:$0xf]
      %v1581 = vld [vmem:[%s3 + $0x178] sm:$0xf]
      %v1582 = vld [vmem:[%s3 + $0x17c] sm:$0xf]
      %v1583 = vunpack.c.l.b16 %v1460
      %v1584 = vunpack.c.l.b16 %v1474
      %v1585 = vunpack.c.l.b16 %v1488
      %v1586 = vunpack.c.l.b16 %v1502
      %v1587 = vunpack.c.l.b16 %v1516
      %v1588 = vunpack.c.l.b16 %v1530
      %v1589 = vunpack.c.l.b16 %v1544
      %v1590 = vunpack.c.l.b16 %v1558
      %v1591 = vpack.c.b16 %v1584, %v1583
      %v1592 = vpack.c.b16 %v1586, %v1585
      %v1593 = vpack.c.b16 %v1588, %v1587
      %v1594 = vpack.c.b16 %v1590, %v1589
      %v1615 = vunpack.c.l.b16 %v1567
      %v1616 = vunpack.c.l.b16 %v1568
      %v1617 = vunpack.c.l.b16 %v1569
      %v1618 = vunpack.c.l.b16 %v1570
      %v1619 = vunpack.c.l.b16 %v1571
      %v1620 = vunpack.c.l.b16 %v1572
      %v1621 = vunpack.c.l.b16 %v1573
      %v1622 = vunpack.c.l.b16 %v1574
      %v1623 = vunpack.c.l.b16 %v1575
      %v1624 = vunpack.c.l.b16 %v1576
      %v1625 = vunpack.c.l.b16 %v1577
      %v1626 = vunpack.c.l.b16 %v1578
      %v1627 = vunpack.c.l.b16 %v1579
      %v1628 = vunpack.c.l.b16 %v1580
      %v1629 = vunpack.c.l.b16 %v1581
      %v1630 = vunpack.c.l.b16 %v1582
      %v1631 = vpack.c.b16 %v1616, %v1615
      %v1632 = vpack.c.b16 %v1618, %v1617
      %v1633 = vpack.c.b16 %v1620, %v1619
      %v1634 = vpack.c.b16 %v1622, %v1621
      %v1635 = vpack.c.b16 %v1624, %v1623
      %v1636 = vpack.c.b16 %v1626, %v1625
      %v1637 = vpack.c.b16 %v1628, %v1627
      %v1638 = vpack.c.b16 %v1630, %v1629
      %1647 = vmatprep.subr.bf16.mxu0 0
      %1648 = vmatpush1.bf16.msra.mxu0 %v1631
      %1649 = vmatprep.subr.bf16.mxu0 0
      %1650 = vmatpush1.bf16.msra.mxu0 %v1632
      %1651 = vmatprep.subr.bf16.mxu0 0
      %1652 = vmatpush1.bf16.msra.mxu0 %v1633
      %1653 = vmatprep.subr.bf16.mxu0 0
      %1654 = vmatpush1.bf16.msra.mxu0 %v1634
      %1655 = vmatprep.subr.bf16.mxu0 0
      %1656 = vmatpush1.bf16.msra.mxu0 %v1635
      %1657 = vmatprep.subr.bf16.mxu0 0
      %1658 = vmatpush1.bf16.msra.mxu0 %v1636
      %1659 = vmatprep.subr.bf16.mxu0 0
      %1660 = vmatpush1.bf16.msra.mxu0 %v1637
      %1661 = vmatprep.subr.bf16.mxu0 0
      %1662 = vmatpush1.bf16.msra.mxu0 %v1638
      %1663 = vmatprep.subr.bf16.mxu0 0
      %1664 = vmatpush1.bf16.msra.mxu0 0
      %1665 = vmatprep.subr.bf16.mxu0 0
      %1666 = vmatpush1.bf16.msra.mxu0 0
      %1667 = vmatprep.subr.bf16.mxu0 0
      %1668 = vmatpush1.bf16.msra.mxu0 0
      %1669 = vmatprep.subr.bf16.mxu0 0
      %1670 = vmatpush1.bf16.msra.mxu0 0
      %1671 = vmatprep.subr.bf16.mxu0 0
      %1672 = vmatpush1.bf16.msra.mxu0 0
      %1673 = vmatprep.subr.bf16.mxu0 0
      %1674 = vmatpush1.bf16.msra.mxu0 0
      %1675 = vmatprep.subr.bf16.mxu0 0
      %1676 = vmatpush1.bf16.msra.mxu0 0
      %1677 = vmatprep.subr.bf16.mxu0 0
      %1678 = vmatpush1.bf16.msra.mxu0 0
      %1679 = vmatprep.mubr.bf16.mxu0 0
      %1680 = vmatmul.mubr.bf16.gmra.mrb[0].mxu0 %v1591
      %v1681 = vpop.f32.mrb[0].mxu0
      %v1682 = vadd.f32 0.0, %v1681
      %v1683 = vpop.f32.mrb[0].mxu0
      %v1684 = vpop.f32.mrb[0].mxu0
      %v1685 = vadd.f32 0.0, %v1684
      %v1686 = vpop.f32.mrb[0].mxu0
      %1687 = vmatprep.mubr.bf16.mxu0 0
      %1688 = vmatmul.mubr.bf16.gmra.mrb[0].mxu0 %v1592
      %v1689 = vpop.f32.mrb[0].mxu0
      %v1690 = vadd.f32 0.0, %v1689
      %v1691 = vpop.f32.mrb[0].mxu0
      %v1692 = vpop.f32.mrb[0].mxu0
      %v1693 = vadd.f32 0.0, %v1692
      %v1694 = vpop.f32.mrb[0].mxu0
      %1695 = vmatprep.mubr.bf16.mxu0 0
      %1696 = vmatmul.mubr.bf16.gmra.mrb[0].mxu0 %v1593
      %v1697 = vpop.f32.mrb[0].mxu0
      %v1698 = vadd.f32 0.0, %v1697
      %v1699 = vpop.f32.mrb[0].mxu0
      %v1700 = vpop.f32.mrb[0].mxu0
      %v1701 = vadd.f32 0.0, %v1700
      %v1702 = vpop.f32.mrb[0].mxu0
      %1703 = vmatprep.mubr.bf16.mxu0 0
      %1704 = vmatmul.mubr.bf16.gmra.mrb[0].mxu0 %v1594
      %v1705 = vpop.f32.mrb[0].mxu0
      %v1706 = vadd.f32 0.0, %v1705
      %v1707 = vpop.f32.mrb[0].mxu0
      %v1708 = vpop.f32.mrb[0].mxu0
      %v1709 = vadd.f32 0.0, %v1708
      %v1710 = vpop.f32.mrb[0].mxu0
      %1711 = vdwg.mxu0
      %v1712 = vadd.f32 %v1559, %v1682
      %v1713 = vadd.f32 %v1560, %v1685
      %v1714 = vadd.f32 %v1561, %v1690
      %v1715 = vadd.f32 %v1562, %v1693
      %v1716 = vadd.f32 %v1563, %v1698
      %v1717 = vadd.f32 %v1564, %v1701
      %v1718 = vadd.f32 %v1565, %v1706
      %v1719 = vadd.f32 %v1566, %v1709
      %1720 = vst [vmem:[#allocation2] sm:$0xff] %v1712
      %1721 = vst [vmem:[#allocation2 + $0x8] sm:$0xff] %v1713
      %1722 = vst [vmem:[#allocation2 + $0x10] sm:$0xff] %v1714
      %1723 = vst [vmem:[#allocation2 + $0x18] sm:$0xff] %v1715
      %1724 = vst [vmem:[#allocation2 + $0x20] sm:$0xff] %v1716
      %1725 = vst [vmem:[#allocation2 + $0x28] sm:$0xff] %v1717
      %1726 = vst [vmem:[#allocation2 + $0x30] sm:$0xff] %v1718
      %1727 = vst [vmem:[#allocation2 + $0x38] sm:$0xff] %v1719
      %s1728 = scalar_lea.vmem %s207, 8
      %v1729 = vld [vmem:[%s1728] sm:$0xf]
      %v1730 = vld [vmem:[%s1728 + $0x8] sm:$0xf]
      %v1731 = vld [vmem:[%s1728 + $0x10] sm:$0xf]
      %v1732 = vld [vmem:[%s1728 + $0x18] sm:$0xf]
      %v1733 = vld [vmem:[%s1728 + $0x20] sm:$0xf]
      %v1734 = vld [vmem:[%s1728 + $0x28] sm:$0xf]
      %v1735 = vld [vmem:[%s1728 + $0x30] sm:$0xf]
      %v1736 = vld [vmem:[%s1728 + $0x38] sm:$0xf]
      %v1737 = vld [vmem:[#allocation2] sm:$0xff]
      %v1738 = vld [vmem:[#allocation2 + $0x8] sm:$0xff]
      %v1739 = vld [vmem:[#allocation2 + $0x10] sm:$0xff]
      %v1740 = vld [vmem:[#allocation2 + $0x18] sm:$0xff]
      %v1741 = vld [vmem:[#allocation2 + $0x20] sm:$0xff]
      %v1742 = vld [vmem:[#allocation2 + $0x28] sm:$0xff]
      %v1743 = vld [vmem:[#allocation2 + $0x30] sm:$0xff]
      %v1744 = vld [vmem:[#allocation2 + $0x38] sm:$0xff]
      %v1745 = vld [vmem:[%s3 + $0x180] sm:$0xf]
      %v1746 = vld [vmem:[%s3 + $0x184] sm:$0xf]
      %v1747 = vld [vmem:[%s3 + $0x188] sm:$0xf]
      %v1748 = vld [vmem:[%s3 + $0x18c] sm:$0xf]
      %v1749 = vld [vmem:[%s3 + $0x190] sm:$0xf]
      %v1750 = vld [vmem:[%s3 + $0x194] sm:$0xf]
      %v1751 = vld [vmem:[%s3 + $0x198] sm:$0xf]
      %v1752 = vld [vmem:[%s3 + $0x19c] sm:$0xf]
      %v1753 = vld [vmem:[%s3 + $0x1a0] sm:$0xf]
      %v1754 = vld [vmem:[%s3 + $0x1a4] sm:$0xf]
      %v1755 = vld [vmem:[%s3 + $0x1a8] sm:$0xf]
      %v1756 = vld [vmem:[%s3 + $0x1ac] sm:$0xf]
      %v1757 = vld [vmem:[%s3 + $0x1b0] sm:$0xf]
      %v1758 = vld [vmem:[%s3 + $0x1b4] sm:$0xf]
      %v1759 = vld [vmem:[%s3 + $0x1b8] sm:$0xf]
      %v1760 = vld [vmem:[%s3 + $0x1bc] sm:$0xf]
      %v1769 = vunpack.c.l.b16 %v1729
      %v1770 = vunpack.c.l.b16 %v1730
      %v1771 = vunpack.c.l.b16 %v1731
      %v1772 = vunpack.c.l.b16 %v1732
      %v1773 = vunpack.c.l.b16 %v1733
      %v1774 = vunpack.c.l.b16 %v1734
      %v1775 = vunpack.c.l.b16 %v1735
      %v1776 = vunpack.c.l.b16 %v1736
      %v1777 = vpack.c.b16 %v1770, %v1769
      %v1778 = vpack.c.b16 %v1772, %v1771
      %v1779 = vpack.c.b16 %v1774, %v1773
      %v1780 = vpack.c.b16 %v1776, %v1775
      %v1801 = vunpack.c.l.b16 %v1745
      %v1802 = vunpack.c.l.b16 %v1746
      %v1803 = vunpack.c.l.b16 %v1747
      %v1804 = vunpack.c.l.b16 %v1748
      %v1805 = vunpack.c.l.b16 %v1749
      %v1806 = vunpack.c.l.b16 %v1750
      %v1807 = vunpack.c.l.b16 %v1751
      %v1808 = vunpack.c.l.b16 %v1752
      %v1809 = vunpack.c.l.b16 %v1753
      %v1810 = vunpack.c.l.b16 %v1754
      %v1811 = vunpack.c.l.b16 %v1755
      %v1812 = vunpack.c.l.b16 %v1756
      %v1813 = vunpack.c.l.b16 %v1757
      %v1814 = vunpack.c.l.b16 %v1758
      %v1815 = vunpack.c.l.b16 %v1759
      %v1816 = vunpack.c.l.b16 %v1760
      %v1817 = vpack.c.b16 %v1802, %v1801
      %v1818 = vpack.c.b16 %v1804, %v1803
      %v1819 = vpack.c.b16 %v1806, %v1805
      %v1820 = vpack.c.b16 %v1808, %v1807
      %v1821 = vpack.c.b16 %v1810, %v1809
      %v1822 = vpack.c.b16 %v1812, %v1811
      %v1823 = vpack.c.b16 %v1814, %v1813
      %v1824 = vpack.c.b16 %v1816, %v1815
      %1833 = vmatprep.subr.bf16.mxu0 0
      %1834 = vmatpush1.bf16.msra.mxu0 %v1817
      %1835 = vmatprep.subr.bf16.mxu0 0
      %1836 = vmatpush1.bf16.msra.mxu0 %v1818
      %1837 = vmatprep.subr.bf16.mxu0 0
      %1838 = vmatpush1.bf16.msra.mxu0 %v1819
      %1839 = vmatprep.subr.bf16.mxu0 0
      %1840 = vmatpush1.bf16.msra.mxu0 %v1820
      %1841 = vmatprep.subr.bf16.mxu0 0
      %1842 = vmatpush1.bf16.msra.mxu0 %v1821
      %1843 = vmatprep.subr.bf16.mxu0 0
      %1844 = vmatpush1.bf16.msra.mxu0 %v1822
      %1845 = vmatprep.subr.bf16.mxu0 0
      %1846 = vmatpush1.bf16.msra.mxu0 %v1823
      %1847 = vmatprep.subr.bf16.mxu0 0
      %1848 = vmatpush1.bf16.msra.mxu0 %v1824
      %1849 = vmatprep.subr.bf16.mxu0 0
      %1850 = vmatpush1.bf16.msra.mxu0 0
      %1851 = vmatprep.subr.bf16.mxu0 0
      %1852 = vmatpush1.bf16.msra.mxu0 0
      %1853 = vmatprep.subr.bf16.mxu0 0
      %1854 = vmatpush1.bf16.msra.mxu0 0
      %1855 = vmatprep.subr.bf16.mxu0 0
      %1856 = vmatpush1.bf16.msra.mxu0 0
      %1857 = vmatprep.subr.bf16.mxu0 0
      %1858 = vmatpush1.bf16.msra.mxu0 0
      %1859 = vmatprep.subr.bf16.mxu0 0
      %1860 = vmatpush1.bf16.msra.mxu0 0
      %1861 = vmatprep.subr.bf16.mxu0 0
      %1862 = vmatpush1.bf16.msra.mxu0 0
      %1863 = vmatprep.subr.bf16.mxu0 0
      %1864 = vmatpush1.bf16.msra.mxu0 0
      %1865 = vmatprep.mubr.bf16.mxu0 0
      %1866 = vmatmul.mubr.bf16.gmra.mrb[0].mxu0 %v1777
      %v1867 = vpop.f32.mrb[0].mxu0
      %v1868 = vadd.f32 0.0, %v1867
      %v1869 = vpop.f32.mrb[0].mxu0
      %v1870 = vpop.f32.mrb[0].mxu0
      %v1871 = vadd.f32 0.0, %v1870
      %v1872 = vpop.f32.mrb[0].mxu0
      %1873 = vmatprep.mubr.bf16.mxu0 0
      %1874 = vmatmul.mubr.bf16.gmra.mrb[0].mxu0 %v1778
      %v1875 = vpop.f32.mrb[0].mxu0
      %v1876 = vadd.f32 0.0, %v1875
      %v1877 = vpop.f32.mrb[0].mxu0
      %v1878 = vpop.f32.mrb[0].mxu0
      %v1879 = vadd.f32 0.0, %v1878
      %v1880 = vpop.f32.mrb[0].mxu0
      %1881 = vmatprep.mubr.bf16.mxu0 0
      %1882 = vmatmul.mubr.bf16.gmra.mrb[0].mxu0 %v1779
      %v1883 = vpop.f32.mrb[0].mxu0
      %v1884 = vadd.f32 0.0, %v1883
      %v1885 = vpop.f32.mrb[0].mxu0
      %v1886 = vpop.f32.mrb[0].mxu0
      %v1887 = vadd.f32 0.0, %v1886
      %v1888 = vpop.f32.mrb[0].mxu0
      %1889 = vmatprep.mubr.bf16.mxu0 0
      %1890 = vmatmul.mubr.bf16.gmra.mrb[0].mxu0 %v1780
      %v1891 = vpop.f32.mrb[0].mxu0
      %v1892 = vadd.f32 0.0, %v1891
      %v1893 = vpop.f32.mrb[0].mxu0
      %v1894 = vpop.f32.mrb[0].mxu0
      %v1895 = vadd.f32 0.0, %v1894
      %v1896 = vpop.f32.mrb[0].mxu0
      %1897 = vdwg.mxu0
      %v1898 = vadd.f32 %v1737, %v1868
      %v1899 = vadd.f32 %v1738, %v1871
      %v1900 = vadd.f32 %v1739, %v1876
      %v1901 = vadd.f32 %v1740, %v1879
      %v1902 = vadd.f32 %v1741, %v1884
      %v1903 = vadd.f32 %v1742, %v1887
      %v1904 = vadd.f32 %v1743, %v1892
      %v1905 = vadd.f32 %v1744, %v1895
      %1906 = vst [vmem:[#allocation2] sm:$0xff] %v1898
      %1907 = vst [vmem:[#allocation2 + $0x8] sm:$0xff] %v1899
      %1908 = vst [vmem:[#allocation2 + $0x10] sm:$0xff] %v1900
      %1909 = vst [vmem:[#allocation2 + $0x18] sm:$0xff] %v1901
      %1910 = vst [vmem:[#allocation2 + $0x20] sm:$0xff] %v1902
      %1911 = vst [vmem:[#allocation2 + $0x28] sm:$0xff] %v1903
      %1912 = vst [vmem:[#allocation2 + $0x30] sm:$0xff] %v1904
      %1913 = vst [vmem:[#allocation2 + $0x38] sm:$0xff] %v1905
      %s1914 = scalar_lea.vmem %s207, 80
      %v1915 = vld [vmem:[%s1914] sm:$0xf]
      %v1916 = vld [vmem:[%s1914 + $0x8] sm:$0xf]
      %v1917 = vld [vmem:[%s1914 + $0x10] sm:$0xf]
      %v1918 = vld [vmem:[%s1914 + $0x18] sm:$0xf]
      %v1919 = vld [vmem:[%s1914 + $0x20] sm:$0xf]
      %v1920 = vld [vmem:[%s1914 + $0x28] sm:$0xf]
      %v1921 = vld [vmem:[%s1914 + $0x30] sm:$0xf]
      %v1922 = vld [vmem:[%s1914 + $0x38] sm:$0xf]
      %v1923 = vld [vmem:[#allocation2] sm:$0xff]
      %v1924 = vld [vmem:[#allocation2 + $0x8] sm:$0xff]
      %v1925 = vld [vmem:[#allocation2 + $0x10] sm:$0xff]
      %v1926 = vld [vmem:[#allocation2 + $0x18] sm:$0xff]
      %v1927 = vld [vmem:[#allocation2 + $0x20] sm:$0xff]
      %v1928 = vld [vmem:[#allocation2 + $0x28] sm:$0xff]
      %v1929 = vld [vmem:[#allocation2 + $0x30] sm:$0xff]
      %v1930 = vld [vmem:[#allocation2 + $0x38] sm:$0xff]
      %v1931 = vld [vmem:[%s3 + $0x1c0] sm:$0xf]
      %v1932 = vld [vmem:[%s3 + $0x1c4] sm:$0xf]
      %v1933 = vld [vmem:[%s3 + $0x1c8] sm:$0xf]
      %v1934 = vld [vmem:[%s3 + $0x1cc] sm:$0xf]
      %v1935 = vld [vmem:[%s3 + $0x1d0] sm:$0xf]
      %v1936 = vld [vmem:[%s3 + $0x1d4] sm:$0xf]
      %v1937 = vld [vmem:[%s3 + $0x1d8] sm:$0xf]
      %v1938 = vld [vmem:[%s3 + $0x1dc] sm:$0xf]
      %v1939 = vld [vmem:[%s3 + $0x1e0] sm:$0xf]
      %v1940 = vld [vmem:[%s3 + $0x1e4] sm:$0xf]
      %v1941 = vld [vmem:[%s3 + $0x1e8] sm:$0xf]
      %v1942 = vld [vmem:[%s3 + $0x1ec] sm:$0xf]
      %v1943 = vld [vmem:[%s3 + $0x1f0] sm:$0xf]
      %v1944 = vld [vmem:[%s3 + $0x1f4] sm:$0xf]
      %v1945 = vld [vmem:[%s3 + $0x1f8] sm:$0xf]
      %v1946 = vld [vmem:[%s3 + $0x1fc] sm:$0xf]
      %v1955 = vunpack.c.l.b16 %v1915
      %v1956 = vunpack.c.l.b16 %v1916
      %v1957 = vunpack.c.l.b16 %v1917
      %v1958 = vunpack.c.l.b16 %v1918
      %v1959 = vunpack.c.l.b16 %v1919
      %v1960 = vunpack.c.l.b16 %v1920
      %v1961 = vunpack.c.l.b16 %v1921
      %v1962 = vunpack.c.l.b16 %v1922
      %v1963 = vpack.c.b16 %v1956, %v1955
      %v1964 = vpack.c.b16 %v1958, %v1957
      %v1965 = vpack.c.b16 %v1960, %v1959
      %v1966 = vpack.c.b16 %v1962, %v1961
      %v1987 = vunpack.c.l.b16 %v1931
      %v1988 = vunpack.c.l.b16 %v1932
      %v1989 = vunpack.c.l.b16 %v1933
      %v1990 = vunpack.c.l.b16 %v1934
      %v1991 = vunpack.c.l.b16 %v1935
      %v1992 = vunpack.c.l.b16 %v1936
      %v1993 = vunpack.c.l.b16 %v1937
      %v1994 = vunpack.c.l.b16 %v1938
      %v1995 = vunpack.c.l.b16 %v1939
      %v1996 = vunpack.c.l.b16 %v1940
      %v1997 = vunpack.c.l.b16 %v1941
      %v1998 = vunpack.c.l.b16 %v1942
      %v1999 = vunpack.c.l.b16 %v1943
      %v2000 = vunpack.c.l.b16 %v1944
      %v2001 = vunpack.c.l.b16 %v1945
      %v2002 = vunpack.c.l.b16 %v1946
      %v2003 = vpack.c.b16 %v1988, %v1987
      %v2004 = vpack.c.b16 %v1990, %v1989
      %v2005 = vpack.c.b16 %v1992, %v1991
      %v2006 = vpack.c.b16 %v1994, %v1993
      %v2007 = vpack.c.b16 %v1996, %v1995
      %v2008 = vpack.c.b16 %v1998, %v1997
      %v2009 = vpack.c.b16 %v2000, %v1999
      %v2010 = vpack.c.b16 %v2002, %v2001
      %2019 = vmatprep.subr.bf16.mxu0 0
      %2020 = vmatpush1.bf16.msra.mxu0 %v2003
      %2021 = vmatprep.subr.bf16.mxu0 0
      %2022 = vmatpush1.bf16.msra.mxu0 %v2004
      %2023 = vmatprep.subr.bf16.mxu0 0
      %2024 = vmatpush1.bf16.msra.mxu0 %v2005
      %2025 = vmatprep.subr.bf16.mxu0 0
      %2026 = vmatpush1.bf16.msra.mxu0 %v2006
      %2027 = vmatprep.subr.bf16.mxu0 0
      %2028 = vmatpush1.bf16.msra.mxu0 %v2007
      %2029 = vmatprep.subr.bf16.mxu0 0
      %2030 = vmatpush1.bf16.msra.mxu0 %v2008
      %2031 = vmatprep.subr.bf16.mxu0 0
      %2032 = vmatpush1.bf16.msra.mxu0 %v2009
      %2033 = vmatprep.subr.bf16.mxu0 0
      %2034 = vmatpush1.bf16.msra.mxu0 %v2010
      %2035 = vmatprep.subr.bf16.mxu0 0
      %2036 = vmatpush1.bf16.msra.mxu0 0
      %2037 = vmatprep.subr.bf16.mxu0 0
      %2038 = vmatpush1.bf16.msra.mxu0 0
      %2039 = vmatprep.subr.bf16.mxu0 0
      %2040 = vmatpush1.bf16.msra.mxu0 0
      %2041 = vmatprep.subr.bf16.mxu0 0
      %2042 = vmatpush1.bf16.msra.mxu0 0
      %2043 = vmatprep.subr.bf16.mxu0 0
      %2044 = vmatpush1.bf16.msra.mxu0 0
      %2045 = vmatprep.subr.bf16.mxu0 0
      %2046 = vmatpush1.bf16.msra.mxu0 0
      %2047 = vmatprep.subr.bf16.mxu0 0
      %2048 = vmatpush1.bf16.msra.mxu0 0
      %2049 = vmatprep.subr.bf16.mxu0 0
      %2050 = vmatpush1.bf16.msra.mxu0 0
      %2051 = vmatprep.mubr.bf16.mxu0 0
      %2052 = vmatmul.mubr.bf16.gmra.mrb[0].mxu0 %v1963
      %v2053 = vpop.f32.mrb[0].mxu0
      %v2054 = vadd.f32 0.0, %v2053
      %v2055 = vpop.f32.mrb[0].mxu0
      %v2056 = vpop.f32.mrb[0].mxu0
      %v2057 = vadd.f32 0.0, %v2056
      %v2058 = vpop.f32.mrb[0].mxu0
      %2059 = vmatprep.mubr.bf16.mxu0 0
      %2060 = vmatmul.mubr.bf16.gmra.mrb[0].mxu0 %v1964
      %v2061 = vpop.f32.mrb[0].mxu0
      %v2062 = vadd.f32 0.0, %v2061
      %v2063 = vpop.f32.mrb[0].mxu0
      %v2064 = vpop.f32.mrb[0].mxu0
      %v2065 = vadd.f32 0.0, %v2064
      %v2066 = vpop.f32.mrb[0].mxu0
      %2067 = vmatprep.mubr.bf16.mxu0 0
      %2068 = vmatmul.mubr.bf16.gmra.mrb[0].mxu0 %v1965
      %v2069 = vpop.f32.mrb[0].mxu0
      %v2070 = vadd.f32 0.0, %v2069
      %v2071 = vpop.f32.mrb[0].mxu0
      %v2072 = vpop.f32.mrb[0].mxu0
      %v2073 = vadd.f32 0.0, %v2072
      %v2074 = vpop.f32.mrb[0].mxu0
      %2075 = vmatprep.mubr.bf16.mxu0 0
      %2076 = vmatmul.mubr.bf16.gmra.mrb[0].mxu0 %v1966
      %v2077 = vpop.f32.mrb[0].mxu0
      %v2078 = vadd.f32 0.0, %v2077
      %v2079 = vpop.f32.mrb[0].mxu0
      %v2080 = vpop.f32.mrb[0].mxu0
      %v2081 = vadd.f32 0.0, %v2080
      %v2082 = vpop.f32.mrb[0].mxu0
      %2083 = vdwg.mxu0
      %v2084 = vadd.f32 %v1923, %v2054
      %v2085 = vadd.f32 %v1924, %v2057
      %v2086 = vadd.f32 %v1925, %v2062
      %v2087 = vadd.f32 %v1926, %v2065
      %v2088 = vadd.f32 %v1927, %v2070
      %v2089 = vadd.f32 %v1928, %v2073
      %v2090 = vadd.f32 %v1929, %v2078
      %v2091 = vadd.f32 %v1930, %v2081
      %2092 = vst [vmem:[#allocation2] sm:$0xff] %v2084
      %2093 = vst [vmem:[#allocation2 + $0x8] sm:$0xff] %v2085
      %2094 = vst [vmem:[#allocation2 + $0x10] sm:$0xff] %v2086
      %2095 = vst [vmem:[#allocation2 + $0x18] sm:$0xff] %v2087
      %2096 = vst [vmem:[#allocation2 + $0x20] sm:$0xff] %v2088
      %2097 = vst [vmem:[#allocation2 + $0x28] sm:$0xff] %v2089
      %2098 = vst [vmem:[#allocation2 + $0x30] sm:$0xff] %v2090
      %2099 = vst [vmem:[#allocation2 + $0x38] sm:$0xff] %v2091
      %v2100 = vld [vmem:[%s1728] sm:$0xf]
      %v2101 = vld [vmem:[%s1728 + $0x4] sm:$0x1]
      %v2102 = vld [vmem:[%s1728 + $0x8] sm:$0xf]
      %v2103 = vld [vmem:[%s1728 + $0xc] sm:$0x1]
      %v2104 = vld [vmem:[%s1728 + $0x10] sm:$0xf]
      %v2105 = vld [vmem:[%s1728 + $0x14] sm:$0x1]
      %v2106 = vld [vmem:[%s1728 + $0x18] sm:$0xf]
      %v2107 = vld [vmem:[%s1728 + $0x1c] sm:$0x1]
      %v2108 = vld [vmem:[%s1728 + $0x20] sm:$0xf]
      %v2109 = vld [vmem:[%s1728 + $0x24] sm:$0x1]
      %v2110 = vld [vmem:[%s1728 + $0x28] sm:$0xf]
      %v2111 = vld [vmem:[%s1728 + $0x2c] sm:$0x1]
      %v2112 = vld [vmem:[%s1728 + $0x30] sm:$0xf]
      %v2113 = vld [vmem:[%s1728 + $0x34] sm:$0x1]
      %v2114 = vld [vmem:[%s1728 + $0x38] sm:$0xf]
      %v2115 = vld [vmem:[%s1728 + $0x3c] sm:$0x1]
      %v2117 = vshrl.u32 %v2100, 16
      %v2119 = vrot.slane %v2117, 4
      %v2120 = vshll.u32 %v2100, 16
      %v2122 = vrot.slane %v2120, 5
      %v2123 = vor.u32 %v2119, %v2122
      %v2124 = vrot.slane %v2123, 4
      %v2126 = vshll.u32 %v2101, 16
      %v2128 = vrot.slane %v2126, 5
      %v2129 = vsel %vm777, %v2124, %v2128
      %v2131 = vshrl.u32 %v2102, 16
      %v2133 = vrot.slane %v2131, 4
      %v2134 = vshll.u32 %v2102, 16
      %v2136 = vrot.slane %v2134, 5
      %v2137 = vor.u32 %v2133, %v2136
      %v2138 = vrot.slane %v2137, 4
      %v2140 = vshll.u32 %v2103, 16
      %v2142 = vrot.slane %v2140, 5
      %v2143 = vsel %vm777, %v2138, %v2142
      %v2145 = vshrl.u32 %v2104, 16
      %v2147 = vrot.slane %v2145, 4
      %v2148 = vshll.u32 %v2104, 16
      %v2150 = vrot.slane %v2148, 5
      %v2151 = vor.u32 %v2147, %v2150
      %v2152 = vrot.slane %v2151, 4
      %v2154 = vshll.u32 %v2105, 16
      %v2156 = vrot.slane %v2154, 5
      %v2157 = vsel %vm777, %v2152, %v2156
      %v2159 = vshrl.u32 %v2106, 16
      %v2161 = vrot.slane %v2159, 4
      %v2162 = vshll.u32 %v2106, 16
      %v2164 = vrot.slane %v2162, 5
      %v2165 = vor.u32 %v2161, %v2164
      %v2166 = vrot.slane %v2165, 4
      %v2168 = vshll.u32 %v2107, 16
      %v2170 = vrot.slane %v2168, 5
      %v2171 = vsel %vm777, %v2166, %v2170
      %v2173 = vshrl.u32 %v2108, 16
      %v2175 = vrot.slane %v2173, 4
      %v2176 = vshll.u32 %v2108, 16
      %v2178 = vrot.slane %v2176, 5
      %v2179 = vor.u32 %v2175, %v2178
      %v2180 = vrot.slane %v2179, 4
      %v2182 = vshll.u32 %v2109, 16
      %v2184 = vrot.slane %v2182, 5
      %v2185 = vsel %vm777, %v2180, %v2184
      %v2187 = vshrl.u32 %v2110, 16
      %v2189 = vrot.slane %v2187, 4
      %v2190 = vshll.u32 %v2110, 16
      %v2192 = vrot.slane %v2190, 5
      %v2193 = vor.u32 %v2189, %v2192
      %v2194 = vrot.slane %v2193, 4
      %v2196 = vshll.u32 %v2111, 16
      %v2198 = vrot.slane %v2196, 5
      %v2199 = vsel %vm777, %v2194, %v2198
      %v2201 = vshrl.u32 %v2112, 16
      %v2203 = vrot.slane %v2201, 4
      %v2204 = vshll.u32 %v2112, 16
      %v2206 = vrot.slane %v2204, 5
      %v2207 = vor.u32 %v2203, %v2206
      %v2208 = vrot.slane %v2207, 4
      %v2210 = vshll.u32 %v2113, 16
      %v2212 = vrot.slane %v2210, 5
      %v2213 = vsel %vm777, %v2208, %v2212
      %v2215 = vshrl.u32 %v2114, 16
      %v2217 = vrot.slane %v2215, 4
      %v2218 = vshll.u32 %v2114, 16
      %v2220 = vrot.slane %v2218, 5
      %v2221 = vor.u32 %v2217, %v2220
      %v2222 = vrot.slane %v2221, 4
      %v2224 = vshll.u32 %v2115, 16
      %v2226 = vrot.slane %v2224, 5
      %v2227 = vsel %vm777, %v2222, %v2226
      %v2228 = vld [vmem:[#allocation2] sm:$0xff]
      %v2229 = vld [vmem:[#allocation2 + $0x8] sm:$0xff]
      %v2230 = vld [vmem:[#allocation2 + $0x10] sm:$0xff]
      %v2231 = vld [vmem:[#allocation2 + $0x18] sm:$0xff]
      %v2232 = vld [vmem:[#allocation2 + $0x20] sm:$0xff]
      %v2233 = vld [vmem:[#allocation2 + $0x28] sm:$0xff]
      %v2234 = vld [vmem:[#allocation2 + $0x30] sm:$0xff]
      %v2235 = vld [vmem:[#allocation2 + $0x38] sm:$0xff]
      %v2236 = vld [vmem:[%s3 + $0x200] sm:$0xf]
      %v2237 = vld [vmem:[%s3 + $0x204] sm:$0xf]
      %v2238 = vld [vmem:[%s3 + $0x208] sm:$0xf]
      %v2239 = vld [vmem:[%s3 + $0x20c] sm:$0xf]
      %v2240 = vld [vmem:[%s3 + $0x210] sm:$0xf]
      %v2241 = vld [vmem:[%s3 + $0x214] sm:$0xf]
      %v2242 = vld [vmem:[%s3 + $0x218] sm:$0xf]
      %v2243 = vld [vmem:[%s3 + $0x21c] sm:$0xf]
      %v2244 = vld [vmem:[%s3 + $0x220] sm:$0xf]
      %v2245 = vld [vmem:[%s3 + $0x224] sm:$0xf]
      %v2246 = vld [vmem:[%s3 + $0x228] sm:$0xf]
      %v2247 = vld [vmem:[%s3 + $0x22c] sm:$0xf]
      %v2248 = vld [vmem:[%s3 + $0x230] sm:$0xf]
      %v2249 = vld [vmem:[%s3 + $0x234] sm:$0xf]
      %v2250 = vld [vmem:[%s3 + $0x238] sm:$0xf]
      %v2251 = vld [vmem:[%s3 + $0x23c] sm:$0xf]
      %v2252 = vunpack.c.l.b16 %v2129
      %v2253 = vunpack.c.l.b16 %v2143
      %v2254 = vunpack.c.l.b16 %v2157
      %v2255 = vunpack.c.l.b16 %v2171
      %v2256 = vunpack.c.l.b16 %v2185
      %v2257 = vunpack.c.l.b16 %v2199
      %v2258 = vunpack.c.l.b16 %v2213
      %v2259 = vunpack.c.l.b16 %v2227
      %v2260 = vpack.c.b16 %v2253, %v2252
      %v2261 = vpack.c.b16 %v2255, %v2254
      %v2262 = vpack.c.b16 %v2257, %v2256
      %v2263 = vpack.c.b16 %v2259, %v2258
      %v2284 = vunpack.c.l.b16 %v2236
      %v2285 = vunpack.c.l.b16 %v2237
      %v2286 = vunpack.c.l.b16 %v2238
      %v2287 = vunpack.c.l.b16 %v2239
      %v2288 = vunpack.c.l.b16 %v2240
      %v2289 = vunpack.c.l.b16 %v2241
      %v2290 = vunpack.c.l.b16 %v2242
      %v2291 = vunpack.c.l.b16 %v2243
      %v2292 = vunpack.c.l.b16 %v2244
      %v2293 = vunpack.c.l.b16 %v2245
      %v2294 = vunpack.c.l.b16 %v2246
      %v2295 = vunpack.c.l.b16 %v2247
      %v2296 = vunpack.c.l.b16 %v2248
      %v2297 = vunpack.c.l.b16 %v2249
      %v2298 = vunpack.c.l.b16 %v2250
      %v2299 = vunpack.c.l.b16 %v2251
      %v2300 = vpack.c.b16 %v2285, %v2284
      %v2301 = vpack.c.b16 %v2287, %v2286
      %v2302 = vpack.c.b16 %v2289, %v2288
      %v2303 = vpack.c.b16 %v2291, %v2290
      %v2304 = vpack.c.b16 %v2293, %v2292
      %v2305 = vpack.c.b16 %v2295, %v2294
      %v2306 = vpack.c.b16 %v2297, %v2296
      %v2307 = vpack.c.b16 %v2299, %v2298
      %2316 = vmatprep.subr.bf16.mxu0 0
      %2317 = vmatpush1.bf16.msra.mxu0 %v2300
      %2318 = vmatprep.subr.bf16.mxu0 0
      %2319 = vmatpush1.bf16.msra.mxu0 %v2301
      %2320 = vmatprep.subr.bf16.mxu0 0
      %2321 = vmatpush1.bf16.msra.mxu0 %v2302
      %2322 = vmatprep.subr.bf16.mxu0 0
      %2323 = vmatpush1.bf16.msra.mxu0 %v2303
      %2324 = vmatprep.subr.bf16.mxu0 0
      %2325 = vmatpush1.bf16.msra.mxu0 %v2304
      %2326 = vmatprep.subr.bf16.mxu0 0
      %2327 = vmatpush1.bf16.msra.mxu0 %v2305
      %2328 = vmatprep.subr.bf16.mxu0 0
      %2329 = vmatpush1.bf16.msra.mxu0 %v2306
      %2330 = vmatprep.subr.bf16.mxu0 0
      %2331 = vmatpush1.bf16.msra.mxu0 %v2307
      %2332 = vmatprep.subr.bf16.mxu0 0
      %2333 = vmatpush1.bf16.msra.mxu0 0
      %2334 = vmatprep.subr.bf16.mxu0 0
      %2335 = vmatpush1.bf16.msra.mxu0 0
      %2336 = vmatprep.subr.bf16.mxu0 0
      %2337 = vmatpush1.bf16.msra.mxu0 0
      %2338 = vmatprep.subr.bf16.mxu0 0
      %2339 = vmatpush1.bf16.msra.mxu0 0
      %2340 = vmatprep.subr.bf16.mxu0 0
      %2341 = vmatpush1.bf16.msra.mxu0 0
      %2342 = vmatprep.subr.bf16.mxu0 0
      %2343 = vmatpush1.bf16.msra.mxu0 0
      %2344 = vmatprep.subr.bf16.mxu0 0
      %2345 = vmatpush1.bf16.msra.mxu0 0
      %2346 = vmatprep.subr.bf16.mxu0 0
      %2347 = vmatpush1.bf16.msra.mxu0 0
      %2348 = vmatprep.mubr.bf16.mxu0 0
      %2349 = vmatmul.mubr.bf16.gmra.mrb[0].mxu0 %v2260
      %v2350 = vpop.f32.mrb[0].mxu0
      %v2351 = vadd.f32 0.0, %v2350
      %v2352 = vpop.f32.mrb[0].mxu0
      %v2353 = vpop.f32.mrb[0].mxu0
      %v2354 = vadd.f32 0.0, %v2353
      %v2355 = vpop.f32.mrb[0].mxu0
      %2356 = vmatprep.mubr.bf16.mxu0 0
      %2357 = vmatmul.mubr.bf16.gmra.mrb[0].mxu0 %v2261
      %v2358 = vpop.f32.mrb[0].mxu0
      %v2359 = vadd.f32 0.0, %v2358
      %v2360 = vpop.f32.mrb[0].mxu0
      %v2361 = vpop.f32.mrb[0].mxu0
      %v2362 = vadd.f32 0.0, %v2361
      %v2363 = vpop.f32.mrb[0].mxu0
      %2364 = vmatprep.mubr.bf16.mxu0 0
      %2365 = vmatmul.mubr.bf16.gmra.mrb[0].mxu0 %v2262
      %v2366 = vpop.f32.mrb[0].mxu0
      %v2367 = vadd.f32 0.0, %v2366
      %v2368 = vpop.f32.mrb[0].mxu0
      %v2369 = vpop.f32.mrb[0].mxu0
      %v2370 = vadd.f32 0.0, %v2369
      %v2371 = vpop.f32.mrb[0].mxu0
      %2372 = vmatprep.mubr.bf16.mxu0 0
      %2373 = vmatmul.mubr.bf16.gmra.mrb[0].mxu0 %v2263
      %v2374 = vpop.f32.mrb[0].mxu0
      %v2375 = vadd.f32 0.0, %v2374
      %v2376 = vpop.f32.mrb[0].mxu0
      %v2377 = vpop.f32.mrb[0].mxu0
      %v2378 = vadd.f32 0.0, %v2377
      %v2379 = vpop.f32.mrb[0].mxu0
      %2380 = vdwg.mxu0
      %v2381 = vadd.f32 %v2228, %v2351
      %v2382 = vadd.f32 %v2229, %v2354
      %v2383 = vadd.f32 %v2230, %v2359
      %v2384 = vadd.f32 %v2231, %v2362
      %v2385 = vadd.f32 %v2232, %v2367
      %v2386 = vadd.f32 %v2233, %v2370
      %v2387 = vadd.f32 %v2234, %v2375
      %v2388 = vadd.f32 %v2235, %v2378
      %2389 = vst [vmem:[#allocation2] sm:$0xff] %v2381
      %2390 = vst [vmem:[#allocation2 + $0x8] sm:$0xff] %v2382
      %2391 = vst [vmem:[#allocation2 + $0x10] sm:$0xff] %v2383
      %2392 = vst [vmem:[#allocation2 + $0x18] sm:$0xff] %v2384
      %2393 = vst [vmem:[#allocation2 + $0x20] sm:$0xff] %v2385
      %2394 = vst [vmem:[#allocation2 + $0x28] sm:$0xff] %v2386
      %2395 = vst [vmem:[#allocation2 + $0x30] sm:$0xff] %v2387
      %2396 = vst [vmem:[#allocation2 + $0x38] sm:$0xff] %v2388
      %v2397 = vld [vmem:[#allocation2] sm:$0xff]
      %v2398 = vld [vmem:[#allocation2 + $0x8] sm:$0xff]
      %v2399 = vld [vmem:[#allocation2 + $0x10] sm:$0xff]
      %v2400 = vld [vmem:[#allocation2 + $0x18] sm:$0xff]
      %v2401 = vld [vmem:[#allocation2 + $0x20] sm:$0xff]
      %v2402 = vld [vmem:[#allocation2 + $0x28] sm:$0xff]
      %v2403 = vld [vmem:[#allocation2 + $0x30] sm:$0xff]
      %v2404 = vld [vmem:[#allocation2 + $0x38] sm:$0xff]
      %2405 = vst [vmem:[%s217] sm:$0xff] %v2397
      %2406 = vst [vmem:[%s217 + $0x8] sm:$0xff] %v2398
      %2407 = vst [vmem:[%s217 + $0x10] sm:$0xff] %v2399
      %2408 = vst [vmem:[%s217 + $0x18] sm:$0xff] %v2400
      %2409 = vst [vmem:[%s217 + $0x20] sm:$0xff] %v2401
      %2410 = vst [vmem:[%s217 + $0x28] sm:$0xff] %v2402
      %2411 = vst [vmem:[%s217 + $0x30] sm:$0xff] %v2403
      %2412 = vst [vmem:[%s217 + $0x38] sm:$0xff] %v2404
      %p2413 = scmp.lt.s32.totalorder %s15, 1
      %s2414 = scalar_select %p2413, %s15, 1
      %s2415 = smul.addr %s2414, 8
      %s2416 = smul.addr %s2415, 8
      %s2417 = scalar_lea.vmem %s4, %s2416
      // Predicated region
      $region37: #{wide_basic_forward.3} parent=35 // pred_check
        %p2418 = pneg %p127
      $region38: #{wide_basic_forward.3} parent=35 // pred_check_branch
        %2420 = sbr.rel (%p2418) target = $region40
      $region39: #{wide_basic_forward.3} parent=35 // pred_region
        _
      $region40: #{wide_basic_forward.3} parent=35 // pred_fallthru
        _
    $region36: #{wide_basic_forward.3} parent=5 // pred_fallthru
      _
    %p2421 = scmp.le.s32.totalorder 2, %s10
    // Predicated region
    $region41: #{wide_basic_forward.3} parent=5 // pred_check
      %p2422 = pneg %p2421
    $region42: #{wide_basic_forward.3} parent=5 // pred_check_branch
      %2424 = sbr.rel (%p2422) target = $region44
    $region43: #{wide_basic_forward.3} parent=5 // pred_region
      %s2425 = ssub.s32 %s10, 2
      // Predicated region
      $region45: #{wide_basic_forward.3} parent=43 // pred_check
        %p2426 = pneg %p133
      $region46: #{wide_basic_forward.3} parent=43 // pred_check_branch
        %2428 = sbr.rel (%p2426) target = $region48
      $region47: #{wide_basic_forward.3} parent=43 // pred_region
        %p2429 = scmp.lt.s32.totalorder %s16, 1
        %s2430 = scalar_select %p2429, %s16, 1
        %s2431 = smul.addr %s2430, 8
        %s2432 = smul.addr %s2431, 8
        %s2433 = scalar_lea.vmem %s4, %s2432
      $region48: #{wide_basic_forward.3} parent=43 // pred_fallthru
        _
    $region44: #{wide_basic_forward.3} parent=5 // pred_fallthru
      _
  $region6: #{wide_basic_forward.3} parent=0 // loop_footer
    %s14 = sadd.s32 1, %s10
  $region7: #{wide_basic_forward.3} parent=0 // loop_footer_branch
    %9 = sbr.rel target = $region3
  $region8: #{wide_basic_forward.3} parent=0 // loop_exit
    _

// kernel: wide_basic_forward.2
$region0: #{wide_basic_forward.2}
  #allocation0 [shape = 'u32[]', space=smem, size = 0x4, offset = 0x4, fixed_abs, tag = 'smem constant byte address 0x4 - core index']
  #allocation1 [shape = 'u32[144,128]{1,0:T(1,128)}', space=vmem, size = 0x12000, scoped, tag = 'internal scratch']
  #allocation2 [shape = 'f32[256,128]{1,0:T(8,128)}', space=vmem, size = 0x20000, scoped, tag = 'scratch operand']
  %s0 = inlined_call_operand.vmem [shape: bf16[2,16,16,128], index: 0, kind: input, shape index: {}]
  %s1 = inlined_call_operand.vmem [shape: f32[1,128], index: 1, kind: input, shape index: {}]
  %s2 = inlined_call_operand.vmem [shape: f32[1,128], index: 2, kind: input, shape index: {}]
  %s3 = inlined_call_operand.vmem [shape: bf16[1152,128], index: 3, kind: input, shape index: {}]
  %s4 = inlined_call_operand.vmem [shape: f32[1,128], index: 4, kind: input, shape index: {}]
  %s5 = inlined_call_operand.vmem [shape: f32[1,128], index: 5, kind: input, shape index: {}]
  %s6 = inlined_call_operand.vmem [shape: bf16[2,256,128], index: 6, kind: output, shape index: {}]
  %s7 = sld [smem:[#allocation0]]
  $region57: #{wide_basic_forward.2} parent=0
    _
  %s9 = ssub.s32 1, %s7
  %s10 = scalar_select 0, %s9, %s7
  loop: start=0, step=1, limit=4
  $region2: #{wide_basic_forward.2} parent=0 // loop_pre_header
    _
  $region3: #{wide_basic_forward.2} parent=0 // loop_header
    %s12 = sphi 0, %s16
    %p13 = scmp.ge.s32.totalorder %s12, 4
    %s22 = sphi 0, %s24
    %s25 = sphi 0, %s22
    %s26 = sphi 0, %s25
    %s42 = sphi 0, %s26
    %s46 = sphi 0, %s46
    %s48 = sphi 0, %s46
    %s49 = sphi 0, %s48
    %s63 = sphi 0, %s49
    %s67 = sphi 0, %s67
    %s69 = sphi 0, %s67
    %s70 = sphi 0, %s69
    %s84 = sphi 0, %s70
    %s88 = sphi 0, %s88
    %s90 = sphi 0, %s88
    %s91 = sphi 0, %s90
    %s105 = sphi 0, %s91
    %s109 = sphi 0, %s109
    %s111 = sphi 0, %s109
    %s112 = sphi 0, %s111
    %s126 = sphi 0, %s112
    %s130 = sphi 0, %s130
    %s132 = sphi 0, %s130
    %s133 = sphi 0, %s132
    %s147 = sphi 0, %s133
    %s153 = sphi 0, %s155
    %s156 = sphi 0, %s153
    %s157 = sphi 0, %s156
    %s173 = sphi 0, %s157
  $region4: #{wide_basic_forward.2} parent=0 // loop_header_branch
    %15 = sbr.rel (%p13) target = $region8
  $region5: #{wide_basic_forward.2} parent=0 // loop_body
    %s17 = ssub.s32 %s12, 1
    %s18 = ssub.s32 %s12, 2
    %s19 = sadd.s32 %s12, 1
    %s20 = ssub.s32 %s12, %s19
    %p21 = scmp.eq.s32.totalorder %s20, 0
    %s23 = sadd.s32 %s22, 1
    %s24 = scalar_select %p21, %s22, %s23
    %p27 = pneg %p21
    %p28 = scmp.eq.s32.totalorder %s12, 1
    %p29 = por %p27, %p28
    %p30 = scmp.ne.s32.totalorder %s22, %s25
    %p31 = scmp.eq.s32.totalorder %s12, 0
    %p32 = por %p30, %p31
    %p33 = scmp.ne.s32.totalorder %s22, %s25
    %p34 = scmp.eq.s32.totalorder %s17, 1
    %p35 = por %p33, %p34
    %p36 = scmp.ne.s32.totalorder %s25, %s26
    %p37 = scmp.eq.s32.totalorder %s17, 0
    %p38 = por %p36, %p37
    %p39 = scmp.ne.s32.totalorder %s25, %s26
    %p40 = scmp.eq.s32.totalorder %s18, 1
    %p41 = por %p39, %p40
    %p43 = scmp.ne.s32.totalorder %s26, %s42
    %p44 = scmp.eq.s32.totalorder %s18, 0
    %p45 = por %p43, %p44
    %s47 = sadd.s32 %s46, 1
    %p50 = scmp.eq.s32.totalorder %s12, 1
    %p51 = scmp.ne.s32.totalorder %s46, %s48
    %p52 = scmp.eq.s32.totalorder %s12, 0
    %p53 = por %p51, %p52
    %p54 = scmp.ne.s32.totalorder %s46, %s48
    %p55 = scmp.eq.s32.totalorder %s17, 1
    %p56 = por %p54, %p55
    %p57 = scmp.ne.s32.totalorder %s48, %s49
    %p58 = scmp.eq.s32.totalorder %s17, 0
    %p59 = por %p57, %p58
    %p60 = scmp.ne.s32.totalorder %s48, %s49
    %p61 = scmp.eq.s32.totalorder %s18, 1
    %p62 = por %p60, %p61
    %p64 = scmp.ne.s32.totalorder %s49, %s63
    %p65 = scmp.eq.s32.totalorder %s18, 0
    %p66 = por %p64, %p65
    %s68 = sadd.s32 %s67, 1
    %p71 = scmp.eq.s32.totalorder %s12, 1
    %p72 = scmp.ne.s32.totalorder %s67, %s69
    %p73 = scmp.eq.s32.totalorder %s12, 0
    %p74 = por %p72, %p73
    %p75 = scmp.ne.s32.totalorder %s67, %s69
    %p76 = scmp.eq.s32.totalorder %s17, 1
    %p77 = por %p75, %p76
    %p78 = scmp.ne.s32.totalorder %s69, %s70
    %p79 = scmp.eq.s32.totalorder %s17, 0
    %p80 = por %p78, %p79
    %p81 = scmp.ne.s32.totalorder %s69, %s70
    %p82 = scmp.eq.s32.totalorder %s18, 1
    %p83 = por %p81, %p82
    %p85 = scmp.ne.s32.totalorder %s70, %s84
    %p86 = scmp.eq.s32.totalorder %s18, 0
    %p87 = por %p85, %p86
    %s89 = sadd.s32 %s88, 1
    %p92 = scmp.eq.s32.totalorder %s12, 1
    %p93 = scmp.ne.s32.totalorder %s88, %s90
    %p94 = scmp.eq.s32.totalorder %s12, 0
    %p95 = por %p93, %p94
    %p96 = scmp.ne.s32.totalorder %s88, %s90
    %p97 = scmp.eq.s32.totalorder %s17, 1
    %p98 = por %p96, %p97
    %p99 = scmp.ne.s32.totalorder %s90, %s91
    %p100 = scmp.eq.s32.totalorder %s17, 0
    %p101 = por %p99, %p100
    %p102 = scmp.ne.s32.totalorder %s90, %s91
    %p103 = scmp.eq.s32.totalorder %s18, 1
    %p104 = por %p102, %p103
    %p106 = scmp.ne.s32.totalorder %s91, %s105
    %p107 = scmp.eq.s32.totalorder %s18, 0
    %p108 = por %p106, %p107
    %s110 = sadd.s32 %s109, 1
    %p113 = scmp.eq.s32.totalorder %s12, 1
    %p114 = scmp.ne.s32.totalorder %s109, %s111
    %p115 = scmp.eq.s32.totalorder %s12, 0
    %p116 = por %p114, %p115
    %p117 = scmp.ne.s32.totalorder %s109, %s111
    %p118 = scmp.eq.s32.totalorder %s17, 1
    %p119 = por %p117, %p118
    %p120 = scmp.ne.s32.totalorder %s111, %s112
    %p121 = scmp.eq.s32.totalorder %s17, 0
    %p122 = por %p120, %p121
    %p123 = scmp.ne.s32.totalorder %s111, %s112
    %p124 = scmp.eq.s32.totalorder %s18, 1
    %p125 = por %p123, %p124
    %p127 = scmp.ne.s32.totalorder %s112, %s126
    %p128 = scmp.eq.s32.totalorder %s18, 0
    %p129 = por %p127, %p128
    %s131 = sadd.s32 %s130, 1
    %p134 = scmp.eq.s32.totalorder %s12, 1
    %p135 = scmp.ne.s32.totalorder %s130, %s132
    %p136 = scmp.eq.s32.totalorder %s12, 0
    %p137 = por %p135, %p136
    %p138 = scmp.ne.s32.totalorder %s130, %s132
    %p139 = scmp.eq.s32.totalorder %s17, 1
    %p140 = por %p138, %p139
    %p141 = scmp.ne.s32.totalorder %s132, %s133
    %p142 = scmp.eq.s32.totalorder %s17, 0
    %p143 = por %p141, %p142
    %p144 = scmp.ne.s32.totalorder %s132, %s133
    %p145 = scmp.eq.s32.totalorder %s18, 1
    %p146 = por %p144, %p145
    %p148 = scmp.ne.s32.totalorder %s133, %s147
    %p149 = scmp.eq.s32.totalorder %s18, 0
    %p150 = por %p148, %p149
    %s151 = ssub.s32 %s12, %s19
    %p152 = scmp.eq.s32.totalorder %s151, 0
    %s154 = sadd.s32 %s153, 1
    %s155 = scalar_select %p152, %s153, %s154
    %p158 = pneg %p152
    %p159 = scmp.eq.s32.totalorder %s12, 1
    %p160 = por %p158, %p159
    %p161 = scmp.ne.s32.totalorder %s153, %s156
    %p162 = scmp.eq.s32.totalorder %s12, 0
    %p163 = por %p161, %p162
    %p164 = scmp.ne.s32.totalorder %s153, %s156
    %p165 = scmp.eq.s32.totalorder %s17, 1
    %p166 = por %p164, %p165
    %p167 = scmp.ne.s32.totalorder %s156, %s157
    %p168 = scmp.eq.s32.totalorder %s17, 0
    %p169 = por %p167, %p168
    %p170 = scmp.ne.s32.totalorder %s156, %s157
    %p171 = scmp.eq.s32.totalorder %s18, 1
    %p172 = por %p170, %p171
    %p174 = scmp.ne.s32.totalorder %s157, %s173
    %p175 = scmp.eq.s32.totalorder %s18, 0
    %p176 = por %p174, %p175
    %p177 = scmp.le.s32.totalorder 1, %s12
    %p178 = scmp.lt.s32.totalorder %s12, 3
    %p179 = pnand %p177, %p178
    %p180 = pneg %p179
    // Predicated region
    $region9: #{wide_basic_forward.2} parent=5 // pred_check
      _
    $region10: #{wide_basic_forward.2} parent=5 // pred_check_branch
      %182 = sbr.rel (%p179) target = $region12
    $region11: #{wide_basic_forward.2} parent=5 // pred_region
      %s183 = ssub.s32 %s12, 1
      // Predicated region
      $region13: #{wide_basic_forward.2} parent=11 // pred_check
        %p184 = pneg %p59
      $region14: #{wide_basic_forward.2} parent=11 // pred_check_branch
        %186 = sbr.rel (%p184) target = $region16
      $region15: #{wide_basic_forward.2} parent=11 // pred_region
        _
      $region16: #{wide_basic_forward.2} parent=11 // pred_fallthru
        _
      // Predicated region
      $region17: #{wide_basic_forward.2} parent=11 // pred_check
        %p187 = pneg %p80
      $region18: #{wide_basic_forward.2} parent=11 // pred_check_branch
        %189 = sbr.rel (%p187) target = $region20
      $region19: #{wide_basic_forward.2} parent=11 // pred_region
        _
      $region20: #{wide_basic_forward.2} parent=11 // pred_fallthru
        _
      // Predicated region
      $region21: #{wide_basic_forward.2} parent=11 // pred_check
        %p190 = pneg %p101
      $region22: #{wide_basic_forward.2} parent=11 // pred_check_branch
        %192 = sbr.rel (%p190) target = $region24
      $region23: #{wide_basic_forward.2} parent=11 // pred_region
        _
      $region24: #{wide_basic_forward.2} parent=11 // pred_fallthru
        _
      // Predicated region
      $region25: #{wide_basic_forward.2} parent=11 // pred_check
        %p193 = pneg %p122
      $region26: #{wide_basic_forward.2} parent=11 // pred_check_branch
        %195 = sbr.rel (%p193) target = $region28
      $region27: #{wide_basic_forward.2} parent=11 // pred_region
        _
      $region28: #{wide_basic_forward.2} parent=11 // pred_fallthru
        _
      // Predicated region
      $region29: #{wide_basic_forward.2} parent=11 // pred_check
        %p196 = pneg %p143
      $region30: #{wide_basic_forward.2} parent=11 // pred_check_branch
        %198 = sbr.rel (%p196) target = $region32
      $region31: #{wide_basic_forward.2} parent=11 // pred_region
        _
      $region32: #{wide_basic_forward.2} parent=11 // pred_fallthru
        _
    $region12: #{wide_basic_forward.2} parent=5 // pred_fallthru
      _
    %p199 = scmp.lt.s32.totalorder %s12, 2
    // Predicated region
    $region33: #{wide_basic_forward.2} parent=5 // pred_check
      %p200 = pneg %p199
    $region34: #{wide_basic_forward.2} parent=5 // pred_check_branch
      %202 = sbr.rel (%p200) target = $region36
    $region35: #{wide_basic_forward.2} parent=5 // pred_region
      // Predicated region
      $region37: #{wide_basic_forward.2} parent=35 // pred_check
        %p203 = pneg %p32
      $region38: #{wide_basic_forward.2} parent=35 // pred_check_branch
        %205 = sbr.rel (%p203) target = $region40
      $region39: #{wide_basic_forward.2} parent=35 // pred_region
        %p206 = scmp.lt.s32.totalorder %s12, 1
        %s207 = scalar_select %p206, %s12, 1
        %s208 = smul.addr %s207, 32
        %s209 = smul.addr %s208, 4
        %s210 = scalar_lea.vmem %s0, %s209
      $region40: #{wide_basic_forward.2} parent=35 // pred_fallthru
        _
    $region36: #{wide_basic_forward.2} parent=5 // pred_fallthru
      _
    %p211 = scmp.le.s32.totalorder 1, %s12
    %p212 = scmp.lt.s32.totalorder %s12, 3
    %p213 = pnand %p211, %p212
    %p214 = pneg %p213
    // Predicated region
    $region41: #{wide_basic_forward.2} parent=5 // pred_check
      _
    $region42: #{wide_basic_forward.2} parent=5 // pred_check_branch
      %216 = sbr.rel (%p213) target = $region44
    $region43: #{wide_basic_forward.2} parent=5 // pred_region
      %s217 = ssub.s32 %s12, 1
      %p218 = scmp.lt.s32.totalorder %s17, 1
      %s219 = scalar_select %p218, %s17, 1
      %s220 = smul.addr %s219, 32
      %s221 = smul.addr %s220, 4
      %s222 = scalar_lea.vmem %s0, %s221
      %p223 = pneg %p38
      %p224 = pneg %p35
      %p225 = pneg %p59
      %p226 = pneg %p56
      %p227 = pneg %p80
      %p228 = pneg %p77
      %p229 = pneg %p101
      %p230 = pneg %p98
      %p231 = pneg %p122
      %p232 = pneg %p119
      %p233 = pneg %p143
      %p234 = pneg %p140
      %p235 = pneg %p169
      %p236 = pneg %p166
      %p237 = scmp.lt.s32.totalorder %s17, 1
      %s238 = scalar_select %p237, %s17, 1
      %s239 = smul.addr %s238, 32
      %s240 = smul.addr %s239, 4
      %s241 = scalar_lea.vmem %s6, %s240
      %p242 = scmp.lt.s32.totalorder %s17, 1
      %s243 = scalar_select %p242, %s17, 1
      %s244 = smul.addr %s243, 32
      %s245 = smul.addr %s244, 4
      %s246 = scalar_lea.vmem %s0, %s245
      %p247 = scmp.lt.s32.totalorder %s17, 1
      %s248 = scalar_select %p247, %s17, 1
      %s249 = smul.addr %s248, 32
      %s250 = smul.addr %s249, 4
      %s251 = scalar_lea.vmem %s6, %s250
      %v253 = vld [vmem:[%s246] sm:$0xf]
      %v254 = vld [vmem:[%s246 + $0x4] sm:$0xf]
      %v255 = vld [vmem:[%s246 + $0x8] sm:$0xf]
      %v256 = vld [vmem:[%s246 + $0xc] sm:$0xf]
      %v257 = vld [vmem:[%s246 + $0x10] sm:$0xf]
      %v258 = vld [vmem:[%s246 + $0x14] sm:$0xf]
      %v259 = vld [vmem:[%s246 + $0x18] sm:$0xf]
      %v260 = vld [vmem:[%s246 + $0x1c] sm:$0xf]
      %v261 = vld [vmem:[%s246 + $0x20] sm:$0xf]
      %v262 = vld [vmem:[%s246 + $0x24] sm:$0xf]
      %v263 = vld [vmem:[%s246 + $0x28] sm:$0xf]
      %v264 = vld [vmem:[%s246 + $0x2c] sm:$0xf]
      %v265 = vld [vmem:[%s246 + $0x30] sm:$0xf]
      %v266 = vld [vmem:[%s246 + $0x34] sm:$0xf]
      %v267 = vld [vmem:[%s246 + $0x38] sm:$0xf]
      %v268 = vld [vmem:[%s246 + $0x3c] sm:$0xf]
      %v269 = vld [vmem:[%s246 + $0x40] sm:$0xf]
      %v270 = vld [vmem:[%s246 + $0x44] sm:$0xf]
      %v271 = vld [vmem:[%s246 + $0x48] sm:$0xf]
      %v272 = vld [vmem:[%s246 + $0x4c] sm:$0xf]
      %v273 = vld [vmem:[%s246 + $0x50] sm:$0xf]
      %v274 = vld [vmem:[%s246 + $0x54] sm:$0xf]
      %v275 = vld [vmem:[%s246 + $0x58] sm:$0xf]
      %v276 = vld [vmem:[%s246 + $0x5c] sm:$0xf]
      %v277 = vld [vmem:[%s246 + $0x60] sm:$0xf]
      %v278 = vld [vmem:[%s246 + $0x64] sm:$0xf]
      %v279 = vld [vmem:[%s246 + $0x68] sm:$0xf]
      %v280 = vld [vmem:[%s246 + $0x6c] sm:$0xf]
      %v281 = vld [vmem:[%s246 + $0x70] sm:$0xf]
      %v282 = vld [vmem:[%s246 + $0x74] sm:$0xf]
      %v283 = vld [vmem:[%s246 + $0x78] sm:$0xf]
      %v284 = vld [vmem:[%s246 + $0x7c] sm:$0xf]
      %v285 = vunpack.c.l.bf16 %v253
      %v286 = vunpack.c.l.bf16 %v254
      %v287 = vunpack.c.l.bf16 %v255
      %v288 = vunpack.c.l.bf16 %v256
      %v289 = vunpack.c.l.bf16 %v257
      %v290 = vunpack.c.l.bf16 %v258
      %v291 = vunpack.c.l.bf16 %v259
      %v292 = vunpack.c.l.bf16 %v260
      %v293 = vunpack.c.l.bf16 %v261
      %v294 = vunpack.c.l.bf16 %v262
      %v295 = vunpack.c.l.bf16 %v263
      %v296 = vunpack.c.l.bf16 %v264
      %v297 = vunpack.c.l.bf16 %v265
      %v298 = vunpack.c.l.bf16 %v266
      %v299 = vunpack.c.l.bf16 %v267
      %v300 = vunpack.c.l.bf16 %v268
      %v301 = vunpack.c.l.bf16 %v269
      %v302 = vunpack.c.l.bf16 %v270
      %v303 = vunpack.c.l.bf16 %v271
      %v304 = vunpack.c.l.bf16 %v272
      %v305 = vunpack.c.l.bf16 %v273
      %v306 = vunpack.c.l.bf16 %v274
      %v307 = vunpack.c.l.bf16 %v275
      %v308 = vunpack.c.l.bf16 %v276
      %v309 = vunpack.c.l.bf16 %v277
      %v310 = vunpack.c.l.bf16 %v278
      %v311 = vunpack.c.l.bf16 %v279
      %v312 = vunpack.c.l.bf16 %v280
      %v313 = vunpack.c.l.bf16 %v281
      %v314 = vunpack.c.l.bf16 %v282
      %v315 = vunpack.c.l.bf16 %v283
      %v316 = vunpack.c.l.bf16 %v284
      %v317 = vld [vmem:[%s1] sm:$0x1]
      %v319 = vlaneseq
      %v320 = vshrl.u32 %v319, 7
      %v321 = vsub.s32 0, %v320
      %v322 = vrot.slane %v317, %v321
      %v324 = vmul.f32 %v285, %v322
      %v325 = vmul.f32 %v286, %v322
      %v326 = vmul.f32 %v287, %v322
      %v327 = vmul.f32 %v288, %v322
      %v328 = vmul.f32 %v289, %v322
      %v329 = vmul.f32 %v290, %v322
      %v330 = vmul.f32 %v291, %v322
      %v331 = vmul.f32 %v292, %v322
      %v332 = vmul.f32 %v293, %v322
      %v333 = vmul.f32 %v294, %v322
      %v334 = vmul.f32 %v295, %v322
      %v335 = vmul.f32 %v296, %v322
      %v336 = vmul.f32 %v297, %v322
      %v337 = vmul.f32 %v298, %v322
      %v338 = vmul.f32 %v299, %v322
      %v339 = vmul.f32 %v300, %v322
      %v340 = vmul.f32 %v301, %v322
      %v341 = vmul.f32 %v302, %v322
      %v342 = vmul.f32 %v303, %v322
      %v343 = vmul.f32 %v304, %v322
      %v344 = vmul.f32 %v305, %v322
      %v345 = vmul.f32 %v306, %v322
      %v346 = vmul.f32 %v307, %v322
      %v347 = vmul.f32 %v308, %v322
      %v348 = vmul.f32 %v309, %v322
      %v349 = vmul.f32 %v310, %v322
      %v350 = vmul.f32 %v311, %v322
      %v351 = vmul.f32 %v312, %v322
      %v352 = vmul.f32 %v313, %v322
      %v353 = vmul.f32 %v314, %v322
      %v354 = vmul.f32 %v315, %v322
      %v355 = vmul.f32 %v316, %v322
      %v356 = vld [vmem:[%s2] sm:$0x1]
      %v358 = vlaneseq
      %v359 = vshrl.u32 %v358, 7
      %v360 = vsub.s32 0, %v359
      %v361 = vrot.slane %v356, %v360
      %v363 = vadd.f32 %v324, %v361
      %v364 = vadd.f32 %v325, %v361
      %v365 = vadd.f32 %v326, %v361
      %v366 = vadd.f32 %v327, %v361
      %v367 = vadd.f32 %v328, %v361
      %v368 = vadd.f32 %v329, %v361
      %v369 = vadd.f32 %v330, %v361
      %v370 = vadd.f32 %v331, %v361
      %v371 = vadd.f32 %v332, %v361
      %v372 = vadd.f32 %v333, %v361
      %v373 = vadd.f32 %v334, %v361
      %v374 = vadd.f32 %v335, %v361
      %v375 = vadd.f32 %v336, %v361
      %v376 = vadd.f32 %v337, %v361
      %v377 = vadd.f32 %v338, %v361
      %v378 = vadd.f32 %v339, %v361
      %v379 = vadd.f32 %v340, %v361
      %v380 = vadd.f32 %v341, %v361
      %v381 = vadd.f32 %v342, %v361
      %v382 = vadd.f32 %v343, %v361
      %v383 = vadd.f32 %v344, %v361
      %v384 = vadd.f32 %v345, %v361
      %v385 = vadd.f32 %v346, %v361
      %v386 = vadd.f32 %v347, %v361
      %v387 = vadd.f32 %v348, %v361
      %v388 = vadd.f32 %v349, %v361
      %v389 = vadd.f32 %v350, %v361
      %v390 = vadd.f32 %v351, %v361
      %v391 = vadd.f32 %v352, %v361
      %v392 = vadd.f32 %v353, %v361
      %v393 = vadd.f32 %v354, %v361
      %v394 = vadd.f32 %v355, %v361
      %vm395 = vcmp.gt.f32.partialorder %v363, 0.0
      %vm396 = vcmp.gt.f32.partialorder %v364, 0.0
      %vm397 = vcmp.gt.f32.partialorder %v365, 0.0
      %vm398 = vcmp.gt.f32.partialorder %v366, 0.0
      %vm399 = vcmp.gt.f32.partialorder %v367, 0.0
      %vm400 = vcmp.gt.f32.partialorder %v368, 0.0
      %vm401 = vcmp.gt.f32.partialorder %v369, 0.0
      %vm402 = vcmp.gt.f32.partialorder %v370, 0.0
      %vm403 = vcmp.gt.f32.partialorder %v371, 0.0
      %vm404 = vcmp.gt.f32.partialorder %v372, 0.0
      %vm405 = vcmp.gt.f32.partialorder %v373, 0.0
      %vm406 = vcmp.gt.f32.partialorder %v374, 0.0
      %vm407 = vcmp.gt.f32.partialorder %v375, 0.0
      %vm408 = vcmp.gt.f32.partialorder %v376, 0.0
      %vm409 = vcmp.gt.f32.partialorder %v377, 0.0
      %vm410 = vcmp.gt.f32.partialorder %v378, 0.0
      %vm411 = vcmp.gt.f32.partialorder %v379, 0.0
      %vm412 = vcmp.gt.f32.partialorder %v380, 0.0
      %vm413 = vcmp.gt.f32.partialorder %v381, 0.0
      %vm414 = vcmp.gt.f32.partialorder %v382, 0.0
      %vm415 = vcmp.gt.f32.partialorder %v383, 0.0
      %vm416 = vcmp.gt.f32.partialorder %v384, 0.0
      %vm417 = vcmp.gt.f32.partialorder %v385, 0.0
      %vm418 = vcmp.gt.f32.partialorder %v386, 0.0
      %vm419 = vcmp.gt.f32.partialorder %v387, 0.0
      %vm420 = vcmp.gt.f32.partialorder %v388, 0.0
      %vm421 = vcmp.gt.f32.partialorder %v389, 0.0
      %vm422 = vcmp.gt.f32.partialorder %v390, 0.0
      %vm423 = vcmp.gt.f32.partialorder %v391, 0.0
      %vm424 = vcmp.gt.f32.partialorder %v392, 0.0
      %vm425 = vcmp.gt.f32.partialorder %v393, 0.0
      %vm426 = vcmp.gt.f32.partialorder %v394, 0.0
      %v427 = vmul.f32 %v363, 0.0
      %v428 = vmul.f32 %v364, 0.0
      %v429 = vmul.f32 %v365, 0.0
      %v430 = vmul.f32 %v366, 0.0
      %v431 = vmul.f32 %v367, 0.0
      %v432 = vmul.f32 %v368, 0.0
      %v433 = vmul.f32 %v369, 0.0
      %v434 = vmul.f32 %v370, 0.0
      %v435 = vmul.f32 %v371, 0.0
      %v436 = vmul.f32 %v372, 0.0
      %v437 = vmul.f32 %v373, 0.0
      %v438 = vmul.f32 %v374, 0.0
      %v439 = vmul.f32 %v375, 0.0
      %v440 = vmul.f32 %v376, 0.0
      %v441 = vmul.f32 %v377, 0.0
      %v442 = vmul.f32 %v378, 0.0
      %v443 = vmul.f32 %v379, 0.0
      %v444 = vmul.f32 %v380, 0.0
      %v445 = vmul.f32 %v381, 0.0
      %v446 = vmul.f32 %v382, 0.0
      %v447 = vmul.f32 %v383, 0.0
      %v448 = vmul.f32 %v384, 0.0
      %v449 = vmul.f32 %v385, 0.0
      %v450 = vmul.f32 %v386, 0.0
      %v451 = vmul.f32 %v387, 0.0
      %v452 = vmul.f32 %v388, 0.0
      %v453 = vmul.f32 %v389, 0.0
      %v454 = vmul.f32 %v390, 0.0
      %v455 = vmul.f32 %v391, 0.0
      %v456 = vmul.f32 %v392, 0.0
      %v457 = vmul.f32 %v393, 0.0
      %v458 = vmul.f32 %v394, 0.0
      %v459 = vsel %vm395, %v363, %v427
      %v460 = vsel %vm396, %v364, %v428
      %v461 = vsel %vm397, %v365, %v429
      %v462 = vsel %vm398, %v366, %v430
      %v463 = vsel %vm399, %v367, %v431
      %v464 = vsel %vm400, %v368, %v432
      %v465 = vsel %vm401, %v369, %v433
      %v466 = vsel %vm402, %v370, %v434
      %v467 = vsel %vm403, %v371, %v435
      %v468 = vsel %vm404, %v372, %v436
      %v469 = vsel %vm405, %v373, %v437
      %v470 = vsel %vm406, %v374, %v438
      %v471 = vsel %vm407, %v375, %v439
      %v472 = vsel %vm408, %v376, %v440
      %v473 = vsel %vm409, %v377, %v441
      %v474 = vsel %vm410, %v378, %v442
      %v475 = vsel %vm411, %v379, %v443
      %v476 = vsel %vm412, %v380, %v444
      %v477 = vsel %vm413, %v381, %v445
      %v478 = vsel %vm414, %v382, %v446
      %v479 = vsel %vm415, %v383, %v447
      %v480 = vsel %vm416, %v384, %v448
      %v481 = vsel %vm417, %v385, %v449
      %v482 = vsel %vm418, %v386, %v450
      %v483 = vsel %vm419, %v387, %v451
      %v484 = vsel %vm420, %v388, %v452
      %v485 = vsel %vm421, %v389, %v453
      %v486 = vsel %vm422, %v390, %v454
      %v487 = vsel %vm423, %v391, %v455
      %v488 = vsel %vm424, %v392, %v456
      %v489 = vsel %vm425, %v393, %v457
      %v490 = vsel %vm426, %v394, %v458
      %v491 = vpack.c.bf16 %v460, %v459
      %v492 = vpack.c.bf16 %v462, %v461
      %v493 = vpack.c.bf16 %v464, %v463
      %v494 = vpack.c.bf16 %v466, %v465
      %v495 = vpack.c.bf16 %v468, %v467
      %v496 = vpack.c.bf16 %v470, %v469
      %v497 = vpack.c.bf16 %v472, %v471
      %v498 = vpack.c.bf16 %v474, %v473
      %v499 = vpack.c.bf16 %v476, %v475
      %v500 = vpack.c.bf16 %v478, %v477
      %v501 = vpack.c.bf16 %v480, %v479
      %v502 = vpack.c.bf16 %v482, %v481
      %v503 = vpack.c.bf16 %v484, %v483
      %v504 = vpack.c.bf16 %v486, %v485
      %v505 = vpack.c.bf16 %v488, %v487
      %v506 = vpack.c.bf16 %v490, %v489
      %v508 = vshrl.u32 %v491, 16
      %v510 = vrot.slane %v508, 7
      %v511 = vshll.u32 %v491, 16
      %v513 = vor.u32 %v510, %v511
      %v515 = vshrl.u32 %v492, 16
      %v517 = vrot.slane %v515, 7
      %v518 = vshll.u32 %v492, 16
      %v520 = vor.u32 %v517, %v518
      %v522 = vshrl.u32 %v493, 16
      %v524 = vrot.slane %v522, 7
      %v525 = vshll.u32 %v493, 16
      %v527 = vor.u32 %v524, %v525
      %v529 = vshrl.u32 %v494, 16
      %v531 = vrot.slane %v529, 7
      %v532 = vshll.u32 %v494, 16
      %v534 = vor.u32 %v531, %v532
      %v536 = vshrl.u32 %v495, 16
      %v538 = vrot.slane %v536, 7
      %v539 = vshll.u32 %v495, 16
      %v541 = vor.u32 %v538, %v539
      %v543 = vshrl.u32 %v496, 16
      %v545 = vrot.slane %v543, 7
      %v546 = vshll.u32 %v496, 16
      %v548 = vor.u32 %v545, %v546
      %v550 = vshrl.u32 %v497, 16
      %v552 = vrot.slane %v550, 7
      %v553 = vshll.u32 %v497, 16
      %v555 = vor.u32 %v552, %v553
      %v557 = vshrl.u32 %v498, 16
      %v559 = vrot.slane %v557, 7
      %v560 = vshll.u32 %v498, 16
      %v562 = vor.u32 %v559, %v560
      %v564 = vshrl.u32 %v499, 16
      %v566 = vrot.slane %v564, 7
      %v567 = vshll.u32 %v499, 16
      %v569 = vor.u32 %v566, %v567
      %v571 = vshrl.u32 %v500, 16
      %v573 = vrot.slane %v571, 7
      %v574 = vshll.u32 %v500, 16
      %v576 = vor.u32 %v573, %v574
      %v578 = vshrl.u32 %v501, 16
      %v580 = vrot.slane %v578, 7
      %v581 = vshll.u32 %v501, 16
      %v583 = vor.u32 %v580, %v581
      %v585 = vshrl.u32 %v502, 16
      %v587 = vrot.slane %v585, 7
      %v588 = vshll.u32 %v502, 16
      %v590 = vor.u32 %v587, %v588
      %v592 = vshrl.u32 %v503, 16
      %v594 = vrot.slane %v592, 7
      %v595 = vshll.u32 %v503, 16
      %v597 = vor.u32 %v594, %v595
      %v599 = vshrl.u32 %v504, 16
      %v601 = vrot.slane %v599, 7
      %v602 = vshll.u32 %v504, 16
      %v604 = vor.u32 %v601, %v602
      %v606 = vshrl.u32 %v505, 16
      %v608 = vrot.slane %v606, 7
      %v609 = vshll.u32 %v505, 16
      %v611 = vor.u32 %v608, %v609
      %v613 = vshrl.u32 %v506, 16
      %v615 = vrot.slane %v613, 7
      %v616 = vshll.u32 %v506, 16
      %v618 = vor.u32 %v615, %v616
      %vm651 = vcmask 1040384
      %vm652 = vsmask.f32 256
      %vm653 = vmand %vm651, %vm652
      %v654 = vsel %vm653, 0, %v513
      %v655 = vsel %vm653, 0, %v520
      %v656 = vsel %vm653, 0, %v527
      %v657 = vsel %vm653, 0, %v534
      %v658 = vsel %vm653, 0, %v541
      %v659 = vsel %vm653, 0, %v548
      %v660 = vsel %vm653, 0, %v555
      %v661 = vsel %vm653, 0, %v562
      %v662 = vsel %vm653, 0, %v569
      %v663 = vsel %vm653, 0, %v576
      %v664 = vsel %vm653, 0, %v583
      %v665 = vsel %vm653, 0, %v590
      %v666 = vsel %vm653, 0, %v597
      %v667 = vsel %vm653, 0, %v604
      %v668 = vsel %vm653, 0, %v611
      %v669 = vsel %vm653, 0, %v618
      %v670 = vsel %vm653, %v510, 0
      %v671 = vsel %vm653, %v517, 0
      %v672 = vsel %vm653, %v524, 0
      %v673 = vsel %vm653, %v531, 0
      %v674 = vsel %vm653, %v538, 0
      %v675 = vsel %vm653, %v545, 0
      %v676 = vsel %vm653, %v552, 0
      %v677 = vsel %vm653, %v559, 0
      %v678 = vsel %vm653, %v566, 0
      %v679 = vsel %vm653, %v573, 0
      %v680 = vsel %vm653, %v580, 0
      %v681 = vsel %vm653, %v587, 0
      %v682 = vsel %vm653, %v594, 0
      %v683 = vsel %vm653, %v601, 0
      %v684 = vsel %vm653, %v608, 0
      %v685 = vsel %vm653, %v615, 0
      %686 = vst [vmem:[#allocation2] sm:$0xff] 0.0
      %687 = vst [vmem:[#allocation2 + $0x8] sm:$0xff] 0.0
      %688 = vst [vmem:[#allocation2 + $0x10] sm:$0xff] 0.0
      %689 = vst [vmem:[#allocation2 + $0x18] sm:$0xff] 0.0
      %690 = vst [vmem:[#allocation2 + $0x20] sm:$0xff] 0.0
      %691 = vst [vmem:[#allocation2 + $0x28] sm:$0xff] 0.0
      %692 = vst [vmem:[#allocation2 + $0x30] sm:$0xff] 0.0
      %693 = vst [vmem:[#allocation2 + $0x38] sm:$0xff] 0.0
      %694 = vst [vmem:[#allocation2 + $0x40] sm:$0xff] 0.0
      %695 = vst [vmem:[#allocation2 + $0x48] sm:$0xff] 0.0
      %696 = vst [vmem:[#allocation2 + $0x50] sm:$0xff] 0.0
      %697 = vst [vmem:[#allocation2 + $0x58] sm:$0xff] 0.0
      %698 = vst [vmem:[#allocation2 + $0x60] sm:$0xff] 0.0
      %699 = vst [vmem:[#allocation2 + $0x68] sm:$0xff] 0.0
      %700 = vst [vmem:[#allocation2 + $0x70] sm:$0xff] 0.0
      %701 = vst [vmem:[#allocation2 + $0x78] sm:$0xff] 0.0
      %702 = vst [vmem:[#allocation2 + $0x80] sm:$0xff] 0.0
      %703 = vst [vmem:[#allocation2 + $0x88] sm:$0xff] 0.0
      %704 = vst [vmem:[#allocation2 + $0x90] sm:$0xff] 0.0
      %705 = vst [vmem:[#allocation2 + $0x98] sm:$0xff] 0.0
      %706 = vst [vmem:[#allocation2 + $0xa0] sm:$0xff] 0.0
      %707 = vst [vmem:[#allocation2 + $0xa8] sm:$0xff] 0.0
      %708 = vst [vmem:[#allocation2 + $0xb0] sm:$0xff] 0.0
      %709 = vst [vmem:[#allocation2 + $0xb8] sm:$0xff] 0.0
      %710 = vst [vmem:[#allocation2 + $0xc0] sm:$0xff] 0.0
      %711 = vst [vmem:[#allocation2 + $0xc8] sm:$0xff] 0.0
      %712 = vst [vmem:[#allocation2 + $0xd0] sm:$0xff] 0.0
      %713 = vst [vmem:[#allocation2 + $0xd8] sm:$0xff] 0.0
      %714 = vst [vmem:[#allocation2 + $0xe0] sm:$0xff] 0.0
      %715 = vst [vmem:[#allocation2 + $0xe8] sm:$0xff] 0.0
      %716 = vst [vmem:[#allocation2 + $0xf0] sm:$0xff] 0.0
      %717 = vst [vmem:[#allocation2 + $0xf8] sm:$0xff] 0.0
      %v718 = vld [vmem:[#allocation2] sm:$0xff]
      %v719 = vld [vmem:[#allocation2 + $0x8] sm:$0xff]
      %v720 = vld [vmem:[#allocation2 + $0x10] sm:$0xff]
      %v721 = vld [vmem:[#allocation2 + $0x18] sm:$0xff]
      %v722 = vld [vmem:[#allocation2 + $0x20] sm:$0xff]
      %v723 = vld [vmem:[#allocation2 + $0x28] sm:$0xff]
      %v724 = vld [vmem:[#allocation2 + $0x30] sm:$0xff]
      %v725 = vld [vmem:[#allocation2 + $0x38] sm:$0xff]
      %v726 = vld [vmem:[#allocation2 + $0x40] sm:$0xff]
      %v727 = vld [vmem:[#allocation2 + $0x48] sm:$0xff]
      %v728 = vld [vmem:[#allocation2 + $0x50] sm:$0xff]
      %v729 = vld [vmem:[#allocation2 + $0x58] sm:$0xff]
      %v730 = vld [vmem:[#allocation2 + $0x60] sm:$0xff]
      %v731 = vld [vmem:[#allocation2 + $0x68] sm:$0xff]
      %v732 = vld [vmem:[#allocation2 + $0x70] sm:$0xff]
      %v733 = vld [vmem:[#allocation2 + $0x78] sm:$0xff]
      %v734 = vld [vmem:[#allocation2 + $0x80] sm:$0xff]
      %v735 = vld [vmem:[#allocation2 + $0x88] sm:$0xff]
      %v736 = vld [vmem:[#allocation2 + $0x90] sm:$0xff]
      %v737 = vld [vmem:[#allocation2 + $0x98] sm:$0xff]
      %v738 = vld [vmem:[#allocation2 + $0xa0] sm:$0xff]
      %v739 = vld [vmem:[#allocation2 + $0xa8] sm:$0xff]
      %v740 = vld [vmem:[#allocation2 + $0xb0] sm:$0xff]
      %v741 = vld [vmem:[#allocation2 + $0xb8] sm:$0xff]
      %v742 = vld [vmem:[#allocation2 + $0xc0] sm:$0xff]
      %v743 = vld [vmem:[#allocation2 + $0xc8] sm:$0xff]
      %v744 = vld [vmem:[#allocation2 + $0xd0] sm:$0xff]
      %v745 = vld [vmem:[#allocation2 + $0xd8] sm:$0xff]
      %v746 = vld [vmem:[#allocation2 + $0xe0] sm:$0xff]
      %v747 = vld [vmem:[#allocation2 + $0xe8] sm:$0xff]
      %v748 = vld [vmem:[#allocation2 + $0xf0] sm:$0xff]
      %v749 = vld [vmem:[#allocation2 + $0xf8] sm:$0xff]
      %v750 = vld [vmem:[%s3] sm:$0xf]
      %v751 = vld [vmem:[%s3 + $0x4] sm:$0xf]
      %v752 = vld [vmem:[%s3 + $0x8] sm:$0xf]
      %v753 = vld [vmem:[%s3 + $0xc] sm:$0xf]
      %v754 = vld [vmem:[%s3 + $0x10] sm:$0xf]
      %v755 = vld [vmem:[%s3 + $0x14] sm:$0xf]
      %v756 = vld [vmem:[%s3 + $0x18] sm:$0xf]
      %v757 = vld [vmem:[%s3 + $0x1c] sm:$0xf]
      %v758 = vld [vmem:[%s3 + $0x20] sm:$0xf]
      %v759 = vld [vmem:[%s3 + $0x24] sm:$0xf]
      %v760 = vld [vmem:[%s3 + $0x28] sm:$0xf]
      %v761 = vld [vmem:[%s3 + $0x2c] sm:$0xf]
      %v762 = vld [vmem:[%s3 + $0x30] sm:$0xf]
      %v763 = vld [vmem:[%s3 + $0x34] sm:$0xf]
      %v764 = vld [vmem:[%s3 + $0x38] sm:$0xf]
      %v765 = vld [vmem:[%s3 + $0x3c] sm:$0xf]
      %v782 = vunpack.c.l.b16 %v750
      %v783 = vunpack.c.l.b16 %v751
      %v784 = vunpack.c.l.b16 %v752
      %v785 = vunpack.c.l.b16 %v753
      %v786 = vunpack.c.l.b16 %v754
      %v787 = vunpack.c.l.b16 %v755
      %v788 = vunpack.c.l.b16 %v756
      %v789 = vunpack.c.l.b16 %v757
      %v790 = vunpack.c.l.b16 %v758
      %v791 = vunpack.c.l.b16 %v759
      %v792 = vunpack.c.l.b16 %v760
      %v793 = vunpack.c.l.b16 %v761
      %v794 = vunpack.c.l.b16 %v762
      %v795 = vunpack.c.l.b16 %v763
      %v796 = vunpack.c.l.b16 %v764
      %v797 = vunpack.c.l.b16 %v765
      %v798 = vpack.c.b16 %v783, %v782
      %v799 = vpack.c.b16 %v785, %v784
      %v800 = vpack.c.b16 %v787, %v786
      %v801 = vpack.c.b16 %v789, %v788
      %v802 = vpack.c.b16 %v791, %v790
      %v803 = vpack.c.b16 %v793, %v792
      %v804 = vpack.c.b16 %v795, %v794
      %v805 = vpack.c.b16 %v797, %v796
      %814 = vmatprep.subr.bf16.mxu0 0
      %815 = vmatpush1.bf16.msra.mxu0 %v798
      %816 = vmatprep.subr.bf16.mxu0 0
      %817 = vmatpush1.bf16.msra.mxu0 %v799
      %818 = vmatprep.subr.bf16.mxu0 0
      %819 = vmatpush1.bf16.msra.mxu0 %v800
      %820 = vmatprep.subr.bf16.mxu0 0
      %821 = vmatpush1.bf16.msra.mxu0 %v801
      %822 = vmatprep.subr.bf16.mxu0 0
      %823 = vmatpush1.bf16.msra.mxu0 %v802
      %824 = vmatprep.subr.bf16.mxu0 0
      %825 = vmatpush1.bf16.msra.mxu0 %v803
      %826 = vmatprep.subr.bf16.mxu0 0
      %827 = vmatpush1.bf16.msra.mxu0 %v804
      %828 = vmatprep.subr.bf16.mxu0 0
      %829 = vmatpush1.bf16.msra.mxu0 %v805
      %830 = vmatprep.subr.bf16.mxu0 0
      %831 = vmatpush1.bf16.msra.mxu0 0
      %832 = vmatprep.subr.bf16.mxu0 0
      %833 = vmatpush1.bf16.msra.mxu0 0
      %834 = vmatprep.subr.bf16.mxu0 0
      %835 = vmatpush1.bf16.msra.mxu0 0
      %836 = vmatprep.subr.bf16.mxu0 0
      %837 = vmatpush1.bf16.msra.mxu0 0
      %838 = vmatprep.subr.bf16.mxu0 0
      %839 = vmatpush1.bf16.msra.mxu0 0
      %840 = vmatprep.subr.bf16.mxu0 0
      %841 = vmatpush1.bf16.msra.mxu0 0
      %842 = vmatprep.subr.bf16.mxu0 0
      %843 = vmatpush1.bf16.msra.mxu0 0
      %844 = vmatprep.subr.bf16.mxu0 0
      %845 = vmatpush1.bf16.msra.mxu0 0
      %846 = vmatprep.mubr.bf16.mxu0 0
      %847 = vmatmul.mubr.bf16.gmra.mrb[0].mxu0 0
      %v848 = vpop.f32.mrb[0].mxu0
      %v849 = vadd.f32 0.0, %v848
      %v850 = vpop.f32.mrb[0].mxu0
      %v851 = vpop.f32.mrb[0].mxu0
      %v852 = vadd.f32 0.0, %v851
      %v853 = vpop.f32.mrb[0].mxu0
      %854 = vmatprep.mubr.bf16.mxu0 0
      %855 = vmatmul.mubr.bf16.gmra.mrb[0].mxu0 %v654
      %v856 = vpop.f32.mrb[0].mxu0
      %v857 = vadd.f32 0.0, %v856
      %v858 = vpop.f32.mrb[0].mxu0
      %v859 = vpop.f32.mrb[0].mxu0
      %v860 = vadd.f32 0.0, %v859
      %v861 = vpop.f32.mrb[0].mxu0
      %862 = vmatprep.mubr.bf16.mxu0 0
      %863 = vmatmul.mubr.bf16.gmra.mrb[0].mxu0 %v655
      %v864 = vpop.f32.mrb[0].mxu0
      %v865 = vadd.f32 0.0, %v864
      %v866 = vpop.f32.mrb[0].mxu0
      %v867 = vpop.f32.mrb[0].mxu0
      %v868 = vadd.f32 0.0, %v867
      %v869 = vpop.f32.mrb[0].mxu0
      %870 = vmatprep.mubr.bf16.mxu0 0
      %871 = vmatmul.mubr.bf16.gmra.mrb[0].mxu0 %v656
      %v872 = vpop.f32.mrb[0].mxu0
      %v873 = vadd.f32 0.0, %v872
      %v874 = vpop.f32.mrb[0].mxu0
      %v875 = vpop.f32.mrb[0].mxu0
      %v876 = vadd.f32 0.0, %v875
      %v877 = vpop.f32.mrb[0].mxu0
      %878 = vmatprep.mubr.bf16.mxu0 0
      %879 = vmatmul.mubr.bf16.gmra.mrb[0].mxu0 %v657
      %v880 = vpop.f32.mrb[0].mxu0
      %v881 = vadd.f32 0.0, %v880
      %v882 = vpop.f32.mrb[0].mxu0
      %v883 = vpop.f32.mrb[0].mxu0
      %v884 = vadd.f32 0.0, %v883
      %v885 = vpop.f32.mrb[0].mxu0
      %886 = vmatprep.mubr.bf16.mxu0 0
      %887 = vmatmul.mubr.bf16.gmra.mrb[0].mxu0 %v658
      %v888 = vpop.f32.mrb[0].mxu0
      %v889 = vadd.f32 0.0, %v888
      %v890 = vpop.f32.mrb[0].mxu0
      %v891 = vpop.f32.mrb[0].mxu0
      %v892 = vadd.f32 0.0, %v891
      %v893 = vpop.f32.mrb[0].mxu0
      %894 = vmatprep.mubr.bf16.mxu0 0
      %895 = vmatmul.mubr.bf16.gmra.mrb[0].mxu0 %v659
      %v896 = vpop.f32.mrb[0].mxu0
      %v897 = vadd.f32 0.0, %v896
      %v898 = vpop.f32.mrb[0].mxu0
      %v899 = vpop.f32.mrb[0].mxu0
      %v900 = vadd.f32 0.0, %v899
      %v901 = vpop.f32.mrb[0].mxu0
      %902 = vmatprep.mubr.bf16.mxu0 0
      %903 = vmatmul.mubr.bf16.gmra.mrb[0].mxu0 %v660
      %v904 = vpop.f32.mrb[0].mxu0
      %v905 = vadd.f32 0.0, %v904
      %v906 = vpop.f32.mrb[0].mxu0
      %v907 = vpop.f32.mrb[0].mxu0
      %v908 = vadd.f32 0.0, %v907
      %v909 = vpop.f32.mrb[0].mxu0
      %910 = vmatprep.mubr.bf16.mxu0 0
      %911 = vmatmul.mubr.bf16.gmra.mrb[0].mxu0 %v661
      %v912 = vpop.f32.mrb[0].mxu0
      %v913 = vadd.f32 0.0, %v912
      %v914 = vpop.f32.mrb[0].mxu0
      %v915 = vpop.f32.mrb[0].mxu0
      %v916 = vadd.f32 0.0, %v915
      %v917 = vpop.f32.mrb[0].mxu0
      %918 = vmatprep.mubr.bf16.mxu0 0
      %919 = vmatmul.mubr.bf16.gmra.mrb[0].mxu0 %v662
      %v920 = vpop.f32.mrb[0].mxu0
      %v921 = vadd.f32 0.0, %v920
      %v922 = vpop.f32.mrb[0].mxu0
      %v923 = vpop.f32.mrb[0].mxu0
      %v924 = vadd.f32 0.0, %v923
      %v925 = vpop.f32.mrb[0].mxu0
      %926 = vmatprep.mubr.bf16.mxu0 0
      %927 = vmatmul.mubr.bf16.gmra.mrb[0].mxu0 %v663
      %v928 = vpop.f32.mrb[0].mxu0
      %v929 = vadd.f32 0.0, %v928
      %v930 = vpop.f32.mrb[0].mxu0
      %v931 = vpop.f32.mrb[0].mxu0
      %v932 = vadd.f32 0.0, %v931
      %v933 = vpop.f32.mrb[0].mxu0
      %934 = vmatprep.mubr.bf16.mxu0 0
      %935 = vmatmul.mubr.bf16.gmra.mrb[0].mxu0 %v664
      %v936 = vpop.f32.mrb[0].mxu0
      %v937 = vadd.f32 0.0, %v936
      %v938 = vpop.f32.mrb[0].mxu0
      %v939 = vpop.f32.mrb[0].mxu0
      %v940 = vadd.f32 0.0, %v939
      %v941 = vpop.f32.mrb[0].mxu0
      %942 = vmatprep.mubr.bf16.mxu0 0
      %943 = vmatmul.mubr.bf16.gmra.mrb[0].mxu0 %v665
      %v944 = vpop.f32.mrb[0].mxu0
      %v945 = vadd.f32 0.0, %v944
      %v946 = vpop.f32.mrb[0].mxu0
      %v947 = vpop.f32.mrb[0].mxu0
      %v948 = vadd.f32 0.0, %v947
      %v949 = vpop.f32.mrb[0].mxu0
      %950 = vmatprep.mubr.bf16.mxu0 0
      %951 = vmatmul.mubr.bf16.gmra.mrb[0].mxu0 %v666
      %v952 = vpop.f32.mrb[0].mxu0
      %v953 = vadd.f32 0.0, %v952
      %v954 = vpop.f32.mrb[0].mxu0
      %v955 = vpop.f32.mrb[0].mxu0
      %v956 = vadd.f32 0.0, %v955
      %v957 = vpop.f32.mrb[0].mxu0
      %958 = vmatprep.mubr.bf16.mxu0 0
      %959 = vmatmul.mubr.bf16.gmra.mrb[0].mxu0 %v667
      %v960 = vpop.f32.mrb[0].mxu0
      %v961 = vadd.f32 0.0, %v960
      %v962 = vpop.f32.mrb[0].mxu0
      %v963 = vpop.f32.mrb[0].mxu0
      %v964 = vadd.f32 0.0, %v963
      %v965 = vpop.f32.mrb[0].mxu0
      %966 = vmatprep.mubr.bf16.mxu0 0
      %967 = vmatmul.mubr.bf16.gmra.mrb[0].mxu0 %v668
      %v968 = vpop.f32.mrb[0].mxu0
      %v969 = vadd.f32 0.0, %v968
      %v970 = vpop.f32.mrb[0].mxu0
      %v971 = vpop.f32.mrb[0].mxu0
      %v972 = vadd.f32 0.0, %v971
      %v973 = vpop.f32.mrb[0].mxu0
      %974 = vdwg.mxu0
      %v975 = vadd.f32 %v718, %v849
      %v976 = vadd.f32 %v719, %v852
      %v977 = vadd.f32 %v720, %v857
      %v978 = vadd.f32 %v721, %v860
      %v979 = vadd.f32 %v722, %v865
      %v980 = vadd.f32 %v723, %v868
      %v981 = vadd.f32 %v724, %v873
      %v982 = vadd.f32 %v725, %v876
      %v983 = vadd.f32 %v726, %v881
      %v984 = vadd.f32 %v727, %v884
      %v985 = vadd.f32 %v728, %v889
      %v986 = vadd.f32 %v729, %v892
      %v987 = vadd.f32 %v730, %v897
      %v988 = vadd.f32 %v731, %v900
      %v989 = vadd.f32 %v732, %v905
      %v990 = vadd.f32 %v733, %v908
      %v991 = vadd.f32 %v734, %v913
      %v992 = vadd.f32 %v735, %v916
      %v993 = vadd.f32 %v736, %v921
      %v994 = vadd.f32 %v737, %v924
      %v995 = vadd.f32 %v738, %v929
      %v996 = vadd.f32 %v739, %v932
      %v997 = vadd.f32 %v740, %v937
      %v998 = vadd.f32 %v741, %v940
      %v999 = vadd.f32 %v742, %v945
      %v1000 = vadd.f32 %v743, %v948
      %v1001 = vadd.f32 %v744, %v953
      %v1002 = vadd.f32 %v745, %v956
      %v1003 = vadd.f32 %v746, %v961
      %v1004 = vadd.f32 %v747, %v964
      %v1005 = vadd.f32 %v748, %v969
      %v1006 = vadd.f32 %v749, %v972
      %1007 = vst [vmem:[#allocation2] sm:$0xff] %v975
      %1008 = vst [vmem:[#allocation2 + $0x8] sm:$0xff] %v976
      %1009 = vst [vmem:[#allocation2 + $0x10] sm:$0xff] %v977
      %1010 = vst [vmem:[#allocation2 + $0x18] sm:$0xff] %v978
      %1011 = vst [vmem:[#allocation2 + $0x20] sm:$0xff] %v979
      %1012 = vst [vmem:[#allocation2 + $0x28] sm:$0xff] %v980
      %1013 = vst [vmem:[#allocation2 + $0x30] sm:$0xff] %v981
      %1014 = vst [vmem:[#allocation2 + $0x38] sm:$0xff] %v982
      %1015 = vst [vmem:[#allocation2 + $0x40] sm:$0xff] %v983
      %1016 = vst [vmem:[#allocation2 + $0x48] sm:$0xff] %v984
      %1017 = vst [vmem:[#allocation2 + $0x50] sm:$0xff] %v985
      %1018 = vst [vmem:[#allocation2 + $0x58] sm:$0xff] %v986
      %1019 = vst [vmem:[#allocation2 + $0x60] sm:$0xff] %v987
      %1020 = vst [vmem:[#allocation2 + $0x68] sm:$0xff] %v988
      %1021 = vst [vmem:[#allocation2 + $0x70] sm:$0xff] %v989
      %1022 = vst [vmem:[#allocation2 + $0x78] sm:$0xff] %v990
      %1023 = vst [vmem:[#allocation2 + $0x80] sm:$0xff] %v991
      %1024 = vst [vmem:[#allocation2 + $0x88] sm:$0xff] %v992
      %1025 = vst [vmem:[#allocation2 + $0x90] sm:$0xff] %v993
      %1026 = vst [vmem:[#allocation2 + $0x98] sm:$0xff] %v994
      %1027 = vst [vmem:[#allocation2 + $0xa0] sm:$0xff] %v995
      %1028 = vst [vmem:[#allocation2 + $0xa8] sm:$0xff] %v996
      %1029 = vst [vmem:[#allocation2 + $0xb0] sm:$0xff] %v997
      %1030 = vst [vmem:[#allocation2 + $0xb8] sm:$0xff] %v998
      %1031 = vst [vmem:[#allocation2 + $0xc0] sm:$0xff] %v999
      %1032 = vst [vmem:[#allocation2 + $0xc8] sm:$0xff] %v1000
      %1033 = vst [vmem:[#allocation2 + $0xd0] sm:$0xff] %v1001
      %1034 = vst [vmem:[#allocation2 + $0xd8] sm:$0xff] %v1002
      %1035 = vst [vmem:[#allocation2 + $0xe0] sm:$0xff] %v1003
      %1036 = vst [vmem:[#allocation2 + $0xe8] sm:$0xff] %v1004
      %1037 = vst [vmem:[#allocation2 + $0xf0] sm:$0xff] %v1005
      %1038 = vst [vmem:[#allocation2 + $0xf8] sm:$0xff] %v1006
      %vm1039 = vsmask.f32 7424
      %v1041 = vshrl.u32 0, 16
      %v1043 = vshll.u32 0, 16
      %v1045 = vrot.slane %v1043, 1
      %v1046 = vor.u32 %v1041, %v1045
      %v1047 = vsel %vm1039, %v1046, %v1045
      %v1049 = vshrl.u32 %v654, 16
      %v1051 = vshll.u32 %v654, 16
      %v1053 = vrot.slane %v1051, 1
      %v1054 = vor.u32 %v1049, %v1053
      %v1056 = vshll.u32 %v670, 16
      %v1058 = vrot.slane %v1056, 1
      %v1059 = vsel %vm1039, %v1054, %v1058
      %v1061 = vshrl.u32 %v655, 16
      %v1063 = vshll.u32 %v655, 16
      %v1065 = vrot.slane %v1063, 1
      %v1066 = vor.u32 %v1061, %v1065
      %v1068 = vshll.u32 %v671, 16
      %v1070 = vrot.slane %v1068, 1
      %v1071 = vsel %vm1039, %v1066, %v1070
      %v1073 = vshrl.u32 %v656, 16
      %v1075 = vshll.u32 %v656, 16
      %v1077 = vrot.slane %v1075, 1
      %v1078 = vor.u32 %v1073, %v1077
      %v1080 = vshll.u32 %v672, 16
      %v1082 = vrot.slane %v1080, 1
      %v1083 = vsel %vm1039, %v1078, %v1082
      %v1085 = vshrl.u32 %v657, 16
      %v1087 = vshll.u32 %v657, 16
      %v1089 = vrot.slane %v1087, 1
      %v1090 = vor.u32 %v1085, %v1089
      %v1092 = vshll.u32 %v673, 16
      %v1094 = vrot.slane %v1092, 1
      %v1095 = vsel %vm1039, %v1090, %v1094
      %v1097 = vshrl.u32 %v658, 16
      %v1099 = vshll.u32 %v658, 16
      %v1101 = vrot.slane %v1099, 1
      %v1102 = vor.u32 %v1097, %v1101
      %v1104 = vshll.u32 %v674, 16
      %v1106 = vrot.slane %v1104, 1
      %v1107 = vsel %vm1039, %v1102, %v1106
      %v1109 = vshrl.u32 %v659, 16
      %v1111 = vshll.u32 %v659, 16
      %v1113 = vrot.slane %v1111, 1
      %v1114 = vor.u32 %v1109, %v1113
      %v1116 = vshll.u32 %v675, 16
      %v1118 = vrot.slane %v1116, 1
      %v1119 = vsel %vm1039, %v1114, %v1118
      %v1121 = vshrl.u32 %v660, 16
      %v1123 = vshll.u32 %v660, 16
      %v1125 = vrot.slane %v1123, 1
      %v1126 = vor.u32 %v1121, %v1125
      %v1128 = vshll.u32 %v676, 16
      %v1130 = vrot.slane %v1128, 1
      %v1131 = vsel %vm1039, %v1126, %v1130
      %v1133 = vshrl.u32 %v661, 16
      %v1135 = vshll.u32 %v661, 16
      %v1137 = vrot.slane %v1135, 1
      %v1138 = vor.u32 %v1133, %v1137
      %v1140 = vshll.u32 %v677, 16
      %v1142 = vrot.slane %v1140, 1
      %v1143 = vsel %vm1039, %v1138, %v1142
      %v1145 = vshrl.u32 %v662, 16
      %v1147 = vshll.u32 %v662, 16
      %v1149 = vrot.slane %v1147, 1
      %v1150 = vor.u32 %v1145, %v1149
      %v1152 = vshll.u32 %v678, 16
      %v1154 = vrot.slane %v1152, 1
      %v1155 = vsel %vm1039, %v1150, %v1154
      %v1157 = vshrl.u32 %v663, 16
      %v1159 = vshll.u32 %v663, 16
      %v1161 = vrot.slane %v1159, 1
      %v1162 = vor.u32 %v1157, %v1161
      %v1164 = vshll.u32 %v679, 16
      %v1166 = vrot.slane %v1164, 1
      %v1167 = vsel %vm1039, %v1162, %v1166
      %v1169 = vshrl.u32 %v664, 16
      %v1171 = vshll.u32 %v664, 16
      %v1173 = vrot.slane %v1171, 1
      %v1174 = vor.u32 %v1169, %v1173
      %v1176 = vshll.u32 %v680, 16
      %v1178 = vrot.slane %v1176, 1
      %v1179 = vsel %vm1039, %v1174, %v1178
      %v1181 = vshrl.u32 %v665, 16
      %v1183 = vshll.u32 %v665, 16
      %v1185 = vrot.slane %v1183, 1
      %v1186 = vor.u32 %v1181, %v1185
      %v1188 = vshll.u32 %v681, 16
      %v1190 = vrot.slane %v1188, 1
      %v1191 = vsel %vm1039, %v1186, %v1190
      %v1193 = vshrl.u32 %v666, 16
      %v1195 = vshll.u32 %v666, 16
      %v1197 = vrot.slane %v1195, 1
      %v1198 = vor.u32 %v1193, %v1197
      %v1200 = vshll.u32 %v682, 16
      %v1202 = vrot.slane %v1200, 1
      %v1203 = vsel %vm1039, %v1198, %v1202
      %v1205 = vshrl.u32 %v667, 16
      %v1207 = vshll.u32 %v667, 16
      %v1209 = vrot.slane %v1207, 1
      %v1210 = vor.u32 %v1205, %v1209
      %v1212 = vshll.u32 %v683, 16
      %v1214 = vrot.slane %v1212, 1
      %v1215 = vsel %vm1039, %v1210, %v1214
      %v1217 = vshrl.u32 %v668, 16
      %v1219 = vshll.u32 %v668, 16
      %v1221 = vrot.slane %v1219, 1
      %v1222 = vor.u32 %v1217, %v1221
      %v1224 = vshll.u32 %v684, 16
      %v1226 = vrot.slane %v1224, 1
      %v1227 = vsel %vm1039, %v1222, %v1226
      %v1244 = vld [vmem:[#allocation2] sm:$0xff]
      %v1245 = vld [vmem:[#allocation2 + $0x8] sm:$0xff]
      %v1246 = vld [vmem:[#allocation2 + $0x10] sm:$0xff]
      %v1247 = vld [vmem:[#allocation2 + $0x18] sm:$0xff]
      %v1248 = vld [vmem:[#allocation2 + $0x20] sm:$0xff]
      %v1249 = vld [vmem:[#allocation2 + $0x28] sm:$0xff]
      %v1250 = vld [vmem:[#allocation2 + $0x30] sm:$0xff]
      %v1251 = vld [vmem:[#allocation2 + $0x38] sm:$0xff]
      %v1252 = vld [vmem:[#allocation2 + $0x40] sm:$0xff]
      %v1253 = vld [vmem:[#allocation2 + $0x48] sm:$0xff]
      %v1254 = vld [vmem:[#allocation2 + $0x50] sm:$0xff]
      %v1255 = vld [vmem:[#allocation2 + $0x58] sm:$0xff]
      %v1256 = vld [vmem:[#allocation2 + $0x60] sm:$0xff]
      %v1257 = vld [vmem:[#allocation2 + $0x68] sm:$0xff]
      %v1258 = vld [vmem:[#allocation2 + $0x70] sm:$0xff]
      %v1259 = vld [vmem:[#allocation2 + $0x78] sm:$0xff]
      %v1260 = vld [vmem:[#allocation2 + $0x80] sm:$0xff]
      %v1261 = vld [vmem:[#allocation2 + $0x88] sm:$0xff]
      %v1262 = vld [vmem:[#allocation2 + $0x90] sm:$0xff]
      %v1263 = vld [vmem:[#allocation2 + $0x98] sm:$0xff]
      %v1264 = vld [vmem:[#allocation2 + $0xa0] sm:$0xff]
      %v1265 = vld [vmem:[#allocation2 + $0xa8] sm:$0xff]
      %v1266 = vld [vmem:[#allocation2 + $0xb0] sm:$0xff]
      %v1267 = vld [vmem:[#allocation2 + $0xb8] sm:$0xff]
      %v1268 = vld [vmem:[#allocation2 + $0xc0] sm:$0xff]
      %v1269 = vld [vmem:[#allocation2 + $0xc8] sm:$0xff]
      %v1270 = vld [vmem:[#allocation2 + $0xd0] sm:$0xff]
      %v1271 = vld [vmem:[#allocation2 + $0xd8] sm:$0xff]
      %v1272 = vld [vmem:[#allocation2 + $0xe0] sm:$0xff]
      %v1273 = vld [vmem:[#allocation2 + $0xe8] sm:$0xff]
      %v1274 = vld [vmem:[#allocation2 + $0xf0] sm:$0xff]
      %v1275 = vld [vmem:[#allocation2 + $0xf8] sm:$0xff]
      %v1276 = vld [vmem:[%s3 + $0x40] sm:$0xf]
      %v1277 = vld [vmem:[%s3 + $0x44] sm:$0xf]
      %v1278 = vld [vmem:[%s3 + $0x48] sm:$0xf]
      %v1279 = vld [vmem:[%s3 + $0x4c] sm:$0xf]
      %v1280 = vld [vmem:[%s3 + $0x50] sm:$0xf]
      %v1281 = vld [vmem:[%s3 + $0x54] sm:$0xf]
      %v1282 = vld [vmem:[%s3 + $0x58] sm:$0xf]
      %v1283 = vld [vmem:[%s3 + $0x5c] sm:$0xf]
      %v1284 = vld [vmem:[%s3 + $0x60] sm:$0xf]
      %v1285 = vld [vmem:[%s3 + $0x64] sm:$0xf]
      %v1286 = vld [vmem:[%s3 + $0x68] sm:$0xf]
      %v1287 = vld [vmem:[%s3 + $0x6c] sm:$0xf]
      %v1288 = vld [vmem:[%s3 + $0x70] sm:$0xf]
      %v1289 = vld [vmem:[%s3 + $0x74] sm:$0xf]
      %v1290 = vld [vmem:[%s3 + $0x78] sm:$0xf]
      %v1291 = vld [vmem:[%s3 + $0x7c] sm:$0xf]
      %v1308 = vunpack.c.l.b16 %v1276
      %v1309 = vunpack.c.l.b16 %v1277
      %v1310 = vunpack.c.l.b16 %v1278
      %v1311 = vunpack.c.l.b16 %v1279
      %v1312 = vunpack.c.l.b16 %v1280
      %v1313 = vunpack.c.l.b16 %v1281
      %v1314 = vunpack.c.l.b16 %v1282
      %v1315 = vunpack.c.l.b16 %v1283
      %v1316 = vunpack.c.l.b16 %v1284
      %v1317 = vunpack.c.l.b16 %v1285
      %v1318 = vunpack.c.l.b16 %v1286
      %v1319 = vunpack.c.l.b16 %v1287
      %v1320 = vunpack.c.l.b16 %v1288
      %v1321 = vunpack.c.l.b16 %v1289
      %v1322 = vunpack.c.l.b16 %v1290
      %v1323 = vunpack.c.l.b16 %v1291
      %v1324 = vpack.c.b16 %v1309, %v1308
      %v1325 = vpack.c.b16 %v1311, %v1310
      %v1326 = vpack.c.b16 %v1313, %v1312
      %v1327 = vpack.c.b16 %v1315, %v1314
      %v1328 = vpack.c.b16 %v1317, %v1316
      %v1329 = vpack.c.b16 %v1319, %v1318
      %v1330 = vpack.c.b16 %v1321, %v1320
      %v1331 = vpack.c.b16 %v1323, %v1322
      %1340 = vmatprep.subr.bf16.mxu0 0
      %1341 = vmatpush1.bf16.msra.mxu0 %v1324
      %1342 = vmatprep.subr.bf16.mxu0 0
      %1343 = vmatpush1.bf16.msra.mxu0 %v1325
      %1344 = vmatprep.subr.bf16.mxu0 0
      %1345 = vmatpush1.bf16.msra.mxu0 %v1326
      %1346 = vmatprep.subr.bf16.mxu0 0
      %1347 = vmatpush1.bf16.msra.mxu0 %v1327
      %1348 = vmatprep.subr.bf16.mxu0 0
      %1349 = vmatpush1.bf16.msra.mxu0 %v1328
      %1350 = vmatprep.subr.bf16.mxu0 0
      %1351 = vmatpush1.bf16.msra.mxu0 %v1329
      %1352 = vmatprep.subr.bf16.mxu0 0
      %1353 = vmatpush1.bf16.msra.mxu0 %v1330
      %1354 = vmatprep.subr.bf16.mxu0 0
      %1355 = vmatpush1.bf16.msra.mxu0 %v1331
      %1356 = vmatprep.subr.bf16.mxu0 0
      %1357 = vmatpush1.bf16.msra.mxu0 0
      %1358 = vmatprep.subr.bf16.mxu0 0
      %1359 = vmatpush1.bf16.msra.mxu0 0
      %1360 = vmatprep.subr.bf16.mxu0 0
      %1361 = vmatpush1.bf16.msra.mxu0 0
      %1362 = vmatprep.subr.bf16.mxu0 0
      %1363 = vmatpush1.bf16.msra.mxu0 0
      %1364 = vmatprep.subr.bf16.mxu0 0
      %1365 = vmatpush1.bf16.msra.mxu0 0
      %1366 = vmatprep.subr.bf16.mxu0 0
      %1367 = vmatpush1.bf16.msra.mxu0 0
      %1368 = vmatprep.subr.bf16.mxu0 0
      %1369 = vmatpush1.bf16.msra.mxu0 0
      %1370 = vmatprep.subr.bf16.mxu0 0
      %1371 = vmatpush1.bf16.msra.mxu0 0
      %1372 = vmatprep.mubr.bf16.mxu0 0
      %1373 = vmatmul.mubr.bf16.gmra.mrb[0].mxu0 %v1047
      %v1374 = vpop.f32.mrb[0].mxu0
      %v1375 = vadd.f32 0.0, %v1374
      %v1376 = vpop.f32.mrb[0].mxu0
      %v1377 = vpop.f32.mrb[0].mxu0
      %v1378 = vadd.f32 0.0, %v1377
      %v1379 = vpop.f32.mrb[0].mxu0
      %1380 = vmatprep.mubr.bf16.mxu0 0
      %1381 = vmatmul.mubr.bf16.gmra.mrb[0].mxu0 %v1059
      %v1382 = vpop.f32.mrb[0].mxu0
      %v1383 = vadd.f32 0.0, %v1382
      %v1384 = vpop.f32.mrb[0].mxu0
      %v1385 = vpop.f32.mrb[0].mxu0
      %v1386 = vadd.f32 0.0, %v1385
      %v1387 = vpop.f32.mrb[0].mxu0
      %1388 = vmatprep.mubr.bf16.mxu0 0
      %1389 = vmatmul.mubr.bf16.gmra.mrb[0].mxu0 %v1071
      %v1390 = vpop.f32.mrb[0].mxu0
      %v1391 = vadd.f32 0.0, %v1390
      %v1392 = vpop.f32.mrb[0].mxu0
      %v1393 = vpop.f32.mrb[0].mxu0
      %v1394 = vadd.f32 0.0, %v1393
      %v1395 = vpop.f32.mrb[0].mxu0
      %1396 = vmatprep.mubr.bf16.mxu0 0
      %1397 = vmatmul.mubr.bf16.gmra.mrb[0].mxu0 %v1083
      %v1398 = vpop.f32.mrb[0].mxu0
      %v1399 = vadd.f32 0.0, %v1398
      %v1400 = vpop.f32.mrb[0].mxu0
      %v1401 = vpop.f32.mrb[0].mxu0
      %v1402 = vadd.f32 0.0, %v1401
      %v1403 = vpop.f32.mrb[0].mxu0
      %1404 = vmatprep.mubr.bf16.mxu0 0
      %1405 = vmatmul.mubr.bf16.gmra.mrb[0].mxu0 %v1095
      %v1406 = vpop.f32.mrb[0].mxu0
      %v1407 = vadd.f32 0.0, %v1406
      %v1408 = vpop.f32.mrb[0].mxu0
      %v1409 = vpop.f32.mrb[0].mxu0
      %v1410 = vadd.f32 0.0, %v1409
      %v1411 = vpop.f32.mrb[0].mxu0
      %1412 = vmatprep.mubr.bf16.mxu0 0
      %1413 = vmatmul.mubr.bf16.gmra.mrb[0].mxu0 %v1107
      %v1414 = vpop.f32.mrb[0].mxu0
      %v1415 = vadd.f32 0.0, %v1414
      %v1416 = vpop.f32.mrb[0].mxu0
      %v1417 = vpop.f32.mrb[0].mxu0
      %v1418 = vadd.f32 0.0, %v1417
      %v1419 = vpop.f32.mrb[0].mxu0
      %1420 = vmatprep.mubr.bf16.mxu0 0
      %1421 = vmatmul.mubr.bf16.gmra.mrb[0].mxu0 %v1119
      %v1422 = vpop.f32.mrb[0].mxu0
      %v1423 = vadd.f32 0.0, %v1422
      %v1424 = vpop.f32.mrb[0].mxu0
      %v1425 = vpop.f32.mrb[0].mxu0
      %v1426 = vadd.f32 0.0, %v1425
      %v1427 = vpop.f32.mrb[0].mxu0
      %1428 = vmatprep.mubr.bf16.mxu0 0
      %1429 = vmatmul.mubr.bf16.gmra.mrb[0].mxu0 %v1131
      %v1430 = vpop.f32.mrb[0].mxu0
      %v1431 = vadd.f32 0.0, %v1430
      %v1432 = vpop.f32.mrb[0].mxu0
      %v1433 = vpop.f32.mrb[0].mxu0
      %v1434 = vadd.f32 0.0, %v1433
      %v1435 = vpop.f32.mrb[0].mxu0
      %1436 = vmatprep.mubr.bf16.mxu0 0
      %1437 = vmatmul.mubr.bf16.gmra.mrb[0].mxu0 %v1143
      %v1438 = vpop.f32.mrb[0].mxu0
      %v1439 = vadd.f32 0.0, %v1438
      %v1440 = vpop.f32.mrb[0].mxu0
      %v1441 = vpop.f32.mrb[0].mxu0
      %v1442 = vadd.f32 0.0, %v1441
      %v1443 = vpop.f32.mrb[0].mxu0
      %1444 = vmatprep.mubr.bf16.mxu0 0
      %1445 = vmatmul.mubr.bf16.gmra.mrb[0].mxu0 %v1155
      %v1446 = vpop.f32.mrb[0].mxu0
      %v1447 = vadd.f32 0.0, %v1446
      %v1448 = vpop.f32.mrb[0].mxu0
      %v1449 = vpop.f32.mrb[0].mxu0
      %v1450 = vadd.f32 0.0, %v1449
      %v1451 = vpop.f32.mrb[0].mxu0
      %1452 = vmatprep.mubr.bf16.mxu0 0
      %1453 = vmatmul.mubr.bf16.gmra.mrb[0].mxu0 %v1167
      %v1454 = vpop.f32.mrb[0].mxu0
      %v1455 = vadd.f32 0.0, %v1454
      %v1456 = vpop.f32.mrb[0].mxu0
      %v1457 = vpop.f32.mrb[0].mxu0
      %v1458 = vadd.f32 0.0, %v1457
      %v1459 = vpop.f32.mrb[0].mxu0
      %1460 = vmatprep.mubr.bf16.mxu0 0
      %1461 = vmatmul.mubr.bf16.gmra.mrb[0].mxu0 %v1179
      %v1462 = vpop.f32.mrb[0].mxu0
      %v1463 = vadd.f32 0.0, %v1462
      %v1464 = vpop.f32.mrb[0].mxu0
      %v1465 = vpop.f32.mrb[0].mxu0
      %v1466 = vadd.f32 0.0, %v1465
      %v1467 = vpop.f32.mrb[0].mxu0
      %1468 = vmatprep.mubr.bf16.mxu0 0
      %1469 = vmatmul.mubr.bf16.gmra.mrb[0].mxu0 %v1191
      %v1470 = vpop.f32.mrb[0].mxu0
      %v1471 = vadd.f32 0.0, %v1470
      %v1472 = vpop.f32.mrb[0].mxu0
      %v1473 = vpop.f32.mrb[0].mxu0
      %v1474 = vadd.f32 0.0, %v1473
      %v1475 = vpop.f32.mrb[0].mxu0
      %1476 = vmatprep.mubr.bf16.mxu0 0
      %1477 = vmatmul.mubr.bf16.gmra.mrb[0].mxu0 %v1203
      %v1478 = vpop.f32.mrb[0].mxu0
      %v1479 = vadd.f32 0.0, %v1478
      %v1480 = vpop.f32.mrb[0].mxu0
      %v1481 = vpop.f32.mrb[0].mxu0
      %v1482 = vadd.f32 0.0, %v1481
      %v1483 = vpop.f32.mrb[0].mxu0
      %1484 = vmatprep.mubr.bf16.mxu0 0
      %1485 = vmatmul.mubr.bf16.gmra.mrb[0].mxu0 %v1215
      %v1486 = vpop.f32.mrb[0].mxu0
      %v1487 = vadd.f32 0.0, %v1486
      %v1488 = vpop.f32.mrb[0].mxu0
      %v1489 = vpop.f32.mrb[0].mxu0
      %v1490 = vadd.f32 0.0, %v1489
      %v1491 = vpop.f32.mrb[0].mxu0
      %1492 = vmatprep.mubr.bf16.mxu0 0
      %1493 = vmatmul.mubr.bf16.gmra.mrb[0].mxu0 %v1227
      %v1494 = vpop.f32.mrb[0].mxu0
      %v1495 = vadd.f32 0.0, %v1494
      %v1496 = vpop.f32.mrb[0].mxu0
      %v1497 = vpop.f32.mrb[0].mxu0
      %v1498 = vadd.f32 0.0, %v1497
      %v1499 = vpop.f32.mrb[0].mxu0
      %1500 = vdwg.mxu0
      %v1501 = vadd.f32 %v1244, %v1375
      %v1502 = vadd.f32 %v1245, %v1378
      %v1503 = vadd.f32 %v1246, %v1383
      %v1504 = vadd.f32 %v1247, %v1386
      %v1505 = vadd.f32 %v1248, %v1391
      %v1506 = vadd.f32 %v1249, %v1394
      %v1507 = vadd.f32 %v1250, %v1399
      %v1508 = vadd.f32 %v1251, %v1402
      %v1509 = vadd.f32 %v1252, %v1407
      %v1510 = vadd.f32 %v1253, %v1410
      %v1511 = vadd.f32 %v1254, %v1415
      %v1512 = vadd.f32 %v1255, %v1418
      %v1513 = vadd.f32 %v1256, %v1423
      %v1514 = vadd.f32 %v1257, %v1426
      %v1515 = vadd.f32 %v1258, %v1431
      %v1516 = vadd.f32 %v1259, %v1434
      %v1517 = vadd.f32 %v1260, %v1439
      %v1518 = vadd.f32 %v1261, %v1442
      %v1519 = vadd.f32 %v1262, %v1447
      %v1520 = vadd.f32 %v1263, %v1450
      %v1521 = vadd.f32 %v1264, %v1455
      %v1522 = vadd.f32 %v1265, %v1458
      %v1523 = vadd.f32 %v1266, %v1463
      %v1524 = vadd.f32 %v1267, %v1466
      %v1525 = vadd.f32 %v1268, %v1471
      %v1526 = vadd.f32 %v1269, %v1474
      %v1527 = vadd.f32 %v1270, %v1479
      %v1528 = vadd.f32 %v1271, %v1482
      %v1529 = vadd.f32 %v1272, %v1487
      %v1530 = vadd.f32 %v1273, %v1490
      %v1531 = vadd.f32 %v1274, %v1495
      %v1532 = vadd.f32 %v1275, %v1498
      %1533 = vst [vmem:[#allocation2] sm:$0xff] %v1501
      %1534 = vst [vmem:[#allocation2 + $0x8] sm:$0xff] %v1502
      %1535 = vst [vmem:[#allocation2 + $0x10] sm:$0xff] %v1503
      %1536 = vst [vmem:[#allocation2 + $0x18] sm:$0xff] %v1504
      %1537 = vst [vmem:[#allocation2 + $0x20] sm:$0xff] %v1505
      %1538 = vst [vmem:[#allocation2 + $0x28] sm:$0xff] %v1506
      %1539 = vst [vmem:[#allocation2 + $0x30] sm:$0xff] %v1507
      %1540 = vst [vmem:[#allocation2 + $0x38] sm:$0xff] %v1508
      %1541 = vst [vmem:[#allocation2 + $0x40] sm:$0xff] %v1509
      %1542 = vst [vmem:[#allocation2 + $0x48] sm:$0xff] %v1510
      %1543 = vst [vmem:[#allocation2 + $0x50] sm:$0xff] %v1511
      %1544 = vst [vmem:[#allocation2 + $0x58] sm:$0xff] %v1512
      %1545 = vst [vmem:[#allocation2 + $0x60] sm:$0xff] %v1513
      %1546 = vst [vmem:[#allocation2 + $0x68] sm:$0xff] %v1514
      %1547 = vst [vmem:[#allocation2 + $0x70] sm:$0xff] %v1515
      %1548 = vst [vmem:[#allocation2 + $0x78] sm:$0xff] %v1516
      %1549 = vst [vmem:[#allocation2 + $0x80] sm:$0xff] %v1517
      %1550 = vst [vmem:[#allocation2 + $0x88] sm:$0xff] %v1518
      %1551 = vst [vmem:[#allocation2 + $0x90] sm:$0xff] %v1519
      %1552 = vst [vmem:[#allocation2 + $0x98] sm:$0xff] %v1520
      %1553 = vst [vmem:[#allocation2 + $0xa0] sm:$0xff] %v1521
      %1554 = vst [vmem:[#allocation2 + $0xa8] sm:$0xff] %v1522
      %1555 = vst [vmem:[#allocation2 + $0xb0] sm:$0xff] %v1523
      %1556 = vst [vmem:[#allocation2 + $0xb8] sm:$0xff] %v1524
      %1557 = vst [vmem:[#allocation2 + $0xc0] sm:$0xff] %v1525
      %1558 = vst [vmem:[#allocation2 + $0xc8] sm:$0xff] %v1526
      %1559 = vst [vmem:[#allocation2 + $0xd0] sm:$0xff] %v1527
      %1560 = vst [vmem:[#allocation2 + $0xd8] sm:$0xff] %v1528
      %1561 = vst [vmem:[#allocation2 + $0xe0] sm:$0xff] %v1529
      %1562 = vst [vmem:[#allocation2 + $0xe8] sm:$0xff] %v1530
      %1563 = vst [vmem:[#allocation2 + $0xf0] sm:$0xff] %v1531
      %1564 = vst [vmem:[#allocation2 + $0xf8] sm:$0xff] %v1532
      %vm1596 = vcmask 1046528
      %v1597 = vrot.slane 0, 1
      %v1598 = vsel %vm1596, %v1597, %v1597
      %v1599 = vrot.slane %v654, 1
      %v1600 = vrot.slane %v670, 1
      %v1601 = vsel %vm1596, %v1599, %v1600
      %v1602 = vrot.slane %v655, 1
      %v1603 = vrot.slane %v671, 1
      %v1604 = vsel %vm1596, %v1602, %v1603
      %v1605 = vrot.slane %v656, 1
      %v1606 = vrot.slane %v672, 1
      %v1607 = vsel %vm1596, %v1605, %v1606
      %v1608 = vrot.slane %v657, 1
      %v1609 = vrot.slane %v673, 1
      %v1610 = vsel %vm1596, %v1608, %v1609
      %v1611 = vrot.slane %v658, 1
      %v1612 = vrot.slane %v674, 1
      %v1613 = vsel %vm1596, %v1611, %v1612
      %v1614 = vrot.slane %v659, 1
      %v1615 = vrot.slane %v675, 1
      %v1616 = vsel %vm1596, %v1614, %v1615
      %v1617 = vrot.slane %v660, 1
      %v1618 = vrot.slane %v676, 1
      %v1619 = vsel %vm1596, %v1617, %v1618
      %v1620 = vrot.slane %v661, 1
      %v1621 = vrot.slane %v677, 1
      %v1622 = vsel %vm1596, %v1620, %v1621
      %v1623 = vrot.slane %v662, 1
      %v1624 = vrot.slane %v678, 1
      %v1625 = vsel %vm1596, %v1623, %v1624
      %v1626 = vrot.slane %v663, 1
      %v1627 = vrot.slane %v679, 1
      %v1628 = vsel %vm1596, %v1626, %v1627
      %v1629 = vrot.slane %v664, 1
      %v1630 = vrot.slane %v680, 1
      %v1631 = vsel %vm1596, %v1629, %v1630
      %v1632 = vrot.slane %v665, 1
      %v1633 = vrot.slane %v681, 1
      %v1634 = vsel %vm1596, %v1632, %v1633
      %v1635 = vrot.slane %v666, 1
      %v1636 = vrot.slane %v682, 1
      %v1637 = vsel %vm1596, %v1635, %v1636
      %v1638 = vrot.slane %v667, 1
      %v1639 = vrot.slane %v683, 1
      %v1640 = vsel %vm1596, %v1638, %v1639
      %v1641 = vrot.slane %v668, 1
      %v1642 = vrot.slane %v684, 1
      %v1643 = vsel %vm1596, %v1641, %v1642
      %v1660 = vld [vmem:[#allocation2] sm:$0xff]
      %v1661 = vld [vmem:[#allocation2 + $0x8] sm:$0xff]
      %v1662 = vld [vmem:[#allocation2 + $0x10] sm:$0xff]
      %v1663 = vld [vmem:[#allocation2 + $0x18] sm:$0xff]
      %v1664 = vld [vmem:[#allocation2 + $0x20] sm:$0xff]
      %v1665 = vld [vmem:[#allocation2 + $0x28] sm:$0xff]
      %v1666 = vld [vmem:[#allocation2 + $0x30] sm:$0xff]
      %v1667 = vld [vmem:[#allocation2 + $0x38] sm:$0xff]
      %v1668 = vld [vmem:[#allocation2 + $0x40] sm:$0xff]
      %v1669 = vld [vmem:[#allocation2 + $0x48] sm:$0xff]
      %v1670 = vld [vmem:[#allocation2 + $0x50] sm:$0xff]
      %v1671 = vld [vmem:[#allocation2 + $0x58] sm:$0xff]
      %v1672 = vld [vmem:[#allocation2 + $0x60] sm:$0xff]
      %v1673 = vld [vmem:[#allocation2 + $0x68] sm:$0xff]
      %v1674 = vld [vmem:[#allocation2 + $0x70] sm:$0xff]
      %v1675 = vld [vmem:[#allocation2 + $0x78] sm:$0xff]
      %v1676 = vld [vmem:[#allocation2 + $0x80] sm:$0xff]
      %v1677 = vld [vmem:[#allocation2 + $0x88] sm:$0xff]
      %v1678 = vld [vmem:[#allocation2 + $0x90] sm:$0xff]
      %v1679 = vld [vmem:[#allocation2 + $0x98] sm:$0xff]
      %v1680 = vld [vmem:[#allocation2 + $0xa0] sm:$0xff]
      %v1681 = vld [vmem:[#allocation2 + $0xa8] sm:$0xff]
      %v1682 = vld [vmem:[#allocation2 + $0xb0] sm:$0xff]
      %v1683 = vld [vmem:[#allocation2 + $0xb8] sm:$0xff]
      %v1684 = vld [vmem:[#allocation2 + $0xc0] sm:$0xff]
      %v1685 = vld [vmem:[#allocation2 + $0xc8] sm:$0xff]
      %v1686 = vld [vmem:[#allocation2 + $0xd0] sm:$0xff]
      %v1687 = vld [vmem:[#allocation2 + $0xd8] sm:$0xff]
      %v1688 = vld [vmem:[#allocation2 + $0xe0] sm:$0xff]
      %v1689 = vld [vmem:[#allocation2 + $0xe8] sm:$0xff]
      %v1690 = vld [vmem:[#allocation2 + $0xf0] sm:$0xff]
      %v1691 = vld [vmem:[#allocation2 + $0xf8] sm:$0xff]
      %v1692 = vld [vmem:[%s3 + $0x80] sm:$0xf]
      %v1693 = vld [vmem:[%s3 + $0x84] sm:$0xf]
      %v1694 = vld [vmem:[%s3 + $0x88] sm:$0xf]
      %v1695 = vld [vmem:[%s3 + $0x8c] sm:$0xf]
      %v1696 = vld [vmem:[%s3 + $0x90] sm:$0xf]
      %v1697 = vld [vmem:[%s3 + $0x94] sm:$0xf]
      %v1698 = vld [vmem:[%s3 + $0x98] sm:$0xf]
      %v1699 = vld [vmem:[%s3 + $0x9c] sm:$0xf]
      %v1700 = vld [vmem:[%s3 + $0xa0] sm:$0xf]
      %v1701 = vld [vmem:[%s3 + $0xa4] sm:$0xf]
      %v1702 = vld [vmem:[%s3 + $0xa8] sm:$0xf]
      %v1703 = vld [vmem:[%s3 + $0xac] sm:$0xf]
      %v1704 = vld [vmem:[%s3 + $0xb0] sm:$0xf]
      %v1705 = vld [vmem:[%s3 + $0xb4] sm:$0xf]
      %v1706 = vld [vmem:[%s3 + $0xb8] sm:$0xf]
      %v1707 = vld [vmem:[%s3 + $0xbc] sm:$0xf]
      %v1724 = vunpack.c.l.b16 %v1692
      %v1725 = vunpack.c.l.b16 %v1693
      %v1726 = vunpack.c.l.b16 %v1694
      %v1727 = vunpack.c.l.b16 %v1695
      %v1728 = vunpack.c.l.b16 %v1696
      %v1729 = vunpack.c.l.b16 %v1697
      %v1730 = vunpack.c.l.b16 %v1698
      %v1731 = vunpack.c.l.b16 %v1699
      %v1732 = vunpack.c.l.b16 %v1700
      %v1733 = vunpack.c.l.b16 %v1701
      %v1734 = vunpack.c.l.b16 %v1702
      %v1735 = vunpack.c.l.b16 %v1703
      %v1736 = vunpack.c.l.b16 %v1704
      %v1737 = vunpack.c.l.b16 %v1705
      %v1738 = vunpack.c.l.b16 %v1706
      %v1739 = vunpack.c.l.b16 %v1707
      %v1740 = vpack.c.b16 %v1725, %v1724
      %v1741 = vpack.c.b16 %v1727, %v1726
      %v1742 = vpack.c.b16 %v1729, %v1728
      %v1743 = vpack.c.b16 %v1731, %v1730
      %v1744 = vpack.c.b16 %v1733, %v1732
      %v1745 = vpack.c.b16 %v1735, %v1734
      %v1746 = vpack.c.b16 %v1737, %v1736
      %v1747 = vpack.c.b16 %v1739, %v1738
      %1756 = vmatprep.subr.bf16.mxu0 0
      %1757 = vmatpush1.bf16.msra.mxu0 %v1740
      %1758 = vmatprep.subr.bf16.mxu0 0
      %1759 = vmatpush1.bf16.msra.mxu0 %v1741
      %1760 = vmatprep.subr.bf16.mxu0 0
      %1761 = vmatpush1.bf16.msra.mxu0 %v1742
      %1762 = vmatprep.subr.bf16.mxu0 0
      %1763 = vmatpush1.bf16.msra.mxu0 %v1743
      %1764 = vmatprep.subr.bf16.mxu0 0
      %1765 = vmatpush1.bf16.msra.mxu0 %v1744
      %1766 = vmatprep.subr.bf16.mxu0 0
      %1767 = vmatpush1.bf16.msra.mxu0 %v1745
      %1768 = vmatprep.subr.bf16.mxu0 0
      %1769 = vmatpush1.bf16.msra.mxu0 %v1746
      %1770 = vmatprep.subr.bf16.mxu0 0
      %1771 = vmatpush1.bf16.msra.mxu0 %v1747
      %1772 = vmatprep.subr.bf16.mxu0 0
      %1773 = vmatpush1.bf16.msra.mxu0 0
      %1774 = vmatprep.subr.bf16.mxu0 0
      %1775 = vmatpush1.bf16.msra.mxu0 0
      %1776 = vmatprep.subr.bf16.mxu0 0
      %1777 = vmatpush1.bf16.msra.mxu0 0
      %1778 = vmatprep.subr.bf16.mxu0 0
      %1779 = vmatpush1.bf16.msra.mxu0 0
      %1780 = vmatprep.subr.bf16.mxu0 0
      %1781 = vmatpush1.bf16.msra.mxu0 0
      %1782 = vmatprep.subr.bf16.mxu0 0
      %1783 = vmatpush1.bf16.msra.mxu0 0
      %1784 = vmatprep.subr.bf16.mxu0 0
      %1785 = vmatpush1.bf16.msra.mxu0 0
      %1786 = vmatprep.subr.bf16.mxu0 0
      %1787 = vmatpush1.bf16.msra.mxu0 0
      %1788 = vmatprep.mubr.bf16.mxu0 0
      %1789 = vmatmul.mubr.bf16.gmra.mrb[0].mxu0 %v1598
      %v1790 = vpop.f32.mrb[0].mxu0
      %v1791 = vadd.f32 0.0, %v1790
      %v1792 = vpop.f32.mrb[0].mxu0
      %v1793 = vpop.f32.mrb[0].mxu0
      %v1794 = vadd.f32 0.0, %v1793
      %v1795 = vpop.f32.mrb[0].mxu0
      %1796 = vmatprep.mubr.bf16.mxu0 0
      %1797 = vmatmul.mubr.bf16.gmra.mrb[0].mxu0 %v1601
      %v1798 = vpop.f32.mrb[0].mxu0
      %v1799 = vadd.f32 0.0, %v1798
      %v1800 = vpop.f32.mrb[0].mxu0
      %v1801 = vpop.f32.mrb[0].mxu0
      %v1802 = vadd.f32 0.0, %v1801
      %v1803 = vpop.f32.mrb[0].mxu0
      %1804 = vmatprep.mubr.bf16.mxu0 0
      %1805 = vmatmul.mubr.bf16.gmra.mrb[0].mxu0 %v1604
      %v1806 = vpop.f32.mrb[0].mxu0
      %v1807 = vadd.f32 0.0, %v1806
      %v1808 = vpop.f32.mrb[0].mxu0
      %v1809 = vpop.f32.mrb[0].mxu0
      %v1810 = vadd.f32 0.0, %v1809
      %v1811 = vpop.f32.mrb[0].mxu0
      %1812 = vmatprep.mubr.bf16.mxu0 0
      %1813 = vmatmul.mubr.bf16.gmra.mrb[0].mxu0 %v1607
      %v1814 = vpop.f32.mrb[0].mxu0
      %v1815 = vadd.f32 0.0, %v1814
      %v1816 = vpop.f32.mrb[0].mxu0
      %v1817 = vpop.f32.mrb[0].mxu0
      %v1818 = vadd.f32 0.0, %v1817
      %v1819 = vpop.f32.mrb[0].mxu0
      %1820 = vmatprep.mubr.bf16.mxu0 0
      %1821 = vmatmul.mubr.bf16.gmra.mrb[0].mxu0 %v1610
      %v1822 = vpop.f32.mrb[0].mxu0
      %v1823 = vadd.f32 0.0, %v1822
      %v1824 = vpop.f32.mrb[0].mxu0
      %v1825 = vpop.f32.mrb[0].mxu0
      %v1826 = vadd.f32 0.0, %v1825
      %v1827 = vpop.f32.mrb[0].mxu0
      %1828 = vmatprep.mubr.bf16.mxu0 0
      %1829 = vmatmul.mubr.bf16.gmra.mrb[0].mxu0 %v1613
      %v1830 = vpop.f32.mrb[0].mxu0
      %v1831 = vadd.f32 0.0, %v1830
      %v1832 = vpop.f32.mrb[0].mxu0
      %v1833 = vpop.f32.mrb[0].mxu0
      %v1834 = vadd.f32 0.0, %v1833
      %v1835 = vpop.f32.mrb[0].mxu0
      %1836 = vmatprep.mubr.bf16.mxu0 0
      %1837 = vmatmul.mubr.bf16.gmra.mrb[0].mxu0 %v1616
      %v1838 = vpop.f32.mrb[0].mxu0
      %v1839 = vadd.f32 0.0, %v1838
      %v1840 = vpop.f32.mrb[0].mxu0
      %v1841 = vpop.f32.mrb[0].mxu0
      %v1842 = vadd.f32 0.0, %v1841
      %v1843 = vpop.f32.mrb[0].mxu0
      %1844 = vmatprep.mubr.bf16.mxu0 0
      %1845 = vmatmul.mubr.bf16.gmra.mrb[0].mxu0 %v1619
      %v1846 = vpop.f32.mrb[0].mxu0
      %v1847 = vadd.f32 0.0, %v1846
      %v1848 = vpop.f32.mrb[0].mxu0
      %v1849 = vpop.f32.mrb[0].mxu0
      %v1850 = vadd.f32 0.0, %v1849
      %v1851 = vpop.f32.mrb[0].mxu0
      %1852 = vmatprep.mubr.bf16.mxu0 0
      %1853 = vmatmul.mubr.bf16.gmra.mrb[0].mxu0 %v1622
      %v1854 = vpop.f32.mrb[0].mxu0
      %v1855 = vadd.f32 0.0, %v1854
      %v1856 = vpop.f32.mrb[0].mxu0
      %v1857 = vpop.f32.mrb[0].mxu0
      %v1858 = vadd.f32 0.0, %v1857
      %v1859 = vpop.f32.mrb[0].mxu0
      %1860 = vmatprep.mubr.bf16.mxu0 0
      %1861 = vmatmul.mubr.bf16.gmra.mrb[0].mxu0 %v1625
      %v1862 = vpop.f32.mrb[0].mxu0
      %v1863 = vadd.f32 0.0, %v1862
      %v1864 = vpop.f32.mrb[0].mxu0
      %v1865 = vpop.f32.mrb[0].mxu0
      %v1866 = vadd.f32 0.0, %v1865
      %v1867 = vpop.f32.mrb[0].mxu0
      %1868 = vmatprep.mubr.bf16.mxu0 0
      %1869 = vmatmul.mubr.bf16.gmra.mrb[0].mxu0 %v1628
      %v1870 = vpop.f32.mrb[0].mxu0
      %v1871 = vadd.f32 0.0, %v1870
      %v1872 = vpop.f32.mrb[0].mxu0
      %v1873 = vpop.f32.mrb[0].mxu0
      %v1874 = vadd.f32 0.0, %v1873
      %v1875 = vpop.f32.mrb[0].mxu0
      %1876 = vmatprep.mubr.bf16.mxu0 0
      %1877 = vmatmul.mubr.bf16.gmra.mrb[0].mxu0 %v1631
      %v1878 = vpop.f32.mrb[0].mxu0
      %v1879 = vadd.f32 0.0, %v1878
      %v1880 = vpop.f32.mrb[0].mxu0
      %v1881 = vpop.f32.mrb[0].mxu0
      %v1882 = vadd.f32 0.0, %v1881
      %v1883 = vpop.f32.mrb[0].mxu0
      %1884 = vmatprep.mubr.bf16.mxu0 0
      %1885 = vmatmul.mubr.bf16.gmra.mrb[0].mxu0 %v1634
      %v1886 = vpop.f32.mrb[0].mxu0
      %v1887 = vadd.f32 0.0, %v1886
      %v1888 = vpop.f32.mrb[0].mxu0
      %v1889 = vpop.f32.mrb[0].mxu0
      %v1890 = vadd.f32 0.0, %v1889
      %v1891 = vpop.f32.mrb[0].mxu0
      %1892 = vmatprep.mubr.bf16.mxu0 0
      %1893 = vmatmul.mubr.bf16.gmra.mrb[0].mxu0 %v1637
      %v1894 = vpop.f32.mrb[0].mxu0
      %v1895 = vadd.f32 0.0, %v1894
      %v1896 = vpop.f32.mrb[0].mxu0
      %v1897 = vpop.f32.mrb[0].mxu0
      %v1898 = vadd.f32 0.0, %v1897
      %v1899 = vpop.f32.mrb[0].mxu0
      %1900 = vmatprep.mubr.bf16.mxu0 0
      %1901 = vmatmul.mubr.bf16.gmra.mrb[0].mxu0 %v1640
      %v1902 = vpop.f32.mrb[0].mxu0
      %v1903 = vadd.f32 0.0, %v1902
      %v1904 = vpop.f32.mrb[0].mxu0
      %v1905 = vpop.f32.mrb[0].mxu0
      %v1906 = vadd.f32 0.0, %v1905
      %v1907 = vpop.f32.mrb[0].mxu0
      %1908 = vmatprep.mubr.bf16.mxu0 0
      %1909 = vmatmul.mubr.bf16.gmra.mrb[0].mxu0 %v1643
      %v1910 = vpop.f32.mrb[0].mxu0
      %v1911 = vadd.f32 0.0, %v1910
      %v1912 = vpop.f32.mrb[0].mxu0
      %v1913 = vpop.f32.mrb[0].mxu0
      %v1914 = vadd.f32 0.0, %v1913
      %v1915 = vpop.f32.mrb[0].mxu0
      %1916 = vdwg.mxu0
      %v1917 = vadd.f32 %v1660, %v1791
      %v1918 = vadd.f32 %v1661, %v1794
      %v1919 = vadd.f32 %v1662, %v1799
      %v1920 = vadd.f32 %v1663, %v1802
      %v1921 = vadd.f32 %v1664, %v1807
      %v1922 = vadd.f32 %v1665, %v1810
      %v1923 = vadd.f32 %v1666, %v1815
      %v1924 = vadd.f32 %v1667, %v1818
      %v1925 = vadd.f32 %v1668, %v1823
      %v1926 = vadd.f32 %v1669, %v1826
      %v1927 = vadd.f32 %v1670, %v1831
      %v1928 = vadd.f32 %v1671, %v1834
      %v1929 = vadd.f32 %v1672, %v1839
      %v1930 = vadd.f32 %v1673, %v1842
      %v1931 = vadd.f32 %v1674, %v1847
      %v1932 = vadd.f32 %v1675, %v1850
      %v1933 = vadd.f32 %v1676, %v1855
      %v1934 = vadd.f32 %v1677, %v1858
      %v1935 = vadd.f32 %v1678, %v1863
      %v1936 = vadd.f32 %v1679, %v1866
      %v1937 = vadd.f32 %v1680, %v1871
      %v1938 = vadd.f32 %v1681, %v1874
      %v1939 = vadd.f32 %v1682, %v1879
      %v1940 = vadd.f32 %v1683, %v1882
      %v1941 = vadd.f32 %v1684, %v1887
      %v1942 = vadd.f32 %v1685, %v1890
      %v1943 = vadd.f32 %v1686, %v1895
      %v1944 = vadd.f32 %v1687, %v1898
      %v1945 = vadd.f32 %v1688, %v1903
      %v1946 = vadd.f32 %v1689, %v1906
      %v1947 = vadd.f32 %v1690, %v1911
      %v1948 = vadd.f32 %v1691, %v1914
      %1949 = vst [vmem:[#allocation2] sm:$0xff] %v1917
      %1950 = vst [vmem:[#allocation2 + $0x8] sm:$0xff] %v1918
      %1951 = vst [vmem:[#allocation2 + $0x10] sm:$0xff] %v1919
      %1952 = vst [vmem:[#allocation2 + $0x18] sm:$0xff] %v1920
      %1953 = vst [vmem:[#allocation2 + $0x20] sm:$0xff] %v1921
      %1954 = vst [vmem:[#allocation2 + $0x28] sm:$0xff] %v1922
      %1955 = vst [vmem:[#allocation2 + $0x30] sm:$0xff] %v1923
      %1956 = vst [vmem:[#allocation2 + $0x38] sm:$0xff] %v1924
      %1957 = vst [vmem:[#allocation2 + $0x40] sm:$0xff] %v1925
      %1958 = vst [vmem:[#allocation2 + $0x48] sm:$0xff] %v1926
      %1959 = vst [vmem:[#allocation2 + $0x50] sm:$0xff] %v1927
      %1960 = vst [vmem:[#allocation2 + $0x58] sm:$0xff] %v1928
      %1961 = vst [vmem:[#allocation2 + $0x60] sm:$0xff] %v1929
      %1962 = vst [vmem:[#allocation2 + $0x68] sm:$0xff] %v1930
      %1963 = vst [vmem:[#allocation2 + $0x70] sm:$0xff] %v1931
      %1964 = vst [vmem:[#allocation2 + $0x78] sm:$0xff] %v1932
      %1965 = vst [vmem:[#allocation2 + $0x80] sm:$0xff] %v1933
      %1966 = vst [vmem:[#allocation2 + $0x88] sm:$0xff] %v1934
      %1967 = vst [vmem:[#allocation2 + $0x90] sm:$0xff] %v1935
      %1968 = vst [vmem:[#allocation2 + $0x98] sm:$0xff] %v1936
      %1969 = vst [vmem:[#allocation2 + $0xa0] sm:$0xff] %v1937
      %1970 = vst [vmem:[#allocation2 + $0xa8] sm:$0xff] %v1938
      %1971 = vst [vmem:[#allocation2 + $0xb0] sm:$0xff] %v1939
      %1972 = vst [vmem:[#allocation2 + $0xb8] sm:$0xff] %v1940
      %1973 = vst [vmem:[#allocation2 + $0xc0] sm:$0xff] %v1941
      %1974 = vst [vmem:[#allocation2 + $0xc8] sm:$0xff] %v1942
      %1975 = vst [vmem:[#allocation2 + $0xd0] sm:$0xff] %v1943
      %1976 = vst [vmem:[#allocation2 + $0xd8] sm:$0xff] %v1944
      %1977 = vst [vmem:[#allocation2 + $0xe0] sm:$0xff] %v1945
      %1978 = vst [vmem:[#allocation2 + $0xe8] sm:$0xff] %v1946
      %1979 = vst [vmem:[#allocation2 + $0xf0] sm:$0xff] %v1947
      %1980 = vst [vmem:[#allocation2 + $0xf8] sm:$0xff] %v1948
      %v1981 = vld [vmem:[#allocation2] sm:$0xff]
      %v1982 = vld [vmem:[#allocation2 + $0x8] sm:$0xff]
      %v1983 = vld [vmem:[#allocation2 + $0x10] sm:$0xff]
      %v1984 = vld [vmem:[#allocation2 + $0x18] sm:$0xff]
      %v1985 = vld [vmem:[#allocation2 + $0x20] sm:$0xff]
      %v1986 = vld [vmem:[#allocation2 + $0x28] sm:$0xff]
      %v1987 = vld [vmem:[#allocation2 + $0x30] sm:$0xff]
      %v1988 = vld [vmem:[#allocation2 + $0x38] sm:$0xff]
      %v1989 = vld [vmem:[#allocation2 + $0x40] sm:$0xff]
      %v1990 = vld [vmem:[#allocation2 + $0x48] sm:$0xff]
      %v1991 = vld [vmem:[#allocation2 + $0x50] sm:$0xff]
      %v1992 = vld [vmem:[#allocation2 + $0x58] sm:$0xff]
      %v1993 = vld [vmem:[#allocation2 + $0x60] sm:$0xff]
      %v1994 = vld [vmem:[#allocation2 + $0x68] sm:$0xff]
      %v1995 = vld [vmem:[#allocation2 + $0x70] sm:$0xff]
      %v1996 = vld [vmem:[#allocation2 + $0x78] sm:$0xff]
      %v1997 = vld [vmem:[#allocation2 + $0x80] sm:$0xff]
      %v1998 = vld [vmem:[#allocation2 + $0x88] sm:$0xff]
      %v1999 = vld [vmem:[#allocation2 + $0x90] sm:$0xff]
      %v2000 = vld [vmem:[#allocation2 + $0x98] sm:$0xff]
      %v2001 = vld [vmem:[#allocation2 + $0xa0] sm:$0xff]
      %v2002 = vld [vmem:[#allocation2 + $0xa8] sm:$0xff]
      %v2003 = vld [vmem:[#allocation2 + $0xb0] sm:$0xff]
      %v2004 = vld [vmem:[#allocation2 + $0xb8] sm:$0xff]
      %v2005 = vld [vmem:[#allocation2 + $0xc0] sm:$0xff]
      %v2006 = vld [vmem:[#allocation2 + $0xc8] sm:$0xff]
      %v2007 = vld [vmem:[#allocation2 + $0xd0] sm:$0xff]
      %v2008 = vld [vmem:[#allocation2 + $0xd8] sm:$0xff]
      %v2009 = vld [vmem:[#allocation2 + $0xe0] sm:$0xff]
      %v2010 = vld [vmem:[#allocation2 + $0xe8] sm:$0xff]
      %v2011 = vld [vmem:[#allocation2 + $0xf0] sm:$0xff]
      %v2012 = vld [vmem:[#allocation2 + $0xf8] sm:$0xff]
      %v2013 = vld [vmem:[%s3 + $0xc0] sm:$0xf]
      %v2014 = vld [vmem:[%s3 + $0xc4] sm:$0xf]
      %v2015 = vld [vmem:[%s3 + $0xc8] sm:$0xf]
      %v2016 = vld [vmem:[%s3 + $0xcc] sm:$0xf]
      %v2017 = vld [vmem:[%s3 + $0xd0] sm:$0xf]
      %v2018 = vld [vmem:[%s3 + $0xd4] sm:$0xf]
      %v2019 = vld [vmem:[%s3 + $0xd8] sm:$0xf]
      %v2020 = vld [vmem:[%s3 + $0xdc] sm:$0xf]
      %v2021 = vld [vmem:[%s3 + $0xe0] sm:$0xf]
      %v2022 = vld [vmem:[%s3 + $0xe4] sm:$0xf]
      %v2023 = vld [vmem:[%s3 + $0xe8] sm:$0xf]
      %v2024 = vld [vmem:[%s3 + $0xec] sm:$0xf]
      %v2025 = vld [vmem:[%s3 + $0xf0] sm:$0xf]
      %v2026 = vld [vmem:[%s3 + $0xf4] sm:$0xf]
      %v2027 = vld [vmem:[%s3 + $0xf8] sm:$0xf]
      %v2028 = vld [vmem:[%s3 + $0xfc] sm:$0xf]
      %v2045 = vunpack.c.l.b16 %v2013
      %v2046 = vunpack.c.l.b16 %v2014
      %v2047 = vunpack.c.l.b16 %v2015
      %v2048 = vunpack.c.l.b16 %v2016
      %v2049 = vunpack.c.l.b16 %v2017
      %v2050 = vunpack.c.l.b16 %v2018
      %v2051 = vunpack.c.l.b16 %v2019
      %v2052 = vunpack.c.l.b16 %v2020
      %v2053 = vunpack.c.l.b16 %v2021
      %v2054 = vunpack.c.l.b16 %v2022
      %v2055 = vunpack.c.l.b16 %v2023
      %v2056 = vunpack.c.l.b16 %v2024
      %v2057 = vunpack.c.l.b16 %v2025
      %v2058 = vunpack.c.l.b16 %v2026
      %v2059 = vunpack.c.l.b16 %v2027
      %v2060 = vunpack.c.l.b16 %v2028
      %v2061 = vpack.c.b16 %v2046, %v2045
      %v2062 = vpack.c.b16 %v2048, %v2047
      %v2063 = vpack.c.b16 %v2050, %v2049
      %v2064 = vpack.c.b16 %v2052, %v2051
      %v2065 = vpack.c.b16 %v2054, %v2053
      %v2066 = vpack.c.b16 %v2056, %v2055
      %v2067 = vpack.c.b16 %v2058, %v2057
      %v2068 = vpack.c.b16 %v2060, %v2059
      %2077 = vmatprep.subr.bf16.mxu0 0
      %2078 = vmatpush1.bf16.msra.mxu0 %v2061
      %2079 = vmatprep.subr.bf16.mxu0 0
      %2080 = vmatpush1.bf16.msra.mxu0 %v2062
      %2081 = vmatprep.subr.bf16.mxu0 0
      %2082 = vmatpush1.bf16.msra.mxu0 %v2063
      %2083 = vmatprep.subr.bf16.mxu0 0
      %2084 = vmatpush1.bf16.msra.mxu0 %v2064
      %2085 = vmatprep.subr.bf16.mxu0 0
      %2086 = vmatpush1.bf16.msra.mxu0 %v2065
      %2087 = vmatprep.subr.bf16.mxu0 0
      %2088 = vmatpush1.bf16.msra.mxu0 %v2066
      %2089 = vmatprep.subr.bf16.mxu0 0
      %2090 = vmatpush1.bf16.msra.mxu0 %v2067
      %2091 = vmatprep.subr.bf16.mxu0 0
      %2092 = vmatpush1.bf16.msra.mxu0 %v2068
      %2093 = vmatprep.subr.bf16.mxu0 0
      %2094 = vmatpush1.bf16.msra.mxu0 0
      %2095 = vmatprep.subr.bf16.mxu0 0
      %2096 = vmatpush1.bf16.msra.mxu0 0
      %2097 = vmatprep.subr.bf16.mxu0 0
      %2098 = vmatpush1.bf16.msra.mxu0 0
      %2099 = vmatprep.subr.bf16.mxu0 0
      %2100 = vmatpush1.bf16.msra.mxu0 0
      %2101 = vmatprep.subr.bf16.mxu0 0
      %2102 = vmatpush1.bf16.msra.mxu0 0
      %2103 = vmatprep.subr.bf16.mxu0 0
      %2104 = vmatpush1.bf16.msra.mxu0 0
      %2105 = vmatprep.subr.bf16.mxu0 0
      %2106 = vmatpush1.bf16.msra.mxu0 0
      %2107 = vmatprep.subr.bf16.mxu0 0
      %2108 = vmatpush1.bf16.msra.mxu0 0
      %2109 = vmatprep.mubr.bf16.mxu0 0
      %2110 = vmatmul.mubr.bf16.gmra.mrb[0].mxu0 %v654
      %v2111 = vpop.f32.mrb[0].mxu0
      %v2112 = vadd.f32 0.0, %v2111
      %v2113 = vpop.f32.mrb[0].mxu0
      %v2114 = vpop.f32.mrb[0].mxu0
      %v2115 = vadd.f32 0.0, %v2114
      %v2116 = vpop.f32.mrb[0].mxu0
      %2117 = vmatprep.mubr.bf16.mxu0 0
      %2118 = vmatmul.mubr.bf16.gmra.mrb[0].mxu0 %v655
      %v2119 = vpop.f32.mrb[0].mxu0
      %v2120 = vadd.f32 0.0, %v2119
      %v2121 = vpop.f32.mrb[0].mxu0
      %v2122 = vpop.f32.mrb[0].mxu0
      %v2123 = vadd.f32 0.0, %v2122
      %v2124 = vpop.f32.mrb[0].mxu0
      %2125 = vmatprep.mubr.bf16.mxu0 0
      %2126 = vmatmul.mubr.bf16.gmra.mrb[0].mxu0 %v656
      %v2127 = vpop.f32.mrb[0].mxu0
      %v2128 = vadd.f32 0.0, %v2127
      %v2129 = vpop.f32.mrb[0].mxu0
      %v2130 = vpop.f32.mrb[0].mxu0
      %v2131 = vadd.f32 0.0, %v2130
      %v2132 = vpop.f32.mrb[0].mxu0
      %2133 = vmatprep.mubr.bf16.mxu0 0
      %2134 = vmatmul.mubr.bf16.gmra.mrb[0].mxu0 %v657
      %v2135 = vpop.f32.mrb[0].mxu0
      %v2136 = vadd.f32 0.0, %v2135
      %v2137 = vpop.f32.mrb[0].mxu0
      %v2138 = vpop.f32.mrb[0].mxu0
      %v2139 = vadd.f32 0.0, %v2138
      %v2140 = vpop.f32.mrb[0].mxu0
      %2141 = vmatprep.mubr.bf16.mxu0 0
      %2142 = vmatmul.mubr.bf16.gmra.mrb[0].mxu0 %v658
      %v2143 = vpop.f32.mrb[0].mxu0
      %v2144 = vadd.f32 0.0, %v2143
      %v2145 = vpop.f32.mrb[0].mxu0
      %v2146 = vpop.f32.mrb[0].mxu0
      %v2147 = vadd.f32 0.0, %v2146
      %v2148 = vpop.f32.mrb[0].mxu0
      %2149 = vmatprep.mubr.bf16.mxu0 0
      %2150 = vmatmul.mubr.bf16.gmra.mrb[0].mxu0 %v659
      %v2151 = vpop.f32.mrb[0].mxu0
      %v2152 = vadd.f32 0.0, %v2151
      %v2153 = vpop.f32.mrb[0].mxu0
      %v2154 = vpop.f32.mrb[0].mxu0
      %v2155 = vadd.f32 0.0, %v2154
      %v2156 = vpop.f32.mrb[0].mxu0
      %2157 = vmatprep.mubr.bf16.mxu0 0
      %2158 = vmatmul.mubr.bf16.gmra.mrb[0].mxu0 %v660
      %v2159 = vpop.f32.mrb[0].mxu0
      %v2160 = vadd.f32 0.0, %v2159
      %v2161 = vpop.f32.mrb[0].mxu0
      %v2162 = vpop.f32.mrb[0].mxu0
      %v2163 = vadd.f32 0.0, %v2162
      %v2164 = vpop.f32.mrb[0].mxu0
      %2165 = vmatprep.mubr.bf16.mxu0 0
      %2166 = vmatmul.mubr.bf16.gmra.mrb[0].mxu0 %v661
      %v2167 = vpop.f32.mrb[0].mxu0
      %v2168 = vadd.f32 0.0, %v2167
      %v2169 = vpop.f32.mrb[0].mxu0
      %v2170 = vpop.f32.mrb[0].mxu0
      %v2171 = vadd.f32 0.0, %v2170
      %v2172 = vpop.f32.mrb[0].mxu0
      %2173 = vmatprep.mubr.bf16.mxu0 0
      %2174 = vmatmul.mubr.bf16.gmra.mrb[0].mxu0 %v662
      %v2175 = vpop.f32.mrb[0].mxu0
      %v2176 = vadd.f32 0.0, %v2175
      %v2177 = vpop.f32.mrb[0].mxu0
      %v2178 = vpop.f32.mrb[0].mxu0
      %v2179 = vadd.f32 0.0, %v2178
      %v2180 = vpop.f32.mrb[0].mxu0
      %2181 = vmatprep.mubr.bf16.mxu0 0
      %2182 = vmatmul.mubr.bf16.gmra.mrb[0].mxu0 %v663
      %v2183 = vpop.f32.mrb[0].mxu0
      %v2184 = vadd.f32 0.0, %v2183
      %v2185 = vpop.f32.mrb[0].mxu0
      %v2186 = vpop.f32.mrb[0].mxu0
      %v2187 = vadd.f32 0.0, %v2186
      %v2188 = vpop.f32.mrb[0].mxu0
      %2189 = vmatprep.mubr.bf16.mxu0 0
      %2190 = vmatmul.mubr.bf16.gmra.mrb[0].mxu0 %v664
      %v2191 = vpop.f32.mrb[0].mxu0
      %v2192 = vadd.f32 0.0, %v2191
      %v2193 = vpop.f32.mrb[0].mxu0
      %v2194 = vpop.f32.mrb[0].mxu0
      %v2195 = vadd.f32 0.0, %v2194
      %v2196 = vpop.f32.mrb[0].mxu0
      %2197 = vmatprep.mubr.bf16.mxu0 0
      %2198 = vmatmul.mubr.bf16.gmra.mrb[0].mxu0 %v665
      %v2199 = vpop.f32.mrb[0].mxu0
      %v2200 = vadd.f32 0.0, %v2199
      %v2201 = vpop.f32.mrb[0].mxu0
      %v2202 = vpop.f32.mrb[0].mxu0
      %v2203 = vadd.f32 0.0, %v2202
      %v2204 = vpop.f32.mrb[0].mxu0
      %2205 = vmatprep.mubr.bf16.mxu0 0
      %2206 = vmatmul.mubr.bf16.gmra.mrb[0].mxu0 %v666
      %v2207 = vpop.f32.mrb[0].mxu0
      %v2208 = vadd.f32 0.0, %v2207
      %v2209 = vpop.f32.mrb[0].mxu0
      %v2210 = vpop.f32.mrb[0].mxu0
      %v2211 = vadd.f32 0.0, %v2210
      %v2212 = vpop.f32.mrb[0].mxu0
      %2213 = vmatprep.mubr.bf16.mxu0 0
      %2214 = vmatmul.mubr.bf16.gmra.mrb[0].mxu0 %v667
      %v2215 = vpop.f32.mrb[0].mxu0
      %v2216 = vadd.f32 0.0, %v2215
      %v2217 = vpop.f32.mrb[0].mxu0
      %v2218 = vpop.f32.mrb[0].mxu0
      %v2219 = vadd.f32 0.0, %v2218
      %v2220 = vpop.f32.mrb[0].mxu0
      %2221 = vmatprep.mubr.bf16.mxu0 0
      %2222 = vmatmul.mubr.bf16.gmra.mrb[0].mxu0 %v668
      %v2223 = vpop.f32.mrb[0].mxu0
      %v2224 = vadd.f32 0.0, %v2223
      %v2225 = vpop.f32.mrb[0].mxu0
      %v2226 = vpop.f32.mrb[0].mxu0
      %v2227 = vadd.f32 0.0, %v2226
      %v2228 = vpop.f32.mrb[0].mxu0
      %2229 = vmatprep.mubr.bf16.mxu0 0
      %2230 = vmatmul.mubr.bf16.gmra.mrb[0].mxu0 %v669
      %v2231 = vpop.f32.mrb[0].mxu0
      %v2232 = vadd.f32 0.0, %v2231
      %v2233 = vpop.f32.mrb[0].mxu0
      %v2234 = vpop.f32.mrb[0].mxu0
      %v2235 = vadd.f32 0.0, %v2234
      %v2236 = vpop.f32.mrb[0].mxu0
      %2237 = vdwg.mxu0
      %v2238 = vadd.f32 %v1981, %v2112
      %v2239 = vadd.f32 %v1982, %v2115
      %v2240 = vadd.f32 %v1983, %v2120
      %v2241 = vadd.f32 %v1984, %v2123
      %v2242 = vadd.f32 %v1985, %v2128
      %v2243 = vadd.f32 %v1986, %v2131
      %v2244 = vadd.f32 %v1987, %v2136
      %v2245 = vadd.f32 %v1988, %v2139
      %v2246 = vadd.f32 %v1989, %v2144
      %v2247 = vadd.f32 %v1990, %v2147
      %v2248 = vadd.f32 %v1991, %v2152
      %v2249 = vadd.f32 %v1992, %v2155
      %v2250 = vadd.f32 %v1993, %v2160
      %v2251 = vadd.f32 %v1994, %v2163
      %v2252 = vadd.f32 %v1995, %v2168
      %v2253 = vadd.f32 %v1996, %v2171
      %v2254 = vadd.f32 %v1997, %v2176
      %v2255 = vadd.f32 %v1998, %v2179
      %v2256 = vadd.f32 %v1999, %v2184
      %v2257 = vadd.f32 %v2000, %v2187
      %v2258 = vadd.f32 %v2001, %v2192
      %v2259 = vadd.f32 %v2002, %v2195
      %v2260 = vadd.f32 %v2003, %v2200
      %v2261 = vadd.f32 %v2004, %v2203
      %v2262 = vadd.f32 %v2005, %v2208
      %v2263 = vadd.f32 %v2006, %v2211
      %v2264 = vadd.f32 %v2007, %v2216
      %v2265 = vadd.f32 %v2008, %v2219
      %v2266 = vadd.f32 %v2009, %v2224
      %v2267 = vadd.f32 %v2010, %v2227
      %v2268 = vadd.f32 %v2011, %v2232
      %v2269 = vadd.f32 %v2012, %v2235
      %2270 = vst [vmem:[#allocation2] sm:$0xff] %v2238
      %2271 = vst [vmem:[#allocation2 + $0x8] sm:$0xff] %v2239
      %2272 = vst [vmem:[#allocation2 + $0x10] sm:$0xff] %v2240
      %2273 = vst [vmem:[#allocation2 + $0x18] sm:$0xff] %v2241
      %2274 = vst [vmem:[#allocation2 + $0x20] sm:$0xff] %v2242
      %2275 = vst [vmem:[#allocation2 + $0x28] sm:$0xff] %v2243
      %2276 = vst [vmem:[#allocation2 + $0x30] sm:$0xff] %v2244
      %2277 = vst [vmem:[#allocation2 + $0x38] sm:$0xff] %v2245
      %2278 = vst [vmem:[#allocation2 + $0x40] sm:$0xff] %v2246
      %2279 = vst [vmem:[#allocation2 + $0x48] sm:$0xff] %v2247
      %2280 = vst [vmem:[#allocation2 + $0x50] sm:$0xff] %v2248
      %2281 = vst [vmem:[#allocation2 + $0x58] sm:$0xff] %v2249
      %2282 = vst [vmem:[#allocation2 + $0x60] sm:$0xff] %v2250
      %2283 = vst [vmem:[#allocation2 + $0x68] sm:$0xff] %v2251
      %2284 = vst [vmem:[#allocation2 + $0x70] sm:$0xff] %v2252
      %2285 = vst [vmem:[#allocation2 + $0x78] sm:$0xff] %v2253
      %2286 = vst [vmem:[#allocation2 + $0x80] sm:$0xff] %v2254
      %2287 = vst [vmem:[#allocation2 + $0x88] sm:$0xff] %v2255
      %2288 = vst [vmem:[#allocation2 + $0x90] sm:$0xff] %v2256
      %2289 = vst [vmem:[#allocation2 + $0x98] sm:$0xff] %v2257
      %2290 = vst [vmem:[#allocation2 + $0xa0] sm:$0xff] %v2258
      %2291 = vst [vmem:[#allocation2 + $0xa8] sm:$0xff] %v2259
      %2292 = vst [vmem:[#allocation2 + $0xb0] sm:$0xff] %v2260
      %2293 = vst [vmem:[#allocation2 + $0xb8] sm:$0xff] %v2261
      %2294 = vst [vmem:[#allocation2 + $0xc0] sm:$0xff] %v2262
      %2295 = vst [vmem:[#allocation2 + $0xc8] sm:$0xff] %v2263
      %2296 = vst [vmem:[#allocation2 + $0xd0] sm:$0xff] %v2264
      %2297 = vst [vmem:[#allocation2 + $0xd8] sm:$0xff] %v2265
      %2298 = vst [vmem:[#allocation2 + $0xe0] sm:$0xff] %v2266
      %2299 = vst [vmem:[#allocation2 + $0xe8] sm:$0xff] %v2267
      %2300 = vst [vmem:[#allocation2 + $0xf0] sm:$0xff] %v2268
      %2301 = vst [vmem:[#allocation2 + $0xf8] sm:$0xff] %v2269
      %v2303 = vshrl.u32 %v669, 16
      %v2305 = vshll.u32 %v669, 16
      %v2307 = vrot.slane %v2305, 1
      %v2308 = vor.u32 %v2303, %v2307
      %v2310 = vshll.u32 %v685, 16
      %v2312 = vrot.slane %v2310, 1
      %v2313 = vsel %vm1039, %v2308, %v2312
      %v2315 = vld [vmem:[#allocation2] sm:$0xff]
      %v2316 = vld [vmem:[#allocation2 + $0x8] sm:$0xff]
      %v2317 = vld [vmem:[#allocation2 + $0x10] sm:$0xff]
      %v2318 = vld [vmem:[#allocation2 + $0x18] sm:$0xff]
      %v2319 = vld [vmem:[#allocation2 + $0x20] sm:$0xff]
      %v2320 = vld [vmem:[#allocation2 + $0x28] sm:$0xff]
      %v2321 = vld [vmem:[#allocation2 + $0x30] sm:$0xff]
      %v2322 = vld [vmem:[#allocation2 + $0x38] sm:$0xff]
      %v2323 = vld [vmem:[#allocation2 + $0x40] sm:$0xff]
      %v2324 = vld [vmem:[#allocation2 + $0x48] sm:$0xff]
      %v2325 = vld [vmem:[#allocation2 + $0x50] sm:$0xff]
      %v2326 = vld [vmem:[#allocation2 + $0x58] sm:$0xff]
      %v2327 = vld [vmem:[#allocation2 + $0x60] sm:$0xff]
      %v2328 = vld [vmem:[#allocation2 + $0x68] sm:$0xff]
      %v2329 = vld [vmem:[#allocation2 + $0x70] sm:$0xff]
      %v2330 = vld [vmem:[#allocation2 + $0x78] sm:$0xff]
      %v2331 = vld [vmem:[#allocation2 + $0x80] sm:$0xff]
      %v2332 = vld [vmem:[#allocation2 + $0x88] sm:$0xff]
      %v2333 = vld [vmem:[#allocation2 + $0x90] sm:$0xff]
      %v2334 = vld [vmem:[#allocation2 + $0x98] sm:$0xff]
      %v2335 = vld [vmem:[#allocation2 + $0xa0] sm:$0xff]
      %v2336 = vld [vmem:[#allocation2 + $0xa8] sm:$0xff]
      %v2337 = vld [vmem:[#allocation2 + $0xb0] sm:$0xff]
      %v2338 = vld [vmem:[#allocation2 + $0xb8] sm:$0xff]
      %v2339 = vld [vmem:[#allocation2 + $0xc0] sm:$0xff]
      %v2340 = vld [vmem:[#allocation2 + $0xc8] sm:$0xff]
      %v2341 = vld [vmem:[#allocation2 + $0xd0] sm:$0xff]
      %v2342 = vld [vmem:[#allocation2 + $0xd8] sm:$0xff]
      %v2343 = vld [vmem:[#allocation2 + $0xe0] sm:$0xff]
      %v2344 = vld [vmem:[#allocation2 + $0xe8] sm:$0xff]
      %v2345 = vld [vmem:[#allocation2 + $0xf0] sm:$0xff]
      %v2346 = vld [vmem:[#allocation2 + $0xf8] sm:$0xff]
      %v2347 = vld [vmem:[%s3 + $0x100] sm:$0xf]
      %v2348 = vld [vmem:[%s3 + $0x104] sm:$0xf]
      %v2349 = vld [vmem:[%s3 + $0x108] sm:$0xf]
      %v2350 = vld [vmem:[%s3 + $0x10c] sm:$0xf]
      %v2351 = vld [vmem:[%s3 + $0x110] sm:$0xf]
      %v2352 = vld [vmem:[%s3 + $0x114] sm:$0xf]
      %v2353 = vld [vmem:[%s3 + $0x118] sm:$0xf]
      %v2354 = vld [vmem:[%s3 + $0x11c] sm:$0xf]
      %v2355 = vld [vmem:[%s3 + $0x120] sm:$0xf]
      %v2356 = vld [vmem:[%s3 + $0x124] sm:$0xf]
      %v2357 = vld [vmem:[%s3 + $0x128] sm:$0xf]
      %v2358 = vld [vmem:[%s3 + $0x12c] sm:$0xf]
      %v2359 = vld [vmem:[%s3 + $0x130] sm:$0xf]
      %v2360 = vld [vmem:[%s3 + $0x134] sm:$0xf]
      %v2361 = vld [vmem:[%s3 + $0x138] sm:$0xf]
      %v2362 = vld [vmem:[%s3 + $0x13c] sm:$0xf]
      %v2379 = vunpack.c.l.b16 %v2347
      %v2380 = vunpack.c.l.b16 %v2348
      %v2381 = vunpack.c.l.b16 %v2349
      %v2382 = vunpack.c.l.b16 %v2350
      %v2383 = vunpack.c.l.b16 %v2351
      %v2384 = vunpack.c.l.b16 %v2352
      %v2385 = vunpack.c.l.b16 %v2353
      %v2386 = vunpack.c.l.b16 %v2354
      %v2387 = vunpack.c.l.b16 %v2355
      %v2388 = vunpack.c.l.b16 %v2356
      %v2389 = vunpack.c.l.b16 %v2357
      %v2390 = vunpack.c.l.b16 %v2358
      %v2391 = vunpack.c.l.b16 %v2359
      %v2392 = vunpack.c.l.b16 %v2360
      %v2393 = vunpack.c.l.b16 %v2361
      %v2394 = vunpack.c.l.b16 %v2362
      %v2395 = vpack.c.b16 %v2380, %v2379
      %v2396 = vpack.c.b16 %v2382, %v2381
      %v2397 = vpack.c.b16 %v2384, %v2383
      %v2398 = vpack.c.b16 %v2386, %v2385
      %v2399 = vpack.c.b16 %v2388, %v2387
      %v2400 = vpack.c.b16 %v2390, %v2389
      %v2401 = vpack.c.b16 %v2392, %v2391
      %v2402 = vpack.c.b16 %v2394, %v2393
      %2411 = vmatprep.subr.bf16.mxu0 0
      %2412 = vmatpush1.bf16.msra.mxu0 %v2395
      %2413 = vmatprep.subr.bf16.mxu0 0
      %2414 = vmatpush1.bf16.msra.mxu0 %v2396
      %2415 = vmatprep.subr.bf16.mxu0 0
      %2416 = vmatpush1.bf16.msra.mxu0 %v2397
      %2417 = vmatprep.subr.bf16.mxu0 0
      %2418 = vmatpush1.bf16.msra.mxu0 %v2398
      %2419 = vmatprep.subr.bf16.mxu0 0
      %2420 = vmatpush1.bf16.msra.mxu0 %v2399
      %2421 = vmatprep.subr.bf16.mxu0 0
      %2422 = vmatpush1.bf16.msra.mxu0 %v2400
      %2423 = vmatprep.subr.bf16.mxu0 0
      %2424 = vmatpush1.bf16.msra.mxu0 %v2401
      %2425 = vmatprep.subr.bf16.mxu0 0
      %2426 = vmatpush1.bf16.msra.mxu0 %v2402
      %2427 = vmatprep.subr.bf16.mxu0 0
      %2428 = vmatpush1.bf16.msra.mxu0 0
      %2429 = vmatprep.subr.bf16.mxu0 0
      %2430 = vmatpush1.bf16.msra.mxu0 0
      %2431 = vmatprep.subr.bf16.mxu0 0
      %2432 = vmatpush1.bf16.msra.mxu0 0
      %2433 = vmatprep.subr.bf16.mxu0 0
      %2434 = vmatpush1.bf16.msra.mxu0 0
      %2435 = vmatprep.subr.bf16.mxu0 0
      %2436 = vmatpush1.bf16.msra.mxu0 0
      %2437 = vmatprep.subr.bf16.mxu0 0
      %2438 = vmatpush1.bf16.msra.mxu0 0
      %2439 = vmatprep.subr.bf16.mxu0 0
      %2440 = vmatpush1.bf16.msra.mxu0 0
      %2441 = vmatprep.subr.bf16.mxu0 0
      %2442 = vmatpush1.bf16.msra.mxu0 0
      %2443 = vmatprep.mubr.bf16.mxu0 0
      %2444 = vmatmul.mubr.bf16.gmra.mrb[0].mxu0 %v1059
      %v2445 = vpop.f32.mrb[0].mxu0
      %v2446 = vadd.f32 0.0, %v2445
      %v2447 = vpop.f32.mrb[0].mxu0
      %v2448 = vpop.f32.mrb[0].mxu0
      %v2449 = vadd.f32 0.0, %v2448
      %v2450 = vpop.f32.mrb[0].mxu0
      %2451 = vmatprep.mubr.bf16.mxu0 0
      %2452 = vmatmul.mubr.bf16.gmra.mrb[0].mxu0 %v1071
      %v2453 = vpop.f32.mrb[0].mxu0
      %v2454 = vadd.f32 0.0, %v2453
      %v2455 = vpop.f32.mrb[0].mxu0
      %v2456 = vpop.f32.mrb[0].mxu0
      %v2457 = vadd.f32 0.0, %v2456
      %v2458 = vpop.f32.mrb[0].mxu0
      %2459 = vmatprep.mubr.bf16.mxu0 0
      %2460 = vmatmul.mubr.bf16.gmra.mrb[0].mxu0 %v1083
      %v2461 = vpop.f32.mrb[0].mxu0
      %v2462 = vadd.f32 0.0, %v2461
      %v2463 = vpop.f32.mrb[0].mxu0
      %v2464 = vpop.f32.mrb[0].mxu0
      %v2465 = vadd.f32 0.0, %v2464
      %v2466 = vpop.f32.mrb[0].mxu0
      %2467 = vmatprep.mubr.bf16.mxu0 0
      %2468 = vmatmul.mubr.bf16.gmra.mrb[0].mxu0 %v1095
      %v2469 = vpop.f32.mrb[0].mxu0
      %v2470 = vadd.f32 0.0, %v2469
      %v2471 = vpop.f32.mrb[0].mxu0
      %v2472 = vpop.f32.mrb[0].mxu0
      %v2473 = vadd.f32 0.0, %v2472
      %v2474 = vpop.f32.mrb[0].mxu0
      %2475 = vmatprep.mubr.bf16.mxu0 0
      %2476 = vmatmul.mubr.bf16.gmra.mrb[0].mxu0 %v1107
      %v2477 = vpop.f32.mrb[0].mxu0
      %v2478 = vadd.f32 0.0, %v2477
      %v2479 = vpop.f32.mrb[0].mxu0
      %v2480 = vpop.f32.mrb[0].mxu0
      %v2481 = vadd.f32 0.0, %v2480
      %v2482 = vpop.f32.mrb[0].mxu0
      %2483 = vmatprep.mubr.bf16.mxu0 0
      %2484 = vmatmul.mubr.bf16.gmra.mrb[0].mxu0 %v1119
      %v2485 = vpop.f32.mrb[0].mxu0
      %v2486 = vadd.f32 0.0, %v2485
      %v2487 = vpop.f32.mrb[0].mxu0
      %v2488 = vpop.f32.mrb[0].mxu0
      %v2489 = vadd.f32 0.0, %v2488
      %v2490 = vpop.f32.mrb[0].mxu0
      %2491 = vmatprep.mubr.bf16.mxu0 0
      %2492 = vmatmul.mubr.bf16.gmra.mrb[0].mxu0 %v1131
      %v2493 = vpop.f32.mrb[0].mxu0
      %v2494 = vadd.f32 0.0, %v2493
      %v2495 = vpop.f32.mrb[0].mxu0
      %v2496 = vpop.f32.mrb[0].mxu0
      %v2497 = vadd.f32 0.0, %v2496
      %v2498 = vpop.f32.mrb[0].mxu0
      %2499 = vmatprep.mubr.bf16.mxu0 0
      %2500 = vmatmul.mubr.bf16.gmra.mrb[0].mxu0 %v1143
      %v2501 = vpop.f32.mrb[0].mxu0
      %v2502 = vadd.f32 0.0, %v2501
      %v2503 = vpop.f32.mrb[0].mxu0
      %v2504 = vpop.f32.mrb[0].mxu0
      %v2505 = vadd.f32 0.0, %v2504
      %v2506 = vpop.f32.mrb[0].mxu0
      %2507 = vmatprep.mubr.bf16.mxu0 0
      %2508 = vmatmul.mubr.bf16.gmra.mrb[0].mxu0 %v1155
      %v2509 = vpop.f32.mrb[0].mxu0
      %v2510 = vadd.f32 0.0, %v2509
      %v2511 = vpop.f32.mrb[0].mxu0
      %v2512 = vpop.f32.mrb[0].mxu0
      %v2513 = vadd.f32 0.0, %v2512
      %v2514 = vpop.f32.mrb[0].mxu0
      %2515 = vmatprep.mubr.bf16.mxu0 0
      %2516 = vmatmul.mubr.bf16.gmra.mrb[0].mxu0 %v1167
      %v2517 = vpop.f32.mrb[0].mxu0
      %v2518 = vadd.f32 0.0, %v2517
      %v2519 = vpop.f32.mrb[0].mxu0
      %v2520 = vpop.f32.mrb[0].mxu0
      %v2521 = vadd.f32 0.0, %v2520
      %v2522 = vpop.f32.mrb[0].mxu0
      %2523 = vmatprep.mubr.bf16.mxu0 0
      %2524 = vmatmul.mubr.bf16.gmra.mrb[0].mxu0 %v1179
      %v2525 = vpop.f32.mrb[0].mxu0
      %v2526 = vadd.f32 0.0, %v2525
      %v2527 = vpop.f32.mrb[0].mxu0
      %v2528 = vpop.f32.mrb[0].mxu0
      %v2529 = vadd.f32 0.0, %v2528
      %v2530 = vpop.f32.mrb[0].mxu0
      %2531 = vmatprep.mubr.bf16.mxu0 0
      %2532 = vmatmul.mubr.bf16.gmra.mrb[0].mxu0 %v1191
      %v2533 = vpop.f32.mrb[0].mxu0
      %v2534 = vadd.f32 0.0, %v2533
      %v2535 = vpop.f32.mrb[0].mxu0
      %v2536 = vpop.f32.mrb[0].mxu0
      %v2537 = vadd.f32 0.0, %v2536
      %v2538 = vpop.f32.mrb[0].mxu0
      %2539 = vmatprep.mubr.bf16.mxu0 0
      %2540 = vmatmul.mubr.bf16.gmra.mrb[0].mxu0 %v1203
      %v2541 = vpop.f32.mrb[0].mxu0
      %v2542 = vadd.f32 0.0, %v2541
      %v2543 = vpop.f32.mrb[0].mxu0
      %v2544 = vpop.f32.mrb[0].mxu0
      %v2545 = vadd.f32 0.0, %v2544
      %v2546 = vpop.f32.mrb[0].mxu0
      %2547 = vmatprep.mubr.bf16.mxu0 0
      %2548 = vmatmul.mubr.bf16.gmra.mrb[0].mxu0 %v1215
      %v2549 = vpop.f32.mrb[0].mxu0
      %v2550 = vadd.f32 0.0, %v2549
      %v2551 = vpop.f32.mrb[0].mxu0
      %v2552 = vpop.f32.mrb[0].mxu0
      %v2553 = vadd.f32 0.0, %v2552
      %v2554 = vpop.f32.mrb[0].mxu0
      %2555 = vmatprep.mubr.bf16.mxu0 0
      %2556 = vmatmul.mubr.bf16.gmra.mrb[0].mxu0 %v1227
      %v2557 = vpop.f32.mrb[0].mxu0
      %v2558 = vadd.f32 0.0, %v2557
      %v2559 = vpop.f32.mrb[0].mxu0
      %v2560 = vpop.f32.mrb[0].mxu0
      %v2561 = vadd.f32 0.0, %v2560
      %v2562 = vpop.f32.mrb[0].mxu0
      %2563 = vmatprep.mubr.bf16.mxu0 0
      %2564 = vmatmul.mubr.bf16.gmra.mrb[0].mxu0 %v2313
      %v2565 = vpop.f32.mrb[0].mxu0
      %v2566 = vadd.f32 0.0, %v2565
      %v2567 = vpop.f32.mrb[0].mxu0
      %v2568 = vpop.f32.mrb[0].mxu0
      %v2569 = vadd.f32 0.0, %v2568
      %v2570 = vpop.f32.mrb[0].mxu0
      %2571 = vdwg.mxu0
      %v2572 = vadd.f32 %v2315, %v2446
      %v2573 = vadd.f32 %v2316, %v2449
      %v2574 = vadd.f32 %v2317, %v2454
      %v2575 = vadd.f32 %v2318, %v2457
      %v2576 = vadd.f32 %v2319, %v2462
      %v2577 = vadd.f32 %v2320, %v2465
      %v2578 = vadd.f32 %v2321, %v2470
      %v2579 = vadd.f32 %v2322, %v2473
      %v2580 = vadd.f32 %v2323, %v2478
      %v2581 = vadd.f32 %v2324, %v2481
      %v2582 = vadd.f32 %v2325, %v2486
      %v2583 = vadd.f32 %v2326, %v2489
      %v2584 = vadd.f32 %v2327, %v2494
      %v2585 = vadd.f32 %v2328, %v2497
      %v2586 = vadd.f32 %v2329, %v2502
      %v2587 = vadd.f32 %v2330, %v2505
      %v2588 = vadd.f32 %v2331, %v2510
      %v2589 = vadd.f32 %v2332, %v2513
      %v2590 = vadd.f32 %v2333, %v2518
      %v2591 = vadd.f32 %v2334, %v2521
      %v2592 = vadd.f32 %v2335, %v2526
      %v2593 = vadd.f32 %v2336, %v2529
      %v2594 = vadd.f32 %v2337, %v2534
      %v2595 = vadd.f32 %v2338, %v2537
      %v2596 = vadd.f32 %v2339, %v2542
      %v2597 = vadd.f32 %v2340, %v2545
      %v2598 = vadd.f32 %v2341, %v2550
      %v2599 = vadd.f32 %v2342, %v2553
      %v2600 = vadd.f32 %v2343, %v2558
      %v2601 = vadd.f32 %v2344, %v2561
      %v2602 = vadd.f32 %v2345, %v2566
      %v2603 = vadd.f32 %v2346, %v2569
      %2604 = vst [vmem:[#allocation2] sm:$0xff] %v2572
      %2605 = vst [vmem:[#allocation2 + $0x8] sm:$0xff] %v2573
      %2606 = vst [vmem:[#allocation2 + $0x10] sm:$0xff] %v2574
      %2607 = vst [vmem:[#allocation2 + $0x18] sm:$0xff] %v2575
      %2608 = vst [vmem:[#allocation2 + $0x20] sm:$0xff] %v2576
      %2609 = vst [vmem:[#allocation2 + $0x28] sm:$0xff] %v2577
      %2610 = vst [vmem:[#allocation2 + $0x30] sm:$0xff] %v2578
      %2611 = vst [vmem:[#allocation2 + $0x38] sm:$0xff] %v2579
      %2612 = vst [vmem:[#allocation2 + $0x40] sm:$0xff] %v2580
      %2613 = vst [vmem:[#allocation2 + $0x48] sm:$0xff] %v2581
      %2614 = vst [vmem:[#allocation2 + $0x50] sm:$0xff] %v2582
      %2615 = vst [vmem:[#allocation2 + $0x58] sm:$0xff] %v2583
      %2616 = vst [vmem:[#allocation2 + $0x60] sm:$0xff] %v2584
      %2617 = vst [vmem:[#allocation2 + $0x68] sm:$0xff] %v2585
      %2618 = vst [vmem:[#allocation2 + $0x70] sm:$0xff] %v2586
      %2619 = vst [vmem:[#allocation2 + $0x78] sm:$0xff] %v2587
      %2620 = vst [vmem:[#allocation2 + $0x80] sm:$0xff] %v2588
      %2621 = vst [vmem:[#allocation2 + $0x88] sm:$0xff] %v2589
      %2622 = vst [vmem:[#allocation2 + $0x90] sm:$0xff] %v2590
      %2623 = vst [vmem:[#allocation2 + $0x98] sm:$0xff] %v2591
      %2624 = vst [vmem:[#allocation2 + $0xa0] sm:$0xff] %v2592
      %2625 = vst [vmem:[#allocation2 + $0xa8] sm:$0xff] %v2593
      %2626 = vst [vmem:[#allocation2 + $0xb0] sm:$0xff] %v2594
      %2627 = vst [vmem:[#allocation2 + $0xb8] sm:$0xff] %v2595
      %2628 = vst [vmem:[#allocation2 + $0xc0] sm:$0xff] %v2596
      %2629 = vst [vmem:[#allocation2 + $0xc8] sm:$0xff] %v2597
      %2630 = vst [vmem:[#allocation2 + $0xd0] sm:$0xff] %v2598
      %2631 = vst [vmem:[#allocation2 + $0xd8] sm:$0xff] %v2599
      %2632 = vst [vmem:[#allocation2 + $0xe0] sm:$0xff] %v2600
      %2633 = vst [vmem:[#allocation2 + $0xe8] sm:$0xff] %v2601
      %2634 = vst [vmem:[#allocation2 + $0xf0] sm:$0xff] %v2602
      %2635 = vst [vmem:[#allocation2 + $0xf8] sm:$0xff] %v2603
      %v2638 = vrot.slane %v669, 1
      %v2639 = vrot.slane %v685, 1
      %v2640 = vsel %vm1596, %v2638, %v2639
      %v2642 = vld [vmem:[#allocation2] sm:$0xff]
      %v2643 = vld [vmem:[#allocation2 + $0x8] sm:$0xff]
      %v2644 = vld [vmem:[#allocation2 + $0x10] sm:$0xff]
      %v2645 = vld [vmem:[#allocation2 + $0x18] sm:$0xff]
      %v2646 = vld [vmem:[#allocation2 + $0x20] sm:$0xff]
      %v2647 = vld [vmem:[#allocation2 + $0x28] sm:$0xff]
      %v2648 = vld [vmem:[#allocation2 + $0x30] sm:$0xff]
      %v2649 = vld [vmem:[#allocation2 + $0x38] sm:$0xff]
      %v2650 = vld [vmem:[#allocation2 + $0x40] sm:$0xff]
      %v2651 = vld [vmem:[#allocation2 + $0x48] sm:$0xff]
      %v2652 = vld [vmem:[#allocation2 + $0x50] sm:$0xff]
      %v2653 = vld [vmem:[#allocation2 + $0x58] sm:$0xff]
      %v2654 = vld [vmem:[#allocation2 + $0x60] sm:$0xff]
      %v2655 = vld [vmem:[#allocation2 + $0x68] sm:$0xff]
      %v2656 = vld [vmem:[#allocation2 + $0x70] sm:$0xff]
      %v2657 = vld [vmem:[#allocation2 + $0x78] sm:$0xff]
      %v2658 = vld [vmem:[#allocation2 + $0x80] sm:$0xff]
      %v2659 = vld [vmem:[#allocation2 + $0x88] sm:$0xff]
      %v2660 = vld [vmem:[#allocation2 + $0x90] sm:$0xff]
      %v2661 = vld [vmem:[#allocation2 + $0x98] sm:$0xff]
      %v2662 = vld [vmem:[#allocation2 + $0xa0] sm:$0xff]
      %v2663 = vld [vmem:[#allocation2 + $0xa8] sm:$0xff]
      %v2664 = vld [vmem:[#allocation2 + $0xb0] sm:$0xff]
      %v2665 = vld [vmem:[#allocation2 + $0xb8] sm:$0xff]
      %v2666 = vld [vmem:[#allocation2 + $0xc0] sm:$0xff]
      %v2667 = vld [vmem:[#allocation2 + $0xc8] sm:$0xff]
      %v2668 = vld [vmem:[#allocation2 + $0xd0] sm:$0xff]
      %v2669 = vld [vmem:[#allocation2 + $0xd8] sm:$0xff]
      %v2670 = vld [vmem:[#allocation2 + $0xe0] sm:$0xff]
      %v2671 = vld [vmem:[#allocation2 + $0xe8] sm:$0xff]
      %v2672 = vld [vmem:[#allocation2 + $0xf0] sm:$0xff]
      %v2673 = vld [vmem:[#allocation2 + $0xf8] sm:$0xff]
      %v2674 = vld [vmem:[%s3 + $0x140] sm:$0xf]
      %v2675 = vld [vmem:[%s3 + $0x144] sm:$0xf]
      %v2676 = vld [vmem:[%s3 + $0x148] sm:$0xf]
      %v2677 = vld [vmem:[%s3 + $0x14c] sm:$0xf]
      %v2678 = vld [vmem:[%s3 + $0x150] sm:$0xf]
      %v2679 = vld [vmem:[%s3 + $0x154] sm:$0xf]
      %v2680 = vld [vmem:[%s3 + $0x158] sm:$0xf]
      %v2681 = vld [vmem:[%s3 + $0x15c] sm:$0xf]
      %v2682 = vld [vmem:[%s3 + $0x160] sm:$0xf]
      %v2683 = vld [vmem:[%s3 + $0x164] sm:$0xf]
      %v2684 = vld [vmem:[%s3 + $0x168] sm:$0xf]
      %v2685 = vld [vmem:[%s3 + $0x16c] sm:$0xf]
      %v2686 = vld [vmem:[%s3 + $0x170] sm:$0xf]
      %v2687 = vld [vmem:[%s3 + $0x174] sm:$0xf]
      %v2688 = vld [vmem:[%s3 + $0x178] sm:$0xf]
      %v2689 = vld [vmem:[%s3 + $0x17c] sm:$0xf]
      %v2706 = vunpack.c.l.b16 %v2674
      %v2707 = vunpack.c.l.b16 %v2675
      %v2708 = vunpack.c.l.b16 %v2676
      %v2709 = vunpack.c.l.b16 %v2677
      %v2710 = vunpack.c.l.b16 %v2678
      %v2711 = vunpack.c.l.b16 %v2679
      %v2712 = vunpack.c.l.b16 %v2680
      %v2713 = vunpack.c.l.b16 %v2681
      %v2714 = vunpack.c.l.b16 %v2682
      %v2715 = vunpack.c.l.b16 %v2683
      %v2716 = vunpack.c.l.b16 %v2684
      %v2717 = vunpack.c.l.b16 %v2685
      %v2718 = vunpack.c.l.b16 %v2686
      %v2719 = vunpack.c.l.b16 %v2687
      %v2720 = vunpack.c.l.b16 %v2688
      %v2721 = vunpack.c.l.b16 %v2689
      %v2722 = vpack.c.b16 %v2707, %v2706
      %v2723 = vpack.c.b16 %v2709, %v2708
      %v2724 = vpack.c.b16 %v2711, %v2710
      %v2725 = vpack.c.b16 %v2713, %v2712
      %v2726 = vpack.c.b16 %v2715, %v2714
      %v2727 = vpack.c.b16 %v2717, %v2716
      %v2728 = vpack.c.b16 %v2719, %v2718
      %v2729 = vpack.c.b16 %v2721, %v2720
      %2738 = vmatprep.subr.bf16.mxu0 0
      %2739 = vmatpush1.bf16.msra.mxu0 %v2722
      %2740 = vmatprep.subr.bf16.mxu0 0
      %2741 = vmatpush1.bf16.msra.mxu0 %v2723
      %2742 = vmatprep.subr.bf16.mxu0 0
      %2743 = vmatpush1.bf16.msra.mxu0 %v2724
      %2744 = vmatprep.subr.bf16.mxu0 0
      %2745 = vmatpush1.bf16.msra.mxu0 %v2725
      %2746 = vmatprep.subr.bf16.mxu0 0
      %2747 = vmatpush1.bf16.msra.mxu0 %v2726
      %2748 = vmatprep.subr.bf16.mxu0 0
      %2749 = vmatpush1.bf16.msra.mxu0 %v2727
      %2750 = vmatprep.subr.bf16.mxu0 0
      %2751 = vmatpush1.bf16.msra.mxu0 %v2728
      %2752 = vmatprep.subr.bf16.mxu0 0
      %2753 = vmatpush1.bf16.msra.mxu0 %v2729
      %2754 = vmatprep.subr.bf16.mxu0 0
      %2755 = vmatpush1.bf16.msra.mxu0 0
      %2756 = vmatprep.subr.bf16.mxu0 0
      %2757 = vmatpush1.bf16.msra.mxu0 0
      %2758 = vmatprep.subr.bf16.mxu0 0
      %2759 = vmatpush1.bf16.msra.mxu0 0
      %2760 = vmatprep.subr.bf16.mxu0 0
      %2761 = vmatpush1.bf16.msra.mxu0 0
      %2762 = vmatprep.subr.bf16.mxu0 0
      %2763 = vmatpush1.bf16.msra.mxu0 0
      %2764 = vmatprep.subr.bf16.mxu0 0
      %2765 = vmatpush1.bf16.msra.mxu0 0
      %2766 = vmatprep.subr.bf16.mxu0 0
      %2767 = vmatpush1.bf16.msra.mxu0 0
      %2768 = vmatprep.subr.bf16.mxu0 0
      %2769 = vmatpush1.bf16.msra.mxu0 0
      %2770 = vmatprep.mubr.bf16.mxu0 0
      %2771 = vmatmul.mubr.bf16.gmra.mrb[0].mxu0 %v1601
      %v2772 = vpop.f32.mrb[0].mxu0
      %v2773 = vadd.f32 0.0, %v2772
      %v2774 = vpop.f32.mrb[0].mxu0
      %v2775 = vpop.f32.mrb[0].mxu0
      %v2776 = vadd.f32 0.0, %v2775
      %v2777 = vpop.f32.mrb[0].mxu0
      %2778 = vmatprep.mubr.bf16.mxu0 0
      %2779 = vmatmul.mubr.bf16.gmra.mrb[0].mxu0 %v1604
      %v2780 = vpop.f32.mrb[0].mxu0
      %v2781 = vadd.f32 0.0, %v2780
      %v2782 = vpop.f32.mrb[0].mxu0
      %v2783 = vpop.f32.mrb[0].mxu0
      %v2784 = vadd.f32 0.0, %v2783
      %v2785 = vpop.f32.mrb[0].mxu0
      %2786 = vmatprep.mubr.bf16.mxu0 0
      %2787 = vmatmul.mubr.bf16.gmra.mrb[0].mxu0 %v1607
      %v2788 = vpop.f32.mrb[0].mxu0
      %v2789 = vadd.f32 0.0, %v2788
      %v2790 = vpop.f32.mrb[0].mxu0
      %v2791 = vpop.f32.mrb[0].mxu0
      %v2792 = vadd.f32 0.0, %v2791
      %v2793 = vpop.f32.mrb[0].mxu0
      %2794 = vmatprep.mubr.bf16.mxu0 0
      %2795 = vmatmul.mubr.bf16.gmra.mrb[0].mxu0 %v1610
      %v2796 = vpop.f32.mrb[0].mxu0
      %v2797 = vadd.f32 0.0, %v2796
      %v2798 = vpop.f32.mrb[0].mxu0
      %v2799 = vpop.f32.mrb[0].mxu0
      %v2800 = vadd.f32 0.0, %v2799
      %v2801 = vpop.f32.mrb[0].mxu0
      %2802 = vmatprep.mubr.bf16.mxu0 0
      %2803 = vmatmul.mubr.bf16.gmra.mrb[0].mxu0 %v1613
      %v2804 = vpop.f32.mrb[0].mxu0
      %v2805 = vadd.f32 0.0, %v2804
      %v2806 = vpop.f32.mrb[0].mxu0
      %v2807 = vpop.f32.mrb[0].mxu0
      %v2808 = vadd.f32 0.0, %v2807
      %v2809 = vpop.f32.mrb[0].mxu0
      %2810 = vmatprep.mubr.bf16.mxu0 0
      %2811 = vmatmul.mubr.bf16.gmra.mrb[0].mxu0 %v1616
      %v2812 = vpop.f32.mrb[0].mxu0
      %v2813 = vadd.f32 0.0, %v2812
      %v2814 = vpop.f32.mrb[0].mxu0
      %v2815 = vpop.f32.mrb[0].mxu0
      %v2816 = vadd.f32 0.0, %v2815
      %v2817 = vpop.f32.mrb[0].mxu0
      %2818 = vmatprep.mubr.bf16.mxu0 0
      %2819 = vmatmul.mubr.bf16.gmra.mrb[0].mxu0 %v1619
      %v2820 = vpop.f32.mrb[0].mxu0
      %v2821 = vadd.f32 0.0, %v2820
      %v2822 = vpop.f32.mrb[0].mxu0
      %v2823 = vpop.f32.mrb[0].mxu0
      %v2824 = vadd.f32 0.0, %v2823
      %v2825 = vpop.f32.mrb[0].mxu0
      %2826 = vmatprep.mubr.bf16.mxu0 0
      %2827 = vmatmul.mubr.bf16.gmra.mrb[0].mxu0 %v1622
      %v2828 = vpop.f32.mrb[0].mxu0
      %v2829 = vadd.f32 0.0, %v2828
      %v2830 = vpop.f32.mrb[0].mxu0
      %v2831 = vpop.f32.mrb[0].mxu0
      %v2832 = vadd.f32 0.0, %v2831
      %v2833 = vpop.f32.mrb[0].mxu0
      %2834 = vmatprep.mubr.bf16.mxu0 0
      %2835 = vmatmul.mubr.bf16.gmra.mrb[0].mxu0 %v1625
      %v2836 = vpop.f32.mrb[0].mxu0
      %v2837 = vadd.f32 0.0, %v2836
      %v2838 = vpop.f32.mrb[0].mxu0
      %v2839 = vpop.f32.mrb[0].mxu0
      %v2840 = vadd.f32 0.0, %v2839
      %v2841 = vpop.f32.mrb[0].mxu0
      %2842 = vmatprep.mubr.bf16.mxu0 0
      %2843 = vmatmul.mubr.bf16.gmra.mrb[0].mxu0 %v1628
      %v2844 = vpop.f32.mrb[0].mxu0
      %v2845 = vadd.f32 0.0, %v2844
      %v2846 = vpop.f32.mrb[0].mxu0
      %v2847 = vpop.f32.mrb[0].mxu0
      %v2848 = vadd.f32 0.0, %v2847
      %v2849 = vpop.f32.mrb[0].mxu0
      %2850 = vmatprep.mubr.bf16.mxu0 0
      %2851 = vmatmul.mubr.bf16.gmra.mrb[0].mxu0 %v1631
      %v2852 = vpop.f32.mrb[0].mxu0
      %v2853 = vadd.f32 0.0, %v2852
      %v2854 = vpop.f32.mrb[0].mxu0
      %v2855 = vpop.f32.mrb[0].mxu0
      %v2856 = vadd.f32 0.0, %v2855
      %v2857 = vpop.f32.mrb[0].mxu0
      %2858 = vmatprep.mubr.bf16.mxu0 0
      %2859 = vmatmul.mubr.bf16.gmra.mrb[0].mxu0 %v1634
      %v2860 = vpop.f32.mrb[0].mxu0
      %v2861 = vadd.f32 0.0, %v2860
      %v2862 = vpop.f32.mrb[0].mxu0
      %v2863 = vpop.f32.mrb[0].mxu0
      %v2864 = vadd.f32 0.0, %v2863
      %v2865 = vpop.f32.mrb[0].mxu0
      %2866 = vmatprep.mubr.bf16.mxu0 0
      %2867 = vmatmul.mubr.bf16.gmra.mrb[0].mxu0 %v1637
      %v2868 = vpop.f32.mrb[0].mxu0
      %v2869 = vadd.f32 0.0, %v2868
      %v2870 = vpop.f32.mrb[0].mxu0
      %v2871 = vpop.f32.mrb[0].mxu0
      %v2872 = vadd.f32 0.0, %v2871
      %v2873 = vpop.f32.mrb[0].mxu0
      %2874 = vmatprep.mubr.bf16.mxu0 0
      %2875 = vmatmul.mubr.bf16.gmra.mrb[0].mxu0 %v1640
      %v2876 = vpop.f32.mrb[0].mxu0
      %v2877 = vadd.f32 0.0, %v2876
      %v2878 = vpop.f32.mrb[0].mxu0
      %v2879 = vpop.f32.mrb[0].mxu0
      %v2880 = vadd.f32 0.0, %v2879
      %v2881 = vpop.f32.mrb[0].mxu0
      %2882 = vmatprep.mubr.bf16.mxu0 0
      %2883 = vmatmul.mubr.bf16.gmra.mrb[0].mxu0 %v1643
      %v2884 = vpop.f32.mrb[0].mxu0
      %v2885 = vadd.f32 0.0, %v2884
      %v2886 = vpop.f32.mrb[0].mxu0
      %v2887 = vpop.f32.mrb[0].mxu0
      %v2888 = vadd.f32 0.0, %v2887
      %v2889 = vpop.f32.mrb[0].mxu0
      %2890 = vmatprep.mubr.bf16.mxu0 0
      %2891 = vmatmul.mubr.bf16.gmra.mrb[0].mxu0 %v2640
      %v2892 = vpop.f32.mrb[0].mxu0
      %v2893 = vadd.f32 0.0, %v2892
      %v2894 = vpop.f32.mrb[0].mxu0
      %v2895 = vpop.f32.mrb[0].mxu0
      %v2896 = vadd.f32 0.0, %v2895
      %v2897 = vpop.f32.mrb[0].mxu0
      %2898 = vdwg.mxu0
      %v2899 = vadd.f32 %v2642, %v2773
      %v2900 = vadd.f32 %v2643, %v2776
      %v2901 = vadd.f32 %v2644, %v2781
      %v2902 = vadd.f32 %v2645, %v2784
      %v2903 = vadd.f32 %v2646, %v2789
      %v2904 = vadd.f32 %v2647, %v2792
      %v2905 = vadd.f32 %v2648, %v2797
      %v2906 = vadd.f32 %v2649, %v2800
      %v2907 = vadd.f32 %v2650, %v2805
      %v2908 = vadd.f32 %v2651, %v2808
      %v2909 = vadd.f32 %v2652, %v2813
      %v2910 = vadd.f32 %v2653, %v2816
      %v2911 = vadd.f32 %v2654, %v2821
      %v2912 = vadd.f32 %v2655, %v2824
      %v2913 = vadd.f32 %v2656, %v2829
      %v2914 = vadd.f32 %v2657, %v2832
      %v2915 = vadd.f32 %v2658, %v2837
      %v2916 = vadd.f32 %v2659, %v2840
      %v2917 = vadd.f32 %v2660, %v2845
      %v2918 = vadd.f32 %v2661, %v2848
      %v2919 = vadd.f32 %v2662, %v2853
      %v2920 = vadd.f32 %v2663, %v2856
      %v2921 = vadd.f32 %v2664, %v2861
      %v2922 = vadd.f32 %v2665, %v2864
      %v2923 = vadd.f32 %v2666, %v2869
      %v2924 = vadd.f32 %v2667, %v2872
      %v2925 = vadd.f32 %v2668, %v2877
      %v2926 = vadd.f32 %v2669, %v2880
      %v2927 = vadd.f32 %v2670, %v2885
      %v2928 = vadd.f32 %v2671, %v2888
      %v2929 = vadd.f32 %v2672, %v2893
      %v2930 = vadd.f32 %v2673, %v2896
      %2931 = vst [vmem:[#allocation2] sm:$0xff] %v2899
      %2932 = vst [vmem:[#allocation2 + $0x8] sm:$0xff] %v2900
      %2933 = vst [vmem:[#allocation2 + $0x10] sm:$0xff] %v2901
      %2934 = vst [vmem:[#allocation2 + $0x18] sm:$0xff] %v2902
      %2935 = vst [vmem:[#allocation2 + $0x20] sm:$0xff] %v2903
      %2936 = vst [vmem:[#allocation2 + $0x28] sm:$0xff] %v2904
      %2937 = vst [vmem:[#allocation2 + $0x30] sm:$0xff] %v2905
      %2938 = vst [vmem:[#allocation2 + $0x38] sm:$0xff] %v2906
      %2939 = vst [vmem:[#allocation2 + $0x40] sm:$0xff] %v2907
      %2940 = vst [vmem:[#allocation2 + $0x48] sm:$0xff] %v2908
      %2941 = vst [vmem:[#allocation2 + $0x50] sm:$0xff] %v2909
      %2942 = vst [vmem:[#allocation2 + $0x58] sm:$0xff] %v2910
      %2943 = vst [vmem:[#allocation2 + $0x60] sm:$0xff] %v2911
      %2944 = vst [vmem:[#allocation2 + $0x68] sm:$0xff] %v2912
      %2945 = vst [vmem:[#allocation2 + $0x70] sm:$0xff] %v2913
      %2946 = vst [vmem:[#allocation2 + $0x78] sm:$0xff] %v2914
      %2947 = vst [vmem:[#allocation2 + $0x80] sm:$0xff] %v2915
      %2948 = vst [vmem:[#allocation2 + $0x88] sm:$0xff] %v2916
      %2949 = vst [vmem:[#allocation2 + $0x90] sm:$0xff] %v2917
      %2950 = vst [vmem:[#allocation2 + $0x98] sm:$0xff] %v2918
      %2951 = vst [vmem:[#allocation2 + $0xa0] sm:$0xff] %v2919
      %2952 = vst [vmem:[#allocation2 + $0xa8] sm:$0xff] %v2920
      %2953 = vst [vmem:[#allocation2 + $0xb0] sm:$0xff] %v2921
      %2954 = vst [vmem:[#allocation2 + $0xb8] sm:$0xff] %v2922
      %2955 = vst [vmem:[#allocation2 + $0xc0] sm:$0xff] %v2923
      %2956 = vst [vmem:[#allocation2 + $0xc8] sm:$0xff] %v2924
      %2957 = vst [vmem:[#allocation2 + $0xd0] sm:$0xff] %v2925
      %2958 = vst [vmem:[#allocation2 + $0xd8] sm:$0xff] %v2926
      %2959 = vst [vmem:[#allocation2 + $0xe0] sm:$0xff] %v2927
      %2960 = vst [vmem:[#allocation2 + $0xe8] sm:$0xff] %v2928
      %2961 = vst [vmem:[#allocation2 + $0xf0] sm:$0xff] %v2929
      %2962 = vst [vmem:[#allocation2 + $0xf8] sm:$0xff] %v2930
      %v2963 = vld [vmem:[#allocation2] sm:$0xff]
      %v2964 = vld [vmem:[#allocation2 + $0x8] sm:$0xff]
      %v2965 = vld [vmem:[#allocation2 + $0x10] sm:$0xff]
      %v2966 = vld [vmem:[#allocation2 + $0x18] sm:$0xff]
      %v2967 = vld [vmem:[#allocation2 + $0x20] sm:$0xff]
      %v2968 = vld [vmem:[#allocation2 + $0x28] sm:$0xff]
      %v2969 = vld [vmem:[#allocation2 + $0x30] sm:$0xff]
      %v2970 = vld [vmem:[#allocation2 + $0x38] sm:$0xff]
      %v2971 = vld [vmem:[#allocation2 + $0x40] sm:$0xff]
      %v2972 = vld [vmem:[#allocation2 + $0x48] sm:$0xff]
      %v2973 = vld [vmem:[#allocation2 + $0x50] sm:$0xff]
      %v2974 = vld [vmem:[#allocation2 + $0x58] sm:$0xff]
      %v2975 = vld [vmem:[#allocation2 + $0x60] sm:$0xff]
      %v2976 = vld [vmem:[#allocation2 + $0x68] sm:$0xff]
      %v2977 = vld [vmem:[#allocation2 + $0x70] sm:$0xff]
      %v2978 = vld [vmem:[#allocation2 + $0x78] sm:$0xff]
      %v2979 = vld [vmem:[#allocation2 + $0x80] sm:$0xff]
      %v2980 = vld [vmem:[#allocation2 + $0x88] sm:$0xff]
      %v2981 = vld [vmem:[#allocation2 + $0x90] sm:$0xff]
      %v2982 = vld [vmem:[#allocation2 + $0x98] sm:$0xff]
      %v2983 = vld [vmem:[#allocation2 + $0xa0] sm:$0xff]
      %v2984 = vld [vmem:[#allocation2 + $0xa8] sm:$0xff]
      %v2985 = vld [vmem:[#allocation2 + $0xb0] sm:$0xff]
      %v2986 = vld [vmem:[#allocation2 + $0xb8] sm:$0xff]
      %v2987 = vld [vmem:[#allocation2 + $0xc0] sm:$0xff]
      %v2988 = vld [vmem:[#allocation2 + $0xc8] sm:$0xff]
      %v2989 = vld [vmem:[#allocation2 + $0xd0] sm:$0xff]
      %v2990 = vld [vmem:[#allocation2 + $0xd8] sm:$0xff]
      %v2991 = vld [vmem:[#allocation2 + $0xe0] sm:$0xff]
      %v2992 = vld [vmem:[#allocation2 + $0xe8] sm:$0xff]
      %v2993 = vld [vmem:[#allocation2 + $0xf0] sm:$0xff]
      %v2994 = vld [vmem:[#allocation2 + $0xf8] sm:$0xff]
      %v2995 = vld [vmem:[%s3 + $0x180] sm:$0xf]
      %v2996 = vld [vmem:[%s3 + $0x184] sm:$0xf]
      %v2997 = vld [vmem:[%s3 + $0x188] sm:$0xf]
      %v2998 = vld [vmem:[%s3 + $0x18c] sm:$0xf]
      %v2999 = vld [vmem:[%s3 + $0x190] sm:$0xf]
      %v3000 = vld [vmem:[%s3 + $0x194] sm:$0xf]
      %v3001 = vld [vmem:[%s3 + $0x198] sm:$0xf]
      %v3002 = vld [vmem:[%s3 + $0x19c] sm:$0xf]
      %v3003 = vld [vmem:[%s3 + $0x1a0] sm:$0xf]
      %v3004 = vld [vmem:[%s3 + $0x1a4] sm:$0xf]
      %v3005 = vld [vmem:[%s3 + $0x1a8] sm:$0xf]
      %v3006 = vld [vmem:[%s3 + $0x1ac] sm:$0xf]
      %v3007 = vld [vmem:[%s3 + $0x1b0] sm:$0xf]
      %v3008 = vld [vmem:[%s3 + $0x1b4] sm:$0xf]
      %v3009 = vld [vmem:[%s3 + $0x1b8] sm:$0xf]
      %v3010 = vld [vmem:[%s3 + $0x1bc] sm:$0xf]
      %v3027 = vunpack.c.l.b16 %v2995
      %v3028 = vunpack.c.l.b16 %v2996
      %v3029 = vunpack.c.l.b16 %v2997
      %v3030 = vunpack.c.l.b16 %v2998
      %v3031 = vunpack.c.l.b16 %v2999
      %v3032 = vunpack.c.l.b16 %v3000
      %v3033 = vunpack.c.l.b16 %v3001
      %v3034 = vunpack.c.l.b16 %v3002
      %v3035 = vunpack.c.l.b16 %v3003
      %v3036 = vunpack.c.l.b16 %v3004
      %v3037 = vunpack.c.l.b16 %v3005
      %v3038 = vunpack.c.l.b16 %v3006
      %v3039 = vunpack.c.l.b16 %v3007
      %v3040 = vunpack.c.l.b16 %v3008
      %v3041 = vunpack.c.l.b16 %v3009
      %v3042 = vunpack.c.l.b16 %v3010
      %v3043 = vpack.c.b16 %v3028, %v3027
      %v3044 = vpack.c.b16 %v3030, %v3029
      %v3045 = vpack.c.b16 %v3032, %v3031
      %v3046 = vpack.c.b16 %v3034, %v3033
      %v3047 = vpack.c.b16 %v3036, %v3035
      %v3048 = vpack.c.b16 %v3038, %v3037
      %v3049 = vpack.c.b16 %v3040, %v3039
      %v3050 = vpack.c.b16 %v3042, %v3041
      %3059 = vmatprep.subr.bf16.mxu0 0
      %3060 = vmatpush1.bf16.msra.mxu0 %v3043
      %3061 = vmatprep.subr.bf16.mxu0 0
      %3062 = vmatpush1.bf16.msra.mxu0 %v3044
      %3063 = vmatprep.subr.bf16.mxu0 0
      %3064 = vmatpush1.bf16.msra.mxu0 %v3045
      %3065 = vmatprep.subr.bf16.mxu0 0
      %3066 = vmatpush1.bf16.msra.mxu0 %v3046
      %3067 = vmatprep.subr.bf16.mxu0 0
      %3068 = vmatpush1.bf16.msra.mxu0 %v3047
      %3069 = vmatprep.subr.bf16.mxu0 0
      %3070 = vmatpush1.bf16.msra.mxu0 %v3048
      %3071 = vmatprep.subr.bf16.mxu0 0
      %3072 = vmatpush1.bf16.msra.mxu0 %v3049
      %3073 = vmatprep.subr.bf16.mxu0 0
      %3074 = vmatpush1.bf16.msra.mxu0 %v3050
      %3075 = vmatprep.subr.bf16.mxu0 0
      %3076 = vmatpush1.bf16.msra.mxu0 0
      %3077 = vmatprep.subr.bf16.mxu0 0
      %3078 = vmatpush1.bf16.msra.mxu0 0
      %3079 = vmatprep.subr.bf16.mxu0 0
      %3080 = vmatpush1.bf16.msra.mxu0 0
      %3081 = vmatprep.subr.bf16.mxu0 0
      %3082 = vmatpush1.bf16.msra.mxu0 0
      %3083 = vmatprep.subr.bf16.mxu0 0
      %3084 = vmatpush1.bf16.msra.mxu0 0
      %3085 = vmatprep.subr.bf16.mxu0 0
      %3086 = vmatpush1.bf16.msra.mxu0 0
      %3087 = vmatprep.subr.bf16.mxu0 0
      %3088 = vmatpush1.bf16.msra.mxu0 0
      %3089 = vmatprep.subr.bf16.mxu0 0
      %3090 = vmatpush1.bf16.msra.mxu0 0
      %3091 = vmatprep.mubr.bf16.mxu0 0
      %3092 = vmatmul.mubr.bf16.gmra.mrb[0].mxu0 %v655
      %v3093 = vpop.f32.mrb[0].mxu0
      %v3094 = vadd.f32 0.0, %v3093
      %v3095 = vpop.f32.mrb[0].mxu0
      %v3096 = vpop.f32.mrb[0].mxu0
      %v3097 = vadd.f32 0.0, %v3096
      %v3098 = vpop.f32.mrb[0].mxu0
      %3099 = vmatprep.mubr.bf16.mxu0 0
      %3100 = vmatmul.mubr.bf16.gmra.mrb[0].mxu0 %v656
      %v3101 = vpop.f32.mrb[0].mxu0
      %v3102 = vadd.f32 0.0, %v3101
      %v3103 = vpop.f32.mrb[0].mxu0
      %v3104 = vpop.f32.mrb[0].mxu0
      %v3105 = vadd.f32 0.0, %v3104
      %v3106 = vpop.f32.mrb[0].mxu0
      %3107 = vmatprep.mubr.bf16.mxu0 0
      %3108 = vmatmul.mubr.bf16.gmra.mrb[0].mxu0 %v657
      %v3109 = vpop.f32.mrb[0].mxu0
      %v3110 = vadd.f32 0.0, %v3109
      %v3111 = vpop.f32.mrb[0].mxu0
      %v3112 = vpop.f32.mrb[0].mxu0
      %v3113 = vadd.f32 0.0, %v3112
      %v3114 = vpop.f32.mrb[0].mxu0
      %3115 = vmatprep.mubr.bf16.mxu0 0
      %3116 = vmatmul.mubr.bf16.gmra.mrb[0].mxu0 %v658
      %v3117 = vpop.f32.mrb[0].mxu0
      %v3118 = vadd.f32 0.0, %v3117
      %v3119 = vpop.f32.mrb[0].mxu0
      %v3120 = vpop.f32.mrb[0].mxu0
      %v3121 = vadd.f32 0.0, %v3120
      %v3122 = vpop.f32.mrb[0].mxu0
      %3123 = vmatprep.mubr.bf16.mxu0 0
      %3124 = vmatmul.mubr.bf16.gmra.mrb[0].mxu0 %v659
      %v3125 = vpop.f32.mrb[0].mxu0
      %v3126 = vadd.f32 0.0, %v3125
      %v3127 = vpop.f32.mrb[0].mxu0
      %v3128 = vpop.f32.mrb[0].mxu0
      %v3129 = vadd.f32 0.0, %v3128
      %v3130 = vpop.f32.mrb[0].mxu0
      %3131 = vmatprep.mubr.bf16.mxu0 0
      %3132 = vmatmul.mubr.bf16.gmra.mrb[0].mxu0 %v660
      %v3133 = vpop.f32.mrb[0].mxu0
      %v3134 = vadd.f32 0.0, %v3133
      %v3135 = vpop.f32.mrb[0].mxu0
      %v3136 = vpop.f32.mrb[0].mxu0
      %v3137 = vadd.f32 0.0, %v3136
      %v3138 = vpop.f32.mrb[0].mxu0
      %3139 = vmatprep.mubr.bf16.mxu0 0
      %3140 = vmatmul.mubr.bf16.gmra.mrb[0].mxu0 %v661
      %v3141 = vpop.f32.mrb[0].mxu0
      %v3142 = vadd.f32 0.0, %v3141
      %v3143 = vpop.f32.mrb[0].mxu0
      %v3144 = vpop.f32.mrb[0].mxu0
      %v3145 = vadd.f32 0.0, %v3144
      %v3146 = vpop.f32.mrb[0].mxu0
      %3147 = vmatprep.mubr.bf16.mxu0 0
      %3148 = vmatmul.mubr.bf16.gmra.mrb[0].mxu0 %v662
      %v3149 = vpop.f32.mrb[0].mxu0
      %v3150 = vadd.f32 0.0, %v3149
      %v3151 = vpop.f32.mrb[0].mxu0
      %v3152 = vpop.f32.mrb[0].mxu0
      %v3153 = vadd.f32 0.0, %v3152
      %v3154 = vpop.f32.mrb[0].mxu0
      %3155 = vmatprep.mubr.bf16.mxu0 0
      %3156 = vmatmul.mubr.bf16.gmra.mrb[0].mxu0 %v663
      %v3157 = vpop.f32.mrb[0].mxu0
      %v3158 = vadd.f32 0.0, %v3157
      %v3159 = vpop.f32.mrb[0].mxu0
      %v3160 = vpop.f32.mrb[0].mxu0
      %v3161 = vadd.f32 0.0, %v3160
      %v3162 = vpop.f32.mrb[0].mxu0
      %3163 = vmatprep.mubr.bf16.mxu0 0
      %3164 = vmatmul.mubr.bf16.gmra.mrb[0].mxu0 %v664
      %v3165 = vpop.f32.mrb[0].mxu0
      %v3166 = vadd.f32 0.0, %v3165
      %v3167 = vpop.f32.mrb[0].mxu0
      %v3168 = vpop.f32.mrb[0].mxu0
      %v3169 = vadd.f32 0.0, %v3168
      %v3170 = vpop.f32.mrb[0].mxu0
      %3171 = vmatprep.mubr.bf16.mxu0 0
      %3172 = vmatmul.mubr.bf16.gmra.mrb[0].mxu0 %v665
      %v3173 = vpop.f32.mrb[0].mxu0
      %v3174 = vadd.f32 0.0, %v3173
      %v3175 = vpop.f32.mrb[0].mxu0
      %v3176 = vpop.f32.mrb[0].mxu0
      %v3177 = vadd.f32 0.0, %v3176
      %v3178 = vpop.f32.mrb[0].mxu0
      %3179 = vmatprep.mubr.bf16.mxu0 0
      %3180 = vmatmul.mubr.bf16.gmra.mrb[0].mxu0 %v666
      %v3181 = vpop.f32.mrb[0].mxu0
      %v3182 = vadd.f32 0.0, %v3181
      %v3183 = vpop.f32.mrb[0].mxu0
      %v3184 = vpop.f32.mrb[0].mxu0
      %v3185 = vadd.f32 0.0, %v3184
      %v3186 = vpop.f32.mrb[0].mxu0
      %3187 = vmatprep.mubr.bf16.mxu0 0
      %3188 = vmatmul.mubr.bf16.gmra.mrb[0].mxu0 %v667
      %v3189 = vpop.f32.mrb[0].mxu0
      %v3190 = vadd.f32 0.0, %v3189
      %v3191 = vpop.f32.mrb[0].mxu0
      %v3192 = vpop.f32.mrb[0].mxu0
      %v3193 = vadd.f32 0.0, %v3192
      %v3194 = vpop.f32.mrb[0].mxu0
      %3195 = vmatprep.mubr.bf16.mxu0 0
      %3196 = vmatmul.mubr.bf16.gmra.mrb[0].mxu0 %v668
      %v3197 = vpop.f32.mrb[0].mxu0
      %v3198 = vadd.f32 0.0, %v3197
      %v3199 = vpop.f32.mrb[0].mxu0
      %v3200 = vpop.f32.mrb[0].mxu0
      %v3201 = vadd.f32 0.0, %v3200
      %v3202 = vpop.f32.mrb[0].mxu0
      %3203 = vmatprep.mubr.bf16.mxu0 0
      %3204 = vmatmul.mubr.bf16.gmra.mrb[0].mxu0 %v669
      %v3205 = vpop.f32.mrb[0].mxu0
      %v3206 = vadd.f32 0.0, %v3205
      %v3207 = vpop.f32.mrb[0].mxu0
      %v3208 = vpop.f32.mrb[0].mxu0
      %v3209 = vadd.f32 0.0, %v3208
      %v3210 = vpop.f32.mrb[0].mxu0
      %3211 = vmatprep.mubr.bf16.mxu0 0
      %3212 = vmatmul.mubr.bf16.gmra.mrb[0].mxu0 0
      %v3213 = vpop.f32.mrb[0].mxu0
      %v3214 = vadd.f32 0.0, %v3213
      %v3215 = vpop.f32.mrb[0].mxu0
      %v3216 = vpop.f32.mrb[0].mxu0
      %v3217 = vadd.f32 0.0, %v3216
      %v3218 = vpop.f32.mrb[0].mxu0
      %3219 = vdwg.mxu0
      %v3220 = vadd.f32 %v2963, %v3094
      %v3221 = vadd.f32 %v2964, %v3097
      %v3222 = vadd.f32 %v2965, %v3102
      %v3223 = vadd.f32 %v2966, %v3105
      %v3224 = vadd.f32 %v2967, %v3110
      %v3225 = vadd.f32 %v2968, %v3113
      %v3226 = vadd.f32 %v2969, %v3118
      %v3227 = vadd.f32 %v2970, %v3121
      %v3228 = vadd.f32 %v2971, %v3126
      %v3229 = vadd.f32 %v2972, %v3129
      %v3230 = vadd.f32 %v2973, %v3134
      %v3231 = vadd.f32 %v2974, %v3137
      %v3232 = vadd.f32 %v2975, %v3142
      %v3233 = vadd.f32 %v2976, %v3145
      %v3234 = vadd.f32 %v2977, %v3150
      %v3235 = vadd.f32 %v2978, %v3153
      %v3236 = vadd.f32 %v2979, %v3158
      %v3237 = vadd.f32 %v2980, %v3161
      %v3238 = vadd.f32 %v2981, %v3166
      %v3239 = vadd.f32 %v2982, %v3169
      %v3240 = vadd.f32 %v2983, %v3174
      %v3241 = vadd.f32 %v2984, %v3177
      %v3242 = vadd.f32 %v2985, %v3182
      %v3243 = vadd.f32 %v2986, %v3185
      %v3244 = vadd.f32 %v2987, %v3190
      %v3245 = vadd.f32 %v2988, %v3193
      %v3246 = vadd.f32 %v2989, %v3198
      %v3247 = vadd.f32 %v2990, %v3201
      %v3248 = vadd.f32 %v2991, %v3206
      %v3249 = vadd.f32 %v2992, %v3209
      %v3250 = vadd.f32 %v2993, %v3214
      %v3251 = vadd.f32 %v2994, %v3217
      %3252 = vst [vmem:[#allocation2] sm:$0xff] %v3220
      %3253 = vst [vmem:[#allocation2 + $0x8] sm:$0xff] %v3221
      %3254 = vst [vmem:[#allocation2 + $0x10] sm:$0xff] %v3222
      %3255 = vst [vmem:[#allocation2 + $0x18] sm:$0xff] %v3223
      %3256 = vst [vmem:[#allocation2 + $0x20] sm:$0xff] %v3224
      %3257 = vst [vmem:[#allocation2 + $0x28] sm:$0xff] %v3225
      %3258 = vst [vmem:[#allocation2 + $0x30] sm:$0xff] %v3226
      %3259 = vst [vmem:[#allocation2 + $0x38] sm:$0xff] %v3227
      %3260 = vst [vmem:[#allocation2 + $0x40] sm:$0xff] %v3228
      %3261 = vst [vmem:[#allocation2 + $0x48] sm:$0xff] %v3229
      %3262 = vst [vmem:[#allocation2 + $0x50] sm:$0xff] %v3230
      %3263 = vst [vmem:[#allocation2 + $0x58] sm:$0xff] %v3231
      %3264 = vst [vmem:[#allocation2 + $0x60] sm:$0xff] %v3232
      %3265 = vst [vmem:[#allocation2 + $0x68] sm:$0xff] %v3233
      %3266 = vst [vmem:[#allocation2 + $0x70] sm:$0xff] %v3234
      %3267 = vst [vmem:[#allocation2 + $0x78] sm:$0xff] %v3235
      %3268 = vst [vmem:[#allocation2 + $0x80] sm:$0xff] %v3236
      %3269 = vst [vmem:[#allocation2 + $0x88] sm:$0xff] %v3237
      %3270 = vst [vmem:[#allocation2 + $0x90] sm:$0xff] %v3238
      %3271 = vst [vmem:[#allocation2 + $0x98] sm:$0xff] %v3239
      %3272 = vst [vmem:[#allocation2 + $0xa0] sm:$0xff] %v3240
      %3273 = vst [vmem:[#allocation2 + $0xa8] sm:$0xff] %v3241
      %3274 = vst [vmem:[#allocation2 + $0xb0] sm:$0xff] %v3242
      %3275 = vst [vmem:[#allocation2 + $0xb8] sm:$0xff] %v3243
      %3276 = vst [vmem:[#allocation2 + $0xc0] sm:$0xff] %v3244
      %3277 = vst [vmem:[#allocation2 + $0xc8] sm:$0xff] %v3245
      %3278 = vst [vmem:[#allocation2 + $0xd0] sm:$0xff] %v3246
      %3279 = vst [vmem:[#allocation2 + $0xd8] sm:$0xff] %v3247
      %3280 = vst [vmem:[#allocation2 + $0xe0] sm:$0xff] %v3248
      %3281 = vst [vmem:[#allocation2 + $0xe8] sm:$0xff] %v3249
      %3282 = vst [vmem:[#allocation2 + $0xf0] sm:$0xff] %v3250
      %3283 = vst [vmem:[#allocation2 + $0xf8] sm:$0xff] %v3251
      %v3284 = vld [vmem:[#allocation2] sm:$0xff]
      %v3285 = vld [vmem:[#allocation2 + $0x8] sm:$0xff]
      %v3286 = vld [vmem:[#allocation2 + $0x10] sm:$0xff]
      %v3287 = vld [vmem:[#allocation2 + $0x18] sm:$0xff]
      %v3288 = vld [vmem:[#allocation2 + $0x20] sm:$0xff]
      %v3289 = vld [vmem:[#allocation2 + $0x28] sm:$0xff]
      %v3290 = vld [vmem:[#allocation2 + $0x30] sm:$0xff]
      %v3291 = vld [vmem:[#allocation2 + $0x38] sm:$0xff]
      %v3292 = vld [vmem:[#allocation2 + $0x40] sm:$0xff]
      %v3293 = vld [vmem:[#allocation2 + $0x48] sm:$0xff]
      %v3294 = vld [vmem:[#allocation2 + $0x50] sm:$0xff]
      %v3295 = vld [vmem:[#allocation2 + $0x58] sm:$0xff]
      %v3296 = vld [vmem:[#allocation2 + $0x60] sm:$0xff]
      %v3297 = vld [vmem:[#allocation2 + $0x68] sm:$0xff]
      %v3298 = vld [vmem:[#allocation2 + $0x70] sm:$0xff]
      %v3299 = vld [vmem:[#allocation2 + $0x78] sm:$0xff]
      %v3300 = vld [vmem:[#allocation2 + $0x80] sm:$0xff]
      %v3301 = vld [vmem:[#allocation2 + $0x88] sm:$0xff]
      %v3302 = vld [vmem:[#allocation2 + $0x90] sm:$0xff]
      %v3303 = vld [vmem:[#allocation2 + $0x98] sm:$0xff]
      %v3304 = vld [vmem:[#allocation2 + $0xa0] sm:$0xff]
      %v3305 = vld [vmem:[#allocation2 + $0xa8] sm:$0xff]
      %v3306 = vld [vmem:[#allocation2 + $0xb0] sm:$0xff]
      %v3307 = vld [vmem:[#allocation2 + $0xb8] sm:$0xff]
      %v3308 = vld [vmem:[#allocation2 + $0xc0] sm:$0xff]
      %v3309 = vld [vmem:[#allocation2 + $0xc8] sm:$0xff]
      %v3310 = vld [vmem:[#allocation2 + $0xd0] sm:$0xff]
      %v3311 = vld [vmem:[#allocation2 + $0xd8] sm:$0xff]
      %v3312 = vld [vmem:[#allocation2 + $0xe0] sm:$0xff]
      %v3313 = vld [vmem:[#allocation2 + $0xe8] sm:$0xff]
      %v3314 = vld [vmem:[#allocation2 + $0xf0] sm:$0xff]
      %v3315 = vld [vmem:[#allocation2 + $0xf8] sm:$0xff]
      %v3316 = vld [vmem:[%s3 + $0x1c0] sm:$0xf]
      %v3317 = vld [vmem:[%s3 + $0x1c4] sm:$0xf]
      %v3318 = vld [vmem:[%s3 + $0x1c8] sm:$0xf]
      %v3319 = vld [vmem:[%s3 + $0x1cc] sm:$0xf]
      %v3320 = vld [vmem:[%s3 + $0x1d0] sm:$0xf]
      %v3321 = vld [vmem:[%s3 + $0x1d4] sm:$0xf]
      %v3322 = vld [vmem:[%s3 + $0x1d8] sm:$0xf]
      %v3323 = vld [vmem:[%s3 + $0x1dc] sm:$0xf]
      %v3324 = vld [vmem:[%s3 + $0x1e0] sm:$0xf]
      %v3325 = vld [vmem:[%s3 + $0x1e4] sm:$0xf]
      %v3326 = vld [vmem:[%s3 + $0x1e8] sm:$0xf]
      %v3327 = vld [vmem:[%s3 + $0x1ec] sm:$0xf]
      %v3328 = vld [vmem:[%s3 + $0x1f0] sm:$0xf]
      %v3329 = vld [vmem:[%s3 + $0x1f4] sm:$0xf]
      %v3330 = vld [vmem:[%s3 + $0x1f8] sm:$0xf]
      %v3331 = vld [vmem:[%s3 + $0x1fc] sm:$0xf]
      %v3348 = vunpack.c.l.b16 %v3316
      %v3349 = vunpack.c.l.b16 %v3317
      %v3350 = vunpack.c.l.b16 %v3318
      %v3351 = vunpack.c.l.b16 %v3319
      %v3352 = vunpack.c.l.b16 %v3320
      %v3353 = vunpack.c.l.b16 %v3321
      %v3354 = vunpack.c.l.b16 %v3322
      %v3355 = vunpack.c.l.b16 %v3323
      %v3356 = vunpack.c.l.b16 %v3324
      %v3357 = vunpack.c.l.b16 %v3325
      %v3358 = vunpack.c.l.b16 %v3326
      %v3359 = vunpack.c.l.b16 %v3327
      %v3360 = vunpack.c.l.b16 %v3328
      %v3361 = vunpack.c.l.b16 %v3329
      %v3362 = vunpack.c.l.b16 %v3330
      %v3363 = vunpack.c.l.b16 %v3331
      %v3364 = vpack.c.b16 %v3349, %v3348
      %v3365 = vpack.c.b16 %v3351, %v3350
      %v3366 = vpack.c.b16 %v3353, %v3352
      %v3367 = vpack.c.b16 %v3355, %v3354
      %v3368 = vpack.c.b16 %v3357, %v3356
      %v3369 = vpack.c.b16 %v3359, %v3358
      %v3370 = vpack.c.b16 %v3361, %v3360
      %v3371 = vpack.c.b16 %v3363, %v3362
      %3380 = vmatprep.subr.bf16.mxu0 0
      %3381 = vmatpush1.bf16.msra.mxu0 %v3364
      %3382 = vmatprep.subr.bf16.mxu0 0
      %3383 = vmatpush1.bf16.msra.mxu0 %v3365
      %3384 = vmatprep.subr.bf16.mxu0 0
      %3385 = vmatpush1.bf16.msra.mxu0 %v3366
      %3386 = vmatprep.subr.bf16.mxu0 0
      %3387 = vmatpush1.bf16.msra.mxu0 %v3367
      %3388 = vmatprep.subr.bf16.mxu0 0
      %3389 = vmatpush1.bf16.msra.mxu0 %v3368
      %3390 = vmatprep.subr.bf16.mxu0 0
      %3391 = vmatpush1.bf16.msra.mxu0 %v3369
      %3392 = vmatprep.subr.bf16.mxu0 0
      %3393 = vmatpush1.bf16.msra.mxu0 %v3370
      %3394 = vmatprep.subr.bf16.mxu0 0
      %3395 = vmatpush1.bf16.msra.mxu0 %v3371
      %3396 = vmatprep.subr.bf16.mxu0 0
      %3397 = vmatpush1.bf16.msra.mxu0 0
      %3398 = vmatprep.subr.bf16.mxu0 0
      %3399 = vmatpush1.bf16.msra.mxu0 0
      %3400 = vmatprep.subr.bf16.mxu0 0
      %3401 = vmatpush1.bf16.msra.mxu0 0
      %3402 = vmatprep.subr.bf16.mxu0 0
      %3403 = vmatpush1.bf16.msra.mxu0 0
      %3404 = vmatprep.subr.bf16.mxu0 0
      %3405 = vmatpush1.bf16.msra.mxu0 0
      %3406 = vmatprep.subr.bf16.mxu0 0
      %3407 = vmatpush1.bf16.msra.mxu0 0
      %3408 = vmatprep.subr.bf16.mxu0 0
      %3409 = vmatpush1.bf16.msra.mxu0 0
      %3410 = vmatprep.subr.bf16.mxu0 0
      %3411 = vmatpush1.bf16.msra.mxu0 0
      %3412 = vmatprep.mubr.bf16.mxu0 0
      %3413 = vmatmul.mubr.bf16.gmra.mrb[0].mxu0 %v1071
      %v3414 = vpop.f32.mrb[0].mxu0
      %v3415 = vadd.f32 0.0, %v3414
      %v3416 = vpop.f32.mrb[0].mxu0
      %v3417 = vpop.f32.mrb[0].mxu0
      %v3418 = vadd.f32 0.0, %v3417
      %v3419 = vpop.f32.mrb[0].mxu0
      %3420 = vmatprep.mubr.bf16.mxu0 0
      %3421 = vmatmul.mubr.bf16.gmra.mrb[0].mxu0 %v1083
      %v3422 = vpop.f32.mrb[0].mxu0
      %v3423 = vadd.f32 0.0, %v3422
      %v3424 = vpop.f32.mrb[0].mxu0
      %v3425 = vpop.f32.mrb[0].mxu0
      %v3426 = vadd.f32 0.0, %v3425
      %v3427 = vpop.f32.mrb[0].mxu0
      %3428 = vmatprep.mubr.bf16.mxu0 0
      %3429 = vmatmul.mubr.bf16.gmra.mrb[0].mxu0 %v1095
      %v3430 = vpop.f32.mrb[0].mxu0
      %v3431 = vadd.f32 0.0, %v3430
      %v3432 = vpop.f32.mrb[0].mxu0
      %v3433 = vpop.f32.mrb[0].mxu0
      %v3434 = vadd.f32 0.0, %v3433
      %v3435 = vpop.f32.mrb[0].mxu0
      %3436 = vmatprep.mubr.bf16.mxu0 0
      %3437 = vmatmul.mubr.bf16.gmra.mrb[0].mxu0 %v1107
      %v3438 = vpop.f32.mrb[0].mxu0
      %v3439 = vadd.f32 0.0, %v3438
      %v3440 = vpop.f32.mrb[0].mxu0
      %v3441 = vpop.f32.mrb[0].mxu0
      %v3442 = vadd.f32 0.0, %v3441
      %v3443 = vpop.f32.mrb[0].mxu0
      %3444 = vmatprep.mubr.bf16.mxu0 0
      %3445 = vmatmul.mubr.bf16.gmra.mrb[0].mxu0 %v1119
      %v3446 = vpop.f32.mrb[0].mxu0
      %v3447 = vadd.f32 0.0, %v3446
      %v3448 = vpop.f32.mrb[0].mxu0
      %v3449 = vpop.f32.mrb[0].mxu0
      %v3450 = vadd.f32 0.0, %v3449
      %v3451 = vpop.f32.mrb[0].mxu0
      %3452 = vmatprep.mubr.bf16.mxu0 0
      %3453 = vmatmul.mubr.bf16.gmra.mrb[0].mxu0 %v1131
      %v3454 = vpop.f32.mrb[0].mxu0
      %v3455 = vadd.f32 0.0, %v3454
      %v3456 = vpop.f32.mrb[0].mxu0
      %v3457 = vpop.f32.mrb[0].mxu0
      %v3458 = vadd.f32 0.0, %v3457
      %v3459 = vpop.f32.mrb[0].mxu0
      %3460 = vmatprep.mubr.bf16.mxu0 0
      %3461 = vmatmul.mubr.bf16.gmra.mrb[0].mxu0 %v1143
      %v3462 = vpop.f32.mrb[0].mxu0
      %v3463 = vadd.f32 0.0, %v3462
      %v3464 = vpop.f32.mrb[0].mxu0
      %v3465 = vpop.f32.mrb[0].mxu0
      %v3466 = vadd.f32 0.0, %v3465
      %v3467 = vpop.f32.mrb[0].mxu0
      %3468 = vmatprep.mubr.bf16.mxu0 0
      %3469 = vmatmul.mubr.bf16.gmra.mrb[0].mxu0 %v1155
      %v3470 = vpop.f32.mrb[0].mxu0
      %v3471 = vadd.f32 0.0, %v3470
      %v3472 = vpop.f32.mrb[0].mxu0
      %v3473 = vpop.f32.mrb[0].mxu0
      %v3474 = vadd.f32 0.0, %v3473
      %v3475 = vpop.f32.mrb[0].mxu0
      %3476 = vmatprep.mubr.bf16.mxu0 0
      %3477 = vmatmul.mubr.bf16.gmra.mrb[0].mxu0 %v1167
      %v3478 = vpop.f32.mrb[0].mxu0
      %v3479 = vadd.f32 0.0, %v3478
      %v3480 = vpop.f32.mrb[0].mxu0
      %v3481 = vpop.f32.mrb[0].mxu0
      %v3482 = vadd.f32 0.0, %v3481
      %v3483 = vpop.f32.mrb[0].mxu0
      %3484 = vmatprep.mubr.bf16.mxu0 0
      %3485 = vmatmul.mubr.bf16.gmra.mrb[0].mxu0 %v1179
      %v3486 = vpop.f32.mrb[0].mxu0
      %v3487 = vadd.f32 0.0, %v3486
      %v3488 = vpop.f32.mrb[0].mxu0
      %v3489 = vpop.f32.mrb[0].mxu0
      %v3490 = vadd.f32 0.0, %v3489
      %v3491 = vpop.f32.mrb[0].mxu0
      %3492 = vmatprep.mubr.bf16.mxu0 0
      %3493 = vmatmul.mubr.bf16.gmra.mrb[0].mxu0 %v1191
      %v3494 = vpop.f32.mrb[0].mxu0
      %v3495 = vadd.f32 0.0, %v3494
      %v3496 = vpop.f32.mrb[0].mxu0
      %v3497 = vpop.f32.mrb[0].mxu0
      %v3498 = vadd.f32 0.0, %v3497
      %v3499 = vpop.f32.mrb[0].mxu0
      %3500 = vmatprep.mubr.bf16.mxu0 0
      %3501 = vmatmul.mubr.bf16.gmra.mrb[0].mxu0 %v1203
      %v3502 = vpop.f32.mrb[0].mxu0
      %v3503 = vadd.f32 0.0, %v3502
      %v3504 = vpop.f32.mrb[0].mxu0
      %v3505 = vpop.f32.mrb[0].mxu0
      %v3506 = vadd.f32 0.0, %v3505
      %v3507 = vpop.f32.mrb[0].mxu0
      %3508 = vmatprep.mubr.bf16.mxu0 0
      %3509 = vmatmul.mubr.bf16.gmra.mrb[0].mxu0 %v1215
      %v3510 = vpop.f32.mrb[0].mxu0
      %v3511 = vadd.f32 0.0, %v3510
      %v3512 = vpop.f32.mrb[0].mxu0
      %v3513 = vpop.f32.mrb[0].mxu0
      %v3514 = vadd.f32 0.0, %v3513
      %v3515 = vpop.f32.mrb[0].mxu0
      %3516 = vmatprep.mubr.bf16.mxu0 0
      %3517 = vmatmul.mubr.bf16.gmra.mrb[0].mxu0 %v1227
      %v3518 = vpop.f32.mrb[0].mxu0
      %v3519 = vadd.f32 0.0, %v3518
      %v3520 = vpop.f32.mrb[0].mxu0
      %v3521 = vpop.f32.mrb[0].mxu0
      %v3522 = vadd.f32 0.0, %v3521
      %v3523 = vpop.f32.mrb[0].mxu0
      %3524 = vmatprep.mubr.bf16.mxu0 0
      %3525 = vmatmul.mubr.bf16.gmra.mrb[0].mxu0 %v2313
      %v3526 = vpop.f32.mrb[0].mxu0
      %v3527 = vadd.f32 0.0, %v3526
      %v3528 = vpop.f32.mrb[0].mxu0
      %v3529 = vpop.f32.mrb[0].mxu0
      %v3530 = vadd.f32 0.0, %v3529
      %v3531 = vpop.f32.mrb[0].mxu0
      %3532 = vmatprep.mubr.bf16.mxu0 0
      %3533 = vmatmul.mubr.bf16.gmra.mrb[0].mxu0 %v1047
      %v3534 = vpop.f32.mrb[0].mxu0
      %v3535 = vadd.f32 0.0, %v3534
      %v3536 = vpop.f32.mrb[0].mxu0
      %v3537 = vpop.f32.mrb[0].mxu0
      %v3538 = vadd.f32 0.0, %v3537
      %v3539 = vpop.f32.mrb[0].mxu0
      %3540 = vdwg.mxu0
      %v3541 = vadd.f32 %v3284, %v3415
      %v3542 = vadd.f32 %v3285, %v3418
      %v3543 = vadd.f32 %v3286, %v3423
      %v3544 = vadd.f32 %v3287, %v3426
      %v3545 = vadd.f32 %v3288, %v3431
      %v3546 = vadd.f32 %v3289, %v3434
      %v3547 = vadd.f32 %v3290, %v3439
      %v3548 = vadd.f32 %v3291, %v3442
      %v3549 = vadd.f32 %v3292, %v3447
      %v3550 = vadd.f32 %v3293, %v3450
      %v3551 = vadd.f32 %v3294, %v3455
      %v3552 = vadd.f32 %v3295, %v3458
      %v3553 = vadd.f32 %v3296, %v3463
      %v3554 = vadd.f32 %v3297, %v3466
      %v3555 = vadd.f32 %v3298, %v3471
      %v3556 = vadd.f32 %v3299, %v3474
      %v3557 = vadd.f32 %v3300, %v3479
      %v3558 = vadd.f32 %v3301, %v3482
      %v3559 = vadd.f32 %v3302, %v3487
      %v3560 = vadd.f32 %v3303, %v3490
      %v3561 = vadd.f32 %v3304, %v3495
      %v3562 = vadd.f32 %v3305, %v3498
      %v3563 = vadd.f32 %v3306, %v3503
      %v3564 = vadd.f32 %v3307, %v3506
      %v3565 = vadd.f32 %v3308, %v3511
      %v3566 = vadd.f32 %v3309, %v3514
      %v3567 = vadd.f32 %v3310, %v3519
      %v3568 = vadd.f32 %v3311, %v3522
      %v3569 = vadd.f32 %v3312, %v3527
      %v3570 = vadd.f32 %v3313, %v3530
      %v3571 = vadd.f32 %v3314, %v3535
      %v3572 = vadd.f32 %v3315, %v3538
      %3573 = vst [vmem:[#allocation2] sm:$0xff] %v3541
      %3574 = vst [vmem:[#allocation2 + $0x8] sm:$0xff] %v3542
      %3575 = vst [vmem:[#allocation2 + $0x10] sm:$0xff] %v3543
      %3576 = vst [vmem:[#allocation2 + $0x18] sm:$0xff] %v3544
      %3577 = vst [vmem:[#allocation2 + $0x20] sm:$0xff] %v3545
      %3578 = vst [vmem:[#allocation2 + $0x28] sm:$0xff] %v3546
      %3579 = vst [vmem:[#allocation2 + $0x30] sm:$0xff] %v3547
      %3580 = vst [vmem:[#allocation2 + $0x38] sm:$0xff] %v3548
      %3581 = vst [vmem:[#allocation2 + $0x40] sm:$0xff] %v3549
      %3582 = vst [vmem:[#allocation2 + $0x48] sm:$0xff] %v3550
      %3583 = vst [vmem:[#allocation2 + $0x50] sm:$0xff] %v3551
      %3584 = vst [vmem:[#allocation2 + $0x58] sm:$0xff] %v3552
      %3585 = vst [vmem:[#allocation2 + $0x60] sm:$0xff] %v3553
      %3586 = vst [vmem:[#allocation2 + $0x68] sm:$0xff] %v3554
      %3587 = vst [vmem:[#allocation2 + $0x70] sm:$0xff] %v3555
      %3588 = vst [vmem:[#allocation2 + $0x78] sm:$0xff] %v3556
      %3589 = vst [vmem:[#allocation2 + $0x80] sm:$0xff] %v3557
      %3590 = vst [vmem:[#allocation2 + $0x88] sm:$0xff] %v3558
      %3591 = vst [vmem:[#allocation2 + $0x90] sm:$0xff] %v3559
      %3592 = vst [vmem:[#allocation2 + $0x98] sm:$0xff] %v3560
      %3593 = vst [vmem:[#allocation2 + $0xa0] sm:$0xff] %v3561
      %3594 = vst [vmem:[#allocation2 + $0xa8] sm:$0xff] %v3562
      %3595 = vst [vmem:[#allocation2 + $0xb0] sm:$0xff] %v3563
      %3596 = vst [vmem:[#allocation2 + $0xb8] sm:$0xff] %v3564
      %3597 = vst [vmem:[#allocation2 + $0xc0] sm:$0xff] %v3565
      %3598 = vst [vmem:[#allocation2 + $0xc8] sm:$0xff] %v3566
      %3599 = vst [vmem:[#allocation2 + $0xd0] sm:$0xff] %v3567
      %3600 = vst [vmem:[#allocation2 + $0xd8] sm:$0xff] %v3568
      %3601 = vst [vmem:[#allocation2 + $0xe0] sm:$0xff] %v3569
      %3602 = vst [vmem:[#allocation2 + $0xe8] sm:$0xff] %v3570
      %3603 = vst [vmem:[#allocation2 + $0xf0] sm:$0xff] %v3571
      %3604 = vst [vmem:[#allocation2 + $0xf8] sm:$0xff] %v3572
      %v3605 = vld [vmem:[#allocation2] sm:$0xff]
      %v3606 = vld [vmem:[#allocation2 + $0x8] sm:$0xff]
      %v3607 = vld [vmem:[#allocation2 + $0x10] sm:$0xff]
      %v3608 = vld [vmem:[#allocation2 + $0x18] sm:$0xff]
      %v3609 = vld [vmem:[#allocation2 + $0x20] sm:$0xff]
      %v3610 = vld [vmem:[#allocation2 + $0x28] sm:$0xff]
      %v3611 = vld [vmem:[#allocation2 + $0x30] sm:$0xff]
      %v3612 = vld [vmem:[#allocation2 + $0x38] sm:$0xff]
      %v3613 = vld [vmem:[#allocation2 + $0x40] sm:$0xff]
      %v3614 = vld [vmem:[#allocation2 + $0x48] sm:$0xff]
      %v3615 = vld [vmem:[#allocation2 + $0x50] sm:$0xff]
      %v3616 = vld [vmem:[#allocation2 + $0x58] sm:$0xff]
      %v3617 = vld [vmem:[#allocation2 + $0x60] sm:$0xff]
      %v3618 = vld [vmem:[#allocation2 + $0x68] sm:$0xff]
      %v3619 = vld [vmem:[#allocation2 + $0x70] sm:$0xff]
      %v3620 = vld [vmem:[#allocation2 + $0x78] sm:$0xff]
      %v3621 = vld [vmem:[#allocation2 + $0x80] sm:$0xff]
      %v3622 = vld [vmem:[#allocation2 + $0x88] sm:$0xff]
      %v3623 = vld [vmem:[#allocation2 + $0x90] sm:$0xff]
      %v3624 = vld [vmem:[#allocation2 + $0x98] sm:$0xff]
      %v3625 = vld [vmem:[#allocation2 + $0xa0] sm:$0xff]
      %v3626 = vld [vmem:[#allocation2 + $0xa8] sm:$0xff]
      %v3627 = vld [vmem:[#allocation2 + $0xb0] sm:$0xff]
      %v3628 = vld [vmem:[#allocation2 + $0xb8] sm:$0xff]
      %v3629 = vld [vmem:[#allocation2 + $0xc0] sm:$0xff]
      %v3630 = vld [vmem:[#allocation2 + $0xc8] sm:$0xff]
      %v3631 = vld [vmem:[#allocation2 + $0xd0] sm:$0xff]
      %v3632 = vld [vmem:[#allocation2 + $0xd8] sm:$0xff]
      %v3633 = vld [vmem:[#allocation2 + $0xe0] sm:$0xff]
      %v3634 = vld [vmem:[#allocation2 + $0xe8] sm:$0xff]
      %v3635 = vld [vmem:[#allocation2 + $0xf0] sm:$0xff]
      %v3636 = vld [vmem:[#allocation2 + $0xf8] sm:$0xff]
      %v3637 = vld [vmem:[%s3 + $0x200] sm:$0xf]
      %v3638 = vld [vmem:[%s3 + $0x204] sm:$0xf]
      %v3639 = vld [vmem:[%s3 + $0x208] sm:$0xf]
      %v3640 = vld [vmem:[%s3 + $0x20c] sm:$0xf]
      %v3641 = vld [vmem:[%s3 + $0x210] sm:$0xf]
      %v3642 = vld [vmem:[%s3 + $0x214] sm:$0xf]
      %v3643 = vld [vmem:[%s3 + $0x218] sm:$0xf]
      %v3644 = vld [vmem:[%s3 + $0x21c] sm:$0xf]
      %v3645 = vld [vmem:[%s3 + $0x220] sm:$0xf]
      %v3646 = vld [vmem:[%s3 + $0x224] sm:$0xf]
      %v3647 = vld [vmem:[%s3 + $0x228] sm:$0xf]
      %v3648 = vld [vmem:[%s3 + $0x22c] sm:$0xf]
      %v3649 = vld [vmem:[%s3 + $0x230] sm:$0xf]
      %v3650 = vld [vmem:[%s3 + $0x234] sm:$0xf]
      %v3651 = vld [vmem:[%s3 + $0x238] sm:$0xf]
      %v3652 = vld [vmem:[%s3 + $0x23c] sm:$0xf]
      %v3669 = vunpack.c.l.b16 %v3637
      %v3670 = vunpack.c.l.b16 %v3638
      %v3671 = vunpack.c.l.b16 %v3639
      %v3672 = vunpack.c.l.b16 %v3640
      %v3673 = vunpack.c.l.b16 %v3641
      %v3674 = vunpack.c.l.b16 %v3642
      %v3675 = vunpack.c.l.b16 %v3643
      %v3676 = vunpack.c.l.b16 %v3644
      %v3677 = vunpack.c.l.b16 %v3645
      %v3678 = vunpack.c.l.b16 %v3646
      %v3679 = vunpack.c.l.b16 %v3647
      %v3680 = vunpack.c.l.b16 %v3648
      %v3681 = vunpack.c.l.b16 %v3649
      %v3682 = vunpack.c.l.b16 %v3650
      %v3683 = vunpack.c.l.b16 %v3651
      %v3684 = vunpack.c.l.b16 %v3652
      %v3685 = vpack.c.b16 %v3670, %v3669
      %v3686 = vpack.c.b16 %v3672, %v3671
      %v3687 = vpack.c.b16 %v3674, %v3673
      %v3688 = vpack.c.b16 %v3676, %v3675
      %v3689 = vpack.c.b16 %v3678, %v3677
      %v3690 = vpack.c.b16 %v3680, %v3679
      %v3691 = vpack.c.b16 %v3682, %v3681
      %v3692 = vpack.c.b16 %v3684, %v3683
      %3701 = vmatprep.subr.bf16.mxu0 0
      %3702 = vmatpush1.bf16.msra.mxu0 %v3685
      %3703 = vmatprep.subr.bf16.mxu0 0
      %3704 = vmatpush1.bf16.msra.mxu0 %v3686
      %3705 = vmatprep.subr.bf16.mxu0 0
      %3706 = vmatpush1.bf16.msra.mxu0 %v3687
      %3707 = vmatprep.subr.bf16.mxu0 0
      %3708 = vmatpush1.bf16.msra.mxu0 %v3688
      %3709 = vmatprep.subr.bf16.mxu0 0
      %3710 = vmatpush1.bf16.msra.mxu0 %v3689
      %3711 = vmatprep.subr.bf16.mxu0 0
      %3712 = vmatpush1.bf16.msra.mxu0 %v3690
      %3713 = vmatprep.subr.bf16.mxu0 0
      %3714 = vmatpush1.bf16.msra.mxu0 %v3691
      %3715 = vmatprep.subr.bf16.mxu0 0
      %3716 = vmatpush1.bf16.msra.mxu0 %v3692
      %3717 = vmatprep.subr.bf16.mxu0 0
      %3718 = vmatpush1.bf16.msra.mxu0 0
      %3719 = vmatprep.subr.bf16.mxu0 0
      %3720 = vmatpush1.bf16.msra.mxu0 0
      %3721 = vmatprep.subr.bf16.mxu0 0
      %3722 = vmatpush1.bf16.msra.mxu0 0
      %3723 = vmatprep.subr.bf16.mxu0 0
      %3724 = vmatpush1.bf16.msra.mxu0 0
      %3725 = vmatprep.subr.bf16.mxu0 0
      %3726 = vmatpush1.bf16.msra.mxu0 0
      %3727 = vmatprep.subr.bf16.mxu0 0
      %3728 = vmatpush1.bf16.msra.mxu0 0
      %3729 = vmatprep.subr.bf16.mxu0 0
      %3730 = vmatpush1.bf16.msra.mxu0 0
      %3731 = vmatprep.subr.bf16.mxu0 0
      %3732 = vmatpush1.bf16.msra.mxu0 0
      %3733 = vmatprep.mubr.bf16.mxu0 0
      %3734 = vmatmul.mubr.bf16.gmra.mrb[0].mxu0 %v1604
      %v3735 = vpop.f32.mrb[0].mxu0
      %v3736 = vadd.f32 0.0, %v3735
      %v3737 = vpop.f32.mrb[0].mxu0
      %v3738 = vpop.f32.mrb[0].mxu0
      %v3739 = vadd.f32 0.0, %v3738
      %v3740 = vpop.f32.mrb[0].mxu0
      %3741 = vmatprep.mubr.bf16.mxu0 0
      %3742 = vmatmul.mubr.bf16.gmra.mrb[0].mxu0 %v1607
      %v3743 = vpop.f32.mrb[0].mxu0
      %v3744 = vadd.f32 0.0, %v3743
      %v3745 = vpop.f32.mrb[0].mxu0
      %v3746 = vpop.f32.mrb[0].mxu0
      %v3747 = vadd.f32 0.0, %v3746
      %v3748 = vpop.f32.mrb[0].mxu0
      %3749 = vmatprep.mubr.bf16.mxu0 0
      %3750 = vmatmul.mubr.bf16.gmra.mrb[0].mxu0 %v1610
      %v3751 = vpop.f32.mrb[0].mxu0
      %v3752 = vadd.f32 0.0, %v3751
      %v3753 = vpop.f32.mrb[0].mxu0
      %v3754 = vpop.f32.mrb[0].mxu0
      %v3755 = vadd.f32 0.0, %v3754
      %v3756 = vpop.f32.mrb[0].mxu0
      %3757 = vmatprep.mubr.bf16.mxu0 0
      %3758 = vmatmul.mubr.bf16.gmra.mrb[0].mxu0 %v1613
      %v3759 = vpop.f32.mrb[0].mxu0
      %v3760 = vadd.f32 0.0, %v3759
      %v3761 = vpop.f32.mrb[0].mxu0
      %v3762 = vpop.f32.mrb[0].mxu0
      %v3763 = vadd.f32 0.0, %v3762
      %v3764 = vpop.f32.mrb[0].mxu0
      %3765 = vmatprep.mubr.bf16.mxu0 0
      %3766 = vmatmul.mubr.bf16.gmra.mrb[0].mxu0 %v1616
      %v3767 = vpop.f32.mrb[0].mxu0
      %v3768 = vadd.f32 0.0, %v3767
      %v3769 = vpop.f32.mrb[0].mxu0
      %v3770 = vpop.f32.mrb[0].mxu0
      %v3771 = vadd.f32 0.0, %v3770
      %v3772 = vpop.f32.mrb[0].mxu0
      %3773 = vmatprep.mubr.bf16.mxu0 0
      %3774 = vmatmul.mubr.bf16.gmra.mrb[0].mxu0 %v1619
      %v3775 = vpop.f32.mrb[0].mxu0
      %v3776 = vadd.f32 0.0, %v3775
      %v3777 = vpop.f32.mrb[0].mxu0
      %v3778 = vpop.f32.mrb[0].mxu0
      %v3779 = vadd.f32 0.0, %v3778
      %v3780 = vpop.f32.mrb[0].mxu0
      %3781 = vmatprep.mubr.bf16.mxu0 0
      %3782 = vmatmul.mubr.bf16.gmra.mrb[0].mxu0 %v1622
      %v3783 = vpop.f32.mrb[0].mxu0
      %v3784 = vadd.f32 0.0, %v3783
      %v3785 = vpop.f32.mrb[0].mxu0
      %v3786 = vpop.f32.mrb[0].mxu0
      %v3787 = vadd.f32 0.0, %v3786
      %v3788 = vpop.f32.mrb[0].mxu0
      %3789 = vmatprep.mubr.bf16.mxu0 0
      %3790 = vmatmul.mubr.bf16.gmra.mrb[0].mxu0 %v1625
      %v3791 = vpop.f32.mrb[0].mxu0
      %v3792 = vadd.f32 0.0, %v3791
      %v3793 = vpop.f32.mrb[0].mxu0
      %v3794 = vpop.f32.mrb[0].mxu0
      %v3795 = vadd.f32 0.0, %v3794
      %v3796 = vpop.f32.mrb[0].mxu0
      %3797 = vmatprep.mubr.bf16.mxu0 0
      %3798 = vmatmul.mubr.bf16.gmra.mrb[0].mxu0 %v1628
      %v3799 = vpop.f32.mrb[0].mxu0
      %v3800 = vadd.f32 0.0, %v3799
      %v3801 = vpop.f32.mrb[0].mxu0
      %v3802 = vpop.f32.mrb[0].mxu0
      %v3803 = vadd.f32 0.0, %v3802
      %v3804 = vpop.f32.mrb[0].mxu0
      %3805 = vmatprep.mubr.bf16.mxu0 0
      %3806 = vmatmul.mubr.bf16.gmra.mrb[0].mxu0 %v1631
      %v3807 = vpop.f32.mrb[0].mxu0
      %v3808 = vadd.f32 0.0, %v3807
      %v3809 = vpop.f32.mrb[0].mxu0
      %v3810 = vpop.f32.mrb[0].mxu0
      %v3811 = vadd.f32 0.0, %v3810
      %v3812 = vpop.f32.mrb[0].mxu0
      %3813 = vmatprep.mubr.bf16.mxu0 0
      %3814 = vmatmul.mubr.bf16.gmra.mrb[0].mxu0 %v1634
      %v3815 = vpop.f32.mrb[0].mxu0
      %v3816 = vadd.f32 0.0, %v3815
      %v3817 = vpop.f32.mrb[0].mxu0
      %v3818 = vpop.f32.mrb[0].mxu0
      %v3819 = vadd.f32 0.0, %v3818
      %v3820 = vpop.f32.mrb[0].mxu0
      %3821 = vmatprep.mubr.bf16.mxu0 0
      %3822 = vmatmul.mubr.bf16.gmra.mrb[0].mxu0 %v1637
      %v3823 = vpop.f32.mrb[0].mxu0
      %v3824 = vadd.f32 0.0, %v3823
      %v3825 = vpop.f32.mrb[0].mxu0
      %v3826 = vpop.f32.mrb[0].mxu0
      %v3827 = vadd.f32 0.0, %v3826
      %v3828 = vpop.f32.mrb[0].mxu0
      %3829 = vmatprep.mubr.bf16.mxu0 0
      %3830 = vmatmul.mubr.bf16.gmra.mrb[0].mxu0 %v1640
      %v3831 = vpop.f32.mrb[0].mxu0
      %v3832 = vadd.f32 0.0, %v3831
      %v3833 = vpop.f32.mrb[0].mxu0
      %v3834 = vpop.f32.mrb[0].mxu0
      %v3835 = vadd.f32 0.0, %v3834
      %v3836 = vpop.f32.mrb[0].mxu0
      %3837 = vmatprep.mubr.bf16.mxu0 0
      %3838 = vmatmul.mubr.bf16.gmra.mrb[0].mxu0 %v1643
      %v3839 = vpop.f32.mrb[0].mxu0
      %v3840 = vadd.f32 0.0, %v3839
      %v3841 = vpop.f32.mrb[0].mxu0
      %v3842 = vpop.f32.mrb[0].mxu0
      %v3843 = vadd.f32 0.0, %v3842
      %v3844 = vpop.f32.mrb[0].mxu0
      %3845 = vmatprep.mubr.bf16.mxu0 0
      %3846 = vmatmul.mubr.bf16.gmra.mrb[0].mxu0 %v2640
      %v3847 = vpop.f32.mrb[0].mxu0
      %v3848 = vadd.f32 0.0, %v3847
      %v3849 = vpop.f32.mrb[0].mxu0
      %v3850 = vpop.f32.mrb[0].mxu0
      %v3851 = vadd.f32 0.0, %v3850
      %v3852 = vpop.f32.mrb[0].mxu0
      %3853 = vmatprep.mubr.bf16.mxu0 0
      %3854 = vmatmul.mubr.bf16.gmra.mrb[0].mxu0 %v1598
      %v3855 = vpop.f32.mrb[0].mxu0
      %v3856 = vadd.f32 0.0, %v3855
      %v3857 = vpop.f32.mrb[0].mxu0
      %v3858 = vpop.f32.mrb[0].mxu0
      %v3859 = vadd.f32 0.0, %v3858
      %v3860 = vpop.f32.mrb[0].mxu0
      %3861 = vdwg.mxu0
      %v3862 = vadd.f32 %v3605, %v3736
      %v3863 = vadd.f32 %v3606, %v3739
      %v3864 = vadd.f32 %v3607, %v3744
      %v3865 = vadd.f32 %v3608, %v3747
      %v3866 = vadd.f32 %v3609, %v3752
      %v3867 = vadd.f32 %v3610, %v3755
      %v3868 = vadd.f32 %v3611, %v3760
      %v3869 = vadd.f32 %v3612, %v3763
      %v3870 = vadd.f32 %v3613, %v3768
      %v3871 = vadd.f32 %v3614, %v3771
      %v3872 = vadd.f32 %v3615, %v3776
      %v3873 = vadd.f32 %v3616, %v3779
      %v3874 = vadd.f32 %v3617, %v3784
      %v3875 = vadd.f32 %v3618, %v3787
      %v3876 = vadd.f32 %v3619, %v3792
      %v3877 = vadd.f32 %v3620, %v3795
      %v3878 = vadd.f32 %v3621, %v3800
      %v3879 = vadd.f32 %v3622, %v3803
      %v3880 = vadd.f32 %v3623, %v3808
      %v3881 = vadd.f32 %v3624, %v3811
      %v3882 = vadd.f32 %v3625, %v3816
      %v3883 = vadd.f32 %v3626, %v3819
      %v3884 = vadd.f32 %v3627, %v3824
      %v3885 = vadd.f32 %v3628, %v3827
      %v3886 = vadd.f32 %v3629, %v3832
      %v3887 = vadd.f32 %v3630, %v3835
      %v3888 = vadd.f32 %v3631, %v3840
      %v3889 = vadd.f32 %v3632, %v3843
      %v3890 = vadd.f32 %v3633, %v3848
      %v3891 = vadd.f32 %v3634, %v3851
      %v3892 = vadd.f32 %v3635, %v3856
      %v3893 = vadd.f32 %v3636, %v3859
      %3894 = vst [vmem:[#allocation2] sm:$0xff] %v3862
      %3895 = vst [vmem:[#allocation2 + $0x8] sm:$0xff] %v3863
      %3896 = vst [vmem:[#allocation2 + $0x10] sm:$0xff] %v3864
      %3897 = vst [vmem:[#allocation2 + $0x18] sm:$0xff] %v3865
      %3898 = vst [vmem:[#allocation2 + $0x20] sm:$0xff] %v3866
      %3899 = vst [vmem:[#allocation2 + $0x28] sm:$0xff] %v3867
      %3900 = vst [vmem:[#allocation2 + $0x30] sm:$0xff] %v3868
      %3901 = vst [vmem:[#allocation2 + $0x38] sm:$0xff] %v3869
      %3902 = vst [vmem:[#allocation2 + $0x40] sm:$0xff] %v3870
      %3903 = vst [vmem:[#allocation2 + $0x48] sm:$0xff] %v3871
      %3904 = vst [vmem:[#allocation2 + $0x50] sm:$0xff] %v3872
      %3905 = vst [vmem:[#allocation2 + $0x58] sm:$0xff] %v3873
      %3906 = vst [vmem:[#allocation2 + $0x60] sm:$0xff] %v3874
      %3907 = vst [vmem:[#allocation2 + $0x68] sm:$0xff] %v3875
      %3908 = vst [vmem:[#allocation2 + $0x70] sm:$0xff] %v3876
      %3909 = vst [vmem:[#allocation2 + $0x78] sm:$0xff] %v3877
      %3910 = vst [vmem:[#allocation2 + $0x80] sm:$0xff] %v3878
      %3911 = vst [vmem:[#allocation2 + $0x88] sm:$0xff] %v3879
      %3912 = vst [vmem:[#allocation2 + $0x90] sm:$0xff] %v3880
      %3913 = vst [vmem:[#allocation2 + $0x98] sm:$0xff] %v3881
      %3914 = vst [vmem:[#allocation2 + $0xa0] sm:$0xff] %v3882
      %3915 = vst [vmem:[#allocation2 + $0xa8] sm:$0xff] %v3883
      %3916 = vst [vmem:[#allocation2 + $0xb0] sm:$0xff] %v3884
      %3917 = vst [vmem:[#allocation2 + $0xb8] sm:$0xff] %v3885
      %3918 = vst [vmem:[#allocation2 + $0xc0] sm:$0xff] %v3886
      %3919 = vst [vmem:[#allocation2 + $0xc8] sm:$0xff] %v3887
      %3920 = vst [vmem:[#allocation2 + $0xd0] sm:$0xff] %v3888
      %3921 = vst [vmem:[#allocation2 + $0xd8] sm:$0xff] %v3889
      %3922 = vst [vmem:[#allocation2 + $0xe0] sm:$0xff] %v3890
      %3923 = vst [vmem:[#allocation2 + $0xe8] sm:$0xff] %v3891
      %3924 = vst [vmem:[#allocation2 + $0xf0] sm:$0xff] %v3892
      %3925 = vst [vmem:[#allocation2 + $0xf8] sm:$0xff] %v3893
      %v3926 = vld [vmem:[#allocation2] sm:$0xff]
      %v3927 = vld [vmem:[#allocation2 + $0x8] sm:$0xff]
      %v3928 = vld [vmem:[#allocation2 + $0x10] sm:$0xff]
      %v3929 = vld [vmem:[#allocation2 + $0x18] sm:$0xff]
      %v3930 = vld [vmem:[#allocation2 + $0x20] sm:$0xff]
      %v3931 = vld [vmem:[#allocation2 + $0x28] sm:$0xff]
      %v3932 = vld [vmem:[#allocation2 + $0x30] sm:$0xff]
      %v3933 = vld [vmem:[#allocation2 + $0x38] sm:$0xff]
      %v3934 = vld [vmem:[#allocation2 + $0x40] sm:$0xff]
      %v3935 = vld [vmem:[#allocation2 + $0x48] sm:$0xff]
      %v3936 = vld [vmem:[#allocation2 + $0x50] sm:$0xff]
      %v3937 = vld [vmem:[#allocation2 + $0x58] sm:$0xff]
      %v3938 = vld [vmem:[#allocation2 + $0x60] sm:$0xff]
      %v3939 = vld [vmem:[#allocation2 + $0x68] sm:$0xff]
      %v3940 = vld [vmem:[#allocation2 + $0x70] sm:$0xff]
      %v3941 = vld [vmem:[#allocation2 + $0x78] sm:$0xff]
      %v3942 = vld [vmem:[#allocation2 + $0x80] sm:$0xff]
      %v3943 = vld [vmem:[#allocation2 + $0x88] sm:$0xff]
      %v3944 = vld [vmem:[#allocation2 + $0x90] sm:$0xff]
      %v3945 = vld [vmem:[#allocation2 + $0x98] sm:$0xff]
      %v3946 = vld [vmem:[#allocation2 + $0xa0] sm:$0xff]
      %v3947 = vld [vmem:[#allocation2 + $0xa8] sm:$0xff]
      %v3948 = vld [vmem:[#allocation2 + $0xb0] sm:$0xff]
      %v3949 = vld [vmem:[#allocation2 + $0xb8] sm:$0xff]
      %v3950 = vld [vmem:[#allocation2 + $0xc0] sm:$0xff]
      %v3951 = vld [vmem:[#allocation2 + $0xc8] sm:$0xff]
      %v3952 = vld [vmem:[#allocation2 + $0xd0] sm:$0xff]
      %v3953 = vld [vmem:[#allocation2 + $0xd8] sm:$0xff]
      %v3954 = vld [vmem:[#allocation2 + $0xe0] sm:$0xff]
      %v3955 = vld [vmem:[#allocation2 + $0xe8] sm:$0xff]
      %v3956 = vld [vmem:[#allocation2 + $0xf0] sm:$0xff]
      %v3957 = vld [vmem:[#allocation2 + $0xf8] sm:$0xff]
      %v3958 = vld [vmem:[%s4] sm:$0x1]
      %v3960 = vlaneseq
      %v3961 = vshrl.u32 %v3960, 7
      %v3962 = vsub.s32 0, %v3961
      %v3963 = vrot.slane %v3958, %v3962
      %v3965 = vmul.f32 %v3926, %v3963
      %v3966 = vmul.f32 %v3927, %v3963
      %v3967 = vmul.f32 %v3928, %v3963
      %v3968 = vmul.f32 %v3929, %v3963
      %v3969 = vmul.f32 %v3930, %v3963
      %v3970 = vmul.f32 %v3931, %v3963
      %v3971 = vmul.f32 %v3932, %v3963
      %v3972 = vmul.f32 %v3933, %v3963
      %v3973 = vmul.f32 %v3934, %v3963
      %v3974 = vmul.f32 %v3935, %v3963
      %v3975 = vmul.f32 %v3936, %v3963
      %v3976 = vmul.f32 %v3937, %v3963
      %v3977 = vmul.f32 %v3938, %v3963
      %v3978 = vmul.f32 %v3939, %v3963
      %v3979 = vmul.f32 %v3940, %v3963
      %v3980 = vmul.f32 %v3941, %v3963
      %v3981 = vmul.f32 %v3942, %v3963
      %v3982 = vmul.f32 %v3943, %v3963
      %v3983 = vmul.f32 %v3944, %v3963
      %v3984 = vmul.f32 %v3945, %v3963
      %v3985 = vmul.f32 %v3946, %v3963
      %v3986 = vmul.f32 %v3947, %v3963
      %v3987 = vmul.f32 %v3948, %v3963
      %v3988 = vmul.f32 %v3949, %v3963
      %v3989 = vmul.f32 %v3950, %v3963
      %v3990 = vmul.f32 %v3951, %v3963
      %v3991 = vmul.f32 %v3952, %v3963
      %v3992 = vmul.f32 %v3953, %v3963
      %v3993 = vmul.f32 %v3954, %v3963
      %v3994 = vmul.f32 %v3955, %v3963
      %v3995 = vmul.f32 %v3956, %v3963
      %v3996 = vmul.f32 %v3957, %v3963
      %v3997 = vld [vmem:[%s5] sm:$0x1]
      %v3999 = vlaneseq
      %v4000 = vshrl.u32 %v3999, 7
      %v4001 = vsub.s32 0, %v4000
      %v4002 = vrot.slane %v3997, %v4001
      %v4004 = vadd.f32 %v3965, %v4002
      %v4005 = vadd.f32 %v3966, %v4002
      %v4006 = vadd.f32 %v3967, %v4002
      %v4007 = vadd.f32 %v3968, %v4002
      %v4008 = vadd.f32 %v3969, %v4002
      %v4009 = vadd.f32 %v3970, %v4002
      %v4010 = vadd.f32 %v3971, %v4002
      %v4011 = vadd.f32 %v3972, %v4002
      %v4012 = vadd.f32 %v3973, %v4002
      %v4013 = vadd.f32 %v3974, %v4002
      %v4014 = vadd.f32 %v3975, %v4002
      %v4015 = vadd.f32 %v3976, %v4002
      %v4016 = vadd.f32 %v3977, %v4002
      %v4017 = vadd.f32 %v3978, %v4002
      %v4018 = vadd.f32 %v3979, %v4002
      %v4019 = vadd.f32 %v3980, %v4002
      %v4020 = vadd.f32 %v3981, %v4002
      %v4021 = vadd.f32 %v3982, %v4002
      %v4022 = vadd.f32 %v3983, %v4002
      %v4023 = vadd.f32 %v3984, %v4002
      %v4024 = vadd.f32 %v3985, %v4002
      %v4025 = vadd.f32 %v3986, %v4002
      %v4026 = vadd.f32 %v3987, %v4002
      %v4027 = vadd.f32 %v3988, %v4002
      %v4028 = vadd.f32 %v3989, %v4002
      %v4029 = vadd.f32 %v3990, %v4002
      %v4030 = vadd.f32 %v3991, %v4002
      %v4031 = vadd.f32 %v3992, %v4002
      %v4032 = vadd.f32 %v3993, %v4002
      %v4033 = vadd.f32 %v3994, %v4002
      %v4034 = vadd.f32 %v3995, %v4002
      %v4035 = vadd.f32 %v3996, %v4002
      %vm4036 = vcmp.gt.f32.partialorder %v4004, 0.0
      %vm4037 = vcmp.gt.f32.partialorder %v4005, 0.0
      %vm4038 = vcmp.gt.f32.partialorder %v4006, 0.0
      %vm4039 = vcmp.gt.f32.partialorder %v4007, 0.0
      %vm4040 = vcmp.gt.f32.partialorder %v4008, 0.0
      %vm4041 = vcmp.gt.f32.partialorder %v4009, 0.0
      %vm4042 = vcmp.gt.f32.partialorder %v4010, 0.0
      %vm4043 = vcmp.gt.f32.partialorder %v4011, 0.0
      %vm4044 = vcmp.gt.f32.partialorder %v4012, 0.0
      %vm4045 = vcmp.gt.f32.partialorder %v4013, 0.0
      %vm4046 = vcmp.gt.f32.partialorder %v4014, 0.0
      %vm4047 = vcmp.gt.f32.partialorder %v4015, 0.0
      %vm4048 = vcmp.gt.f32.partialorder %v4016, 0.0
      %vm4049 = vcmp.gt.f32.partialorder %v4017, 0.0
      %vm4050 = vcmp.gt.f32.partialorder %v4018, 0.0
      %vm4051 = vcmp.gt.f32.partialorder %v4019, 0.0
      %vm4052 = vcmp.gt.f32.partialorder %v4020, 0.0
      %vm4053 = vcmp.gt.f32.partialorder %v4021, 0.0
      %vm4054 = vcmp.gt.f32.partialorder %v4022, 0.0
      %vm4055 = vcmp.gt.f32.partialorder %v4023, 0.0
      %vm4056 = vcmp.gt.f32.partialorder %v4024, 0.0
      %vm4057 = vcmp.gt.f32.partialorder %v4025, 0.0
      %vm4058 = vcmp.gt.f32.partialorder %v4026, 0.0
      %vm4059 = vcmp.gt.f32.partialorder %v4027, 0.0
      %vm4060 = vcmp.gt.f32.partialorder %v4028, 0.0
      %vm4061 = vcmp.gt.f32.partialorder %v4029, 0.0
      %vm4062 = vcmp.gt.f32.partialorder %v4030, 0.0
      %vm4063 = vcmp.gt.f32.partialorder %v4031, 0.0
      %vm4064 = vcmp.gt.f32.partialorder %v4032, 0.0
      %vm4065 = vcmp.gt.f32.partialorder %v4033, 0.0
      %vm4066 = vcmp.gt.f32.partialorder %v4034, 0.0
      %vm4067 = vcmp.gt.f32.partialorder %v4035, 0.0
      %v4068 = vmul.f32 %v4004, 0.0
      %v4069 = vmul.f32 %v4005, 0.0
      %v4070 = vmul.f32 %v4006, 0.0
      %v4071 = vmul.f32 %v4007, 0.0
      %v4072 = vmul.f32 %v4008, 0.0
      %v4073 = vmul.f32 %v4009, 0.0
      %v4074 = vmul.f32 %v4010, 0.0
      %v4075 = vmul.f32 %v4011, 0.0
      %v4076 = vmul.f32 %v4012, 0.0
      %v4077 = vmul.f32 %v4013, 0.0
      %v4078 = vmul.f32 %v4014, 0.0
      %v4079 = vmul.f32 %v4015, 0.0
      %v4080 = vmul.f32 %v4016, 0.0
      %v4081 = vmul.f32 %v4017, 0.0
      %v4082 = vmul.f32 %v4018, 0.0
      %v4083 = vmul.f32 %v4019, 0.0
      %v4084 = vmul.f32 %v4020, 0.0
      %v4085 = vmul.f32 %v4021, 0.0
      %v4086 = vmul.f32 %v4022, 0.0
      %v4087 = vmul.f32 %v4023, 0.0
      %v4088 = vmul.f32 %v4024, 0.0
      %v4089 = vmul.f32 %v4025, 0.0
      %v4090 = vmul.f32 %v4026, 0.0
      %v4091 = vmul.f32 %v4027, 0.0
      %v4092 = vmul.f32 %v4028, 0.0
      %v4093 = vmul.f32 %v4029, 0.0
      %v4094 = vmul.f32 %v4030, 0.0
      %v4095 = vmul.f32 %v4031, 0.0
      %v4096 = vmul.f32 %v4032, 0.0
      %v4097 = vmul.f32 %v4033, 0.0
      %v4098 = vmul.f32 %v4034, 0.0
      %v4099 = vmul.f32 %v4035, 0.0
      %v4100 = vsel %vm4036, %v4004, %v4068
      %v4101 = vsel %vm4037, %v4005, %v4069
      %v4102 = vsel %vm4038, %v4006, %v4070
      %v4103 = vsel %vm4039, %v4007, %v4071
      %v4104 = vsel %vm4040, %v4008, %v4072
      %v4105 = vsel %vm4041, %v4009, %v4073
      %v4106 = vsel %vm4042, %v4010, %v4074
      %v4107 = vsel %vm4043, %v4011, %v4075
      %v4108 = vsel %vm4044, %v4012, %v4076
      %v4109 = vsel %vm4045, %v4013, %v4077
      %v4110 = vsel %vm4046, %v4014, %v4078
      %v4111 = vsel %vm4047, %v4015, %v4079
      %v4112 = vsel %vm4048, %v4016, %v4080
      %v4113 = vsel %vm4049, %v4017, %v4081
      %v4114 = vsel %vm4050, %v4018, %v4082
      %v4115 = vsel %vm4051, %v4019, %v4083
      %v4116 = vsel %vm4052, %v4020, %v4084
      %v4117 = vsel %vm4053, %v4021, %v4085
      %v4118 = vsel %vm4054, %v4022, %v4086
      %v4119 = vsel %vm4055, %v4023, %v4087
      %v4120 = vsel %vm4056, %v4024, %v4088
      %v4121 = vsel %vm4057, %v4025, %v4089
      %v4122 = vsel %vm4058, %v4026, %v4090
      %v4123 = vsel %vm4059, %v4027, %v4091
      %v4124 = vsel %vm4060, %v4028, %v4092
      %v4125 = vsel %vm4061, %v4029, %v4093
      %v4126 = vsel %vm4062, %v4030, %v4094
      %v4127 = vsel %vm4063, %v4031, %v4095
      %v4128 = vsel %vm4064, %v4032, %v4096
      %v4129 = vsel %vm4065, %v4033, %v4097
      %v4130 = vsel %vm4066, %v4034, %v4098
      %v4131 = vsel %vm4067, %v4035, %v4099
      %v4132 = vpack.c.bf16 %v4101, %v4100
      %v4133 = vpack.c.bf16 %v4103, %v4102
      %v4134 = vpack.c.bf16 %v4105, %v4104
      %v4135 = vpack.c.bf16 %v4107, %v4106
      %v4136 = vpack.c.bf16 %v4109, %v4108
      %v4137 = vpack.c.bf16 %v4111, %v4110
      %v4138 = vpack.c.bf16 %v4113, %v4112
      %v4139 = vpack.c.bf16 %v4115, %v4114
      %v4140 = vpack.c.bf16 %v4117, %v4116
      %v4141 = vpack.c.bf16 %v4119, %v4118
      %v4142 = vpack.c.bf16 %v4121, %v4120
      %v4143 = vpack.c.bf16 %v4123, %v4122
      %v4144 = vpack.c.bf16 %v4125, %v4124
      %v4145 = vpack.c.bf16 %v4127, %v4126
      %v4146 = vpack.c.bf16 %v4129, %v4128
      %v4147 = vpack.c.bf16 %v4131, %v4130
      %v4164 = vunpack.c.l.b16 %v4132
      %v4165 = vunpack.c.h.b16 %v4132
      %v4166 = vunpack.c.l.b16 %v4133
      %v4167 = vunpack.c.h.b16 %v4133
      %v4168 = vunpack.c.l.b16 %v4134
      %v4169 = vunpack.c.h.b16 %v4134
      %v4170 = vunpack.c.l.b16 %v4135
      %v4171 = vunpack.c.h.b16 %v4135
      %v4172 = vunpack.c.l.b16 %v4136
      %v4173 = vunpack.c.h.b16 %v4136
      %v4174 = vunpack.c.l.b16 %v4137
      %v4175 = vunpack.c.h.b16 %v4137
      %v4176 = vunpack.c.l.b16 %v4138
      %v4177 = vunpack.c.h.b16 %v4138
      %v4178 = vunpack.c.l.b16 %v4139
      %v4179 = vunpack.c.h.b16 %v4139
      %v4180 = vunpack.c.l.b16 %v4140
      %v4181 = vunpack.c.h.b16 %v4140
      %v4182 = vunpack.c.l.b16 %v4141
      %v4183 = vunpack.c.h.b16 %v4141
      %v4184 = vunpack.c.l.b16 %v4142
      %v4185 = vunpack.c.h.b16 %v4142
      %v4186 = vunpack.c.l.b16 %v4143
      %v4187 = vunpack.c.h.b16 %v4143
      %v4188 = vunpack.c.l.b16 %v4144
      %v4189 = vunpack.c.h.b16 %v4144
      %v4190 = vunpack.c.l.b16 %v4145
      %v4191 = vunpack.c.h.b16 %v4145
      %v4192 = vunpack.c.l.b16 %v4146
      %v4193 = vunpack.c.h.b16 %v4146
      %v4194 = vunpack.c.l.b16 %v4147
      %v4195 = vunpack.c.h.b16 %v4147
      %v4196 = vpack.c.b16 %v4164, %v4164
      %v4197 = vpack.c.b16 %v4165, %v4165
      %v4198 = vpack.c.b16 %v4166, %v4166
      %v4199 = vpack.c.b16 %v4167, %v4167
      %v4200 = vpack.c.b16 %v4168, %v4168
      %v4201 = vpack.c.b16 %v4169, %v4169
      %v4202 = vpack.c.b16 %v4170, %v4170
      %v4203 = vpack.c.b16 %v4171, %v4171
      %v4204 = vpack.c.b16 %v4172, %v4172
      %v4205 = vpack.c.b16 %v4173, %v4173
      %v4206 = vpack.c.b16 %v4174, %v4174
      %v4207 = vpack.c.b16 %v4175, %v4175
      %v4208 = vpack.c.b16 %v4176, %v4176
      %v4209 = vpack.c.b16 %v4177, %v4177
      %v4210 = vpack.c.b16 %v4178, %v4178
      %v4211 = vpack.c.b16 %v4179, %v4179
      %v4212 = vpack.c.b16 %v4180, %v4180
      %v4213 = vpack.c.b16 %v4181, %v4181
      %v4214 = vpack.c.b16 %v4182, %v4182
      %v4215 = vpack.c.b16 %v4183, %v4183
      %v4216 = vpack.c.b16 %v4184, %v4184
      %v4217 = vpack.c.b16 %v4185, %v4185
      %v4218 = vpack.c.b16 %v4186, %v4186
      %v4219 = vpack.c.b16 %v4187, %v4187
      %v4220 = vpack.c.b16 %v4188, %v4188
      %v4221 = vpack.c.b16 %v4189, %v4189
      %v4222 = vpack.c.b16 %v4190, %v4190
      %v4223 = vpack.c.b16 %v4191, %v4191
      %v4224 = vpack.c.b16 %v4192, %v4192
      %v4225 = vpack.c.b16 %v4193, %v4193
      %v4226 = vpack.c.b16 %v4194, %v4194
      %v4227 = vpack.c.b16 %v4195, %v4195
      %4260 = vst [vmem:[%s251] sm:$0xf] %v4196
      %4261 = vst [vmem:[%s251 + $0x4] sm:$0xf] %v4197
      %4262 = vst [vmem:[%s251 + $0x8] sm:$0xf] %v4198
      %4263 = vst [vmem:[%s251 + $0xc] sm:$0xf] %v4199
      %4264 = vst [vmem:[%s251 + $0x10] sm:$0xf] %v4200
      %4265 = vst [vmem:[%s251 + $0x14] sm:$0xf] %v4201
      %4266 = vst [vmem:[%s251 + $0x18] sm:$0xf] %v4202
      %4267 = vst [vmem:[%s251 + $0x1c] sm:$0xf] %v4203
      %4268 = vst [vmem:[%s251 + $0x20] sm:$0xf] %v4204
      %4269 = vst [vmem:[%s251 + $0x24] sm:$0xf] %v4205
      %4270 = vst [vmem:[%s251 + $0x28] sm:$0xf] %v4206
      %4271 = vst [vmem:[%s251 + $0x2c] sm:$0xf] %v4207
      %4272 = vst [vmem:[%s251 + $0x30] sm:$0xf] %v4208
      %4273 = vst [vmem:[%s251 + $0x34] sm:$0xf] %v4209
      %4274 = vst [vmem:[%s251 + $0x38] sm:$0xf] %v4210
      %4275 = vst [vmem:[%s251 + $0x3c] sm:$0xf] %v4211
      %4276 = vst [vmem:[%s251 + $0x40] sm:$0xf] %v4212
      %4277 = vst [vmem:[%s251 + $0x44] sm:$0xf] %v4213
      %4278 = vst [vmem:[%s251 + $0x48] sm:$0xf] %v4214
      %4279 = vst [vmem:[%s251 + $0x4c] sm:$0xf] %v4215
      %4280 = vst [vmem:[%s251 + $0x50] sm:$0xf] %v4216
      %4281 = vst [vmem:[%s251 + $0x54] sm:$0xf] %v4217
      %4282 = vst [vmem:[%s251 + $0x58] sm:$0xf] %v4218
      %4283 = vst [vmem:[%s251 + $0x5c] sm:$0xf] %v4219
      %4284 = vst [vmem:[%s251 + $0x60] sm:$0xf] %v4220
      %4285 = vst [vmem:[%s251 + $0x64] sm:$0xf] %v4221
      %4286 = vst [vmem:[%s251 + $0x68] sm:$0xf] %v4222
      %4287 = vst [vmem:[%s251 + $0x6c] sm:$0xf] %v4223
      %4288 = vst [vmem:[%s251 + $0x70] sm:$0xf] %v4224
      %4289 = vst [vmem:[%s251 + $0x74] sm:$0xf] %v4225
      %4290 = vst [vmem:[%s251 + $0x78] sm:$0xf] %v4226
      %4291 = vst [vmem:[%s251 + $0x7c] sm:$0xf] %v4227
      %p4292 = scmp.lt.s32.totalorder %s17, 1
      %s4293 = scalar_select %p4292, %s17, 1
      %s4294 = smul.addr %s4293, 32
      %s4295 = smul.addr %s4294, 4
      %s4296 = scalar_lea.vmem %s6, %s4295
      // Predicated region
      $region45: #{wide_basic_forward.2} parent=43 // pred_check
        %p4297 = pneg %p166
      $region46: #{wide_basic_forward.2} parent=43 // pred_check_branch
        %4299 = sbr.rel (%p4297) target = $region48
      $region47: #{wide_basic_forward.2} parent=43 // pred_region
        _
      $region48: #{wide_basic_forward.2} parent=43 // pred_fallthru
        _
    $region44: #{wide_basic_forward.2} parent=5 // pred_fallthru
      _
    %p4300 = scmp.le.s32.totalorder 2, %s12
    // Predicated region
    $region49: #{wide_basic_forward.2} parent=5 // pred_check
      %p4301 = pneg %p4300
    $region50: #{wide_basic_forward.2} parent=5 // pred_check_branch
      %4303 = sbr.rel (%p4301) target = $region52
    $region51: #{wide_basic_forward.2} parent=5 // pred_region
      %s4304 = ssub.s32 %s12, 2
      // Predicated region
      $region53: #{wide_basic_forward.2} parent=51 // pred_check
        %p4305 = pneg %p172
      $region54: #{wide_basic_forward.2} parent=51 // pred_check_branch
        %4307 = sbr.rel (%p4305) target = $region56
      $region55: #{wide_basic_forward.2} parent=51 // pred_region
        %p4308 = scmp.lt.s32.totalorder %s18, 1
        %s4309 = scalar_select %p4308, %s18, 1
        %s4310 = smul.addr %s4309, 32
        %s4311 = smul.addr %s4310, 4
        %s4312 = scalar_lea.vmem %s6, %s4311
      $region56: #{wide_basic_forward.2} parent=51 // pred_fallthru
        _
    $region52: #{wide_basic_forward.2} parent=5 // pred_fallthru
      _
  $region6: #{wide_basic_forward.2} parent=0 // loop_footer
    %s16 = sadd.s32 1, %s12
  $region7: #{wide_basic_forward.2} parent=0 // loop_footer_branch
    %11 = sbr.rel target = $region3
  $region8: #{wide_basic_forward.2} parent=0 // loop_exit
    _

</llo_original>
